<compile_context>
chip_gen: v7x
topology: tpu7x:2x2x1
jax: 0.10.0
libtpu: 0.0.40
codegen_flags: <defaults>
</compile_context>

<pallas_src>
import numpy as np
import jax
import jax.numpy as jnp
from jax import lax
from jax.experimental import pallas as pl
from jax.experimental.pallas import tpu as pltpu

# ----------------------------- configuration -----------------------------
B = 8                    # args.batch_size (must equal the actual batch)
C, H, W = 3, 8, 8        # small synthetic images
IN_FEAT = C * H * W
HIDDEN = 32              # backbone feature dim (stand-in)
MLP = 64                 # mlp_dim
DIM = 16                 # feature dim
TOPK = 2                 # memory-bank neighbours
BANK = 32                # bank_size
T_SOFT = 1.0             # self.T
TEMPERATURE = 0.5        # args.temperature (hard_contrastive)
A_PARAM = 1.0            # args.a
B_PARAM = 0.1            # args.b
AA = 0.5                 # args.aa
M_MOM = 0.99             # args.queue_momentum


def _vmem():
    return pl.BlockSpec(memory_space=pltpu.MemorySpace.VMEM)


def _smem():
    return pl.BlockSpec(memory_space=pltpu.MemorySpace.SMEM)


# ------------------------- in-kernel helpers -------------------------
def _l2n(x):
    # F.normalize(dim=1): x / max(||x||, 1e-12)   (rsqrt -> EUP slot)
    ss = jnp.sum(x * x, axis=-1, keepdims=True)
    return x * lax.rsqrt(jnp.maximum(ss, 1e-24))


def _dot_t(a, b):
    # a @ b.T without materializing a transpose (contract both on the last axis)
    return lax.dot_general(a, b, (((1,), (1,)), ((), ())),
                           preferred_element_type=jnp.float32)


def _rowdot(a, b):
    # einsum('bd,bd->b')[:, None]
    return jnp.sum(a * b, axis=-1, keepdims=True)


def _uniform(shape, seed, salt):
    # Counter-based hash PRNG: plain int32/uint32 VPU ops only (no pltpu.prng_*,
    # which lacks an interpret-mode lowering).  Returns uniforms in [0, 1).
    r = lax.broadcasted_iota(jnp.int32, shape, 0)
    c = lax.broadcasted_iota(jnp.int32, shape, 1)
    x = (r * shape[-1] + c).astype(jnp.uint32)
    x = x + seed.astype(jnp.uint32) * jnp.uint32(2654435761)
    x = x + jnp.uint32((salt * 0x9E3779B1) & 0xFFFFFFFF)
    x = x ^ (x >> jnp.uint32(16))
    x = x * jnp.uint32(0x7FEB352D)
    x = x ^ (x >> jnp.uint32(15))
    x = x * jnp.uint32(0x846CA68B)
    x = x ^ (x >> jnp.uint32(16))
    # top 24 bits -> float in [0, 1)
    return (x >> jnp.uint32(8)).astype(jnp.int32).astype(jnp.float32) * (1.0 / 16777216.0)


# ============================ the fused PSM forward kernel ============================
def _psm_kernel(seed_ref, x_ref, bank_ref, w0s_ref, w1s_ref, w2s_ref,
                pw1_ref, pw2_ref, gb_ref, out_ref):
    seed = seed_ref[0]
    x = x_ref[...]                                   # (2B, IN_FEAT) = [x1f ; x2f]

    # ---- unpack packed weight slabs ----
    gb = gb_ref[...]                                 # (8, MLP): [eg, eb, pg, pb, mg, mb, 0, 0]
    eg, ebta = gb[0:1], gb[1:2]
    pg, pbta = gb[2:3], gb[3:4]
    mg0, mbta0 = gb[4:5], gb[5:6]

    # momentum EMA fused in-kernel: p_m <- m * p_m + (1 - m) * p_b
    # TODO(synk): the updated momentum state is used for this forward but not
    #             persisted across steps (reference mutates it in place).
    bw0, bw1, bw2 = w0s_ref[0], w1s_ref[0], w2s_ref[0]
    mw0 = M_MOM * w0s_ref[1] + (1.0 - M_MOM) * bw0
    mw1 = M_MOM * w1s_ref[1] + (1.0 - M_MOM) * bw1
    mw2 = M_MOM * w2s_ref[1] + (1.0 - M_MOM) * bw2
    mg = M_MOM * mg0 + (1.0 - M_MOM) * eg
    mbt = M_MOM * mbta0 + (1.0 - M_MOM) * ebta

    # per-view row indicators (view-1 rows [0,B), view-2 rows [B,2B)) — no slicing/concat
    vt = (lax.broadcasted_iota(jnp.int32, (2 * B, 1), 0) < B).astype(jnp.float32)
    vb = 1.0 - vt
    inv_b = 1.0 / float(B)

    def bn_per_view(h, g, b, relu):
        # training-mode BatchNorm1d with per-view statistics, matching the
        # reference's separate encoder(x1)/encoder(x2)/predictor(.) calls.
        def stats(w):
            mu = jnp.sum(h * w, axis=0, keepdims=True) * inv_b
            var = jnp.sum(((h - mu) ** 2) * w, axis=0, keepdims=True) * inv_b
            return mu, var
        mu_t, var_t = stats(vt)
        mu_b, var_b = stats(vb)
        mu = vt * mu_t + vb * mu_b
        var = vt * var_t + vb * var_b
        y = (h - mu) * lax.rsqrt(var + 1e-5)
        if g is not None:
            y = y * g + b
        if relu:
            y = jnp.maximum(y, 0.0)
        return y

    def mlp2(h, w1, g, b, w2):
        # Linear -> BN -> ReLU -> Linear -> BN(affine=False)
        h = jnp.dot(h, w1, preferred_element_type=jnp.float32)
        h = bn_per_view(h, g, b, relu=True)
        h = jnp.dot(h, w2, preferred_element_type=jnp.float32)
        return bn_per_view(h, None, None, relu=False)

    # ---- base encoder (backbone stand-in + projector), predictor, momentum encoder ----
    # TODO(synk): the real backbone is a torchvision-style model; a flatten+linear stand-in is used.
    q_pre = mlp2(jnp.dot(x, bw0, preferred_element_type=jnp.float32), bw1, eg, ebta, bw2)
    q = mlp2(q_pre, pw1_ref[...], pg, pbta, pw2_ref[...])
    k_ = mlp2(jnp.dot(x, mw0, preferred_element_type=jnp.float32), mw1, mg, mbt, mw2)

    # ---- memory bank: normalized similarity + top-2 NN via one-hot matmuls ----
    # TODO(synk): the stateful ring-buffer bank update (update=True) is not modeled;
    #             for realistic BANK sizes tile this over BANK column blocks (v7x VMEM).
    bank = bank_ref[...]
    sim = _dot_t(_l2n(k_), _l2n(bank))               # (2B, BANK)
    col = lax.broadcasted_iota(jnp.int32, sim.shape, 1)

    def top1_onehot(s):
        m = jnp.max(s, axis=-1, keepdims=True)
        first = jnp.min(jnp.where(s >= m, col, BANK), axis=-1, keepdims=True)
        return (col == first).astype(jnp.float32)

    oh1 = top1_onehot(sim)
    oh2 = top1_onehot(jnp.where(oh1 > 0.0, -1e30, sim))
    nn1 = jnp.dot(oh1, bank, preferred_element_type=jnp.float32)   # unnormalized bank rows
    nn2 = jnp.dot(oh2, bank, preferred_element_type=jnp.float32)

    # ---- constant (B,B) masks built in-kernel from iota (no extra inputs) ----
    rr = lax.broadcasted_iota(jnp.int32, (B, B), 0)
    cc = lax.broadcasted_iota(jnp.int32, (B, B), 1)
    eye = (rr == cc).astype(jnp.float32)
    offdiag = 1.0 - eye                              # negative mask for every (B,B) block
    att_m = (eye - 1.0) * 999.0                      # 0 on diag, -999 off-diag

    # per-view slices (sublane-aligned offsets 0 / 8)
    q1, q2 = q[:B], q[B:]
    qp1, qp2 = q_pre[:B], q_pre[B:]
    k1, k2 = k_[:B], k_[B:]
    n11, n12 = nn1[:B], nn1[B:]
    n21, n22 = nn2[:B], nn2[B:]

    # ---------------- hard_contrastive (both calls), block form ----------------
    def hard_one(o1, o2, salt):
        fq, fk = _l2n(o1), _l2n(o2)
        lp = _rowdot(o1, o2)                         # logits_pos       (B,1)
        lpt = _rowdot(fq, fk)                        # logits_pos_true  (B,1)

        def ng(s_un, s_n, slt):
            # Bernoulli rejection sampling on the (unnormalized) negatives, then
            # exp of the selected (normalized) negatives, masked row-sum.
            x1 = s_un - lp - B_PARAM
            # TODO(synk): reference repeats logits_pos to width 2*256-2 (only valid
            #             for B==256); broadcasting gives the equivalent semantics.
            p = jnp.clip(jnp.exp(-A_PARAM * x1 * x1), 0.0, 0.999)
            sel = (_uniform((B, B), seed, slt) < p).astype(jnp.float32)
            # TODO(synk): reference drops entries via exact float check exp(x5/T)==1.0;
            #             masking with `sel` is the numerically robust equivalent.
            x55 = jnp.exp(s_n * sel / TEMPERATURE) * sel
            return jnp.sum(x55 * offdiag, axis=-1, keepdims=True)

        # logits_neg / logits_neg_true as a 2x2 block of (B,B) contractions (no concats)
        ng_top = ng(_dot_t(o1, o1), _dot_t(fq, fq), salt + 0) \
               + ng(_dot_t(o1, o2), _dot_t(fq, fk), salt + 1)
        ng_bot = ng(_dot_t(o2, o1), _dot_t(fk, fq), salt + 2) \
               + ng(_dot_t(o2, o2), _dot_t(fk, fk), salt + 3)

        # Reference: loss = (-log(pos / (pos + Ng))).mean() with pos (2B,1) and Ng (2B,)
        # -> PyTorch broadcasts to a (2B,2B) matrix; reproduce that exactly.
        pe = jnp.exp(lpt / TEMPERATURE)                                   # (B,1)
        ngt_row = jnp.sum(ng_top * eye, axis=0, keepdims=True)            # (1,B) transpose-free
        ngb_row = jnp.sum(ng_bot * eye, axis=0, keepdims=True)            # (1,B)
        cross = jnp.sum(jnp.log(pe + ngt_row)) + jnp.sum(jnp.log(pe + ngb_row))
        total = 2.0 * cross - 4.0 * float(B) * jnp.sum(lpt / TEMPERATURE)
        return total / float(4 * B * B)

    l_hard = hard_one(q1, k2, 0) + hard_one(q2, k1, 4)

    # ---------------- soft_constrastive (both calls), block form ----------------
    def soft_one(qv, qpv, outv, nn1v, nn2v, salt):
        qn, qpn = _l2n(qv), _l2n(qpv)
        outn, n1n, n2n = _l2n(outv), _l2n(nn1v), _l2n(nn2v)
        # pospro (positive logits) = diagonals of the [self | nn-0 | nn-1] blocks
        d0 = _rowdot(qn, outn)                       # also `pos` of the reference
        d1 = _rowdot(qn, n1n)
        d2 = _rowdot(qn, n2n)
        pos = d0

        ng_sum = jnp.zeros((B, 1), jnp.float32)
        for idx, cn in enumerate((outn, n1n, n2n)):
            s_blk = _dot_t(qn, cn)                   # logits1 block (B,B)
            x1 = s_blk - pos - B_PARAM
            p = jnp.clip(jnp.exp(-A_PARAM * x1 * x1), 0.0, 0.999)
            sel = (_uniform((B, B), seed, salt + idx) < p).astype(jnp.float32)
            x55 = jnp.exp(s_blk * sel / T_SOFT) * sel
            ng_sum = ng_sum + jnp.sum(x55 * offdiag, axis=-1, keepdims=True)

        # att_clc: masked softmax over the 2B neighbour columns; with threshold=True
        # the labels are binarized (strictly-positive softmax -> effectively all ones).
        a1 = _dot_t(qpn, n1n) + att_m
        a2 = _dot_t(qpn, n2n) + att_m
        mx = jnp.maximum(jnp.max(a1, axis=-1, keepdims=True),
                         jnp.max(a2, axis=-1, keepdims=True))
        e1, e2 = jnp.exp(a1 - mx), jnp.exp(a2 - mx)
        denom = jnp.sum(e1, axis=-1, keepdims=True) + jnp.sum(e2, axis=-1, keepdims=True)
        lab1 = jnp.sum(e1 * eye, axis=-1, keepdims=True) / denom
        lab2 = jnp.sum(e2 * eye, axis=-1, keepdims=True) / denom
        l1b = (lab1 > 0.0).astype(jnp.float32)       # labelsnew (threshold=True path)
        l2b = (lab2 > 0.0).astype(jnp.float32)

        pos1 = jnp.exp(d0 / T_SOFT) + l1b * jnp.exp(d1 / T_SOFT) + l2b * jnp.exp(d2 / T_SOFT)
        logz = jnp.log(pos1 + ng_sum)
        row = (1.0 + l1b + l2b) * logz - (d0 + l1b * d1 + l2b * d2) / T_SOFT
        return jnp.sum(row) / float(B)

    l_soft = soft_one(q1, qp1, k2, n12, n22, 8) + soft_one(q2, qp2, k1, n11, n21, 11)

    # final combine in-kernel; scalar loss goes straight to SMEM
    out_ref[0, 0] = l_soft / 2.0 + AA * (l_hard / 2.0)


# ============================ host-side wrappers ============================
def _psm_call(params, bank, x, seed):
    # TODO(synk): at realistic B/BANK add a grid + dimension_semantics (2nd TC on v7x)
    #             and bf16 MXU operands on v6e/v7x; unnecessary at these tiny sizes.
    return pl.pallas_call(
        _psm_kernel,
        out_shape=jax.ShapeDtypeStruct((1, 1), jnp.float32),
        in_specs=[_smem()] + [_vmem()] * 8,
        out_specs=_smem(),
    )(seed, x, bank, params['w0s'], params['w1s'], params['w2s'],
      params['pw1'], params['pw2'], params['gb'])


@jax.jit
def _psm_forward_jit(params, bank, x1, x2, seed):
    # both views batched; NCHW flattened row-major to feature-last (lane-dense)
    x = jnp.concatenate([x1.reshape(B, -1), x2.reshape(B, -1)], axis=0).astype(jnp.float32)
    out = _psm_call(params, bank.astype(jnp.float32), x, seed)
    return out[0, 0]


def psm_forward(params, bank, x1, x2, seed):
    return _psm_forward_jit(params, bank, x1, x2, seed), TOPK


# ----------------------------- parameter init (packed layout) -----------------------------
def init_params(key):
    ks = jax.random.split(key, 5)

    def w(k, shape, fan_in):
        return (jax.random.normal(k, shape, dtype=jnp.float32) /
                np.sqrt(float(fan_in))).astype(jnp.float32)

    enc_w0 = w(ks[0], (IN_FEAT, HIDDEN), IN_FEAT)    # backbone stand-in
    enc_w1 = w(ks[1], (HIDDEN, MLP), HIDDEN)         # projector fc layer 0
    enc_w2 = w(ks[2], (MLP, DIM), MLP)               # projector fc layer 1 (BN affine=False)
    pred_w1 = w(ks[3], (DIM, MLP), DIM)              # predictor
    pred_w2 = w(ks[4], (MLP, DIM), MLP)

    # BN gamma/beta slab rows: [enc_g, enc_b, pred_g, pred_b, mom_g, mom_b, pad, pad]
    gb = jnp.zeros((8, MLP), jnp.float32)
    gb = gb.at[0].set(1.0).at[2].set(1.0).at[4].set(1.0)

    # momentum encoder initialized as a copy of the base encoder ([base, momentum] stacks)
    return {
        'w0s': jnp.stack([enc_w0, enc_w0]),
        'w1s': jnp.stack([enc_w1, enc_w1]),
        'w2s': jnp.stack([enc_w2, enc_w2]),
        'pw1': pred_w1,
        'pw2': pred_w2,
        'gb': gb,
    }


if __name__ == "__main__":
    key = jax.random.PRNGKey(0)
    kp, kb, kx1, kx2, ks = jax.random.split(key, 5)

    params = init_params(kp)
    bank = jax.random.normal(kb, (BANK, DIM), dtype=jnp.float32)

    x1 = jax.random.normal(kx1, (B, C, H, W), dtype=jnp.float32)   # NCHW
    x2 = jax.random.normal(kx2, (B, C, H, W), dtype=jnp.float32)
    seed = jax.random.randint(ks, (1,), 0, np.iinfo(np.int32).max, dtype=jnp.int32)

    loss, topk = psm_forward(params, bank, x1, x2, seed)
    loss = jax.block_until_ready(loss)
    assert np.isfinite(float(loss)), "loss is not finite"
    print("KERNEL_OK")
</pallas_src>

<mosaic_0001>
module attributes {stable_mosaic.version = 11 : i64} {
  func.func @_psm_kernel(%arg0: memref<1xi32, #tpu.memory_space<smem>>, %arg1: memref<16x192xf32, #tpu.memory_space<vmem>>, %arg2: memref<32x16xf32, #tpu.memory_space<vmem>>, %arg3: memref<2x192x32xf32, #tpu.memory_space<vmem>>, %arg4: memref<2x32x64xf32, #tpu.memory_space<vmem>>, %arg5: memref<2x64x16xf32, #tpu.memory_space<vmem>>, %arg6: memref<16x64xf32, #tpu.memory_space<vmem>>, %arg7: memref<64x16xf32, #tpu.memory_space<vmem>>, %arg8: memref<8x64xf32, #tpu.memory_space<vmem>>, %arg9: memref<1x1xf32, #tpu.memory_space<smem>>) attributes {dimension_semantics = [], scalar_prefetch = 0 : i64, scratch_operands = 0 : i64, tpu.core_type = #tpu.core_type<tc>} {
    %c0 = arith.constant 0 : index
    %0 = memref.load %arg0[%c0] : memref<1xi32, #tpu.memory_space<smem>>
    %c0_0 = arith.constant 0 : index
    %c0_1 = arith.constant 0 : index
    %1 = vector.load %arg1[%c0_0, %c0_1] : memref<16x192xf32, #tpu.memory_space<vmem>>, vector<16x192xf32>
    %c0_2 = arith.constant 0 : index
    %c0_3 = arith.constant 0 : index
    %2 = vector.load %arg8[%c0_2, %c0_3] : memref<8x64xf32, #tpu.memory_space<vmem>>, vector<8x64xf32>
    %3 = vector.extract_strided_slice %2 {offsets = [0, 0], sizes = [1, 64], strides = [1, 1]} : vector<8x64xf32> to vector<1x64xf32>
    %4 = vector.extract_strided_slice %2 {offsets = [1, 0], sizes = [1, 64], strides = [1, 1]} : vector<8x64xf32> to vector<1x64xf32>
    %5 = vector.extract_strided_slice %2 {offsets = [2, 0], sizes = [1, 64], strides = [1, 1]} : vector<8x64xf32> to vector<1x64xf32>
    %6 = vector.extract_strided_slice %2 {offsets = [3, 0], sizes = [1, 64], strides = [1, 1]} : vector<8x64xf32> to vector<1x64xf32>
    %7 = vector.extract_strided_slice %2 {offsets = [4, 0], sizes = [1, 64], strides = [1, 1]} : vector<8x64xf32> to vector<1x64xf32>
    %8 = vector.extract_strided_slice %2 {offsets = [5, 0], sizes = [1, 64], strides = [1, 1]} : vector<8x64xf32> to vector<1x64xf32>
    %c0_4 = arith.constant 0 : index
    %c0_5 = arith.constant 0 : index
    %c0_6 = arith.constant 0 : index
    %9 = vector.load %arg3[%c0_4, %c0_5, %c0_6] : memref<2x192x32xf32, #tpu.memory_space<vmem>>, vector<1x192x32xf32>
    %10 = vector.shape_cast %9 : vector<1x192x32xf32> to vector<192x32xf32>
    %c0_7 = arith.constant 0 : index
    %c0_8 = arith.constant 0 : index
    %c0_9 = arith.constant 0 : index
    %11 = vector.load %arg4[%c0_7, %c0_8, %c0_9] : memref<2x32x64xf32, #tpu.memory_space<vmem>>, vector<1x32x64xf32>
    %12 = vector.shape_cast %11 : vector<1x32x64xf32> to vector<32x64xf32>
    %c0_10 = arith.constant 0 : index
    %c0_11 = arith.constant 0 : index
    %c0_12 = arith.constant 0 : index
    %13 = vector.load %arg5[%c0_10, %c0_11, %c0_12] : memref<2x64x16xf32, #tpu.memory_space<vmem>>, vector<1x64x16xf32>
    %14 = vector.shape_cast %13 : vector<1x64x16xf32> to vector<64x16xf32>
    %c1 = arith.constant 1 : index
    %c0_13 = arith.constant 0 : index
    %c0_14 = arith.constant 0 : index
    %15 = vector.load %arg3[%c1, %c0_13, %c0_14] : memref<2x192x32xf32, #tpu.memory_space<vmem>>, vector<1x192x32xf32>
    %16 = vector.shape_cast %15 : vector<1x192x32xf32> to vector<192x32xf32>
    %cst = arith.constant 9.900000e-01 : f32
    %17 = vector.broadcast %cst : f32 to vector<192x32xf32>
    %18 = arith.mulf %17, %16 : vector<192x32xf32>
    %cst_15 = arith.constant 0.00999999977 : f32
    %19 = vector.broadcast %cst_15 : f32 to vector<192x32xf32>
    %20 = arith.mulf %19, %10 : vector<192x32xf32>
    %21 = arith.addf %18, %20 : vector<192x32xf32>
    %c1_16 = arith.constant 1 : index
    %c0_17 = arith.constant 0 : index
    %c0_18 = arith.constant 0 : index
    %22 = vector.load %arg4[%c1_16, %c0_17, %c0_18] : memref<2x32x64xf32, #tpu.memory_space<vmem>>, vector<1x32x64xf32>
    %23 = vector.shape_cast %22 : vector<1x32x64xf32> to vector<32x64xf32>
    %cst_19 = arith.constant 9.900000e-01 : f32
    %24 = vector.broadcast %cst_19 : f32 to vector<32x64xf32>
    %25 = arith.mulf %24, %23 : vector<32x64xf32>
    %cst_20 = arith.constant 0.00999999977 : f32
    %26 = vector.broadcast %cst_20 : f32 to vector<32x64xf32>
    %27 = arith.mulf %26, %12 : vector<32x64xf32>
    %28 = arith.addf %25, %27 : vector<32x64xf32>
    %c1_21 = arith.constant 1 : index
    %c0_22 = arith.constant 0 : index
    %c0_23 = arith.constant 0 : index
    %29 = vector.load %arg5[%c1_21, %c0_22, %c0_23] : memref<2x64x16xf32, #tpu.memory_space<vmem>>, vector<1x64x16xf32>
    %30 = vector.shape_cast %29 : vector<1x64x16xf32> to vector<64x16xf32>
    %cst_24 = arith.constant 9.900000e-01 : f32
    %31 = vector.broadcast %cst_24 : f32 to vector<64x16xf32>
    %32 = arith.mulf %31, %30 : vector<64x16xf32>
    %cst_25 = arith.constant 0.00999999977 : f32
    %33 = vector.broadcast %cst_25 : f32 to vector<64x16xf32>
    %34 = arith.mulf %33, %14 : vector<64x16xf32>
    %35 = arith.addf %32, %34 : vector<64x16xf32>
    %cst_26 = arith.constant 9.900000e-01 : f32
    %36 = vector.broadcast %cst_26 : f32 to vector<1x64xf32>
    %37 = arith.mulf %36, %7 : vector<1x64xf32>
    %cst_27 = arith.constant 0.00999999977 : f32
    %38 = vector.broadcast %cst_27 : f32 to vector<1x64xf32>
    %39 = arith.mulf %38, %3 : vector<1x64xf32>
    %40 = arith.addf %37, %39 : vector<1x64xf32>
    %cst_28 = arith.constant 9.900000e-01 : f32
    %41 = vector.broadcast %cst_28 : f32 to vector<1x64xf32>
    %42 = arith.mulf %41, %8 : vector<1x64xf32>
    %cst_29 = arith.constant 0.00999999977 : f32
    %43 = vector.broadcast %cst_29 : f32 to vector<1x64xf32>
    %44 = arith.mulf %43, %4 : vector<1x64xf32>
    %45 = arith.addf %42, %44 : vector<1x64xf32>
    %46 = tpu.iota {dimensions = array<i32: 0>} : vector<16x1xi32>
    %c8_i32 = arith.constant 8 : i32
    %47 = vector.broadcast %c8_i32 : i32 to vector<16x1xi32>
    %48 = arith.cmpi slt, %46, %47 : vector<16x1xi32>
    %49 = arith.extui %48 : vector<16x1xi1> to vector<16x1xi32>
    %50 = arith.sitofp %49 : vector<16x1xi32> to vector<16x1xf32>
    %cst_30 = arith.constant 1.000000e+00 : f32
    %51 = vector.broadcast %cst_30 : f32 to vector<16x1xf32>
    %52 = arith.subf %51, %50 : vector<16x1xf32>
    %cst_31 = arith.constant dense<0.000000e+00> : vector<16x32xf32>
    %53 = tpu.matmul %1, %10, %cst_31 {dimension_numbers = #tpu.dot_dimension_numbers<[1], [0], [0], [1], [0, 0, 1, 1], [], []>} : vector<16x192xf32>, vector<192x32xf32>, vector<16x32xf32> -> vector<16x32xf32>
    %cst_32 = arith.constant dense<0.000000e+00> : vector<16x64xf32>
    %54 = tpu.matmul %53, %12, %cst_32 {dimension_numbers = #tpu.dot_dimension_numbers<[1], [0], [0], [1], [0, 0, 1, 1], [], []>} : vector<16x32xf32>, vector<32x64xf32>, vector<16x64xf32> -> vector<16x64xf32>
    %55 = vector.broadcast %50 : vector<16x1xf32> to vector<16x64xf32>
    %56 = arith.mulf %54, %55 : vector<16x64xf32>
    %cst_33 = arith.constant dense<0.000000e+00> : vector<64xf32>
    %57 = vector.multi_reduction <add>, %56, %cst_33 [0] : vector<16x64xf32> to vector<64xf32>
    %58 = vector.shape_cast %57 : vector<64xf32> to vector<1x64xf32>
    %cst_34 = arith.constant 1.250000e-01 : f32
    %59 = vector.broadcast %cst_34 : f32 to vector<1x64xf32>
    %60 = arith.mulf %58, %59 : vector<1x64xf32>
    %61 = vector.broadcast %60 : vector<1x64xf32> to vector<16x64xf32>
    %62 = arith.subf %54, %61 : vector<16x64xf32>
    %63 = arith.mulf %62, %62 : vector<16x64xf32>
    %64 = vector.broadcast %50 : vector<16x1xf32> to vector<16x64xf32>
    %65 = arith.mulf %63, %64 : vector<16x64xf32>
    %cst_35 = arith.constant dense<0.000000e+00> : vector<64xf32>
    %66 = vector.multi_reduction <add>, %65, %cst_35 [0] : vector<16x64xf32> to vector<64xf32>
    %67 = vector.shape_cast %66 : vector<64xf32> to vector<1x64xf32>
    %cst_36 = arith.constant 1.250000e-01 : f32
    %68 = vector.broadcast %cst_36 : f32 to vector<1x64xf32>
    %69 = arith.mulf %67, %68 : vector<1x64xf32>
    %70 = vector.broadcast %52 : vector<16x1xf32> to vector<16x64xf32>
    %71 = arith.mulf %54, %70 : vector<16x64xf32>
    %cst_37 = arith.constant dense<0.000000e+00> : vector<64xf32>
    %72 = vector.multi_reduction <add>, %71, %cst_37 [0] : vector<16x64xf32> to vector<64xf32>
    %73 = vector.shape_cast %72 : vector<64xf32> to vector<1x64xf32>
    %cst_38 = arith.constant 1.250000e-01 : f32
    %74 = vector.broadcast %cst_38 : f32 to vector<1x64xf32>
    %75 = arith.mulf %73, %74 : vector<1x64xf32>
    %76 = vector.broadcast %75 : vector<1x64xf32> to vector<16x64xf32>
    %77 = arith.subf %54, %76 : vector<16x64xf32>
    %78 = arith.mulf %77, %77 : vector<16x64xf32>
    %79 = vector.broadcast %52 : vector<16x1xf32> to vector<16x64xf32>
    %80 = arith.mulf %78, %79 : vector<16x64xf32>
    %cst_39 = arith.constant dense<0.000000e+00> : vector<64xf32>
    %81 = vector.multi_reduction <add>, %80, %cst_39 [0] : vector<16x64xf32> to vector<64xf32>
    %82 = vector.shape_cast %81 : vector<64xf32> to vector<1x64xf32>
    %cst_40 = arith.constant 1.250000e-01 : f32
    %83 = vector.broadcast %cst_40 : f32 to vector<1x64xf32>
    %84 = arith.mulf %82, %83 : vector<1x64xf32>
    %85 = vector.broadcast %50 : vector<16x1xf32> to vector<16x64xf32>
    %86 = vector.broadcast %60 : vector<1x64xf32> to vector<16x64xf32>
    %87 = arith.mulf %85, %86 : vector<16x64xf32>
    %88 = vector.broadcast %52 : vector<16x1xf32> to vector<16x64xf32>
    %89 = vector.broadcast %75 : vector<1x64xf32> to vector<16x64xf32>
    %90 = arith.mulf %88, %89 : vector<16x64xf32>
    %91 = arith.addf %87, %90 : vector<16x64xf32>
    %92 = vector.broadcast %50 : vector<16x1xf32> to vector<16x64xf32>
    %93 = vector.broadcast %69 : vector<1x64xf32> to vector<16x64xf32>
    %94 = arith.mulf %92, %93 : vector<16x64xf32>
    %95 = vector.broadcast %52 : vector<16x1xf32> to vector<16x64xf32>
    %96 = vector.broadcast %84 : vector<1x64xf32> to vector<16x64xf32>
    %97 = arith.mulf %95, %96 : vector<16x64xf32>
    %98 = arith.addf %94, %97 : vector<16x64xf32>
    %99 = arith.subf %54, %91 : vector<16x64xf32>
    %cst_41 = arith.constant 9.99999974E-6 : f32
    %100 = vector.broadcast %cst_41 : f32 to vector<16x64xf32>
    %101 = arith.addf %98, %100 : vector<16x64xf32>
    %102 = math.rsqrt %101 : vector<16x64xf32>
    %103 = arith.mulf %99, %102 : vector<16x64xf32>
    %104 = vector.broadcast %3 : vector<1x64xf32> to vector<16x64xf32>
    %105 = arith.mulf %103, %104 : vector<16x64xf32>
    %106 = vector.broadcast %4 : vector<1x64xf32> to vector<16x64xf32>
    %107 = arith.addf %105, %106 : vector<16x64xf32>
    %cst_42 = arith.constant 0.000000e+00 : f32
    %108 = vector.broadcast %cst_42 : f32 to vector<16x64xf32>
    %109 = arith.maximumf %107, %108 : vector<16x64xf32>
    %cst_43 = arith.constant dense<0.000000e+00> : vector<16x16xf32>
    %110 = tpu.matmul %109, %14, %cst_43 {dimension_numbers = #tpu.dot_dimension_numbers<[1], [0], [0], [1], [0, 0, 1, 1], [], []>} : vector<16x64xf32>, vector<64x16xf32>, vector<16x16xf32> -> vector<16x16xf32>
    %111 = vector.broadcast %50 : vector<16x1xf32> to vector<16x16xf32>
    %112 = arith.mulf %110, %111 : vector<16x16xf32>
    %cst_44 = arith.constant dense<0.000000e+00> : vector<16xf32>
    %113 = vector.multi_reduction <add>, %112, %cst_44 [0] : vector<16x16xf32> to vector<16xf32>
    %114 = vector.shape_cast %113 : vector<16xf32> to vector<1x16xf32>
    %cst_45 = arith.constant 1.250000e-01 : f32
    %115 = vector.broadcast %cst_45 : f32 to vector<1x16xf32>
    %116 = arith.mulf %114, %115 : vector<1x16xf32>
    %117 = vector.broadcast %116 : vector<1x16xf32> to vector<16x16xf32>
    %118 = arith.subf %110, %117 : vector<16x16xf32>
    %119 = arith.mulf %118, %118 : vector<16x16xf32>
    %120 = vector.broadcast %50 : vector<16x1xf32> to vector<16x16xf32>
    %121 = arith.mulf %119, %120 : vector<16x16xf32>
    %cst_46 = arith.constant dense<0.000000e+00> : vector<16xf32>
    %122 = vector.multi_reduction <add>, %121, %cst_46 [0] : vector<16x16xf32> to vector<16xf32>
    %123 = vector.shape_cast %122 : vector<16xf32> to vector<1x16xf32>
    %cst_47 = arith.constant 1.250000e-01 : f32
    %124 = vector.broadcast %cst_47 : f32 to vector<1x16xf32>
    %125 = arith.mulf %123, %124 : vector<1x16xf32>
    %126 = vector.broadcast %52 : vector<16x1xf32> to vector<16x16xf32>
    %127 = arith.mulf %110, %126 : vector<16x16xf32>
    %cst_48 = arith.constant dense<0.000000e+00> : vector<16xf32>
    %128 = vector.multi_reduction <add>, %127, %cst_48 [0] : vector<16x16xf32> to vector<16xf32>
    %129 = vector.shape_cast %128 : vector<16xf32> to vector<1x16xf32>
    %cst_49 = arith.constant 1.250000e-01 : f32
    %130 = vector.broadcast %cst_49 : f32 to vector<1x16xf32>
    %131 = arith.mulf %129, %130 : vector<1x16xf32>
    %132 = vector.broadcast %131 : vector<1x16xf32> to vector<16x16xf32>
    %133 = arith.subf %110, %132 : vector<16x16xf32>
    %134 = arith.mulf %133, %133 : vector<16x16xf32>
    %135 = vector.broadcast %52 : vector<16x1xf32> to vector<16x16xf32>
    %136 = arith.mulf %134, %135 : vector<16x16xf32>
    %cst_50 = arith.constant dense<0.000000e+00> : vector<16xf32>
    %137 = vector.multi_reduction <add>, %136, %cst_50 [0] : vector<16x16xf32> to vector<16xf32>
    %138 = vector.shape_cast %137 : vector<16xf32> to vector<1x16xf32>
    %cst_51 = arith.constant 1.250000e-01 : f32
    %139 = vector.broadcast %cst_51 : f32 to vector<1x16xf32>
    %140 = arith.mulf %138, %139 : vector<1x16xf32>
    %141 = vector.broadcast %50 : vector<16x1xf32> to vector<16x16xf32>
    %142 = vector.broadcast %116 : vector<1x16xf32> to vector<16x16xf32>
    %143 = arith.mulf %141, %142 : vector<16x16xf32>
    %144 = vector.broadcast %52 : vector<16x1xf32> to vector<16x16xf32>
    %145 = vector.broadcast %131 : vector<1x16xf32> to vector<16x16xf32>
    %146 = arith.mulf %144, %145 : vector<16x16xf32>
    %147 = arith.addf %143, %146 : vector<16x16xf32>
    %148 = vector.broadcast %50 : vector<16x1xf32> to vector<16x16xf32>
    %149 = vector.broadcast %125 : vector<1x16xf32> to vector<16x16xf32>
    %150 = arith.mulf %148, %149 : vector<16x16xf32>
    %151 = vector.broadcast %52 : vector<16x1xf32> to vector<16x16xf32>
    %152 = vector.broadcast %140 : vector<1x16xf32> to vector<16x16xf32>
    %153 = arith.mulf %151, %152 : vector<16x16xf32>
    %154 = arith.addf %150, %153 : vector<16x16xf32>
    %155 = arith.subf %110, %147 : vector<16x16xf32>
    %cst_52 = arith.constant 9.99999974E-6 : f32
    %156 = vector.broadcast %cst_52 : f32 to vector<16x16xf32>
    %157 = arith.addf %154, %156 : vector<16x16xf32>
    %158 = math.rsqrt %157 : vector<16x16xf32>
    %159 = arith.mulf %155, %158 : vector<16x16xf32>
    %c0_53 = arith.constant 0 : index
    %c0_54 = arith.constant 0 : index
    %160 = vector.load %arg6[%c0_53, %c0_54] : memref<16x64xf32, #tpu.memory_space<vmem>>, vector<16x64xf32>
    %c0_55 = arith.constant 0 : index
    %c0_56 = arith.constant 0 : index
    %161 = vector.load %arg7[%c0_55, %c0_56] : memref<64x16xf32, #tpu.memory_space<vmem>>, vector<64x16xf32>
    %cst_57 = arith.constant dense<0.000000e+00> : vector<16x64xf32>
    %162 = tpu.matmul %159, %160, %cst_57 {dimension_numbers = #tpu.dot_dimension_numbers<[1], [0], [0], [1], [0, 0, 1, 1], [], []>} : vector<16x16xf32>, vector<16x64xf32>, vector<16x64xf32> -> vector<16x64xf32>
    %163 = vector.broadcast %50 : vector<16x1xf32> to vector<16x64xf32>
    %164 = arith.mulf %162, %163 : vector<16x64xf32>
    %cst_58 = arith.constant dense<0.000000e+00> : vector<64xf32>
    %165 = vector.multi_reduction <add>, %164, %cst_58 [0] : vector<16x64xf32> to vector<64xf32>
    %166 = vector.shape_cast %165 : vector<64xf32> to vector<1x64xf32>
    %cst_59 = arith.constant 1.250000e-01 : f32
    %167 = vector.broadcast %cst_59 : f32 to vector<1x64xf32>
    %168 = arith.mulf %166, %167 : vector<1x64xf32>
    %169 = vector.broadcast %168 : vector<1x64xf32> to vector<16x64xf32>
    %170 = arith.subf %162, %169 : vector<16x64xf32>
    %171 = arith.mulf %170, %170 : vector<16x64xf32>
    %172 = vector.broadcast %50 : vector<16x1xf32> to vector<16x64xf32>
    %173 = arith.mulf %171, %172 : vector<16x64xf32>
    %cst_60 = arith.constant dense<0.000000e+00> : vector<64xf32>
    %174 = vector.multi_reduction <add>, %173, %cst_60 [0] : vector<16x64xf32> to vector<64xf32>
    %175 = vector.shape_cast %174 : vector<64xf32> to vector<1x64xf32>
    %cst_61 = arith.constant 1.250000e-01 : f32
    %176 = vector.broadcast %cst_61 : f32 to vector<1x64xf32>
    %177 = arith.mulf %175, %176 : vector<1x64xf32>
    %178 = vector.broadcast %52 : vector<16x1xf32> to vector<16x64xf32>
    %179 = arith.mulf %162, %178 : vector<16x64xf32>
    %cst_62 = arith.constant dense<0.000000e+00> : vector<64xf32>
    %180 = vector.multi_reduction <add>, %179, %cst_62 [0] : vector<16x64xf32> to vector<64xf32>
    %181 = vector.shape_cast %180 : vector<64xf32> to vector<1x64xf32>
    %cst_63 = arith.constant 1.250000e-01 : f32
    %182 = vector.broadcast %cst_63 : f32 to vector<1x64xf32>
    %183 = arith.mulf %181, %182 : vector<1x64xf32>
    %184 = vector.broadcast %183 : vector<1x64xf32> to vector<16x64xf32>
    %185 = arith.subf %162, %184 : vector<16x64xf32>
    %186 = arith.mulf %185, %185 : vector<16x64xf32>
    %187 = vector.broadcast %52 : vector<16x1xf32> to vector<16x64xf32>
    %188 = arith.mulf %186, %187 : vector<16x64xf32>
    %cst_64 = arith.constant dense<0.000000e+00> : vector<64xf32>
    %189 = vector.multi_reduction <add>, %188, %cst_64 [0] : vector<16x64xf32> to vector<64xf32>
    %190 = vector.shape_cast %189 : vector<64xf32> to vector<1x64xf32>
    %cst_65 = arith.constant 1.250000e-01 : f32
    %191 = vector.broadcast %cst_65 : f32 to vector<1x64xf32>
    %192 = arith.mulf %190, %191 : vector<1x64xf32>
    %193 = vector.broadcast %50 : vector<16x1xf32> to vector<16x64xf32>
    %194 = vector.broadcast %168 : vector<1x64xf32> to vector<16x64xf32>
    %195 = arith.mulf %193, %194 : vector<16x64xf32>
    %196 = vector.broadcast %52 : vector<16x1xf32> to vector<16x64xf32>
    %197 = vector.broadcast %183 : vector<1x64xf32> to vector<16x64xf32>
    %198 = arith.mulf %196, %197 : vector<16x64xf32>
    %199 = arith.addf %195, %198 : vector<16x64xf32>
    %200 = vector.broadcast %50 : vector<16x1xf32> to vector<16x64xf32>
    %201 = vector.broadcast %177 : vector<1x64xf32> to vector<16x64xf32>
    %202 = arith.mulf %200, %201 : vector<16x64xf32>
    %203 = vector.broadcast %52 : vector<16x1xf32> to vector<16x64xf32>
    %204 = vector.broadcast %192 : vector<1x64xf32> to vector<16x64xf32>
    %205 = arith.mulf %203, %204 : vector<16x64xf32>
    %206 = arith.addf %202, %205 : vector<16x64xf32>
    %207 = arith.subf %162, %199 : vector<16x64xf32>
    %cst_66 = arith.constant 9.99999974E-6 : f32
    %208 = vector.broadcast %cst_66 : f32 to vector<16x64xf32>
    %209 = arith.addf %206, %208 : vector<16x64xf32>
    %210 = math.rsqrt %209 : vector<16x64xf32>
    %211 = arith.mulf %207, %210 : vector<16x64xf32>
    %212 = vector.broadcast %5 : vector<1x64xf32> to vector<16x64xf32>
    %213 = arith.mulf %211, %212 : vector<16x64xf32>
    %214 = vector.broadcast %6 : vector<1x64xf32> to vector<16x64xf32>
    %215 = arith.addf %213, %214 : vector<16x64xf32>
    %cst_67 = arith.constant 0.000000e+00 : f32
    %216 = vector.broadcast %cst_67 : f32 to vector<16x64xf32>
    %217 = arith.maximumf %215, %216 : vector<16x64xf32>
    %cst_68 = arith.constant dense<0.000000e+00> : vector<16x16xf32>
    %218 = tpu.matmul %217, %161, %cst_68 {dimension_numbers = #tpu.dot_dimension_numbers<[1], [0], [0], [1], [0, 0, 1, 1], [], []>} : vector<16x64xf32>, vector<64x16xf32>, vector<16x16xf32> -> vector<16x16xf32>
    %219 = vector.broadcast %50 : vector<16x1xf32> to vector<16x16xf32>
    %220 = arith.mulf %218, %219 : vector<16x16xf32>
    %cst_69 = arith.constant dense<0.000000e+00> : vector<16xf32>
    %221 = vector.multi_reduction <add>, %220, %cst_69 [0] : vector<16x16xf32> to vector<16xf32>
    %222 = vector.shape_cast %221 : vector<16xf32> to vector<1x16xf32>
    %cst_70 = arith.constant 1.250000e-01 : f32
    %223 = vector.broadcast %cst_70 : f32 to vector<1x16xf32>
    %224 = arith.mulf %222, %223 : vector<1x16xf32>
    %225 = vector.broadcast %224 : vector<1x16xf32> to vector<16x16xf32>
    %226 = arith.subf %218, %225 : vector<16x16xf32>
    %227 = arith.mulf %226, %226 : vector<16x16xf32>
    %228 = vector.broadcast %50 : vector<16x1xf32> to vector<16x16xf32>
    %229 = arith.mulf %227, %228 : vector<16x16xf32>
    %cst_71 = arith.constant dense<0.000000e+00> : vector<16xf32>
    %230 = vector.multi_reduction <add>, %229, %cst_71 [0] : vector<16x16xf32> to vector<16xf32>
    %231 = vector.shape_cast %230 : vector<16xf32> to vector<1x16xf32>
    %cst_72 = arith.constant 1.250000e-01 : f32
    %232 = vector.broadcast %cst_72 : f32 to vector<1x16xf32>
    %233 = arith.mulf %231, %232 : vector<1x16xf32>
    %234 = vector.broadcast %52 : vector<16x1xf32> to vector<16x16xf32>
    %235 = arith.mulf %218, %234 : vector<16x16xf32>
    %cst_73 = arith.constant dense<0.000000e+00> : vector<16xf32>
    %236 = vector.multi_reduction <add>, %235, %cst_73 [0] : vector<16x16xf32> to vector<16xf32>
    %237 = vector.shape_cast %236 : vector<16xf32> to vector<1x16xf32>
    %cst_74 = arith.constant 1.250000e-01 : f32
    %238 = vector.broadcast %cst_74 : f32 to vector<1x16xf32>
    %239 = arith.mulf %237, %238 : vector<1x16xf32>
    %240 = vector.broadcast %239 : vector<1x16xf32> to vector<16x16xf32>
    %241 = arith.subf %218, %240 : vector<16x16xf32>
    %242 = arith.mulf %241, %241 : vector<16x16xf32>
    %243 = vector.broadcast %52 : vector<16x1xf32> to vector<16x16xf32>
    %244 = arith.mulf %242, %243 : vector<16x16xf32>
    %cst_75 = arith.constant dense<0.000000e+00> : vector<16xf32>
    %245 = vector.multi_reduction <add>, %244, %cst_75 [0] : vector<16x16xf32> to vector<16xf32>
    %246 = vector.shape_cast %245 : vector<16xf32> to vector<1x16xf32>
    %cst_76 = arith.constant 1.250000e-01 : f32
    %247 = vector.broadcast %cst_76 : f32 to vector<1x16xf32>
    %248 = arith.mulf %246, %247 : vector<1x16xf32>
    %249 = vector.broadcast %50 : vector<16x1xf32> to vector<16x16xf32>
    %250 = vector.broadcast %224 : vector<1x16xf32> to vector<16x16xf32>
    %251 = arith.mulf %249, %250 : vector<16x16xf32>
    %252 = vector.broadcast %52 : vector<16x1xf32> to vector<16x16xf32>
    %253 = vector.broadcast %239 : vector<1x16xf32> to vector<16x16xf32>
    %254 = arith.mulf %252, %253 : vector<16x16xf32>
    %255 = arith.addf %251, %254 : vector<16x16xf32>
    %256 = vector.broadcast %50 : vector<16x1xf32> to vector<16x16xf32>
    %257 = vector.broadcast %233 : vector<1x16xf32> to vector<16x16xf32>
    %258 = arith.mulf %256, %257 : vector<16x16xf32>
    %259 = vector.broadcast %52 : vector<16x1xf32> to vector<16x16xf32>
    %260 = vector.broadcast %248 : vector<1x16xf32> to vector<16x16xf32>
    %261 = arith.mulf %259, %260 : vector<16x16xf32>
    %262 = arith.addf %258, %261 : vector<16x16xf32>
    %263 = arith.subf %218, %255 : vector<16x16xf32>
    %cst_77 = arith.constant 9.99999974E-6 : f32
    %264 = vector.broadcast %cst_77 : f32 to vector<16x16xf32>
    %265 = arith.addf %262, %264 : vector<16x16xf32>
    %266 = math.rsqrt %265 : vector<16x16xf32>
    %267 = arith.mulf %263, %266 : vector<16x16xf32>
    %cst_78 = arith.constant dense<0.000000e+00> : vector<16x32xf32>
    %268 = tpu.matmul %1, %21, %cst_78 {dimension_numbers = #tpu.dot_dimension_numbers<[1], [0], [0], [1], [0, 0, 1, 1], [], []>} : vector<16x192xf32>, vector<192x32xf32>, vector<16x32xf32> -> vector<16x32xf32>
    %cst_79 = arith.constant dense<0.000000e+00> : vector<16x64xf32>
    %269 = tpu.matmul %268, %28, %cst_79 {dimension_numbers = #tpu.dot_dimension_numbers<[1], [0], [0], [1], [0, 0, 1, 1], [], []>} : vector<16x32xf32>, vector<32x64xf32>, vector<16x64xf32> -> vector<16x64xf32>
    %270 = vector.broadcast %50 : vector<16x1xf32> to vector<16x64xf32>
    %271 = arith.mulf %269, %270 : vector<16x64xf32>
    %cst_80 = arith.constant dense<0.000000e+00> : vector<64xf32>
    %272 = vector.multi_reduction <add>, %271, %cst_80 [0] : vector<16x64xf32> to vector<64xf32>
    %273 = vector.shape_cast %272 : vector<64xf32> to vector<1x64xf32>
    %cst_81 = arith.constant 1.250000e-01 : f32
    %274 = vector.broadcast %cst_81 : f32 to vector<1x64xf32>
    %275 = arith.mulf %273, %274 : vector<1x64xf32>
    %276 = vector.broadcast %275 : vector<1x64xf32> to vector<16x64xf32>
    %277 = arith.subf %269, %276 : vector<16x64xf32>
    %278 = arith.mulf %277, %277 : vector<16x64xf32>
    %279 = vector.broadcast %50 : vector<16x1xf32> to vector<16x64xf32>
    %280 = arith.mulf %278, %279 : vector<16x64xf32>
    %cst_82 = arith.constant dense<0.000000e+00> : vector<64xf32>
    %281 = vector.multi_reduction <add>, %280, %cst_82 [0] : vector<16x64xf32> to vector<64xf32>
    %282 = vector.shape_cast %281 : vector<64xf32> to vector<1x64xf32>
    %cst_83 = arith.constant 1.250000e-01 : f32
    %283 = vector.broadcast %cst_83 : f32 to vector<1x64xf32>
    %284 = arith.mulf %282, %283 : vector<1x64xf32>
    %285 = vector.broadcast %52 : vector<16x1xf32> to vector<16x64xf32>
    %286 = arith.mulf %269, %285 : vector<16x64xf32>
    %cst_84 = arith.constant dense<0.000000e+00> : vector<64xf32>
    %287 = vector.multi_reduction <add>, %286, %cst_84 [0] : vector<16x64xf32> to vector<64xf32>
    %288 = vector.shape_cast %287 : vector<64xf32> to vector<1x64xf32>
    %cst_85 = arith.constant 1.250000e-01 : f32
    %289 = vector.broadcast %cst_85 : f32 to vector<1x64xf32>
    %290 = arith.mulf %288, %289 : vector<1x64xf32>
    %291 = vector.broadcast %290 : vector<1x64xf32> to vector<16x64xf32>
    %292 = arith.subf %269, %291 : vector<16x64xf32>
    %293 = arith.mulf %292, %292 : vector<16x64xf32>
    %294 = vector.broadcast %52 : vector<16x1xf32> to vector<16x64xf32>
    %295 = arith.mulf %293, %294 : vector<16x64xf32>
    %cst_86 = arith.constant dense<0.000000e+00> : vector<64xf32>
    %296 = vector.multi_reduction <add>, %295, %cst_86 [0] : vector<16x64xf32> to vector<64xf32>
    %297 = vector.shape_cast %296 : vector<64xf32> to vector<1x64xf32>
    %cst_87 = arith.constant 1.250000e-01 : f32
    %298 = vector.broadcast %cst_87 : f32 to vector<1x64xf32>
    %299 = arith.mulf %297, %298 : vector<1x64xf32>
    %300 = vector.broadcast %50 : vector<16x1xf32> to vector<16x64xf32>
    %301 = vector.broadcast %275 : vector<1x64xf32> to vector<16x64xf32>
    %302 = arith.mulf %300, %301 : vector<16x64xf32>
    %303 = vector.broadcast %52 : vector<16x1xf32> to vector<16x64xf32>
    %304 = vector.broadcast %290 : vector<1x64xf32> to vector<16x64xf32>
    %305 = arith.mulf %303, %304 : vector<16x64xf32>
    %306 = arith.addf %302, %305 : vector<16x64xf32>
    %307 = vector.broadcast %50 : vector<16x1xf32> to vector<16x64xf32>
    %308 = vector.broadcast %284 : vector<1x64xf32> to vector<16x64xf32>
    %309 = arith.mulf %307, %308 : vector<16x64xf32>
    %310 = vector.broadcast %52 : vector<16x1xf32> to vector<16x64xf32>
    %311 = vector.broadcast %299 : vector<1x64xf32> to vector<16x64xf32>
    %312 = arith.mulf %310, %311 : vector<16x64xf32>
    %313 = arith.addf %309, %312 : vector<16x64xf32>
    %314 = arith.subf %269, %306 : vector<16x64xf32>
    %cst_88 = arith.constant 9.99999974E-6 : f32
    %315 = vector.broadcast %cst_88 : f32 to vector<16x64xf32>
    %316 = arith.addf %313, %315 : vector<16x64xf32>
    %317 = math.rsqrt %316 : vector<16x64xf32>
    %318 = arith.mulf %314, %317 : vector<16x64xf32>
    %319 = vector.broadcast %40 : vector<1x64xf32> to vector<16x64xf32>
    %320 = arith.mulf %318, %319 : vector<16x64xf32>
    %321 = vector.broadcast %45 : vector<1x64xf32> to vector<16x64xf32>
    %322 = arith.addf %320, %321 : vector<16x64xf32>
    %cst_89 = arith.constant 0.000000e+00 : f32
    %323 = vector.broadcast %cst_89 : f32 to vector<16x64xf32>
    %324 = arith.maximumf %322, %323 : vector<16x64xf32>
    %cst_90 = arith.constant dense<0.000000e+00> : vector<16x16xf32>
    %325 = tpu.matmul %324, %35, %cst_90 {dimension_numbers = #tpu.dot_dimension_numbers<[1], [0], [0], [1], [0, 0, 1, 1], [], []>} : vector<16x64xf32>, vector<64x16xf32>, vector<16x16xf32> -> vector<16x16xf32>
    %326 = vector.broadcast %50 : vector<16x1xf32> to vector<16x16xf32>
    %327 = arith.mulf %325, %326 : vector<16x16xf32>
    %cst_91 = arith.constant dense<0.000000e+00> : vector<16xf32>
    %328 = vector.multi_reduction <add>, %327, %cst_91 [0] : vector<16x16xf32> to vector<16xf32>
    %329 = vector.shape_cast %328 : vector<16xf32> to vector<1x16xf32>
    %cst_92 = arith.constant 1.250000e-01 : f32
    %330 = vector.broadcast %cst_92 : f32 to vector<1x16xf32>
    %331 = arith.mulf %329, %330 : vector<1x16xf32>
    %332 = vector.broadcast %331 : vector<1x16xf32> to vector<16x16xf32>
    %333 = arith.subf %325, %332 : vector<16x16xf32>
    %334 = arith.mulf %333, %333 : vector<16x16xf32>
    %335 = vector.broadcast %50 : vector<16x1xf32> to vector<16x16xf32>
    %336 = arith.mulf %334, %335 : vector<16x16xf32>
    %cst_93 = arith.constant dense<0.000000e+00> : vector<16xf32>
    %337 = vector.multi_reduction <add>, %336, %cst_93 [0] : vector<16x16xf32> to vector<16xf32>
    %338 = vector.shape_cast %337 : vector<16xf32> to vector<1x16xf32>
    %cst_94 = arith.constant 1.250000e-01 : f32
    %339 = vector.broadcast %cst_94 : f32 to vector<1x16xf32>
    %340 = arith.mulf %338, %339 : vector<1x16xf32>
    %341 = vector.broadcast %52 : vector<16x1xf32> to vector<16x16xf32>
    %342 = arith.mulf %325, %341 : vector<16x16xf32>
    %cst_95 = arith.constant dense<0.000000e+00> : vector<16xf32>
    %343 = vector.multi_reduction <add>, %342, %cst_95 [0] : vector<16x16xf32> to vector<16xf32>
    %344 = vector.shape_cast %343 : vector<16xf32> to vector<1x16xf32>
    %cst_96 = arith.constant 1.250000e-01 : f32
    %345 = vector.broadcast %cst_96 : f32 to vector<1x16xf32>
    %346 = arith.mulf %344, %345 : vector<1x16xf32>
    %347 = vector.broadcast %346 : vector<1x16xf32> to vector<16x16xf32>
    %348 = arith.subf %325, %347 : vector<16x16xf32>
    %349 = arith.mulf %348, %348 : vector<16x16xf32>
    %350 = vector.broadcast %52 : vector<16x1xf32> to vector<16x16xf32>
    %351 = arith.mulf %349, %350 : vector<16x16xf32>
    %cst_97 = arith.constant dense<0.000000e+00> : vector<16xf32>
    %352 = vector.multi_reduction <add>, %351, %cst_97 [0] : vector<16x16xf32> to vector<16xf32>
    %353 = vector.shape_cast %352 : vector<16xf32> to vector<1x16xf32>
    %cst_98 = arith.constant 1.250000e-01 : f32
    %354 = vector.broadcast %cst_98 : f32 to vector<1x16xf32>
    %355 = arith.mulf %353, %354 : vector<1x16xf32>
    %356 = vector.broadcast %50 : vector<16x1xf32> to vector<16x16xf32>
    %357 = vector.broadcast %331 : vector<1x16xf32> to vector<16x16xf32>
    %358 = arith.mulf %356, %357 : vector<16x16xf32>
    %359 = vector.broadcast %52 : vector<16x1xf32> to vector<16x16xf32>
    %360 = vector.broadcast %346 : vector<1x16xf32> to vector<16x16xf32>
    %361 = arith.mulf %359, %360 : vector<16x16xf32>
    %362 = arith.addf %358, %361 : vector<16x16xf32>
    %363 = vector.broadcast %50 : vector<16x1xf32> to vector<16x16xf32>
    %364 = vector.broadcast %340 : vector<1x16xf32> to vector<16x16xf32>
    %365 = arith.mulf %363, %364 : vector<16x16xf32>
    %366 = vector.broadcast %52 : vector<16x1xf32> to vector<16x16xf32>
    %367 = vector.broadcast %355 : vector<1x16xf32> to vector<16x16xf32>
    %368 = arith.mulf %366, %367 : vector<16x16xf32>
    %369 = arith.addf %365, %368 : vector<16x16xf32>
    %370 = arith.subf %325, %362 : vector<16x16xf32>
    %cst_99 = arith.constant 9.99999974E-6 : f32
    %371 = vector.broadcast %cst_99 : f32 to vector<16x16xf32>
    %372 = arith.addf %369, %371 : vector<16x16xf32>
    %373 = math.rsqrt %372 : vector<16x16xf32>
    %374 = arith.mulf %370, %373 : vector<16x16xf32>
    %c0_100 = arith.constant 0 : index
    %c0_101 = arith.constant 0 : index
    %375 = vector.load %arg2[%c0_100, %c0_101] : memref<32x16xf32, #tpu.memory_space<vmem>>, vector<32x16xf32>
    %376 = arith.mulf %374, %374 : vector<16x16xf32>
    %cst_102 = arith.constant dense<0.000000e+00> : vector<16xf32>
    %377 = vector.multi_reduction <add>, %376, %cst_102 [1] : vector<16x16xf32> to vector<16xf32>
    %378 = vector.shape_cast %377 : vector<16xf32> to vector<16x1xf32>
    %cst_103 = arith.constant 1.000000e-24 : f32
    %379 = vector.broadcast %cst_103 : f32 to vector<16x1xf32>
    %380 = arith.maximumf %378, %379 : vector<16x1xf32>
    %381 = math.rsqrt %380 : vector<16x1xf32>
    %382 = vector.broadcast %381 : vector<16x1xf32> to vector<16x16xf32>
    %383 = arith.mulf %374, %382 : vector<16x16xf32>
    %384 = arith.mulf %375, %375 : vector<32x16xf32>
    %cst_104 = arith.constant dense<0.000000e+00> : vector<32xf32>
    %385 = vector.multi_reduction <add>, %384, %cst_104 [1] : vector<32x16xf32> to vector<32xf32>
    %386 = vector.shape_cast %385 : vector<32xf32> to vector<32x1xf32>
    %cst_105 = arith.constant 1.000000e-24 : f32
    %387 = vector.broadcast %cst_105 : f32 to vector<32x1xf32>
    %388 = arith.maximumf %386, %387 : vector<32x1xf32>
    %389 = math.rsqrt %388 : vector<32x1xf32>
    %390 = vector.broadcast %389 : vector<32x1xf32> to vector<32x16xf32>
    %391 = arith.mulf %375, %390 : vector<32x16xf32>
    %cst_106 = arith.constant dense<0.000000e+00> : vector<16x32xf32>
    %392 = tpu.matmul %383, %391, %cst_106 {dimension_numbers = #tpu.dot_dimension_numbers<[1], [1], [0], [0], [0, 0, 1, 0], [], []>} : vector<16x16xf32>, vector<32x16xf32>, vector<16x32xf32> -> vector<16x32xf32>
    %393 = tpu.iota {dimensions = array<i32: 1>} : vector<16x32xi32>
    %cst_107 = arith.constant dense<0xFF800000> : vector<16xf32>
    %394 = vector.multi_reduction <maximumf>, %392, %cst_107 [1] : vector<16x32xf32> to vector<16xf32>
    %395 = vector.shape_cast %394 : vector<16xf32> to vector<16x1xf32>
    %396 = vector.broadcast %395 : vector<16x1xf32> to vector<16x32xf32>
    %397 = arith.cmpf oge, %392, %396 : vector<16x32xf32>
    %c32_i32 = arith.constant 32 : i32
    %398 = vector.broadcast %c32_i32 : i32 to vector<16x32xi32>
    %399 = arith.select %397, %393, %398 : vector<16x32xi1>, vector<16x32xi32>
    %cst_108 = arith.constant dense<2147483647> : vector<16xi32>
    %400 = vector.multi_reduction <minsi>, %399, %cst_108 [1] : vector<16x32xi32> to vector<16xi32>
    %401 = vector.shape_cast %400 : vector<16xi32> to vector<16x1xi32>
    %402 = vector.broadcast %401 : vector<16x1xi32> to vector<16x32xi32>
    %403 = arith.cmpi eq, %393, %402 : vector<16x32xi32>
    %404 = arith.extui %403 : vector<16x32xi1> to vector<16x32xi32>
    %405 = arith.sitofp %404 : vector<16x32xi32> to vector<16x32xf32>
    %cst_109 = arith.constant 0.000000e+00 : f32
    %406 = vector.broadcast %cst_109 : f32 to vector<16x32xf32>
    %407 = arith.cmpf ogt, %405, %406 : vector<16x32xf32>
    %cst_110 = arith.constant -1.000000e+30 : f32
    %408 = vector.broadcast %cst_110 : f32 to vector<16x32xf32>
    %409 = arith.select %407, %408, %392 : vector<16x32xi1>, vector<16x32xf32>
    %cst_111 = arith.constant dense<0xFF800000> : vector<16xf32>
    %410 = vector.multi_reduction <maximumf>, %409, %cst_111 [1] : vector<16x32xf32> to vector<16xf32>
    %411 = vector.shape_cast %410 : vector<16xf32> to vector<16x1xf32>
    %412 = vector.broadcast %411 : vector<16x1xf32> to vector<16x32xf32>
    %413 = arith.cmpf oge, %409, %412 : vector<16x32xf32>
    %c32_i32_112 = arith.constant 32 : i32
    %414 = vector.broadcast %c32_i32_112 : i32 to vector<16x32xi32>
    %415 = arith.select %413, %393, %414 : vector<16x32xi1>, vector<16x32xi32>
    %cst_113 = arith.constant dense<2147483647> : vector<16xi32>
    %416 = vector.multi_reduction <minsi>, %415, %cst_113 [1] : vector<16x32xi32> to vector<16xi32>
    %417 = vector.shape_cast %416 : vector<16xi32> to vector<16x1xi32>
    %418 = vector.broadcast %417 : vector<16x1xi32> to vector<16x32xi32>
    %419 = arith.cmpi eq, %393, %418 : vector<16x32xi32>
    %420 = arith.extui %419 : vector<16x32xi1> to vector<16x32xi32>
    %421 = arith.sitofp %420 : vector<16x32xi32> to vector<16x32xf32>
    %cst_114 = arith.constant dense<0.000000e+00> : vector<16x16xf32>
    %422 = tpu.matmul %405, %375, %cst_114 {dimension_numbers = #tpu.dot_dimension_numbers<[1], [0], [0], [1], [0, 0, 1, 1], [], []>} : vector<16x32xf32>, vector<32x16xf32>, vector<16x16xf32> -> vector<16x16xf32>
    %cst_115 = arith.constant dense<0.000000e+00> : vector<16x16xf32>
    %423 = tpu.matmul %421, %375, %cst_115 {dimension_numbers = #tpu.dot_dimension_numbers<[1], [0], [0], [1], [0, 0, 1, 1], [], []>} : vector<16x32xf32>, vector<32x16xf32>, vector<16x16xf32> -> vector<16x16xf32>
    %424 = tpu.iota {dimensions = array<i32: 0>} : vector<8x8xi32>
    %425 = tpu.iota {dimensions = array<i32: 1>} : vector<8x8xi32>
    %426 = arith.cmpi eq, %424, %425 : vector<8x8xi32>
    %427 = arith.extui %426 : vector<8x8xi1> to vector<8x8xi32>
    %428 = arith.sitofp %427 : vector<8x8xi32> to vector<8x8xf32>
    %cst_116 = arith.constant 1.000000e+00 : f32
    %429 = vector.broadcast %cst_116 : f32 to vector<8x8xf32>
    %430 = arith.subf %429, %428 : vector<8x8xf32>
    %cst_117 = arith.constant 1.000000e+00 : f32
    %431 = vector.broadcast %cst_117 : f32 to vector<8x8xf32>
    %432 = arith.subf %428, %431 : vector<8x8xf32>
    %cst_118 = arith.constant 9.990000e+02 : f32
    %433 = vector.broadcast %cst_118 : f32 to vector<8x8xf32>
    %434 = arith.mulf %432, %433 : vector<8x8xf32>
    %435 = vector.extract_strided_slice %267 {offsets = [0, 0], sizes = [8, 16], strides = [1, 1]} : vector<16x16xf32> to vector<8x16xf32>
    %436 = vector.extract_strided_slice %267 {offsets = [8, 0], sizes = [8, 16], strides = [1, 1]} : vector<16x16xf32> to vector<8x16xf32>
    %437 = vector.extract_strided_slice %159 {offsets = [0, 0], sizes = [8, 16], strides = [1, 1]} : vector<16x16xf32> to vector<8x16xf32>
    %438 = vector.extract_strided_slice %159 {offsets = [8, 0], sizes = [8, 16], strides = [1, 1]} : vector<16x16xf32> to vector<8x16xf32>
    %439 = vector.extract_strided_slice %374 {offsets = [0, 0], sizes = [8, 16], strides = [1, 1]} : vector<16x16xf32> to vector<8x16xf32>
    %440 = vector.extract_strided_slice %374 {offsets = [8, 0], sizes = [8, 16], strides = [1, 1]} : vector<16x16xf32> to vector<8x16xf32>
    %441 = vector.extract_strided_slice %422 {offsets = [0, 0], sizes = [8, 16], strides = [1, 1]} : vector<16x16xf32> to vector<8x16xf32>
    %442 = vector.extract_strided_slice %422 {offsets = [8, 0], sizes = [8, 16], strides = [1, 1]} : vector<16x16xf32> to vector<8x16xf32>
    %443 = vector.extract_strided_slice %423 {offsets = [0, 0], sizes = [8, 16], strides = [1, 1]} : vector<16x16xf32> to vector<8x16xf32>
    %444 = vector.extract_strided_slice %423 {offsets = [8, 0], sizes = [8, 16], strides = [1, 1]} : vector<16x16xf32> to vector<8x16xf32>
    %445 = arith.mulf %435, %435 : vector<8x16xf32>
    %cst_119 = arith.constant dense<0.000000e+00> : vector<8xf32>
    %446 = vector.multi_reduction <add>, %445, %cst_119 [1] : vector<8x16xf32> to vector<8xf32>
    %447 = vector.shape_cast %446 : vector<8xf32> to vector<8x1xf32>
    %cst_120 = arith.constant 1.000000e-24 : f32
    %448 = vector.broadcast %cst_120 : f32 to vector<8x1xf32>
    %449 = arith.maximumf %447, %448 : vector<8x1xf32>
    %450 = math.rsqrt %449 : vector<8x1xf32>
    %451 = vector.broadcast %450 : vector<8x1xf32> to vector<8x16xf32>
    %452 = arith.mulf %435, %451 : vector<8x16xf32>
    %453 = arith.mulf %440, %440 : vector<8x16xf32>
    %cst_121 = arith.constant dense<0.000000e+00> : vector<8xf32>
    %454 = vector.multi_reduction <add>, %453, %cst_121 [1] : vector<8x16xf32> to vector<8xf32>
    %455 = vector.shape_cast %454 : vector<8xf32> to vector<8x1xf32>
    %cst_122 = arith.constant 1.000000e-24 : f32
    %456 = vector.broadcast %cst_122 : f32 to vector<8x1xf32>
    %457 = arith.maximumf %455, %456 : vector<8x1xf32>
    %458 = math.rsqrt %457 : vector<8x1xf32>
    %459 = vector.broadcast %458 : vector<8x1xf32> to vector<8x16xf32>
    %460 = arith.mulf %440, %459 : vector<8x16xf32>
    %461 = arith.mulf %435, %440 : vector<8x16xf32>
    %cst_123 = arith.constant dense<0.000000e+00> : vector<8xf32>
    %462 = vector.multi_reduction <add>, %461, %cst_123 [1] : vector<8x16xf32> to vector<8xf32>
    %463 = vector.shape_cast %462 : vector<8xf32> to vector<8x1xf32>
    %464 = arith.mulf %452, %460 : vector<8x16xf32>
    %cst_124 = arith.constant dense<0.000000e+00> : vector<8xf32>
    %465 = vector.multi_reduction <add>, %464, %cst_124 [1] : vector<8x16xf32> to vector<8xf32>
    %466 = vector.shape_cast %465 : vector<8xf32> to vector<8x1xf32>
    %cst_125 = arith.constant dense<0.000000e+00> : vector<8x8xf32>
    %467 = tpu.matmul %435, %435, %cst_125 {dimension_numbers = #tpu.dot_dimension_numbers<[1], [1], [0], [0], [0, 0, 1, 0], [], []>} : vector<8x16xf32>, vector<8x16xf32>, vector<8x8xf32> -> vector<8x8xf32>
    %cst_126 = arith.constant dense<0.000000e+00> : vector<8x8xf32>
    %468 = tpu.matmul %452, %452, %cst_126 {dimension_numbers = #tpu.dot_dimension_numbers<[1], [1], [0], [0], [0, 0, 1, 0], [], []>} : vector<8x16xf32>, vector<8x16xf32>, vector<8x8xf32> -> vector<8x8xf32>
    %469 = vector.broadcast %463 : vector<8x1xf32> to vector<8x8xf32>
    %470 = arith.subf %467, %469 : vector<8x8xf32>
    %cst_127 = arith.constant 1.000000e-01 : f32
    %471 = vector.broadcast %cst_127 : f32 to vector<8x8xf32>
    %472 = arith.subf %470, %471 : vector<8x8xf32>
    %cst_128 = arith.constant -1.000000e+00 : f32
    %473 = vector.broadcast %cst_128 : f32 to vector<8x8xf32>
    %474 = arith.mulf %473, %472 : vector<8x8xf32>
    %475 = arith.mulf %474, %472 : vector<8x8xf32>
    %476 = math.exp %475 : vector<8x8xf32>
    %cst_129 = arith.constant 0.000000e+00 : f32
    %cst_130 = arith.constant 9.990000e-01 : f32
    %477 = vector.broadcast %cst_129 : f32 to vector<8x8xf32>
    %478 = arith.maximumf %477, %476 : vector<8x8xf32>
    %479 = vector.broadcast %cst_130 : f32 to vector<8x8xf32>
    %480 = arith.minimumf %479, %478 : vector<8x8xf32>
    %481 = tpu.iota {dimensions = array<i32: 0>} : vector<8x8xi32>
    %482 = tpu.iota {dimensions = array<i32: 1>} : vector<8x8xi32>
    %c8_i32_131 = arith.constant 8 : i32
    %483 = vector.broadcast %c8_i32_131 : i32 to vector<8x8xi32>
    %484 = arith.muli %481, %483 : vector<8x8xi32>
    %485 = arith.addi %484, %482 : vector<8x8xi32>
    %c-1640531535_i32 = arith.constant -1640531535 : i32
    %486 = arith.muli %0, %c-1640531535_i32 : i32
    %487 = vector.broadcast %486 : i32 to vector<8x8xi32>
    %488 = arith.addi %485, %487 : vector<8x8xi32>
    %c0_i32 = arith.constant 0 : i32
    %489 = vector.broadcast %c0_i32 : i32 to vector<8x8xi32>
    %490 = arith.addi %488, %489 : vector<8x8xi32>
    %c16_i32 = arith.constant 16 : i32
    %491 = vector.broadcast %c16_i32 : i32 to vector<8x8xi32>
    %492 = arith.shrui %490, %491 : vector<8x8xi32>
    %493 = arith.xori %490, %492 : vector<8x8xi32>
    %c2146121005_i32 = arith.constant 2146121005 : i32
    %494 = vector.broadcast %c2146121005_i32 : i32 to vector<8x8xi32>
    %495 = arith.muli %493, %494 : vector<8x8xi32>
    %c15_i32 = arith.constant 15 : i32
    %496 = vector.broadcast %c15_i32 : i32 to vector<8x8xi32>
    %497 = arith.shrui %495, %496 : vector<8x8xi32>
    %498 = arith.xori %495, %497 : vector<8x8xi32>
    %c-2073254261_i32 = arith.constant -2073254261 : i32
    %499 = vector.broadcast %c-2073254261_i32 : i32 to vector<8x8xi32>
    %500 = arith.muli %498, %499 : vector<8x8xi32>
    %c16_i32_132 = arith.constant 16 : i32
    %501 = vector.broadcast %c16_i32_132 : i32 to vector<8x8xi32>
    %502 = arith.shrui %500, %501 : vector<8x8xi32>
    %503 = arith.xori %500, %502 : vector<8x8xi32>
    %c8_i32_133 = arith.constant 8 : i32
    %504 = vector.broadcast %c8_i32_133 : i32 to vector<8x8xi32>
    %505 = arith.shrui %503, %504 : vector<8x8xi32>
    %506 = arith.sitofp %505 : vector<8x8xi32> to vector<8x8xf32>
    %cst_134 = arith.constant 5.96046448E-8 : f32
    %507 = vector.broadcast %cst_134 : f32 to vector<8x8xf32>
    %508 = arith.mulf %506, %507 : vector<8x8xf32>
    %509 = arith.cmpf olt, %508, %480 : vector<8x8xf32>
    %510 = arith.extui %509 : vector<8x8xi1> to vector<8x8xi32>
    %511 = arith.sitofp %510 : vector<8x8xi32> to vector<8x8xf32>
    %512 = arith.mulf %468, %511 : vector<8x8xf32>
    %cst_135 = arith.constant 5.000000e-01 : f32
    %513 = vector.broadcast %cst_135 : f32 to vector<8x8xf32>
    %514 = arith.divf %512, %513 : vector<8x8xf32>
    %515 = math.exp %514 : vector<8x8xf32>
    %516 = arith.mulf %515, %511 : vector<8x8xf32>
    %517 = arith.mulf %516, %430 : vector<8x8xf32>
    %cst_136 = arith.constant dense<0.000000e+00> : vector<8xf32>
    %518 = vector.multi_reduction <add>, %517, %cst_136 [1] : vector<8x8xf32> to vector<8xf32>
    %519 = vector.shape_cast %518 : vector<8xf32> to vector<8x1xf32>
    %cst_137 = arith.constant dense<0.000000e+00> : vector<8x8xf32>
    %520 = tpu.matmul %435, %440, %cst_137 {dimension_numbers = #tpu.dot_dimension_numbers<[1], [1], [0], [0], [0, 0, 1, 0], [], []>} : vector<8x16xf32>, vector<8x16xf32>, vector<8x8xf32> -> vector<8x8xf32>
    %cst_138 = arith.constant dense<0.000000e+00> : vector<8x8xf32>
    %521 = tpu.matmul %452, %460, %cst_138 {dimension_numbers = #tpu.dot_dimension_numbers<[1], [1], [0], [0], [0, 0, 1, 0], [], []>} : vector<8x16xf32>, vector<8x16xf32>, vector<8x8xf32> -> vector<8x8xf32>
    %522 = vector.broadcast %463 : vector<8x1xf32> to vector<8x8xf32>
    %523 = arith.subf %520, %522 : vector<8x8xf32>
    %cst_139 = arith.constant 1.000000e-01 : f32
    %524 = vector.broadcast %cst_139 : f32 to vector<8x8xf32>
    %525 = arith.subf %523, %524 : vector<8x8xf32>
    %cst_140 = arith.constant -1.000000e+00 : f32
    %526 = vector.broadcast %cst_140 : f32 to vector<8x8xf32>
    %527 = arith.mulf %526, %525 : vector<8x8xf32>
    %528 = arith.mulf %527, %525 : vector<8x8xf32>
    %529 = math.exp %528 : vector<8x8xf32>
    %cst_141 = arith.constant 0.000000e+00 : f32
    %cst_142 = arith.constant 9.990000e-01 : f32
    %530 = vector.broadcast %cst_141 : f32 to vector<8x8xf32>
    %531 = arith.maximumf %530, %529 : vector<8x8xf32>
    %532 = vector.broadcast %cst_142 : f32 to vector<8x8xf32>
    %533 = arith.minimumf %532, %531 : vector<8x8xf32>
    %534 = tpu.iota {dimensions = array<i32: 0>} : vector<8x8xi32>
    %535 = tpu.iota {dimensions = array<i32: 1>} : vector<8x8xi32>
    %c8_i32_143 = arith.constant 8 : i32
    %536 = vector.broadcast %c8_i32_143 : i32 to vector<8x8xi32>
    %537 = arith.muli %534, %536 : vector<8x8xi32>
    %538 = arith.addi %537, %535 : vector<8x8xi32>
    %c-1640531535_i32_144 = arith.constant -1640531535 : i32
    %539 = arith.muli %0, %c-1640531535_i32_144 : i32
    %540 = vector.broadcast %539 : i32 to vector<8x8xi32>
    %541 = arith.addi %538, %540 : vector<8x8xi32>
    %c-1640531535_i32_145 = arith.constant -1640531535 : i32
    %542 = vector.broadcast %c-1640531535_i32_145 : i32 to vector<8x8xi32>
    %543 = arith.addi %541, %542 : vector<8x8xi32>
    %c16_i32_146 = arith.constant 16 : i32
    %544 = vector.broadcast %c16_i32_146 : i32 to vector<8x8xi32>
    %545 = arith.shrui %543, %544 : vector<8x8xi32>
    %546 = arith.xori %543, %545 : vector<8x8xi32>
    %c2146121005_i32_147 = arith.constant 2146121005 : i32
    %547 = vector.broadcast %c2146121005_i32_147 : i32 to vector<8x8xi32>
    %548 = arith.muli %546, %547 : vector<8x8xi32>
    %c15_i32_148 = arith.constant 15 : i32
    %549 = vector.broadcast %c15_i32_148 : i32 to vector<8x8xi32>
    %550 = arith.shrui %548, %549 : vector<8x8xi32>
    %551 = arith.xori %548, %550 : vector<8x8xi32>
    %c-2073254261_i32_149 = arith.constant -2073254261 : i32
    %552 = vector.broadcast %c-2073254261_i32_149 : i32 to vector<8x8xi32>
    %553 = arith.muli %551, %552 : vector<8x8xi32>
    %c16_i32_150 = arith.constant 16 : i32
    %554 = vector.broadcast %c16_i32_150 : i32 to vector<8x8xi32>
    %555 = arith.shrui %553, %554 : vector<8x8xi32>
    %556 = arith.xori %553, %555 : vector<8x8xi32>
    %c8_i32_151 = arith.constant 8 : i32
    %557 = vector.broadcast %c8_i32_151 : i32 to vector<8x8xi32>
    %558 = arith.shrui %556, %557 : vector<8x8xi32>
    %559 = arith.sitofp %558 : vector<8x8xi32> to vector<8x8xf32>
    %cst_152 = arith.constant 5.96046448E-8 : f32
    %560 = vector.broadcast %cst_152 : f32 to vector<8x8xf32>
    %561 = arith.mulf %559, %560 : vector<8x8xf32>
    %562 = arith.cmpf olt, %561, %533 : vector<8x8xf32>
    %563 = arith.extui %562 : vector<8x8xi1> to vector<8x8xi32>
    %564 = arith.sitofp %563 : vector<8x8xi32> to vector<8x8xf32>
    %565 = arith.mulf %521, %564 : vector<8x8xf32>
    %cst_153 = arith.constant 5.000000e-01 : f32
    %566 = vector.broadcast %cst_153 : f32 to vector<8x8xf32>
    %567 = arith.divf %565, %566 : vector<8x8xf32>
    %568 = math.exp %567 : vector<8x8xf32>
    %569 = arith.mulf %568, %564 : vector<8x8xf32>
    %570 = arith.mulf %569, %430 : vector<8x8xf32>
    %cst_154 = arith.constant dense<0.000000e+00> : vector<8xf32>
    %571 = vector.multi_reduction <add>, %570, %cst_154 [1] : vector<8x8xf32> to vector<8xf32>
    %572 = vector.shape_cast %571 : vector<8xf32> to vector<8x1xf32>
    %573 = arith.addf %519, %572 : vector<8x1xf32>
    %cst_155 = arith.constant dense<0.000000e+00> : vector<8x8xf32>
    %574 = tpu.matmul %440, %435, %cst_155 {dimension_numbers = #tpu.dot_dimension_numbers<[1], [1], [0], [0], [0, 0, 1, 0], [], []>} : vector<8x16xf32>, vector<8x16xf32>, vector<8x8xf32> -> vector<8x8xf32>
    %cst_156 = arith.constant dense<0.000000e+00> : vector<8x8xf32>
    %575 = tpu.matmul %460, %452, %cst_156 {dimension_numbers = #tpu.dot_dimension_numbers<[1], [1], [0], [0], [0, 0, 1, 0], [], []>} : vector<8x16xf32>, vector<8x16xf32>, vector<8x8xf32> -> vector<8x8xf32>
    %576 = vector.broadcast %463 : vector<8x1xf32> to vector<8x8xf32>
    %577 = arith.subf %574, %576 : vector<8x8xf32>
    %cst_157 = arith.constant 1.000000e-01 : f32
    %578 = vector.broadcast %cst_157 : f32 to vector<8x8xf32>
    %579 = arith.subf %577, %578 : vector<8x8xf32>
    %cst_158 = arith.constant -1.000000e+00 : f32
    %580 = vector.broadcast %cst_158 : f32 to vector<8x8xf32>
    %581 = arith.mulf %580, %579 : vector<8x8xf32>
    %582 = arith.mulf %581, %579 : vector<8x8xf32>
    %583 = math.exp %582 : vector<8x8xf32>
    %cst_159 = arith.constant 0.000000e+00 : f32
    %cst_160 = arith.constant 9.990000e-01 : f32
    %584 = vector.broadcast %cst_159 : f32 to vector<8x8xf32>
    %585 = arith.maximumf %584, %583 : vector<8x8xf32>
    %586 = vector.broadcast %cst_160 : f32 to vector<8x8xf32>
    %587 = arith.minimumf %586, %585 : vector<8x8xf32>
    %588 = tpu.iota {dimensions = array<i32: 0>} : vector<8x8xi32>
    %589 = tpu.iota {dimensions = array<i32: 1>} : vector<8x8xi32>
    %c8_i32_161 = arith.constant 8 : i32
    %590 = vector.broadcast %c8_i32_161 : i32 to vector<8x8xi32>
    %591 = arith.muli %588, %590 : vector<8x8xi32>
    %592 = arith.addi %591, %589 : vector<8x8xi32>
    %c-1640531535_i32_162 = arith.constant -1640531535 : i32
    %593 = arith.muli %0, %c-1640531535_i32_162 : i32
    %594 = vector.broadcast %593 : i32 to vector<8x8xi32>
    %595 = arith.addi %592, %594 : vector<8x8xi32>
    %c1013904226_i32 = arith.constant 1013904226 : i32
    %596 = vector.broadcast %c1013904226_i32 : i32 to vector<8x8xi32>
    %597 = arith.addi %595, %596 : vector<8x8xi32>
    %c16_i32_163 = arith.constant 16 : i32
    %598 = vector.broadcast %c16_i32_163 : i32 to vector<8x8xi32>
    %599 = arith.shrui %597, %598 : vector<8x8xi32>
    %600 = arith.xori %597, %599 : vector<8x8xi32>
    %c2146121005_i32_164 = arith.constant 2146121005 : i32
    %601 = vector.broadcast %c2146121005_i32_164 : i32 to vector<8x8xi32>
    %602 = arith.muli %600, %601 : vector<8x8xi32>
    %c15_i32_165 = arith.constant 15 : i32
    %603 = vector.broadcast %c15_i32_165 : i32 to vector<8x8xi32>
    %604 = arith.shrui %602, %603 : vector<8x8xi32>
    %605 = arith.xori %602, %604 : vector<8x8xi32>
    %c-2073254261_i32_166 = arith.constant -2073254261 : i32
    %606 = vector.broadcast %c-2073254261_i32_166 : i32 to vector<8x8xi32>
    %607 = arith.muli %605, %606 : vector<8x8xi32>
    %c16_i32_167 = arith.constant 16 : i32
    %608 = vector.broadcast %c16_i32_167 : i32 to vector<8x8xi32>
    %609 = arith.shrui %607, %608 : vector<8x8xi32>
    %610 = arith.xori %607, %609 : vector<8x8xi32>
    %c8_i32_168 = arith.constant 8 : i32
    %611 = vector.broadcast %c8_i32_168 : i32 to vector<8x8xi32>
    %612 = arith.shrui %610, %611 : vector<8x8xi32>
    %613 = arith.sitofp %612 : vector<8x8xi32> to vector<8x8xf32>
    %cst_169 = arith.constant 5.96046448E-8 : f32
    %614 = vector.broadcast %cst_169 : f32 to vector<8x8xf32>
    %615 = arith.mulf %613, %614 : vector<8x8xf32>
    %616 = arith.cmpf olt, %615, %587 : vector<8x8xf32>
    %617 = arith.extui %616 : vector<8x8xi1> to vector<8x8xi32>
    %618 = arith.sitofp %617 : vector<8x8xi32> to vector<8x8xf32>
    %619 = arith.mulf %575, %618 : vector<8x8xf32>
    %cst_170 = arith.constant 5.000000e-01 : f32
    %620 = vector.broadcast %cst_170 : f32 to vector<8x8xf32>
    %621 = arith.divf %619, %620 : vector<8x8xf32>
    %622 = math.exp %621 : vector<8x8xf32>
    %623 = arith.mulf %622, %618 : vector<8x8xf32>
    %624 = arith.mulf %623, %430 : vector<8x8xf32>
    %cst_171 = arith.constant dense<0.000000e+00> : vector<8xf32>
    %625 = vector.multi_reduction <add>, %624, %cst_171 [1] : vector<8x8xf32> to vector<8xf32>
    %626 = vector.shape_cast %625 : vector<8xf32> to vector<8x1xf32>
    %cst_172 = arith.constant dense<0.000000e+00> : vector<8x8xf32>
    %627 = tpu.matmul %440, %440, %cst_172 {dimension_numbers = #tpu.dot_dimension_numbers<[1], [1], [0], [0], [0, 0, 1, 0], [], []>} : vector<8x16xf32>, vector<8x16xf32>, vector<8x8xf32> -> vector<8x8xf32>
    %cst_173 = arith.constant dense<0.000000e+00> : vector<8x8xf32>
    %628 = tpu.matmul %460, %460, %cst_173 {dimension_numbers = #tpu.dot_dimension_numbers<[1], [1], [0], [0], [0, 0, 1, 0], [], []>} : vector<8x16xf32>, vector<8x16xf32>, vector<8x8xf32> -> vector<8x8xf32>
    %629 = vector.broadcast %463 : vector<8x1xf32> to vector<8x8xf32>
    %630 = arith.subf %627, %629 : vector<8x8xf32>
    %cst_174 = arith.constant 1.000000e-01 : f32
    %631 = vector.broadcast %cst_174 : f32 to vector<8x8xf32>
    %632 = arith.subf %630, %631 : vector<8x8xf32>
    %cst_175 = arith.constant -1.000000e+00 : f32
    %633 = vector.broadcast %cst_175 : f32 to vector<8x8xf32>
    %634 = arith.mulf %633, %632 : vector<8x8xf32>
    %635 = arith.mulf %634, %632 : vector<8x8xf32>
    %636 = math.exp %635 : vector<8x8xf32>
    %cst_176 = arith.constant 0.000000e+00 : f32
    %cst_177 = arith.constant 9.990000e-01 : f32
    %637 = vector.broadcast %cst_176 : f32 to vector<8x8xf32>
    %638 = arith.maximumf %637, %636 : vector<8x8xf32>
    %639 = vector.broadcast %cst_177 : f32 to vector<8x8xf32>
    %640 = arith.minimumf %639, %638 : vector<8x8xf32>
    %641 = tpu.iota {dimensions = array<i32: 0>} : vector<8x8xi32>
    %642 = tpu.iota {dimensions = array<i32: 1>} : vector<8x8xi32>
    %c8_i32_178 = arith.constant 8 : i32
    %643 = vector.broadcast %c8_i32_178 : i32 to vector<8x8xi32>
    %644 = arith.muli %641, %643 : vector<8x8xi32>
    %645 = arith.addi %644, %642 : vector<8x8xi32>
    %c-1640531535_i32_179 = arith.constant -1640531535 : i32
    %646 = arith.muli %0, %c-1640531535_i32_179 : i32
    %647 = vector.broadcast %646 : i32 to vector<8x8xi32>
    %648 = arith.addi %645, %647 : vector<8x8xi32>
    %c-626627309_i32 = arith.constant -626627309 : i32
    %649 = vector.broadcast %c-626627309_i32 : i32 to vector<8x8xi32>
    %650 = arith.addi %648, %649 : vector<8x8xi32>
    %c16_i32_180 = arith.constant 16 : i32
    %651 = vector.broadcast %c16_i32_180 : i32 to vector<8x8xi32>
    %652 = arith.shrui %650, %651 : vector<8x8xi32>
    %653 = arith.xori %650, %652 : vector<8x8xi32>
    %c2146121005_i32_181 = arith.constant 2146121005 : i32
    %654 = vector.broadcast %c2146121005_i32_181 : i32 to vector<8x8xi32>
    %655 = arith.muli %653, %654 : vector<8x8xi32>
    %c15_i32_182 = arith.constant 15 : i32
    %656 = vector.broadcast %c15_i32_182 : i32 to vector<8x8xi32>
    %657 = arith.shrui %655, %656 : vector<8x8xi32>
    %658 = arith.xori %655, %657 : vector<8x8xi32>
    %c-2073254261_i32_183 = arith.constant -2073254261 : i32
    %659 = vector.broadcast %c-2073254261_i32_183 : i32 to vector<8x8xi32>
    %660 = arith.muli %658, %659 : vector<8x8xi32>
    %c16_i32_184 = arith.constant 16 : i32
    %661 = vector.broadcast %c16_i32_184 : i32 to vector<8x8xi32>
    %662 = arith.shrui %660, %661 : vector<8x8xi32>
    %663 = arith.xori %660, %662 : vector<8x8xi32>
    %c8_i32_185 = arith.constant 8 : i32
    %664 = vector.broadcast %c8_i32_185 : i32 to vector<8x8xi32>
    %665 = arith.shrui %663, %664 : vector<8x8xi32>
    %666 = arith.sitofp %665 : vector<8x8xi32> to vector<8x8xf32>
    %cst_186 = arith.constant 5.96046448E-8 : f32
    %667 = vector.broadcast %cst_186 : f32 to vector<8x8xf32>
    %668 = arith.mulf %666, %667 : vector<8x8xf32>
    %669 = arith.cmpf olt, %668, %640 : vector<8x8xf32>
    %670 = arith.extui %669 : vector<8x8xi1> to vector<8x8xi32>
    %671 = arith.sitofp %670 : vector<8x8xi32> to vector<8x8xf32>
    %672 = arith.mulf %628, %671 : vector<8x8xf32>
    %cst_187 = arith.constant 5.000000e-01 : f32
    %673 = vector.broadcast %cst_187 : f32 to vector<8x8xf32>
    %674 = arith.divf %672, %673 : vector<8x8xf32>
    %675 = math.exp %674 : vector<8x8xf32>
    %676 = arith.mulf %675, %671 : vector<8x8xf32>
    %677 = arith.mulf %676, %430 : vector<8x8xf32>
    %cst_188 = arith.constant dense<0.000000e+00> : vector<8xf32>
    %678 = vector.multi_reduction <add>, %677, %cst_188 [1] : vector<8x8xf32> to vector<8xf32>
    %679 = vector.shape_cast %678 : vector<8xf32> to vector<8x1xf32>
    %680 = arith.addf %626, %679 : vector<8x1xf32>
    %cst_189 = arith.constant 5.000000e-01 : f32
    %681 = vector.broadcast %cst_189 : f32 to vector<8x1xf32>
    %682 = arith.divf %466, %681 : vector<8x1xf32>
    %683 = math.exp %682 : vector<8x1xf32>
    %684 = vector.broadcast %573 : vector<8x1xf32> to vector<8x8xf32>
    %685 = arith.mulf %684, %428 : vector<8x8xf32>
    %cst_190 = arith.constant dense<0.000000e+00> : vector<8xf32>
    %686 = vector.multi_reduction <add>, %685, %cst_190 [0] : vector<8x8xf32> to vector<8xf32>
    %687 = vector.shape_cast %686 : vector<8xf32> to vector<1x8xf32>
    %688 = vector.broadcast %680 : vector<8x1xf32> to vector<8x8xf32>
    %689 = arith.mulf %688, %428 : vector<8x8xf32>
    %cst_191 = arith.constant dense<0.000000e+00> : vector<8xf32>
    %690 = vector.multi_reduction <add>, %689, %cst_191 [0] : vector<8x8xf32> to vector<8xf32>
    %691 = vector.shape_cast %690 : vector<8xf32> to vector<1x8xf32>
    %692 = vector.broadcast %683 : vector<8x1xf32> to vector<8x8xf32>
    %693 = vector.broadcast %687 : vector<1x8xf32> to vector<8x8xf32>
    %694 = arith.addf %692, %693 : vector<8x8xf32>
    %695 = math.log %694 : vector<8x8xf32>
    %696 = vector.shape_cast %695 : vector<8x8xf32> to vector<1x8x8xf32>
    %cst_192 = arith.constant dense<0.000000e+00> : vector<1xf32>
    %697 = vector.multi_reduction <add>, %696, %cst_192 [1, 2] : vector<1x8x8xf32> to vector<1xf32>
    %698 = vector.shape_cast %697 : vector<1xf32> to vector<1x1x1xf32>
    %699 = vector.extract %698[0, 0, 0] : f32 from vector<1x1x1xf32>
    %700 = vector.broadcast %683 : vector<8x1xf32> to vector<8x8xf32>
    %701 = vector.broadcast %691 : vector<1x8xf32> to vector<8x8xf32>
    %702 = arith.addf %700, %701 : vector<8x8xf32>
    %703 = math.log %702 : vector<8x8xf32>
    %704 = vector.shape_cast %703 : vector<8x8xf32> to vector<1x8x8xf32>
    %cst_193 = arith.constant dense<0.000000e+00> : vector<1xf32>
    %705 = vector.multi_reduction <add>, %704, %cst_193 [1, 2] : vector<1x8x8xf32> to vector<1xf32>
    %706 = vector.shape_cast %705 : vector<1xf32> to vector<1x1x1xf32>
    %707 = vector.extract %706[0, 0, 0] : f32 from vector<1x1x1xf32>
    %708 = arith.addf %699, %707 : f32
    %cst_194 = arith.constant 2.000000e+00 : f32
    %709 = arith.mulf %cst_194, %708 : f32
    %cst_195 = arith.constant 5.000000e-01 : f32
    %710 = vector.broadcast %cst_195 : f32 to vector<8x1xf32>
    %711 = arith.divf %466, %710 : vector<8x1xf32>
    %712 = vector.shape_cast %711 : vector<8x1xf32> to vector<1x8x1xf32>
    %cst_196 = arith.constant dense<0.000000e+00> : vector<1xf32>
    %713 = vector.multi_reduction <add>, %712, %cst_196 [1, 2] : vector<1x8x1xf32> to vector<1xf32>
    %714 = vector.shape_cast %713 : vector<1xf32> to vector<1x1x1xf32>
    %715 = vector.extract %714[0, 0, 0] : f32 from vector<1x1x1xf32>
    %cst_197 = arith.constant 3.200000e+01 : f32
    %716 = arith.mulf %cst_197, %715 : f32
    %717 = arith.subf %709, %716 : f32
    %cst_198 = arith.constant 2.560000e+02 : f32
    %718 = arith.divf %717, %cst_198 : f32
    %719 = arith.mulf %436, %436 : vector<8x16xf32>
    %cst_199 = arith.constant dense<0.000000e+00> : vector<8xf32>
    %720 = vector.multi_reduction <add>, %719, %cst_199 [1] : vector<8x16xf32> to vector<8xf32>
    %721 = vector.shape_cast %720 : vector<8xf32> to vector<8x1xf32>
    %cst_200 = arith.constant 1.000000e-24 : f32
    %722 = vector.broadcast %cst_200 : f32 to vector<8x1xf32>
    %723 = arith.maximumf %721, %722 : vector<8x1xf32>
    %724 = math.rsqrt %723 : vector<8x1xf32>
    %725 = vector.broadcast %724 : vector<8x1xf32> to vector<8x16xf32>
    %726 = arith.mulf %436, %725 : vector<8x16xf32>
    %727 = arith.mulf %439, %439 : vector<8x16xf32>
    %cst_201 = arith.constant dense<0.000000e+00> : vector<8xf32>
    %728 = vector.multi_reduction <add>, %727, %cst_201 [1] : vector<8x16xf32> to vector<8xf32>
    %729 = vector.shape_cast %728 : vector<8xf32> to vector<8x1xf32>
    %cst_202 = arith.constant 1.000000e-24 : f32
    %730 = vector.broadcast %cst_202 : f32 to vector<8x1xf32>
    %731 = arith.maximumf %729, %730 : vector<8x1xf32>
    %732 = math.rsqrt %731 : vector<8x1xf32>
    %733 = vector.broadcast %732 : vector<8x1xf32> to vector<8x16xf32>
    %734 = arith.mulf %439, %733 : vector<8x16xf32>
    %735 = arith.mulf %436, %439 : vector<8x16xf32>
    %cst_203 = arith.constant dense<0.000000e+00> : vector<8xf32>
    %736 = vector.multi_reduction <add>, %735, %cst_203 [1] : vector<8x16xf32> to vector<8xf32>
    %737 = vector.shape_cast %736 : vector<8xf32> to vector<8x1xf32>
    %738 = arith.mulf %726, %734 : vector<8x16xf32>
    %cst_204 = arith.constant dense<0.000000e+00> : vector<8xf32>
    %739 = vector.multi_reduction <add>, %738, %cst_204 [1] : vector<8x16xf32> to vector<8xf32>
    %740 = vector.shape_cast %739 : vector<8xf32> to vector<8x1xf32>
    %cst_205 = arith.constant dense<0.000000e+00> : vector<8x8xf32>
    %741 = tpu.matmul %436, %436, %cst_205 {dimension_numbers = #tpu.dot_dimension_numbers<[1], [1], [0], [0], [0, 0, 1, 0], [], []>} : vector<8x16xf32>, vector<8x16xf32>, vector<8x8xf32> -> vector<8x8xf32>
    %cst_206 = arith.constant dense<0.000000e+00> : vector<8x8xf32>
    %742 = tpu.matmul %726, %726, %cst_206 {dimension_numbers = #tpu.dot_dimension_numbers<[1], [1], [0], [0], [0, 0, 1, 0], [], []>} : vector<8x16xf32>, vector<8x16xf32>, vector<8x8xf32> -> vector<8x8xf32>
    %743 = vector.broadcast %737 : vector<8x1xf32> to vector<8x8xf32>
    %744 = arith.subf %741, %743 : vector<8x8xf32>
    %cst_207 = arith.constant 1.000000e-01 : f32
    %745 = vector.broadcast %cst_207 : f32 to vector<8x8xf32>
    %746 = arith.subf %744, %745 : vector<8x8xf32>
    %cst_208 = arith.constant -1.000000e+00 : f32
    %747 = vector.broadcast %cst_208 : f32 to vector<8x8xf32>
    %748 = arith.mulf %747, %746 : vector<8x8xf32>
    %749 = arith.mulf %748, %746 : vector<8x8xf32>
    %750 = math.exp %749 : vector<8x8xf32>
    %cst_209 = arith.constant 0.000000e+00 : f32
    %cst_210 = arith.constant 9.990000e-01 : f32
    %751 = vector.broadcast %cst_209 : f32 to vector<8x8xf32>
    %752 = arith.maximumf %751, %750 : vector<8x8xf32>
    %753 = vector.broadcast %cst_210 : f32 to vector<8x8xf32>
    %754 = arith.minimumf %753, %752 : vector<8x8xf32>
    %755 = tpu.iota {dimensions = array<i32: 0>} : vector<8x8xi32>
    %756 = tpu.iota {dimensions = array<i32: 1>} : vector<8x8xi32>
    %c8_i32_211 = arith.constant 8 : i32
    %757 = vector.broadcast %c8_i32_211 : i32 to vector<8x8xi32>
    %758 = arith.muli %755, %757 : vector<8x8xi32>
    %759 = arith.addi %758, %756 : vector<8x8xi32>
    %c-1640531535_i32_212 = arith.constant -1640531535 : i32
    %760 = arith.muli %0, %c-1640531535_i32_212 : i32
    %761 = vector.broadcast %760 : i32 to vector<8x8xi32>
    %762 = arith.addi %759, %761 : vector<8x8xi32>
    %c2027808452_i32 = arith.constant 2027808452 : i32
    %763 = vector.broadcast %c2027808452_i32 : i32 to vector<8x8xi32>
    %764 = arith.addi %762, %763 : vector<8x8xi32>
    %c16_i32_213 = arith.constant 16 : i32
    %765 = vector.broadcast %c16_i32_213 : i32 to vector<8x8xi32>
    %766 = arith.shrui %764, %765 : vector<8x8xi32>
    %767 = arith.xori %764, %766 : vector<8x8xi32>
    %c2146121005_i32_214 = arith.constant 2146121005 : i32
    %768 = vector.broadcast %c2146121005_i32_214 : i32 to vector<8x8xi32>
    %769 = arith.muli %767, %768 : vector<8x8xi32>
    %c15_i32_215 = arith.constant 15 : i32
    %770 = vector.broadcast %c15_i32_215 : i32 to vector<8x8xi32>
    %771 = arith.shrui %769, %770 : vector<8x8xi32>
    %772 = arith.xori %769, %771 : vector<8x8xi32>
    %c-2073254261_i32_216 = arith.constant -2073254261 : i32
    %773 = vector.broadcast %c-2073254261_i32_216 : i32 to vector<8x8xi32>
    %774 = arith.muli %772, %773 : vector<8x8xi32>
    %c16_i32_217 = arith.constant 16 : i32
    %775 = vector.broadcast %c16_i32_217 : i32 to vector<8x8xi32>
    %776 = arith.shrui %774, %775 : vector<8x8xi32>
    %777 = arith.xori %774, %776 : vector<8x8xi32>
    %c8_i32_218 = arith.constant 8 : i32
    %778 = vector.broadcast %c8_i32_218 : i32 to vector<8x8xi32>
    %779 = arith.shrui %777, %778 : vector<8x8xi32>
    %780 = arith.sitofp %779 : vector<8x8xi32> to vector<8x8xf32>
    %cst_219 = arith.constant 5.96046448E-8 : f32
    %781 = vector.broadcast %cst_219 : f32 to vector<8x8xf32>
    %782 = arith.mulf %780, %781 : vector<8x8xf32>
    %783 = arith.cmpf olt, %782, %754 : vector<8x8xf32>
    %784 = arith.extui %783 : vector<8x8xi1> to vector<8x8xi32>
    %785 = arith.sitofp %784 : vector<8x8xi32> to vector<8x8xf32>
    %786 = arith.mulf %742, %785 : vector<8x8xf32>
    %cst_220 = arith.constant 5.000000e-01 : f32
    %787 = vector.broadcast %cst_220 : f32 to vector<8x8xf32>
    %788 = arith.divf %786, %787 : vector<8x8xf32>
    %789 = math.exp %788 : vector<8x8xf32>
    %790 = arith.mulf %789, %785 : vector<8x8xf32>
    %791 = arith.mulf %790, %430 : vector<8x8xf32>
    %cst_221 = arith.constant dense<0.000000e+00> : vector<8xf32>
    %792 = vector.multi_reduction <add>, %791, %cst_221 [1] : vector<8x8xf32> to vector<8xf32>
    %793 = vector.shape_cast %792 : vector<8xf32> to vector<8x1xf32>
    %cst_222 = arith.constant dense<0.000000e+00> : vector<8x8xf32>
    %794 = tpu.matmul %436, %439, %cst_222 {dimension_numbers = #tpu.dot_dimension_numbers<[1], [1], [0], [0], [0, 0, 1, 0], [], []>} : vector<8x16xf32>, vector<8x16xf32>, vector<8x8xf32> -> vector<8x8xf32>
    %cst_223 = arith.constant dense<0.000000e+00> : vector<8x8xf32>
    %795 = tpu.matmul %726, %734, %cst_223 {dimension_numbers = #tpu.dot_dimension_numbers<[1], [1], [0], [0], [0, 0, 1, 0], [], []>} : vector<8x16xf32>, vector<8x16xf32>, vector<8x8xf32> -> vector<8x8xf32>
    %796 = vector.broadcast %737 : vector<8x1xf32> to vector<8x8xf32>
    %797 = arith.subf %794, %796 : vector<8x8xf32>
    %cst_224 = arith.constant 1.000000e-01 : f32
    %798 = vector.broadcast %cst_224 : f32 to vector<8x8xf32>
    %799 = arith.subf %797, %798 : vector<8x8xf32>
    %cst_225 = arith.constant -1.000000e+00 : f32
    %800 = vector.broadcast %cst_225 : f32 to vector<8x8xf32>
    %801 = arith.mulf %800, %799 : vector<8x8xf32>
    %802 = arith.mulf %801, %799 : vector<8x8xf32>
    %803 = math.exp %802 : vector<8x8xf32>
    %cst_226 = arith.constant 0.000000e+00 : f32
    %cst_227 = arith.constant 9.990000e-01 : f32
    %804 = vector.broadcast %cst_226 : f32 to vector<8x8xf32>
    %805 = arith.maximumf %804, %803 : vector<8x8xf32>
    %806 = vector.broadcast %cst_227 : f32 to vector<8x8xf32>
    %807 = arith.minimumf %806, %805 : vector<8x8xf32>
    %808 = tpu.iota {dimensions = array<i32: 0>} : vector<8x8xi32>
    %809 = tpu.iota {dimensions = array<i32: 1>} : vector<8x8xi32>
    %c8_i32_228 = arith.constant 8 : i32
    %810 = vector.broadcast %c8_i32_228 : i32 to vector<8x8xi32>
    %811 = arith.muli %808, %810 : vector<8x8xi32>
    %812 = arith.addi %811, %809 : vector<8x8xi32>
    %c-1640531535_i32_229 = arith.constant -1640531535 : i32
    %813 = arith.muli %0, %c-1640531535_i32_229 : i32
    %814 = vector.broadcast %813 : i32 to vector<8x8xi32>
    %815 = arith.addi %812, %814 : vector<8x8xi32>
    %c387276917_i32 = arith.constant 387276917 : i32
    %816 = vector.broadcast %c387276917_i32 : i32 to vector<8x8xi32>
    %817 = arith.addi %815, %816 : vector<8x8xi32>
    %c16_i32_230 = arith.constant 16 : i32
    %818 = vector.broadcast %c16_i32_230 : i32 to vector<8x8xi32>
    %819 = arith.shrui %817, %818 : vector<8x8xi32>
    %820 = arith.xori %817, %819 : vector<8x8xi32>
    %c2146121005_i32_231 = arith.constant 2146121005 : i32
    %821 = vector.broadcast %c2146121005_i32_231 : i32 to vector<8x8xi32>
    %822 = arith.muli %820, %821 : vector<8x8xi32>
    %c15_i32_232 = arith.constant 15 : i32
    %823 = vector.broadcast %c15_i32_232 : i32 to vector<8x8xi32>
    %824 = arith.shrui %822, %823 : vector<8x8xi32>
    %825 = arith.xori %822, %824 : vector<8x8xi32>
    %c-2073254261_i32_233 = arith.constant -2073254261 : i32
    %826 = vector.broadcast %c-2073254261_i32_233 : i32 to vector<8x8xi32>
    %827 = arith.muli %825, %826 : vector<8x8xi32>
    %c16_i32_234 = arith.constant 16 : i32
    %828 = vector.broadcast %c16_i32_234 : i32 to vector<8x8xi32>
    %829 = arith.shrui %827, %828 : vector<8x8xi32>
    %830 = arith.xori %827, %829 : vector<8x8xi32>
    %c8_i32_235 = arith.constant 8 : i32
    %831 = vector.broadcast %c8_i32_235 : i32 to vector<8x8xi32>
    %832 = arith.shrui %830, %831 : vector<8x8xi32>
    %833 = arith.sitofp %832 : vector<8x8xi32> to vector<8x8xf32>
    %cst_236 = arith.constant 5.96046448E-8 : f32
    %834 = vector.broadcast %cst_236 : f32 to vector<8x8xf32>
    %835 = arith.mulf %833, %834 : vector<8x8xf32>
    %836 = arith.cmpf olt, %835, %807 : vector<8x8xf32>
    %837 = arith.extui %836 : vector<8x8xi1> to vector<8x8xi32>
    %838 = arith.sitofp %837 : vector<8x8xi32> to vector<8x8xf32>
    %839 = arith.mulf %795, %838 : vector<8x8xf32>
    %cst_237 = arith.constant 5.000000e-01 : f32
    %840 = vector.broadcast %cst_237 : f32 to vector<8x8xf32>
    %841 = arith.divf %839, %840 : vector<8x8xf32>
    %842 = math.exp %841 : vector<8x8xf32>
    %843 = arith.mulf %842, %838 : vector<8x8xf32>
    %844 = arith.mulf %843, %430 : vector<8x8xf32>
    %cst_238 = arith.constant dense<0.000000e+00> : vector<8xf32>
    %845 = vector.multi_reduction <add>, %844, %cst_238 [1] : vector<8x8xf32> to vector<8xf32>
    %846 = vector.shape_cast %845 : vector<8xf32> to vector<8x1xf32>
    %847 = arith.addf %793, %846 : vector<8x1xf32>
    %cst_239 = arith.constant dense<0.000000e+00> : vector<8x8xf32>
    %848 = tpu.matmul %439, %436, %cst_239 {dimension_numbers = #tpu.dot_dimension_numbers<[1], [1], [0], [0], [0, 0, 1, 0], [], []>} : vector<8x16xf32>, vector<8x16xf32>, vector<8x8xf32> -> vector<8x8xf32>
    %cst_240 = arith.constant dense<0.000000e+00> : vector<8x8xf32>
    %849 = tpu.matmul %734, %726, %cst_240 {dimension_numbers = #tpu.dot_dimension_numbers<[1], [1], [0], [0], [0, 0, 1, 0], [], []>} : vector<8x16xf32>, vector<8x16xf32>, vector<8x8xf32> -> vector<8x8xf32>
    %850 = vector.broadcast %737 : vector<8x1xf32> to vector<8x8xf32>
    %851 = arith.subf %848, %850 : vector<8x8xf32>
    %cst_241 = arith.constant 1.000000e-01 : f32
    %852 = vector.broadcast %cst_241 : f32 to vector<8x8xf32>
    %853 = arith.subf %851, %852 : vector<8x8xf32>
    %cst_242 = arith.constant -1.000000e+00 : f32
    %854 = vector.broadcast %cst_242 : f32 to vector<8x8xf32>
    %855 = arith.mulf %854, %853 : vector<8x8xf32>
    %856 = arith.mulf %855, %853 : vector<8x8xf32>
    %857 = math.exp %856 : vector<8x8xf32>
    %cst_243 = arith.constant 0.000000e+00 : f32
    %cst_244 = arith.constant 9.990000e-01 : f32
    %858 = vector.broadcast %cst_243 : f32 to vector<8x8xf32>
    %859 = arith.maximumf %858, %857 : vector<8x8xf32>
    %860 = vector.broadcast %cst_244 : f32 to vector<8x8xf32>
    %861 = arith.minimumf %860, %859 : vector<8x8xf32>
    %862 = tpu.iota {dimensions = array<i32: 0>} : vector<8x8xi32>
    %863 = tpu.iota {dimensions = array<i32: 1>} : vector<8x8xi32>
    %c8_i32_245 = arith.constant 8 : i32
    %864 = vector.broadcast %c8_i32_245 : i32 to vector<8x8xi32>
    %865 = arith.muli %862, %864 : vector<8x8xi32>
    %866 = arith.addi %865, %863 : vector<8x8xi32>
    %c-1640531535_i32_246 = arith.constant -1640531535 : i32
    %867 = arith.muli %0, %c-1640531535_i32_246 : i32
    %868 = vector.broadcast %867 : i32 to vector<8x8xi32>
    %869 = arith.addi %866, %868 : vector<8x8xi32>
    %c-1253254618_i32 = arith.constant -1253254618 : i32
    %870 = vector.broadcast %c-1253254618_i32 : i32 to vector<8x8xi32>
    %871 = arith.addi %869, %870 : vector<8x8xi32>
    %c16_i32_247 = arith.constant 16 : i32
    %872 = vector.broadcast %c16_i32_247 : i32 to vector<8x8xi32>
    %873 = arith.shrui %871, %872 : vector<8x8xi32>
    %874 = arith.xori %871, %873 : vector<8x8xi32>
    %c2146121005_i32_248 = arith.constant 2146121005 : i32
    %875 = vector.broadcast %c2146121005_i32_248 : i32 to vector<8x8xi32>
    %876 = arith.muli %874, %875 : vector<8x8xi32>
    %c15_i32_249 = arith.constant 15 : i32
    %877 = vector.broadcast %c15_i32_249 : i32 to vector<8x8xi32>
    %878 = arith.shrui %876, %877 : vector<8x8xi32>
    %879 = arith.xori %876, %878 : vector<8x8xi32>
    %c-2073254261_i32_250 = arith.constant -2073254261 : i32
    %880 = vector.broadcast %c-2073254261_i32_250 : i32 to vector<8x8xi32>
    %881 = arith.muli %879, %880 : vector<8x8xi32>
    %c16_i32_251 = arith.constant 16 : i32
    %882 = vector.broadcast %c16_i32_251 : i32 to vector<8x8xi32>
    %883 = arith.shrui %881, %882 : vector<8x8xi32>
    %884 = arith.xori %881, %883 : vector<8x8xi32>
    %c8_i32_252 = arith.constant 8 : i32
    %885 = vector.broadcast %c8_i32_252 : i32 to vector<8x8xi32>
    %886 = arith.shrui %884, %885 : vector<8x8xi32>
    %887 = arith.sitofp %886 : vector<8x8xi32> to vector<8x8xf32>
    %cst_253 = arith.constant 5.96046448E-8 : f32
    %888 = vector.broadcast %cst_253 : f32 to vector<8x8xf32>
    %889 = arith.mulf %887, %888 : vector<8x8xf32>
    %890 = arith.cmpf olt, %889, %861 : vector<8x8xf32>
    %891 = arith.extui %890 : vector<8x8xi1> to vector<8x8xi32>
    %892 = arith.sitofp %891 : vector<8x8xi32> to vector<8x8xf32>
    %893 = arith.mulf %849, %892 : vector<8x8xf32>
    %cst_254 = arith.constant 5.000000e-01 : f32
    %894 = vector.broadcast %cst_254 : f32 to vector<8x8xf32>
    %895 = arith.divf %893, %894 : vector<8x8xf32>
    %896 = math.exp %895 : vector<8x8xf32>
    %897 = arith.mulf %896, %892 : vector<8x8xf32>
    %898 = arith.mulf %897, %430 : vector<8x8xf32>
    %cst_255 = arith.constant dense<0.000000e+00> : vector<8xf32>
    %899 = vector.multi_reduction <add>, %898, %cst_255 [1] : vector<8x8xf32> to vector<8xf32>
    %900 = vector.shape_cast %899 : vector<8xf32> to vector<8x1xf32>
    %cst_256 = arith.constant dense<0.000000e+00> : vector<8x8xf32>
    %901 = tpu.matmul %439, %439, %cst_256 {dimension_numbers = #tpu.dot_dimension_numbers<[1], [1], [0], [0], [0, 0, 1, 0], [], []>} : vector<8x16xf32>, vector<8x16xf32>, vector<8x8xf32> -> vector<8x8xf32>
    %cst_257 = arith.constant dense<0.000000e+00> : vector<8x8xf32>
    %902 = tpu.matmul %734, %734, %cst_257 {dimension_numbers = #tpu.dot_dimension_numbers<[1], [1], [0], [0], [0, 0, 1, 0], [], []>} : vector<8x16xf32>, vector<8x16xf32>, vector<8x8xf32> -> vector<8x8xf32>
    %903 = vector.broadcast %737 : vector<8x1xf32> to vector<8x8xf32>
    %904 = arith.subf %901, %903 : vector<8x8xf32>
    %cst_258 = arith.constant 1.000000e-01 : f32
    %905 = vector.broadcast %cst_258 : f32 to vector<8x8xf32>
    %906 = arith.subf %904, %905 : vector<8x8xf32>
    %cst_259 = arith.constant -1.000000e+00 : f32
    %907 = vector.broadcast %cst_259 : f32 to vector<8x8xf32>
    %908 = arith.mulf %907, %906 : vector<8x8xf32>
    %909 = arith.mulf %908, %906 : vector<8x8xf32>
    %910 = math.exp %909 : vector<8x8xf32>
    %cst_260 = arith.constant 0.000000e+00 : f32
    %cst_261 = arith.constant 9.990000e-01 : f32
    %911 = vector.broadcast %cst_260 : f32 to vector<8x8xf32>
    %912 = arith.maximumf %911, %910 : vector<8x8xf32>
    %913 = vector.broadcast %cst_261 : f32 to vector<8x8xf32>
    %914 = arith.minimumf %913, %912 : vector<8x8xf32>
    %915 = tpu.iota {dimensions = array<i32: 0>} : vector<8x8xi32>
    %916 = tpu.iota {dimensions = array<i32: 1>} : vector<8x8xi32>
    %c8_i32_262 = arith.constant 8 : i32
    %917 = vector.broadcast %c8_i32_262 : i32 to vector<8x8xi32>
    %918 = arith.muli %915, %917 : vector<8x8xi32>
    %919 = arith.addi %918, %916 : vector<8x8xi32>
    %c-1640531535_i32_263 = arith.constant -1640531535 : i32
    %920 = arith.muli %0, %c-1640531535_i32_263 : i32
    %921 = vector.broadcast %920 : i32 to vector<8x8xi32>
    %922 = arith.addi %919, %921 : vector<8x8xi32>
    %c1401181143_i32 = arith.constant 1401181143 : i32
    %923 = vector.broadcast %c1401181143_i32 : i32 to vector<8x8xi32>
    %924 = arith.addi %922, %923 : vector<8x8xi32>
    %c16_i32_264 = arith.constant 16 : i32
    %925 = vector.broadcast %c16_i32_264 : i32 to vector<8x8xi32>
    %926 = arith.shrui %924, %925 : vector<8x8xi32>
    %927 = arith.xori %924, %926 : vector<8x8xi32>
    %c2146121005_i32_265 = arith.constant 2146121005 : i32
    %928 = vector.broadcast %c2146121005_i32_265 : i32 to vector<8x8xi32>
    %929 = arith.muli %927, %928 : vector<8x8xi32>
    %c15_i32_266 = arith.constant 15 : i32
    %930 = vector.broadcast %c15_i32_266 : i32 to vector<8x8xi32>
    %931 = arith.shrui %929, %930 : vector<8x8xi32>
    %932 = arith.xori %929, %931 : vector<8x8xi32>
    %c-2073254261_i32_267 = arith.constant -2073254261 : i32
    %933 = vector.broadcast %c-2073254261_i32_267 : i32 to vector<8x8xi32>
    %934 = arith.muli %932, %933 : vector<8x8xi32>
    %c16_i32_268 = arith.constant 16 : i32
    %935 = vector.broadcast %c16_i32_268 : i32 to vector<8x8xi32>
    %936 = arith.shrui %934, %935 : vector<8x8xi32>
    %937 = arith.xori %934, %936 : vector<8x8xi32>
    %c8_i32_269 = arith.constant 8 : i32
    %938 = vector.broadcast %c8_i32_269 : i32 to vector<8x8xi32>
    %939 = arith.shrui %937, %938 : vector<8x8xi32>
    %940 = arith.sitofp %939 : vector<8x8xi32> to vector<8x8xf32>
    %cst_270 = arith.constant 5.96046448E-8 : f32
    %941 = vector.broadcast %cst_270 : f32 to vector<8x8xf32>
    %942 = arith.mulf %940, %941 : vector<8x8xf32>
    %943 = arith.cmpf olt, %942, %914 : vector<8x8xf32>
    %944 = arith.extui %943 : vector<8x8xi1> to vector<8x8xi32>
    %945 = arith.sitofp %944 : vector<8x8xi32> to vector<8x8xf32>
    %946 = arith.mulf %902, %945 : vector<8x8xf32>
    %cst_271 = arith.constant 5.000000e-01 : f32
    %947 = vector.broadcast %cst_271 : f32 to vector<8x8xf32>
    %948 = arith.divf %946, %947 : vector<8x8xf32>
    %949 = math.exp %948 : vector<8x8xf32>
    %950 = arith.mulf %949, %945 : vector<8x8xf32>
    %951 = arith.mulf %950, %430 : vector<8x8xf32>
    %cst_272 = arith.constant dense<0.000000e+00> : vector<8xf32>
    %952 = vector.multi_reduction <add>, %951, %cst_272 [1] : vector<8x8xf32> to vector<8xf32>
    %953 = vector.shape_cast %952 : vector<8xf32> to vector<8x1xf32>
    %954 = arith.addf %900, %953 : vector<8x1xf32>
    %cst_273 = arith.constant 5.000000e-01 : f32
    %955 = vector.broadcast %cst_273 : f32 to vector<8x1xf32>
    %956 = arith.divf %740, %955 : vector<8x1xf32>
    %957 = math.exp %956 : vector<8x1xf32>
    %958 = vector.broadcast %847 : vector<8x1xf32> to vector<8x8xf32>
    %959 = arith.mulf %958, %428 : vector<8x8xf32>
    %cst_274 = arith.constant dense<0.000000e+00> : vector<8xf32>
    %960 = vector.multi_reduction <add>, %959, %cst_274 [0] : vector<8x8xf32> to vector<8xf32>
    %961 = vector.shape_cast %960 : vector<8xf32> to vector<1x8xf32>
    %962 = vector.broadcast %954 : vector<8x1xf32> to vector<8x8xf32>
    %963 = arith.mulf %962, %428 : vector<8x8xf32>
    %cst_275 = arith.constant dense<0.000000e+00> : vector<8xf32>
    %964 = vector.multi_reduction <add>, %963, %cst_275 [0] : vector<8x8xf32> to vector<8xf32>
    %965 = vector.shape_cast %964 : vector<8xf32> to vector<1x8xf32>
    %966 = vector.broadcast %957 : vector<8x1xf32> to vector<8x8xf32>
    %967 = vector.broadcast %961 : vector<1x8xf32> to vector<8x8xf32>
    %968 = arith.addf %966, %967 : vector<8x8xf32>
    %969 = math.log %968 : vector<8x8xf32>
    %970 = vector.shape_cast %969 : vector<8x8xf32> to vector<1x8x8xf32>
    %cst_276 = arith.constant dense<0.000000e+00> : vector<1xf32>
    %971 = vector.multi_reduction <add>, %970, %cst_276 [1, 2] : vector<1x8x8xf32> to vector<1xf32>
    %972 = vector.shape_cast %971 : vector<1xf32> to vector<1x1x1xf32>
    %973 = vector.extract %972[0, 0, 0] : f32 from vector<1x1x1xf32>
    %974 = vector.broadcast %957 : vector<8x1xf32> to vector<8x8xf32>
    %975 = vector.broadcast %965 : vector<1x8xf32> to vector<8x8xf32>
    %976 = arith.addf %974, %975 : vector<8x8xf32>
    %977 = math.log %976 : vector<8x8xf32>
    %978 = vector.shape_cast %977 : vector<8x8xf32> to vector<1x8x8xf32>
    %cst_277 = arith.constant dense<0.000000e+00> : vector<1xf32>
    %979 = vector.multi_reduction <add>, %978, %cst_277 [1, 2] : vector<1x8x8xf32> to vector<1xf32>
    %980 = vector.shape_cast %979 : vector<1xf32> to vector<1x1x1xf32>
    %981 = vector.extract %980[0, 0, 0] : f32 from vector<1x1x1xf32>
    %982 = arith.addf %973, %981 : f32
    %cst_278 = arith.constant 2.000000e+00 : f32
    %983 = arith.mulf %cst_278, %982 : f32
    %cst_279 = arith.constant 5.000000e-01 : f32
    %984 = vector.broadcast %cst_279 : f32 to vector<8x1xf32>
    %985 = arith.divf %740, %984 : vector<8x1xf32>
    %986 = vector.shape_cast %985 : vector<8x1xf32> to vector<1x8x1xf32>
    %cst_280 = arith.constant dense<0.000000e+00> : vector<1xf32>
    %987 = vector.multi_reduction <add>, %986, %cst_280 [1, 2] : vector<1x8x1xf32> to vector<1xf32>
    %988 = vector.shape_cast %987 : vector<1xf32> to vector<1x1x1xf32>
    %989 = vector.extract %988[0, 0, 0] : f32 from vector<1x1x1xf32>
    %cst_281 = arith.constant 3.200000e+01 : f32
    %990 = arith.mulf %cst_281, %989 : f32
    %991 = arith.subf %983, %990 : f32
    %cst_282 = arith.constant 2.560000e+02 : f32
    %992 = arith.divf %991, %cst_282 : f32
    %993 = arith.addf %718, %992 : f32
    %994 = arith.mulf %435, %435 : vector<8x16xf32>
    %cst_283 = arith.constant dense<0.000000e+00> : vector<8xf32>
    %995 = vector.multi_reduction <add>, %994, %cst_283 [1] : vector<8x16xf32> to vector<8xf32>
    %996 = vector.shape_cast %995 : vector<8xf32> to vector<8x1xf32>
    %cst_284 = arith.constant 1.000000e-24 : f32
    %997 = vector.broadcast %cst_284 : f32 to vector<8x1xf32>
    %998 = arith.maximumf %996, %997 : vector<8x1xf32>
    %999 = math.rsqrt %998 : vector<8x1xf32>
    %1000 = vector.broadcast %999 : vector<8x1xf32> to vector<8x16xf32>
    %1001 = arith.mulf %435, %1000 : vector<8x16xf32>
    %1002 = arith.mulf %437, %437 : vector<8x16xf32>
    %cst_285 = arith.constant dense<0.000000e+00> : vector<8xf32>
    %1003 = vector.multi_reduction <add>, %1002, %cst_285 [1] : vector<8x16xf32> to vector<8xf32>
    %1004 = vector.shape_cast %1003 : vector<8xf32> to vector<8x1xf32>
    %cst_286 = arith.constant 1.000000e-24 : f32
    %1005 = vector.broadcast %cst_286 : f32 to vector<8x1xf32>
    %1006 = arith.maximumf %1004, %1005 : vector<8x1xf32>
    %1007 = math.rsqrt %1006 : vector<8x1xf32>
    %1008 = vector.broadcast %1007 : vector<8x1xf32> to vector<8x16xf32>
    %1009 = arith.mulf %437, %1008 : vector<8x16xf32>
    %1010 = arith.mulf %440, %440 : vector<8x16xf32>
    %cst_287 = arith.constant dense<0.000000e+00> : vector<8xf32>
    %1011 = vector.multi_reduction <add>, %1010, %cst_287 [1] : vector<8x16xf32> to vector<8xf32>
    %1012 = vector.shape_cast %1011 : vector<8xf32> to vector<8x1xf32>
    %cst_288 = arith.constant 1.000000e-24 : f32
    %1013 = vector.broadcast %cst_288 : f32 to vector<8x1xf32>
    %1014 = arith.maximumf %1012, %1013 : vector<8x1xf32>
    %1015 = math.rsqrt %1014 : vector<8x1xf32>
    %1016 = vector.broadcast %1015 : vector<8x1xf32> to vector<8x16xf32>
    %1017 = arith.mulf %440, %1016 : vector<8x16xf32>
    %1018 = arith.mulf %442, %442 : vector<8x16xf32>
    %cst_289 = arith.constant dense<0.000000e+00> : vector<8xf32>
    %1019 = vector.multi_reduction <add>, %1018, %cst_289 [1] : vector<8x16xf32> to vector<8xf32>
    %1020 = vector.shape_cast %1019 : vector<8xf32> to vector<8x1xf32>
    %cst_290 = arith.constant 1.000000e-24 : f32
    %1021 = vector.broadcast %cst_290 : f32 to vector<8x1xf32>
    %1022 = arith.maximumf %1020, %1021 : vector<8x1xf32>
    %1023 = math.rsqrt %1022 : vector<8x1xf32>
    %1024 = vector.broadcast %1023 : vector<8x1xf32> to vector<8x16xf32>
    %1025 = arith.mulf %442, %1024 : vector<8x16xf32>
    %1026 = arith.mulf %444, %444 : vector<8x16xf32>
    %cst_291 = arith.constant dense<0.000000e+00> : vector<8xf32>
    %1027 = vector.multi_reduction <add>, %1026, %cst_291 [1] : vector<8x16xf32> to vector<8xf32>
    %1028 = vector.shape_cast %1027 : vector<8xf32> to vector<8x1xf32>
    %cst_292 = arith.constant 1.000000e-24 : f32
    %1029 = vector.broadcast %cst_292 : f32 to vector<8x1xf32>
    %1030 = arith.maximumf %1028, %1029 : vector<8x1xf32>
    %1031 = math.rsqrt %1030 : vector<8x1xf32>
    %1032 = vector.broadcast %1031 : vector<8x1xf32> to vector<8x16xf32>
    %1033 = arith.mulf %444, %1032 : vector<8x16xf32>
    %1034 = arith.mulf %1001, %1017 : vector<8x16xf32>
    %cst_293 = arith.constant dense<0.000000e+00> : vector<8xf32>
    %1035 = vector.multi_reduction <add>, %1034, %cst_293 [1] : vector<8x16xf32> to vector<8xf32>
    %1036 = vector.shape_cast %1035 : vector<8xf32> to vector<8x1xf32>
    %1037 = arith.mulf %1001, %1025 : vector<8x16xf32>
    %cst_294 = arith.constant dense<0.000000e+00> : vector<8xf32>
    %1038 = vector.multi_reduction <add>, %1037, %cst_294 [1] : vector<8x16xf32> to vector<8xf32>
    %1039 = vector.shape_cast %1038 : vector<8xf32> to vector<8x1xf32>
    %1040 = arith.mulf %1001, %1033 : vector<8x16xf32>
    %cst_295 = arith.constant dense<0.000000e+00> : vector<8xf32>
    %1041 = vector.multi_reduction <add>, %1040, %cst_295 [1] : vector<8x16xf32> to vector<8xf32>
    %1042 = vector.shape_cast %1041 : vector<8xf32> to vector<8x1xf32>
    %cst_296 = arith.constant 0.000000e+00 : f32
    %1043 = vector.broadcast %cst_296 : f32 to vector<8x1xf32>
    %cst_297 = arith.constant dense<0.000000e+00> : vector<8x8xf32>
    %1044 = tpu.matmul %1001, %1017, %cst_297 {dimension_numbers = #tpu.dot_dimension_numbers<[1], [1], [0], [0], [0, 0, 1, 0], [], []>} : vector<8x16xf32>, vector<8x16xf32>, vector<8x8xf32> -> vector<8x8xf32>
    %1045 = vector.broadcast %1036 : vector<8x1xf32> to vector<8x8xf32>
    %1046 = arith.subf %1044, %1045 : vector<8x8xf32>
    %cst_298 = arith.constant 1.000000e-01 : f32
    %1047 = vector.broadcast %cst_298 : f32 to vector<8x8xf32>
    %1048 = arith.subf %1046, %1047 : vector<8x8xf32>
    %cst_299 = arith.constant -1.000000e+00 : f32
    %1049 = vector.broadcast %cst_299 : f32 to vector<8x8xf32>
    %1050 = arith.mulf %1049, %1048 : vector<8x8xf32>
    %1051 = arith.mulf %1050, %1048 : vector<8x8xf32>
    %1052 = math.exp %1051 : vector<8x8xf32>
    %cst_300 = arith.constant 0.000000e+00 : f32
    %cst_301 = arith.constant 9.990000e-01 : f32
    %1053 = vector.broadcast %cst_300 : f32 to vector<8x8xf32>
    %1054 = arith.maximumf %1053, %1052 : vector<8x8xf32>
    %1055 = vector.broadcast %cst_301 : f32 to vector<8x8xf32>
    %1056 = arith.minimumf %1055, %1054 : vector<8x8xf32>
    %1057 = tpu.iota {dimensions = array<i32: 0>} : vector<8x8xi32>
    %1058 = tpu.iota {dimensions = array<i32: 1>} : vector<8x8xi32>
    %c8_i32_302 = arith.constant 8 : i32
    %1059 = vector.broadcast %c8_i32_302 : i32 to vector<8x8xi32>
    %1060 = arith.muli %1057, %1059 : vector<8x8xi32>
    %1061 = arith.addi %1060, %1058 : vector<8x8xi32>
    %c-1640531535_i32_303 = arith.constant -1640531535 : i32
    %1062 = arith.muli %0, %c-1640531535_i32_303 : i32
    %1063 = vector.broadcast %1062 : i32 to vector<8x8xi32>
    %1064 = arith.addi %1061, %1063 : vector<8x8xi32>
    %c-239350392_i32 = arith.constant -239350392 : i32
    %1065 = vector.broadcast %c-239350392_i32 : i32 to vector<8x8xi32>
    %1066 = arith.addi %1064, %1065 : vector<8x8xi32>
    %c16_i32_304 = arith.constant 16 : i32
    %1067 = vector.broadcast %c16_i32_304 : i32 to vector<8x8xi32>
    %1068 = arith.shrui %1066, %1067 : vector<8x8xi32>
    %1069 = arith.xori %1066, %1068 : vector<8x8xi32>
    %c2146121005_i32_305 = arith.constant 2146121005 : i32
    %1070 = vector.broadcast %c2146121005_i32_305 : i32 to vector<8x8xi32>
    %1071 = arith.muli %1069, %1070 : vector<8x8xi32>
    %c15_i32_306 = arith.constant 15 : i32
    %1072 = vector.broadcast %c15_i32_306 : i32 to vector<8x8xi32>
    %1073 = arith.shrui %1071, %1072 : vector<8x8xi32>
    %1074 = arith.xori %1071, %1073 : vector<8x8xi32>
    %c-2073254261_i32_307 = arith.constant -2073254261 : i32
    %1075 = vector.broadcast %c-2073254261_i32_307 : i32 to vector<8x8xi32>
    %1076 = arith.muli %1074, %1075 : vector<8x8xi32>
    %c16_i32_308 = arith.constant 16 : i32
    %1077 = vector.broadcast %c16_i32_308 : i32 to vector<8x8xi32>
    %1078 = arith.shrui %1076, %1077 : vector<8x8xi32>
    %1079 = arith.xori %1076, %1078 : vector<8x8xi32>
    %c8_i32_309 = arith.constant 8 : i32
    %1080 = vector.broadcast %c8_i32_309 : i32 to vector<8x8xi32>
    %1081 = arith.shrui %1079, %1080 : vector<8x8xi32>
    %1082 = arith.sitofp %1081 : vector<8x8xi32> to vector<8x8xf32>
    %cst_310 = arith.constant 5.96046448E-8 : f32
    %1083 = vector.broadcast %cst_310 : f32 to vector<8x8xf32>
    %1084 = arith.mulf %1082, %1083 : vector<8x8xf32>
    %1085 = arith.cmpf olt, %1084, %1056 : vector<8x8xf32>
    %1086 = arith.extui %1085 : vector<8x8xi1> to vector<8x8xi32>
    %1087 = arith.sitofp %1086 : vector<8x8xi32> to vector<8x8xf32>
    %1088 = arith.mulf %1044, %1087 : vector<8x8xf32>
    %cst_311 = arith.constant 1.000000e+00 : f32
    %1089 = vector.broadcast %cst_311 : f32 to vector<8x8xf32>
    %1090 = arith.divf %1088, %1089 : vector<8x8xf32>
    %1091 = math.exp %1090 : vector<8x8xf32>
    %1092 = arith.mulf %1091, %1087 : vector<8x8xf32>
    %1093 = arith.mulf %1092, %430 : vector<8x8xf32>
    %cst_312 = arith.constant dense<0.000000e+00> : vector<8xf32>
    %1094 = vector.multi_reduction <add>, %1093, %cst_312 [1] : vector<8x8xf32> to vector<8xf32>
    %1095 = vector.shape_cast %1094 : vector<8xf32> to vector<8x1xf32>
    %1096 = arith.addf %1043, %1095 : vector<8x1xf32>
    %cst_313 = arith.constant dense<0.000000e+00> : vector<8x8xf32>
    %1097 = tpu.matmul %1001, %1025, %cst_313 {dimension_numbers = #tpu.dot_dimension_numbers<[1], [1], [0], [0], [0, 0, 1, 0], [], []>} : vector<8x16xf32>, vector<8x16xf32>, vector<8x8xf32> -> vector<8x8xf32>
    %1098 = vector.broadcast %1036 : vector<8x1xf32> to vector<8x8xf32>
    %1099 = arith.subf %1097, %1098 : vector<8x8xf32>
    %cst_314 = arith.constant 1.000000e-01 : f32
    %1100 = vector.broadcast %cst_314 : f32 to vector<8x8xf32>
    %1101 = arith.subf %1099, %1100 : vector<8x8xf32>
    %cst_315 = arith.constant -1.000000e+00 : f32
    %1102 = vector.broadcast %cst_315 : f32 to vector<8x8xf32>
    %1103 = arith.mulf %1102, %1101 : vector<8x8xf32>
    %1104 = arith.mulf %1103, %1101 : vector<8x8xf32>
    %1105 = math.exp %1104 : vector<8x8xf32>
    %cst_316 = arith.constant 0.000000e+00 : f32
    %cst_317 = arith.constant 9.990000e-01 : f32
    %1106 = vector.broadcast %cst_316 : f32 to vector<8x8xf32>
    %1107 = arith.maximumf %1106, %1105 : vector<8x8xf32>
    %1108 = vector.broadcast %cst_317 : f32 to vector<8x8xf32>
    %1109 = arith.minimumf %1108, %1107 : vector<8x8xf32>
    %1110 = tpu.iota {dimensions = array<i32: 0>} : vector<8x8xi32>
    %1111 = tpu.iota {dimensions = array<i32: 1>} : vector<8x8xi32>
    %c8_i32_318 = arith.constant 8 : i32
    %1112 = vector.broadcast %c8_i32_318 : i32 to vector<8x8xi32>
    %1113 = arith.muli %1110, %1112 : vector<8x8xi32>
    %1114 = arith.addi %1113, %1111 : vector<8x8xi32>
    %c-1640531535_i32_319 = arith.constant -1640531535 : i32
    %1115 = arith.muli %0, %c-1640531535_i32_319 : i32
    %1116 = vector.broadcast %1115 : i32 to vector<8x8xi32>
    %1117 = arith.addi %1114, %1116 : vector<8x8xi32>
    %c-1879881927_i32 = arith.constant -1879881927 : i32
    %1118 = vector.broadcast %c-1879881927_i32 : i32 to vector<8x8xi32>
    %1119 = arith.addi %1117, %1118 : vector<8x8xi32>
    %c16_i32_320 = arith.constant 16 : i32
    %1120 = vector.broadcast %c16_i32_320 : i32 to vector<8x8xi32>
    %1121 = arith.shrui %1119, %1120 : vector<8x8xi32>
    %1122 = arith.xori %1119, %1121 : vector<8x8xi32>
    %c2146121005_i32_321 = arith.constant 2146121005 : i32
    %1123 = vector.broadcast %c2146121005_i32_321 : i32 to vector<8x8xi32>
    %1124 = arith.muli %1122, %1123 : vector<8x8xi32>
    %c15_i32_322 = arith.constant 15 : i32
    %1125 = vector.broadcast %c15_i32_322 : i32 to vector<8x8xi32>
    %1126 = arith.shrui %1124, %1125 : vector<8x8xi32>
    %1127 = arith.xori %1124, %1126 : vector<8x8xi32>
    %c-2073254261_i32_323 = arith.constant -2073254261 : i32
    %1128 = vector.broadcast %c-2073254261_i32_323 : i32 to vector<8x8xi32>
    %1129 = arith.muli %1127, %1128 : vector<8x8xi32>
    %c16_i32_324 = arith.constant 16 : i32
    %1130 = vector.broadcast %c16_i32_324 : i32 to vector<8x8xi32>
    %1131 = arith.shrui %1129, %1130 : vector<8x8xi32>
    %1132 = arith.xori %1129, %1131 : vector<8x8xi32>
    %c8_i32_325 = arith.constant 8 : i32
    %1133 = vector.broadcast %c8_i32_325 : i32 to vector<8x8xi32>
    %1134 = arith.shrui %1132, %1133 : vector<8x8xi32>
    %1135 = arith.sitofp %1134 : vector<8x8xi32> to vector<8x8xf32>
    %cst_326 = arith.constant 5.96046448E-8 : f32
    %1136 = vector.broadcast %cst_326 : f32 to vector<8x8xf32>
    %1137 = arith.mulf %1135, %1136 : vector<8x8xf32>
    %1138 = arith.cmpf olt, %1137, %1109 : vector<8x8xf32>
    %1139 = arith.extui %1138 : vector<8x8xi1> to vector<8x8xi32>
    %1140 = arith.sitofp %1139 : vector<8x8xi32> to vector<8x8xf32>
    %1141 = arith.mulf %1097, %1140 : vector<8x8xf32>
    %cst_327 = arith.constant 1.000000e+00 : f32
    %1142 = vector.broadcast %cst_327 : f32 to vector<8x8xf32>
    %1143 = arith.divf %1141, %1142 : vector<8x8xf32>
    %1144 = math.exp %1143 : vector<8x8xf32>
    %1145 = arith.mulf %1144, %1140 : vector<8x8xf32>
    %1146 = arith.mulf %1145, %430 : vector<8x8xf32>
    %cst_328 = arith.constant dense<0.000000e+00> : vector<8xf32>
    %1147 = vector.multi_reduction <add>, %1146, %cst_328 [1] : vector<8x8xf32> to vector<8xf32>
    %1148 = vector.shape_cast %1147 : vector<8xf32> to vector<8x1xf32>
    %1149 = arith.addf %1096, %1148 : vector<8x1xf32>
    %cst_329 = arith.constant dense<0.000000e+00> : vector<8x8xf32>
    %1150 = tpu.matmul %1001, %1033, %cst_329 {dimension_numbers = #tpu.dot_dimension_numbers<[1], [1], [0], [0], [0, 0, 1, 0], [], []>} : vector<8x16xf32>, vector<8x16xf32>, vector<8x8xf32> -> vector<8x8xf32>
    %1151 = vector.broadcast %1036 : vector<8x1xf32> to vector<8x8xf32>
    %1152 = arith.subf %1150, %1151 : vector<8x8xf32>
    %cst_330 = arith.constant 1.000000e-01 : f32
    %1153 = vector.broadcast %cst_330 : f32 to vector<8x8xf32>
    %1154 = arith.subf %1152, %1153 : vector<8x8xf32>
    %cst_331 = arith.constant -1.000000e+00 : f32
    %1155 = vector.broadcast %cst_331 : f32 to vector<8x8xf32>
    %1156 = arith.mulf %1155, %1154 : vector<8x8xf32>
    %1157 = arith.mulf %1156, %1154 : vector<8x8xf32>
    %1158 = math.exp %1157 : vector<8x8xf32>
    %cst_332 = arith.constant 0.000000e+00 : f32
    %cst_333 = arith.constant 9.990000e-01 : f32
    %1159 = vector.broadcast %cst_332 : f32 to vector<8x8xf32>
    %1160 = arith.maximumf %1159, %1158 : vector<8x8xf32>
    %1161 = vector.broadcast %cst_333 : f32 to vector<8x8xf32>
    %1162 = arith.minimumf %1161, %1160 : vector<8x8xf32>
    %1163 = tpu.iota {dimensions = array<i32: 0>} : vector<8x8xi32>
    %1164 = tpu.iota {dimensions = array<i32: 1>} : vector<8x8xi32>
    %c8_i32_334 = arith.constant 8 : i32
    %1165 = vector.broadcast %c8_i32_334 : i32 to vector<8x8xi32>
    %1166 = arith.muli %1163, %1165 : vector<8x8xi32>
    %1167 = arith.addi %1166, %1164 : vector<8x8xi32>
    %c-1640531535_i32_335 = arith.constant -1640531535 : i32
    %1168 = arith.muli %0, %c-1640531535_i32_335 : i32
    %1169 = vector.broadcast %1168 : i32 to vector<8x8xi32>
    %1170 = arith.addi %1167, %1169 : vector<8x8xi32>
    %c774553834_i32 = arith.constant 774553834 : i32
    %1171 = vector.broadcast %c774553834_i32 : i32 to vector<8x8xi32>
    %1172 = arith.addi %1170, %1171 : vector<8x8xi32>
    %c16_i32_336 = arith.constant 16 : i32
    %1173 = vector.broadcast %c16_i32_336 : i32 to vector<8x8xi32>
    %1174 = arith.shrui %1172, %1173 : vector<8x8xi32>
    %1175 = arith.xori %1172, %1174 : vector<8x8xi32>
    %c2146121005_i32_337 = arith.constant 2146121005 : i32
    %1176 = vector.broadcast %c2146121005_i32_337 : i32 to vector<8x8xi32>
    %1177 = arith.muli %1175, %1176 : vector<8x8xi32>
    %c15_i32_338 = arith.constant 15 : i32
    %1178 = vector.broadcast %c15_i32_338 : i32 to vector<8x8xi32>
    %1179 = arith.shrui %1177, %1178 : vector<8x8xi32>
    %1180 = arith.xori %1177, %1179 : vector<8x8xi32>
    %c-2073254261_i32_339 = arith.constant -2073254261 : i32
    %1181 = vector.broadcast %c-2073254261_i32_339 : i32 to vector<8x8xi32>
    %1182 = arith.muli %1180, %1181 : vector<8x8xi32>
    %c16_i32_340 = arith.constant 16 : i32
    %1183 = vector.broadcast %c16_i32_340 : i32 to vector<8x8xi32>
    %1184 = arith.shrui %1182, %1183 : vector<8x8xi32>
    %1185 = arith.xori %1182, %1184 : vector<8x8xi32>
    %c8_i32_341 = arith.constant 8 : i32
    %1186 = vector.broadcast %c8_i32_341 : i32 to vector<8x8xi32>
    %1187 = arith.shrui %1185, %1186 : vector<8x8xi32>
    %1188 = arith.sitofp %1187 : vector<8x8xi32> to vector<8x8xf32>
    %cst_342 = arith.constant 5.96046448E-8 : f32
    %1189 = vector.broadcast %cst_342 : f32 to vector<8x8xf32>
    %1190 = arith.mulf %1188, %1189 : vector<8x8xf32>
    %1191 = arith.cmpf olt, %1190, %1162 : vector<8x8xf32>
    %1192 = arith.extui %1191 : vector<8x8xi1> to vector<8x8xi32>
    %1193 = arith.sitofp %1192 : vector<8x8xi32> to vector<8x8xf32>
    %1194 = arith.mulf %1150, %1193 : vector<8x8xf32>
    %cst_343 = arith.constant 1.000000e+00 : f32
    %1195 = vector.broadcast %cst_343 : f32 to vector<8x8xf32>
    %1196 = arith.divf %1194, %1195 : vector<8x8xf32>
    %1197 = math.exp %1196 : vector<8x8xf32>
    %1198 = arith.mulf %1197, %1193 : vector<8x8xf32>
    %1199 = arith.mulf %1198, %430 : vector<8x8xf32>
    %cst_344 = arith.constant dense<0.000000e+00> : vector<8xf32>
    %1200 = vector.multi_reduction <add>, %1199, %cst_344 [1] : vector<8x8xf32> to vector<8xf32>
    %1201 = vector.shape_cast %1200 : vector<8xf32> to vector<8x1xf32>
    %1202 = arith.addf %1149, %1201 : vector<8x1xf32>
    %cst_345 = arith.constant dense<0.000000e+00> : vector<8x8xf32>
    %1203 = tpu.matmul %1009, %1025, %cst_345 {dimension_numbers = #tpu.dot_dimension_numbers<[1], [1], [0], [0], [0, 0, 1, 0], [], []>} : vector<8x16xf32>, vector<8x16xf32>, vector<8x8xf32> -> vector<8x8xf32>
    %1204 = arith.addf %1203, %434 : vector<8x8xf32>
    %cst_346 = arith.constant dense<0.000000e+00> : vector<8x8xf32>
    %1205 = tpu.matmul %1009, %1033, %cst_346 {dimension_numbers = #tpu.dot_dimension_numbers<[1], [1], [0], [0], [0, 0, 1, 0], [], []>} : vector<8x16xf32>, vector<8x16xf32>, vector<8x8xf32> -> vector<8x8xf32>
    %1206 = arith.addf %1205, %434 : vector<8x8xf32>
    %cst_347 = arith.constant dense<0xFF800000> : vector<8xf32>
    %1207 = vector.multi_reduction <maximumf>, %1204, %cst_347 [1] : vector<8x8xf32> to vector<8xf32>
    %1208 = vector.shape_cast %1207 : vector<8xf32> to vector<8x1xf32>
    %cst_348 = arith.constant dense<0xFF800000> : vector<8xf32>
    %1209 = vector.multi_reduction <maximumf>, %1206, %cst_348 [1] : vector<8x8xf32> to vector<8xf32>
    %1210 = vector.shape_cast %1209 : vector<8xf32> to vector<8x1xf32>
    %1211 = arith.maximumf %1208, %1210 : vector<8x1xf32>
    %1212 = vector.broadcast %1211 : vector<8x1xf32> to vector<8x8xf32>
    %1213 = arith.subf %1204, %1212 : vector<8x8xf32>
    %1214 = math.exp %1213 : vector<8x8xf32>
    %1215 = vector.broadcast %1211 : vector<8x1xf32> to vector<8x8xf32>
    %1216 = arith.subf %1206, %1215 : vector<8x8xf32>
    %1217 = math.exp %1216 : vector<8x8xf32>
    %cst_349 = arith.constant dense<0.000000e+00> : vector<8xf32>
    %1218 = vector.multi_reduction <add>, %1214, %cst_349 [1] : vector<8x8xf32> to vector<8xf32>
    %1219 = vector.shape_cast %1218 : vector<8xf32> to vector<8x1xf32>
    %cst_350 = arith.constant dense<0.000000e+00> : vector<8xf32>
    %1220 = vector.multi_reduction <add>, %1217, %cst_350 [1] : vector<8x8xf32> to vector<8xf32>
    %1221 = vector.shape_cast %1220 : vector<8xf32> to vector<8x1xf32>
    %1222 = arith.addf %1219, %1221 : vector<8x1xf32>
    %1223 = arith.mulf %1214, %428 : vector<8x8xf32>
    %cst_351 = arith.constant dense<0.000000e+00> : vector<8xf32>
    %1224 = vector.multi_reduction <add>, %1223, %cst_351 [1] : vector<8x8xf32> to vector<8xf32>
    %1225 = vector.shape_cast %1224 : vector<8xf32> to vector<8x1xf32>
    %1226 = arith.divf %1225, %1222 : vector<8x1xf32>
    %1227 = arith.mulf %1217, %428 : vector<8x8xf32>
    %cst_352 = arith.constant dense<0.000000e+00> : vector<8xf32>
    %1228 = vector.multi_reduction <add>, %1227, %cst_352 [1] : vector<8x8xf32> to vector<8xf32>
    %1229 = vector.shape_cast %1228 : vector<8xf32> to vector<8x1xf32>
    %1230 = arith.divf %1229, %1222 : vector<8x1xf32>
    %cst_353 = arith.constant 0.000000e+00 : f32
    %1231 = vector.broadcast %cst_353 : f32 to vector<8x1xf32>
    %1232 = arith.cmpf ogt, %1226, %1231 : vector<8x1xf32>
    %1233 = arith.extui %1232 : vector<8x1xi1> to vector<8x1xi32>
    %1234 = arith.sitofp %1233 : vector<8x1xi32> to vector<8x1xf32>
    %cst_354 = arith.constant 0.000000e+00 : f32
    %1235 = vector.broadcast %cst_354 : f32 to vector<8x1xf32>
    %1236 = arith.cmpf ogt, %1230, %1235 : vector<8x1xf32>
    %1237 = arith.extui %1236 : vector<8x1xi1> to vector<8x1xi32>
    %1238 = arith.sitofp %1237 : vector<8x1xi32> to vector<8x1xf32>
    %cst_355 = arith.constant 1.000000e+00 : f32
    %1239 = vector.broadcast %cst_355 : f32 to vector<8x1xf32>
    %1240 = arith.divf %1036, %1239 : vector<8x1xf32>
    %1241 = math.exp %1240 : vector<8x1xf32>
    %cst_356 = arith.constant 1.000000e+00 : f32
    %1242 = vector.broadcast %cst_356 : f32 to vector<8x1xf32>
    %1243 = arith.divf %1039, %1242 : vector<8x1xf32>
    %1244 = math.exp %1243 : vector<8x1xf32>
    %1245 = arith.mulf %1234, %1244 : vector<8x1xf32>
    %1246 = arith.addf %1241, %1245 : vector<8x1xf32>
    %cst_357 = arith.constant 1.000000e+00 : f32
    %1247 = vector.broadcast %cst_357 : f32 to vector<8x1xf32>
    %1248 = arith.divf %1042, %1247 : vector<8x1xf32>
    %1249 = math.exp %1248 : vector<8x1xf32>
    %1250 = arith.mulf %1238, %1249 : vector<8x1xf32>
    %1251 = arith.addf %1246, %1250 : vector<8x1xf32>
    %1252 = arith.addf %1251, %1202 : vector<8x1xf32>
    %1253 = math.log %1252 : vector<8x1xf32>
    %cst_358 = arith.constant 1.000000e+00 : f32
    %1254 = vector.broadcast %cst_358 : f32 to vector<8x1xf32>
    %1255 = arith.addf %1254, %1234 : vector<8x1xf32>
    %1256 = arith.addf %1255, %1238 : vector<8x1xf32>
    %1257 = arith.mulf %1256, %1253 : vector<8x1xf32>
    %1258 = arith.mulf %1234, %1039 : vector<8x1xf32>
    %1259 = arith.addf %1036, %1258 : vector<8x1xf32>
    %1260 = arith.mulf %1238, %1042 : vector<8x1xf32>
    %1261 = arith.addf %1259, %1260 : vector<8x1xf32>
    %cst_359 = arith.constant 1.000000e+00 : f32
    %1262 = vector.broadcast %cst_359 : f32 to vector<8x1xf32>
    %1263 = arith.divf %1261, %1262 : vector<8x1xf32>
    %1264 = arith.subf %1257, %1263 : vector<8x1xf32>
    %1265 = vector.shape_cast %1264 : vector<8x1xf32> to vector<1x8x1xf32>
    %cst_360 = arith.constant dense<0.000000e+00> : vector<1xf32>
    %1266 = vector.multi_reduction <add>, %1265, %cst_360 [1, 2] : vector<1x8x1xf32> to vector<1xf32>
    %1267 = vector.shape_cast %1266 : vector<1xf32> to vector<1x1x1xf32>
    %1268 = vector.extract %1267[0, 0, 0] : f32 from vector<1x1x1xf32>
    %cst_361 = arith.constant 8.000000e+00 : f32
    %1269 = arith.divf %1268, %cst_361 : f32
    %1270 = arith.mulf %436, %436 : vector<8x16xf32>
    %cst_362 = arith.constant dense<0.000000e+00> : vector<8xf32>
    %1271 = vector.multi_reduction <add>, %1270, %cst_362 [1] : vector<8x16xf32> to vector<8xf32>
    %1272 = vector.shape_cast %1271 : vector<8xf32> to vector<8x1xf32>
    %cst_363 = arith.constant 1.000000e-24 : f32
    %1273 = vector.broadcast %cst_363 : f32 to vector<8x1xf32>
    %1274 = arith.maximumf %1272, %1273 : vector<8x1xf32>
    %1275 = math.rsqrt %1274 : vector<8x1xf32>
    %1276 = vector.broadcast %1275 : vector<8x1xf32> to vector<8x16xf32>
    %1277 = arith.mulf %436, %1276 : vector<8x16xf32>
    %1278 = arith.mulf %438, %438 : vector<8x16xf32>
    %cst_364 = arith.constant dense<0.000000e+00> : vector<8xf32>
    %1279 = vector.multi_reduction <add>, %1278, %cst_364 [1] : vector<8x16xf32> to vector<8xf32>
    %1280 = vector.shape_cast %1279 : vector<8xf32> to vector<8x1xf32>
    %cst_365 = arith.constant 1.000000e-24 : f32
    %1281 = vector.broadcast %cst_365 : f32 to vector<8x1xf32>
    %1282 = arith.maximumf %1280, %1281 : vector<8x1xf32>
    %1283 = math.rsqrt %1282 : vector<8x1xf32>
    %1284 = vector.broadcast %1283 : vector<8x1xf32> to vector<8x16xf32>
    %1285 = arith.mulf %438, %1284 : vector<8x16xf32>
    %1286 = arith.mulf %439, %439 : vector<8x16xf32>
    %cst_366 = arith.constant dense<0.000000e+00> : vector<8xf32>
    %1287 = vector.multi_reduction <add>, %1286, %cst_366 [1] : vector<8x16xf32> to vector<8xf32>
    %1288 = vector.shape_cast %1287 : vector<8xf32> to vector<8x1xf32>
    %cst_367 = arith.constant 1.000000e-24 : f32
    %1289 = vector.broadcast %cst_367 : f32 to vector<8x1xf32>
    %1290 = arith.maximumf %1288, %1289 : vector<8x1xf32>
    %1291 = math.rsqrt %1290 : vector<8x1xf32>
    %1292 = vector.broadcast %1291 : vector<8x1xf32> to vector<8x16xf32>
    %1293 = arith.mulf %439, %1292 : vector<8x16xf32>
    %1294 = arith.mulf %441, %441 : vector<8x16xf32>
    %cst_368 = arith.constant dense<0.000000e+00> : vector<8xf32>
    %1295 = vector.multi_reduction <add>, %1294, %cst_368 [1] : vector<8x16xf32> to vector<8xf32>
    %1296 = vector.shape_cast %1295 : vector<8xf32> to vector<8x1xf32>
    %cst_369 = arith.constant 1.000000e-24 : f32
    %1297 = vector.broadcast %cst_369 : f32 to vector<8x1xf32>
    %1298 = arith.maximumf %1296, %1297 : vector<8x1xf32>
    %1299 = math.rsqrt %1298 : vector<8x1xf32>
    %1300 = vector.broadcast %1299 : vector<8x1xf32> to vector<8x16xf32>
    %1301 = arith.mulf %441, %1300 : vector<8x16xf32>
    %1302 = arith.mulf %443, %443 : vector<8x16xf32>
    %cst_370 = arith.constant dense<0.000000e+00> : vector<8xf32>
    %1303 = vector.multi_reduction <add>, %1302, %cst_370 [1] : vector<8x16xf32> to vector<8xf32>
    %1304 = vector.shape_cast %1303 : vector<8xf32> to vector<8x1xf32>
    %cst_371 = arith.constant 1.000000e-24 : f32
    %1305 = vector.broadcast %cst_371 : f32 to vector<8x1xf32>
    %1306 = arith.maximumf %1304, %1305 : vector<8x1xf32>
    %1307 = math.rsqrt %1306 : vector<8x1xf32>
    %1308 = vector.broadcast %1307 : vector<8x1xf32> to vector<8x16xf32>
    %1309 = arith.mulf %443, %1308 : vector<8x16xf32>
    %1310 = arith.mulf %1277, %1293 : vector<8x16xf32>
    %cst_372 = arith.constant dense<0.000000e+00> : vector<8xf32>
    %1311 = vector.multi_reduction <add>, %1310, %cst_372 [1] : vector<8x16xf32> to vector<8xf32>
    %1312 = vector.shape_cast %1311 : vector<8xf32> to vector<8x1xf32>
    %1313 = arith.mulf %1277, %1301 : vector<8x16xf32>
    %cst_373 = arith.constant dense<0.000000e+00> : vector<8xf32>
    %1314 = vector.multi_reduction <add>, %1313, %cst_373 [1] : vector<8x16xf32> to vector<8xf32>
    %1315 = vector.shape_cast %1314 : vector<8xf32> to vector<8x1xf32>
    %1316 = arith.mulf %1277, %1309 : vector<8x16xf32>
    %cst_374 = arith.constant dense<0.000000e+00> : vector<8xf32>
    %1317 = vector.multi_reduction <add>, %1316, %cst_374 [1] : vector<8x16xf32> to vector<8xf32>
    %1318 = vector.shape_cast %1317 : vector<8xf32> to vector<8x1xf32>
    %cst_375 = arith.constant 0.000000e+00 : f32
    %1319 = vector.broadcast %cst_375 : f32 to vector<8x1xf32>
    %cst_376 = arith.constant dense<0.000000e+00> : vector<8x8xf32>
    %1320 = tpu.matmul %1277, %1293, %cst_376 {dimension_numbers = #tpu.dot_dimension_numbers<[1], [1], [0], [0], [0, 0, 1, 0], [], []>} : vector<8x16xf32>, vector<8x16xf32>, vector<8x8xf32> -> vector<8x8xf32>
    %1321 = vector.broadcast %1312 : vector<8x1xf32> to vector<8x8xf32>
    %1322 = arith.subf %1320, %1321 : vector<8x8xf32>
    %cst_377 = arith.constant 1.000000e-01 : f32
    %1323 = vector.broadcast %cst_377 : f32 to vector<8x8xf32>
    %1324 = arith.subf %1322, %1323 : vector<8x8xf32>
    %cst_378 = arith.constant -1.000000e+00 : f32
    %1325 = vector.broadcast %cst_378 : f32 to vector<8x8xf32>
    %1326 = arith.mulf %1325, %1324 : vector<8x8xf32>
    %1327 = arith.mulf %1326, %1324 : vector<8x8xf32>
    %1328 = math.exp %1327 : vector<8x8xf32>
    %cst_379 = arith.constant 0.000000e+00 : f32
    %cst_380 = arith.constant 9.990000e-01 : f32
    %1329 = vector.broadcast %cst_379 : f32 to vector<8x8xf32>
    %1330 = arith.maximumf %1329, %1328 : vector<8x8xf32>
    %1331 = vector.broadcast %cst_380 : f32 to vector<8x8xf32>
    %1332 = arith.minimumf %1331, %1330 : vector<8x8xf32>
    %1333 = tpu.iota {dimensions = array<i32: 0>} : vector<8x8xi32>
    %1334 = tpu.iota {dimensions = array<i32: 1>} : vector<8x8xi32>
    %c8_i32_381 = arith.constant 8 : i32
    %1335 = vector.broadcast %c8_i32_381 : i32 to vector<8x8xi32>
    %1336 = arith.muli %1333, %1335 : vector<8x8xi32>
    %1337 = arith.addi %1336, %1334 : vector<8x8xi32>
    %c-1640531535_i32_382 = arith.constant -1640531535 : i32
    %1338 = arith.muli %0, %c-1640531535_i32_382 : i32
    %1339 = vector.broadcast %1338 : i32 to vector<8x8xi32>
    %1340 = arith.addi %1337, %1339 : vector<8x8xi32>
    %c-865977701_i32 = arith.constant -865977701 : i32
    %1341 = vector.broadcast %c-865977701_i32 : i32 to vector<8x8xi32>
    %1342 = arith.addi %1340, %1341 : vector<8x8xi32>
    %c16_i32_383 = arith.constant 16 : i32
    %1343 = vector.broadcast %c16_i32_383 : i32 to vector<8x8xi32>
    %1344 = arith.shrui %1342, %1343 : vector<8x8xi32>
    %1345 = arith.xori %1342, %1344 : vector<8x8xi32>
    %c2146121005_i32_384 = arith.constant 2146121005 : i32
    %1346 = vector.broadcast %c2146121005_i32_384 : i32 to vector<8x8xi32>
    %1347 = arith.muli %1345, %1346 : vector<8x8xi32>
    %c15_i32_385 = arith.constant 15 : i32
    %1348 = vector.broadcast %c15_i32_385 : i32 to vector<8x8xi32>
    %1349 = arith.shrui %1347, %1348 : vector<8x8xi32>
    %1350 = arith.xori %1347, %1349 : vector<8x8xi32>
    %c-2073254261_i32_386 = arith.constant -2073254261 : i32
    %1351 = vector.broadcast %c-2073254261_i32_386 : i32 to vector<8x8xi32>
    %1352 = arith.muli %1350, %1351 : vector<8x8xi32>
    %c16_i32_387 = arith.constant 16 : i32
    %1353 = vector.broadcast %c16_i32_387 : i32 to vector<8x8xi32>
    %1354 = arith.shrui %1352, %1353 : vector<8x8xi32>
    %1355 = arith.xori %1352, %1354 : vector<8x8xi32>
    %c8_i32_388 = arith.constant 8 : i32
    %1356 = vector.broadcast %c8_i32_388 : i32 to vector<8x8xi32>
    %1357 = arith.shrui %1355, %1356 : vector<8x8xi32>
    %1358 = arith.sitofp %1357 : vector<8x8xi32> to vector<8x8xf32>
    %cst_389 = arith.constant 5.96046448E-8 : f32
    %1359 = vector.broadcast %cst_389 : f32 to vector<8x8xf32>
    %1360 = arith.mulf %1358, %1359 : vector<8x8xf32>
    %1361 = arith.cmpf olt, %1360, %1332 : vector<8x8xf32>
    %1362 = arith.extui %1361 : vector<8x8xi1> to vector<8x8xi32>
    %1363 = arith.sitofp %1362 : vector<8x8xi32> to vector<8x8xf32>
    %1364 = arith.mulf %1320, %1363 : vector<8x8xf32>
    %cst_390 = arith.constant 1.000000e+00 : f32
    %1365 = vector.broadcast %cst_390 : f32 to vector<8x8xf32>
    %1366 = arith.divf %1364, %1365 : vector<8x8xf32>
    %1367 = math.exp %1366 : vector<8x8xf32>
    %1368 = arith.mulf %1367, %1363 : vector<8x8xf32>
    %1369 = arith.mulf %1368, %430 : vector<8x8xf32>
    %cst_391 = arith.constant dense<0.000000e+00> : vector<8xf32>
    %1370 = vector.multi_reduction <add>, %1369, %cst_391 [1] : vector<8x8xf32> to vector<8xf32>
    %1371 = vector.shape_cast %1370 : vector<8xf32> to vector<8x1xf32>
    %1372 = arith.addf %1319, %1371 : vector<8x1xf32>
    %cst_392 = arith.constant dense<0.000000e+00> : vector<8x8xf32>
    %1373 = tpu.matmul %1277, %1301, %cst_392 {dimension_numbers = #tpu.dot_dimension_numbers<[1], [1], [0], [0], [0, 0, 1, 0], [], []>} : vector<8x16xf32>, vector<8x16xf32>, vector<8x8xf32> -> vector<8x8xf32>
    %1374 = vector.broadcast %1312 : vector<8x1xf32> to vector<8x8xf32>
    %1375 = arith.subf %1373, %1374 : vector<8x8xf32>
    %cst_393 = arith.constant 1.000000e-01 : f32
    %1376 = vector.broadcast %cst_393 : f32 to vector<8x8xf32>
    %1377 = arith.subf %1375, %1376 : vector<8x8xf32>
    %cst_394 = arith.constant -1.000000e+00 : f32
    %1378 = vector.broadcast %cst_394 : f32 to vector<8x8xf32>
    %1379 = arith.mulf %1378, %1377 : vector<8x8xf32>
    %1380 = arith.mulf %1379, %1377 : vector<8x8xf32>
    %1381 = math.exp %1380 : vector<8x8xf32>
    %cst_395 = arith.constant 0.000000e+00 : f32
    %cst_396 = arith.constant 9.990000e-01 : f32
    %1382 = vector.broadcast %cst_395 : f32 to vector<8x8xf32>
    %1383 = arith.maximumf %1382, %1381 : vector<8x8xf32>
    %1384 = vector.broadcast %cst_396 : f32 to vector<8x8xf32>
    %1385 = arith.minimumf %1384, %1383 : vector<8x8xf32>
    %1386 = tpu.iota {dimensions = array<i32: 0>} : vector<8x8xi32>
    %1387 = tpu.iota {dimensions = array<i32: 1>} : vector<8x8xi32>
    %c8_i32_397 = arith.constant 8 : i32
    %1388 = vector.broadcast %c8_i32_397 : i32 to vector<8x8xi32>
    %1389 = arith.muli %1386, %1388 : vector<8x8xi32>
    %1390 = arith.addi %1389, %1387 : vector<8x8xi32>
    %c-1640531535_i32_398 = arith.constant -1640531535 : i32
    %1391 = arith.muli %0, %c-1640531535_i32_398 : i32
    %1392 = vector.broadcast %1391 : i32 to vector<8x8xi32>
    %1393 = arith.addi %1390, %1392 : vector<8x8xi32>
    %c1788458060_i32 = arith.constant 1788458060 : i32
    %1394 = vector.broadcast %c1788458060_i32 : i32 to vector<8x8xi32>
    %1395 = arith.addi %1393, %1394 : vector<8x8xi32>
    %c16_i32_399 = arith.constant 16 : i32
    %1396 = vector.broadcast %c16_i32_399 : i32 to vector<8x8xi32>
    %1397 = arith.shrui %1395, %1396 : vector<8x8xi32>
    %1398 = arith.xori %1395, %1397 : vector<8x8xi32>
    %c2146121005_i32_400 = arith.constant 2146121005 : i32
    %1399 = vector.broadcast %c2146121005_i32_400 : i32 to vector<8x8xi32>
    %1400 = arith.muli %1398, %1399 : vector<8x8xi32>
    %c15_i32_401 = arith.constant 15 : i32
    %1401 = vector.broadcast %c15_i32_401 : i32 to vector<8x8xi32>
    %1402 = arith.shrui %1400, %1401 : vector<8x8xi32>
    %1403 = arith.xori %1400, %1402 : vector<8x8xi32>
    %c-2073254261_i32_402 = arith.constant -2073254261 : i32
    %1404 = vector.broadcast %c-2073254261_i32_402 : i32 to vector<8x8xi32>
    %1405 = arith.muli %1403, %1404 : vector<8x8xi32>
    %c16_i32_403 = arith.constant 16 : i32
    %1406 = vector.broadcast %c16_i32_403 : i32 to vector<8x8xi32>
    %1407 = arith.shrui %1405, %1406 : vector<8x8xi32>
    %1408 = arith.xori %1405, %1407 : vector<8x8xi32>
    %c8_i32_404 = arith.constant 8 : i32
    %1409 = vector.broadcast %c8_i32_404 : i32 to vector<8x8xi32>
    %1410 = arith.shrui %1408, %1409 : vector<8x8xi32>
    %1411 = arith.sitofp %1410 : vector<8x8xi32> to vector<8x8xf32>
    %cst_405 = arith.constant 5.96046448E-8 : f32
    %1412 = vector.broadcast %cst_405 : f32 to vector<8x8xf32>
    %1413 = arith.mulf %1411, %1412 : vector<8x8xf32>
    %1414 = arith.cmpf olt, %1413, %1385 : vector<8x8xf32>
    %1415 = arith.extui %1414 : vector<8x8xi1> to vector<8x8xi32>
    %1416 = arith.sitofp %1415 : vector<8x8xi32> to vector<8x8xf32>
    %1417 = arith.mulf %1373, %1416 : vector<8x8xf32>
    %cst_406 = arith.constant 1.000000e+00 : f32
    %1418 = vector.broadcast %cst_406 : f32 to vector<8x8xf32>
    %1419 = arith.divf %1417, %1418 : vector<8x8xf32>
    %1420 = math.exp %1419 : vector<8x8xf32>
    %1421 = arith.mulf %1420, %1416 : vector<8x8xf32>
    %1422 = arith.mulf %1421, %430 : vector<8x8xf32>
    %cst_407 = arith.constant dense<0.000000e+00> : vector<8xf32>
    %1423 = vector.multi_reduction <add>, %1422, %cst_407 [1] : vector<8x8xf32> to vector<8xf32>
    %1424 = vector.shape_cast %1423 : vector<8xf32> to vector<8x1xf32>
    %1425 = arith.addf %1372, %1424 : vector<8x1xf32>
    %cst_408 = arith.constant dense<0.000000e+00> : vector<8x8xf32>
    %1426 = tpu.matmul %1277, %1309, %cst_408 {dimension_numbers = #tpu.dot_dimension_numbers<[1], [1], [0], [0], [0, 0, 1, 0], [], []>} : vector<8x16xf32>, vector<8x16xf32>, vector<8x8xf32> -> vector<8x8xf32>
    %1427 = vector.broadcast %1312 : vector<8x1xf32> to vector<8x8xf32>
    %1428 = arith.subf %1426, %1427 : vector<8x8xf32>
    %cst_409 = arith.constant 1.000000e-01 : f32
    %1429 = vector.broadcast %cst_409 : f32 to vector<8x8xf32>
    %1430 = arith.subf %1428, %1429 : vector<8x8xf32>
    %cst_410 = arith.constant -1.000000e+00 : f32
    %1431 = vector.broadcast %cst_410 : f32 to vector<8x8xf32>
    %1432 = arith.mulf %1431, %1430 : vector<8x8xf32>
    %1433 = arith.mulf %1432, %1430 : vector<8x8xf32>
    %1434 = math.exp %1433 : vector<8x8xf32>
    %cst_411 = arith.constant 0.000000e+00 : f32
    %cst_412 = arith.constant 9.990000e-01 : f32
    %1435 = vector.broadcast %cst_411 : f32 to vector<8x8xf32>
    %1436 = arith.maximumf %1435, %1434 : vector<8x8xf32>
    %1437 = vector.broadcast %cst_412 : f32 to vector<8x8xf32>
    %1438 = arith.minimumf %1437, %1436 : vector<8x8xf32>
    %1439 = tpu.iota {dimensions = array<i32: 0>} : vector<8x8xi32>
    %1440 = tpu.iota {dimensions = array<i32: 1>} : vector<8x8xi32>
    %c8_i32_413 = arith.constant 8 : i32
    %1441 = vector.broadcast %c8_i32_413 : i32 to vector<8x8xi32>
    %1442 = arith.muli %1439, %1441 : vector<8x8xi32>
    %1443 = arith.addi %1442, %1440 : vector<8x8xi32>
    %c-1640531535_i32_414 = arith.constant -1640531535 : i32
    %1444 = arith.muli %0, %c-1640531535_i32_414 : i32
    %1445 = vector.broadcast %1444 : i32 to vector<8x8xi32>
    %1446 = arith.addi %1443, %1445 : vector<8x8xi32>
    %c147926525_i32 = arith.constant 147926525 : i32
    %1447 = vector.broadcast %c147926525_i32 : i32 to vector<8x8xi32>
    %1448 = arith.addi %1446, %1447 : vector<8x8xi32>
    %c16_i32_415 = arith.constant 16 : i32
    %1449 = vector.broadcast %c16_i32_415 : i32 to vector<8x8xi32>
    %1450 = arith.shrui %1448, %1449 : vector<8x8xi32>
    %1451 = arith.xori %1448, %1450 : vector<8x8xi32>
    %c2146121005_i32_416 = arith.constant 2146121005 : i32
    %1452 = vector.broadcast %c2146121005_i32_416 : i32 to vector<8x8xi32>
    %1453 = arith.muli %1451, %1452 : vector<8x8xi32>
    %c15_i32_417 = arith.constant 15 : i32
    %1454 = vector.broadcast %c15_i32_417 : i32 to vector<8x8xi32>
    %1455 = arith.shrui %1453, %1454 : vector<8x8xi32>
    %1456 = arith.xori %1453, %1455 : vector<8x8xi32>
    %c-2073254261_i32_418 = arith.constant -2073254261 : i32
    %1457 = vector.broadcast %c-2073254261_i32_418 : i32 to vector<8x8xi32>
    %1458 = arith.muli %1456, %1457 : vector<8x8xi32>
    %c16_i32_419 = arith.constant 16 : i32
    %1459 = vector.broadcast %c16_i32_419 : i32 to vector<8x8xi32>
    %1460 = arith.shrui %1458, %1459 : vector<8x8xi32>
    %1461 = arith.xori %1458, %1460 : vector<8x8xi32>
    %c8_i32_420 = arith.constant 8 : i32
    %1462 = vector.broadcast %c8_i32_420 : i32 to vector<8x8xi32>
    %1463 = arith.shrui %1461, %1462 : vector<8x8xi32>
    %1464 = arith.sitofp %1463 : vector<8x8xi32> to vector<8x8xf32>
    %cst_421 = arith.constant 5.96046448E-8 : f32
    %1465 = vector.broadcast %cst_421 : f32 to vector<8x8xf32>
    %1466 = arith.mulf %1464, %1465 : vector<8x8xf32>
    %1467 = arith.cmpf olt, %1466, %1438 : vector<8x8xf32>
    %1468 = arith.extui %1467 : vector<8x8xi1> to vector<8x8xi32>
    %1469 = arith.sitofp %1468 : vector<8x8xi32> to vector<8x8xf32>
    %1470 = arith.mulf %1426, %1469 : vector<8x8xf32>
    %cst_422 = arith.constant 1.000000e+00 : f32
    %1471 = vector.broadcast %cst_422 : f32 to vector<8x8xf32>
    %1472 = arith.divf %1470, %1471 : vector<8x8xf32>
    %1473 = math.exp %1472 : vector<8x8xf32>
    %1474 = arith.mulf %1473, %1469 : vector<8x8xf32>
    %1475 = arith.mulf %1474, %430 : vector<8x8xf32>
    %cst_423 = arith.constant dense<0.000000e+00> : vector<8xf32>
    %1476 = vector.multi_reduction <add>, %1475, %cst_423 [1] : vector<8x8xf32> to vector<8xf32>
    %1477 = vector.shape_cast %1476 : vector<8xf32> to vector<8x1xf32>
    %1478 = arith.addf %1425, %1477 : vector<8x1xf32>
    %cst_424 = arith.constant dense<0.000000e+00> : vector<8x8xf32>
    %1479 = tpu.matmul %1285, %1301, %cst_424 {dimension_numbers = #tpu.dot_dimension_numbers<[1], [1], [0], [0], [0, 0, 1, 0], [], []>} : vector<8x16xf32>, vector<8x16xf32>, vector<8x8xf32> -> vector<8x8xf32>
    %1480 = arith.addf %1479, %434 : vector<8x8xf32>
    %cst_425 = arith.constant dense<0.000000e+00> : vector<8x8xf32>
    %1481 = tpu.matmul %1285, %1309, %cst_425 {dimension_numbers = #tpu.dot_dimension_numbers<[1], [1], [0], [0], [0, 0, 1, 0], [], []>} : vector<8x16xf32>, vector<8x16xf32>, vector<8x8xf32> -> vector<8x8xf32>
    %1482 = arith.addf %1481, %434 : vector<8x8xf32>
    %cst_426 = arith.constant dense<0xFF800000> : vector<8xf32>
    %1483 = vector.multi_reduction <maximumf>, %1480, %cst_426 [1] : vector<8x8xf32> to vector<8xf32>
    %1484 = vector.shape_cast %1483 : vector<8xf32> to vector<8x1xf32>
    %cst_427 = arith.constant dense<0xFF800000> : vector<8xf32>
    %1485 = vector.multi_reduction <maximumf>, %1482, %cst_427 [1] : vector<8x8xf32> to vector<8xf32>
    %1486 = vector.shape_cast %1485 : vector<8xf32> to vector<8x1xf32>
    %1487 = arith.maximumf %1484, %1486 : vector<8x1xf32>
    %1488 = vector.broadcast %1487 : vector<8x1xf32> to vector<8x8xf32>
    %1489 = arith.subf %1480, %1488 : vector<8x8xf32>
    %1490 = math.exp %1489 : vector<8x8xf32>
    %1491 = vector.broadcast %1487 : vector<8x1xf32> to vector<8x8xf32>
    %1492 = arith.subf %1482, %1491 : vector<8x8xf32>
    %1493 = math.exp %1492 : vector<8x8xf32>
    %cst_428 = arith.constant dense<0.000000e+00> : vector<8xf32>
    %1494 = vector.multi_reduction <add>, %1490, %cst_428 [1] : vector<8x8xf32> to vector<8xf32>
    %1495 = vector.shape_cast %1494 : vector<8xf32> to vector<8x1xf32>
    %cst_429 = arith.constant dense<0.000000e+00> : vector<8xf32>
    %1496 = vector.multi_reduction <add>, %1493, %cst_429 [1] : vector<8x8xf32> to vector<8xf32>
    %1497 = vector.shape_cast %1496 : vector<8xf32> to vector<8x1xf32>
    %1498 = arith.addf %1495, %1497 : vector<8x1xf32>
    %1499 = arith.mulf %1490, %428 : vector<8x8xf32>
    %cst_430 = arith.constant dense<0.000000e+00> : vector<8xf32>
    %1500 = vector.multi_reduction <add>, %1499, %cst_430 [1] : vector<8x8xf32> to vector<8xf32>
    %1501 = vector.shape_cast %1500 : vector<8xf32> to vector<8x1xf32>
    %1502 = arith.divf %1501, %1498 : vector<8x1xf32>
    %1503 = arith.mulf %1493, %428 : vector<8x8xf32>
    %cst_431 = arith.constant dense<0.000000e+00> : vector<8xf32>
    %1504 = vector.multi_reduction <add>, %1503, %cst_431 [1] : vector<8x8xf32> to vector<8xf32>
    %1505 = vector.shape_cast %1504 : vector<8xf32> to vector<8x1xf32>
    %1506 = arith.divf %1505, %1498 : vector<8x1xf32>
    %cst_432 = arith.constant 0.000000e+00 : f32
    %1507 = vector.broadcast %cst_432 : f32 to vector<8x1xf32>
    %1508 = arith.cmpf ogt, %1502, %1507 : vector<8x1xf32>
    %1509 = arith.extui %1508 : vector<8x1xi1> to vector<8x1xi32>
    %1510 = arith.sitofp %1509 : vector<8x1xi32> to vector<8x1xf32>
    %cst_433 = arith.constant 0.000000e+00 : f32
    %1511 = vector.broadcast %cst_433 : f32 to vector<8x1xf32>
    %1512 = arith.cmpf ogt, %1506, %1511 : vector<8x1xf32>
    %1513 = arith.extui %1512 : vector<8x1xi1> to vector<8x1xi32>
    %1514 = arith.sitofp %1513 : vector<8x1xi32> to vector<8x1xf32>
    %cst_434 = arith.constant 1.000000e+00 : f32
    %1515 = vector.broadcast %cst_434 : f32 to vector<8x1xf32>
    %1516 = arith.divf %1312, %1515 : vector<8x1xf32>
    %1517 = math.exp %1516 : vector<8x1xf32>
    %cst_435 = arith.constant 1.000000e+00 : f32
    %1518 = vector.broadcast %cst_435 : f32 to vector<8x1xf32>
    %1519 = arith.divf %1315, %1518 : vector<8x1xf32>
    %1520 = math.exp %1519 : vector<8x1xf32>
    %1521 = arith.mulf %1510, %1520 : vector<8x1xf32>
    %1522 = arith.addf %1517, %1521 : vector<8x1xf32>
    %cst_436 = arith.constant 1.000000e+00 : f32
    %1523 = vector.broadcast %cst_436 : f32 to vector<8x1xf32>
    %1524 = arith.divf %1318, %1523 : vector<8x1xf32>
    %1525 = math.exp %1524 : vector<8x1xf32>
    %1526 = arith.mulf %1514, %1525 : vector<8x1xf32>
    %1527 = arith.addf %1522, %1526 : vector<8x1xf32>
    %1528 = arith.addf %1527, %1478 : vector<8x1xf32>
    %1529 = math.log %1528 : vector<8x1xf32>
    %cst_437 = arith.constant 1.000000e+00 : f32
    %1530 = vector.broadcast %cst_437 : f32 to vector<8x1xf32>
    %1531 = arith.addf %1530, %1510 : vector<8x1xf32>
    %1532 = arith.addf %1531, %1514 : vector<8x1xf32>
    %1533 = arith.mulf %1532, %1529 : vector<8x1xf32>
    %1534 = arith.mulf %1510, %1315 : vector<8x1xf32>
    %1535 = arith.addf %1312, %1534 : vector<8x1xf32>
    %1536 = arith.mulf %1514, %1318 : vector<8x1xf32>
    %1537 = arith.addf %1535, %1536 : vector<8x1xf32>
    %cst_438 = arith.constant 1.000000e+00 : f32
    %1538 = vector.broadcast %cst_438 : f32 to vector<8x1xf32>
    %1539 = arith.divf %1537, %1538 : vector<8x1xf32>
    %1540 = arith.subf %1533, %1539 : vector<8x1xf32>
    %1541 = vector.shape_cast %1540 : vector<8x1xf32> to vector<1x8x1xf32>
    %cst_439 = arith.constant dense<0.000000e+00> : vector<1xf32>
    %1542 = vector.multi_reduction <add>, %1541, %cst_439 [1, 2] : vector<1x8x1xf32> to vector<1xf32>
    %1543 = vector.shape_cast %1542 : vector<1xf32> to vector<1x1x1xf32>
    %1544 = vector.extract %1543[0, 0, 0] : f32 from vector<1x1x1xf32>
    %cst_440 = arith.constant 8.000000e+00 : f32
    %1545 = arith.divf %1544, %cst_440 : f32
    %1546 = arith.addf %1269, %1545 : f32
    %cst_441 = arith.constant 2.000000e+00 : f32
    %1547 = arith.divf %1546, %cst_441 : f32
    %cst_442 = arith.constant 2.000000e+00 : f32
    %1548 = arith.divf %993, %cst_442 : f32
    %cst_443 = arith.constant 5.000000e-01 : f32
    %1549 = arith.mulf %cst_443, %1548 : f32
    %1550 = arith.addf %1547, %1549 : f32
    %c0_444 = arith.constant 0 : index
    %c0_445 = arith.constant 0 : index
    %1551 = memref.load %arg9[%c0_444, %c0_445] : memref<1x1xf32, #tpu.memory_space<smem>>
    memref.store %1550, %arg9[%c0_444, %c0_445] : memref<1x1xf32, #tpu.memory_space<smem>>
    return
  }
}

</mosaic_0001>

<llo_original>
// kernel: _psm_forward_jit.1
$region0: #{_psm_forward_jit.1}
  #allocation0 [shape = 'u32[]', space=smem, size = 0x4, offset = 0x4, fixed_abs, tag = 'smem constant byte address 0x4 - core index']
  #allocation1 [shape = 'u32[144,128]{1,0:T(1,128)}', space=vmem, size = 0x12000, scoped, tag = 'internal scratch']
  #allocation2 [shape = 's32[1]{0:T(128)S(6)}', space=smem, size = 0x200, scoped, tag = 'scoped memory for _psm_forward_jit.1']
  %s0 = inlined_call_operand.<no memory space> [shape: s32[1], index: 0, kind: input, shape index: {}]
  %s1 = inlined_call_operand.vmem [shape: f32[16,192], index: 1, kind: input, shape index: {}]
  %s2 = inlined_call_operand.vmem [shape: f32[32,16], index: 2, kind: input, shape index: {}]
  %s3 = inlined_call_operand.vmem [shape: f32[2,192,32], index: 3, kind: input, shape index: {}]
  %s4 = inlined_call_operand.vmem [shape: f32[2,32,64], index: 4, kind: input, shape index: {}]
  %s5 = inlined_call_operand.vmem [shape: f32[2,64,16], index: 5, kind: input, shape index: {}]
  %s6 = inlined_call_operand.vmem [shape: f32[16,64], index: 6, kind: input, shape index: {}]
  %s7 = inlined_call_operand.vmem [shape: f32[64,16], index: 7, kind: input, shape index: {}]
  %s8 = inlined_call_operand.vmem [shape: f32[8,64], index: 8, kind: input, shape index: {}]
  %s9 = inlined_call_operand.hbm [shape: f32[1,1], index: 9, kind: output, shape index: {}]
  %s10 = sld [smem:[#allocation0]]
  $region46: #{_psm_forward_jit.1} parent=0
    _
  %s12 = ssub.s32 1, %s10
  %s13 = scalar_select 0, %s12, %s10
  %14 = sst [smem:[#allocation2]] %s0
  $region1: #{_psm_forward_jit.1} parent=0
    #allocation3 [shape = 'u8[512]{0}', space=smem, size = 0x200, scoped, tag = 'output window, operand 0, single buffered']
    #allocation4 [shape = 's32[1]{0}', space=sflag, size = 0x4, scoped, tag = 'scoped memory for _psm_forward_jit.1']
    %15 = vsyncpa [#allocation4], 0
    // Predicated region
    $region2: #{_psm_forward_jit.1} parent=1 // pred_check
      _
    $region3: #{_psm_forward_jit.1} parent=1 // pred_check_branch
      %17 = sbr.rel (0) target = $region5
    $region4: #{_psm_forward_jit.1} parent=1 // pred_region
      _
    $region5: #{_psm_forward_jit.1} parent=1 // pred_fallthru
      _
    // Predicated region
    $region6: #{_psm_forward_jit.1} parent=1 // pred_check
      _
    $region7: #{_psm_forward_jit.1} parent=1 // pred_check_branch
      %19 = sbr.rel (0) target = $region9
    $region8: #{_psm_forward_jit.1} parent=1 // pred_region
      _
    $region9: #{_psm_forward_jit.1} parent=1 // pred_fallthru
      _
    // Predicated region
    $region10: #{_psm_forward_jit.1} parent=1 // pred_check
      _
    $region11: #{_psm_forward_jit.1} parent=1 // pred_check_branch
      %21 = sbr.rel (0) target = $region13
    $region12: #{_psm_forward_jit.1} parent=1 // pred_region
      _
    $region13: #{_psm_forward_jit.1} parent=1 // pred_fallthru
      _
    // Predicated region
    $region14: #{_psm_forward_jit.1} parent=1 // pred_check
      _
    $region15: #{_psm_forward_jit.1} parent=1 // pred_check_branch
      %23 = sbr.rel (0) target = $region17
    $region16: #{_psm_forward_jit.1} parent=1 // pred_region
      _
    $region17: #{_psm_forward_jit.1} parent=1 // pred_fallthru
      _
    // Predicated region
    $region18: #{_psm_forward_jit.1} parent=1 // pred_check
      _
    $region19: #{_psm_forward_jit.1} parent=1 // pred_check_branch
      %25 = sbr.rel (0) target = $region21
    $region20: #{_psm_forward_jit.1} parent=1 // pred_region
      _
    $region21: #{_psm_forward_jit.1} parent=1 // pred_fallthru
      _
    // Predicated region
    $region22: #{_psm_forward_jit.1} parent=1 // pred_check
      _
    $region23: #{_psm_forward_jit.1} parent=1 // pred_check_branch
      %27 = sbr.rel (0) target = $region25
    $region24: #{_psm_forward_jit.1} parent=1 // pred_region
      _
    $region25: #{_psm_forward_jit.1} parent=1 // pred_fallthru
      _
    // Predicated region
    $region26: #{_psm_forward_jit.1} parent=1 // pred_check
      _
    $region27: #{_psm_forward_jit.1} parent=1 // pred_check_branch
      %29 = sbr.rel (0) target = $region29
    $region28: #{_psm_forward_jit.1} parent=1 // pred_region
      _
    $region29: #{_psm_forward_jit.1} parent=1 // pred_fallthru
      _
    // Predicated region
    $region30: #{_psm_forward_jit.1} parent=1 // pred_check
      _
    $region31: #{_psm_forward_jit.1} parent=1 // pred_check_branch
      %31 = sbr.rel (0) target = $region33
    $region32: #{_psm_forward_jit.1} parent=1 // pred_region
      _
    $region33: #{_psm_forward_jit.1} parent=1 // pred_fallthru
      _
    // Predicated region
    $region34: #{_psm_forward_jit.1} parent=1 // pred_check
      _
    $region35: #{_psm_forward_jit.1} parent=1 // pred_check_branch
      %33 = sbr.rel (0) target = $region37
    $region36: #{_psm_forward_jit.1} parent=1 // pred_region
      _
    $region37: #{_psm_forward_jit.1} parent=1 // pred_fallthru
      _
    %s34 = sld [smem:[#allocation2]]
    %v35 = vld [vmem:[%s1] sm:$0xff]
    %v36 = vld [vmem:[%s1 + $0x8] sm:$0xff]
    %v37 = vld [vmem:[%s1 + $0x10] sm:$0xff]
    %v38 = vld [vmem:[%s1 + $0x18] sm:$0xff]
    %v39 = vld [vmem:[%s8] sm:$0xff]
    %v40 = vld [vmem:[%s3] sm:$0xff]
    %v41 = vld [vmem:[%s3 + $0x8] sm:$0xff]
    %v42 = vld [vmem:[%s3 + $0x10] sm:$0xff]
    %v43 = vld [vmem:[%s3 + $0x18] sm:$0xff]
    %v44 = vld [vmem:[%s3 + $0x20] sm:$0xff]
    %v45 = vld [vmem:[%s3 + $0x28] sm:$0xff]
    %v46 = vld [vmem:[%s3 + $0x30] sm:$0xff]
    %v47 = vld [vmem:[%s3 + $0x38] sm:$0xff]
    %v48 = vld [vmem:[%s3 + $0x40] sm:$0xff]
    %v49 = vld [vmem:[%s3 + $0x48] sm:$0xff]
    %v50 = vld [vmem:[%s3 + $0x50] sm:$0xff]
    %v51 = vld [vmem:[%s3 + $0x58] sm:$0xff]
    %v52 = vld [vmem:[%s3 + $0x60] sm:$0xff]
    %v53 = vld [vmem:[%s3 + $0x68] sm:$0xff]
    %v54 = vld [vmem:[%s3 + $0x70] sm:$0xff]
    %v55 = vld [vmem:[%s3 + $0x78] sm:$0xff]
    %v56 = vld [vmem:[%s3 + $0x80] sm:$0xff]
    %v57 = vld [vmem:[%s3 + $0x88] sm:$0xff]
    %v58 = vld [vmem:[%s3 + $0x90] sm:$0xff]
    %v59 = vld [vmem:[%s3 + $0x98] sm:$0xff]
    %v60 = vld [vmem:[%s3 + $0xa0] sm:$0xff]
    %v61 = vld [vmem:[%s3 + $0xa8] sm:$0xff]
    %v62 = vld [vmem:[%s3 + $0xb0] sm:$0xff]
    %v63 = vld [vmem:[%s3 + $0xb8] sm:$0xff]
    %v64 = vld [vmem:[%s4] sm:$0xff]
    %v65 = vld [vmem:[%s4 + $0x8] sm:$0xff]
    %v66 = vld [vmem:[%s4 + $0x10] sm:$0xff]
    %v67 = vld [vmem:[%s4 + $0x18] sm:$0xff]
    %v68 = vld [vmem:[%s5] sm:$0xff]
    %v69 = vld [vmem:[%s5 + $0x8] sm:$0xff]
    %v70 = vld [vmem:[%s5 + $0x10] sm:$0xff]
    %v71 = vld [vmem:[%s5 + $0x18] sm:$0xff]
    %v72 = vld [vmem:[%s5 + $0x20] sm:$0xff]
    %v73 = vld [vmem:[%s5 + $0x28] sm:$0xff]
    %v74 = vld [vmem:[%s5 + $0x30] sm:$0xff]
    %v75 = vld [vmem:[%s5 + $0x38] sm:$0xff]
    %s76 = scalar_lea.vmem %s3, 192
    %v77 = vld [vmem:[%s76] sm:$0xff]
    %v78 = vld [vmem:[%s76 + $0x8] sm:$0xff]
    %v79 = vld [vmem:[%s76 + $0x10] sm:$0xff]
    %v80 = vld [vmem:[%s76 + $0x18] sm:$0xff]
    %v81 = vld [vmem:[%s76 + $0x20] sm:$0xff]
    %v82 = vld [vmem:[%s76 + $0x28] sm:$0xff]
    %v83 = vld [vmem:[%s76 + $0x30] sm:$0xff]
    %v84 = vld [vmem:[%s76 + $0x38] sm:$0xff]
    %v85 = vld [vmem:[%s76 + $0x40] sm:$0xff]
    %v86 = vld [vmem:[%s76 + $0x48] sm:$0xff]
    %v87 = vld [vmem:[%s76 + $0x50] sm:$0xff]
    %v88 = vld [vmem:[%s76 + $0x58] sm:$0xff]
    %v89 = vld [vmem:[%s76 + $0x60] sm:$0xff]
    %v90 = vld [vmem:[%s76 + $0x68] sm:$0xff]
    %v91 = vld [vmem:[%s76 + $0x70] sm:$0xff]
    %v92 = vld [vmem:[%s76 + $0x78] sm:$0xff]
    %v93 = vld [vmem:[%s76 + $0x80] sm:$0xff]
    %v94 = vld [vmem:[%s76 + $0x88] sm:$0xff]
    %v95 = vld [vmem:[%s76 + $0x90] sm:$0xff]
    %v96 = vld [vmem:[%s76 + $0x98] sm:$0xff]
    %v97 = vld [vmem:[%s76 + $0xa0] sm:$0xff]
    %v98 = vld [vmem:[%s76 + $0xa8] sm:$0xff]
    %v99 = vld [vmem:[%s76 + $0xb0] sm:$0xff]
    %v100 = vld [vmem:[%s76 + $0xb8] sm:$0xff]
    %v101 = vmul.f32 %v77, 0.99
    %v102 = vmul.f32 %v78, 0.99
    %v103 = vmul.f32 %v79, 0.99
    %v104 = vmul.f32 %v80, 0.99
    %v105 = vmul.f32 %v81, 0.99
    %v106 = vmul.f32 %v82, 0.99
    %v107 = vmul.f32 %v83, 0.99
    %v108 = vmul.f32 %v84, 0.99
    %v109 = vmul.f32 %v85, 0.99
    %v110 = vmul.f32 %v86, 0.99
    %v111 = vmul.f32 %v87, 0.99
    %v112 = vmul.f32 %v88, 0.99
    %v113 = vmul.f32 %v89, 0.99
    %v114 = vmul.f32 %v90, 0.99
    %v115 = vmul.f32 %v91, 0.99
    %v116 = vmul.f32 %v92, 0.99
    %v117 = vmul.f32 %v93, 0.99
    %v118 = vmul.f32 %v94, 0.99
    %v119 = vmul.f32 %v95, 0.99
    %v120 = vmul.f32 %v96, 0.99
    %v121 = vmul.f32 %v97, 0.99
    %v122 = vmul.f32 %v98, 0.99
    %v123 = vmul.f32 %v99, 0.99
    %v124 = vmul.f32 %v100, 0.99
    %v125 = vmul.f32 %v40, 0.01
    %v126 = vmul.f32 %v41, 0.01
    %v127 = vmul.f32 %v42, 0.01
    %v128 = vmul.f32 %v43, 0.01
    %v129 = vmul.f32 %v44, 0.01
    %v130 = vmul.f32 %v45, 0.01
    %v131 = vmul.f32 %v46, 0.01
    %v132 = vmul.f32 %v47, 0.01
    %v133 = vmul.f32 %v48, 0.01
    %v134 = vmul.f32 %v49, 0.01
    %v135 = vmul.f32 %v50, 0.01
    %v136 = vmul.f32 %v51, 0.01
    %v137 = vmul.f32 %v52, 0.01
    %v138 = vmul.f32 %v53, 0.01
    %v139 = vmul.f32 %v54, 0.01
    %v140 = vmul.f32 %v55, 0.01
    %v141 = vmul.f32 %v56, 0.01
    %v142 = vmul.f32 %v57, 0.01
    %v143 = vmul.f32 %v58, 0.01
    %v144 = vmul.f32 %v59, 0.01
    %v145 = vmul.f32 %v60, 0.01
    %v146 = vmul.f32 %v61, 0.01
    %v147 = vmul.f32 %v62, 0.01
    %v148 = vmul.f32 %v63, 0.01
    %v149 = vadd.f32 %v101, %v125
    %v150 = vadd.f32 %v102, %v126
    %v151 = vadd.f32 %v103, %v127
    %v152 = vadd.f32 %v104, %v128
    %v153 = vadd.f32 %v105, %v129
    %v154 = vadd.f32 %v106, %v130
    %v155 = vadd.f32 %v107, %v131
    %v156 = vadd.f32 %v108, %v132
    %v157 = vadd.f32 %v109, %v133
    %v158 = vadd.f32 %v110, %v134
    %v159 = vadd.f32 %v111, %v135
    %v160 = vadd.f32 %v112, %v136
    %v161 = vadd.f32 %v113, %v137
    %v162 = vadd.f32 %v114, %v138
    %v163 = vadd.f32 %v115, %v139
    %v164 = vadd.f32 %v116, %v140
    %v165 = vadd.f32 %v117, %v141
    %v166 = vadd.f32 %v118, %v142
    %v167 = vadd.f32 %v119, %v143
    %v168 = vadd.f32 %v120, %v144
    %v169 = vadd.f32 %v121, %v145
    %v170 = vadd.f32 %v122, %v146
    %v171 = vadd.f32 %v123, %v147
    %v172 = vadd.f32 %v124, %v148
    %s173 = scalar_lea.vmem %s4, 32
    %v174 = vld [vmem:[%s173] sm:$0xff]
    %v175 = vld [vmem:[%s173 + $0x8] sm:$0xff]
    %v176 = vld [vmem:[%s173 + $0x10] sm:$0xff]
    %v177 = vld [vmem:[%s173 + $0x18] sm:$0xff]
    %v178 = vmul.f32 %v174, 0.99
    %v179 = vmul.f32 %v175, 0.99
    %v180 = vmul.f32 %v176, 0.99
    %v181 = vmul.f32 %v177, 0.99
    %v182 = vmul.f32 %v64, 0.01
    %v183 = vmul.f32 %v65, 0.01
    %v184 = vmul.f32 %v66, 0.01
    %v185 = vmul.f32 %v67, 0.01
    %v186 = vadd.f32 %v178, %v182
    %v187 = vadd.f32 %v179, %v183
    %v188 = vadd.f32 %v180, %v184
    %v189 = vadd.f32 %v181, %v185
    %s190 = scalar_lea.vmem %s5, 64
    %v191 = vld [vmem:[%s190] sm:$0xff]
    %v192 = vld [vmem:[%s190 + $0x8] sm:$0xff]
    %v193 = vld [vmem:[%s190 + $0x10] sm:$0xff]
    %v194 = vld [vmem:[%s190 + $0x18] sm:$0xff]
    %v195 = vld [vmem:[%s190 + $0x20] sm:$0xff]
    %v196 = vld [vmem:[%s190 + $0x28] sm:$0xff]
    %v197 = vld [vmem:[%s190 + $0x30] sm:$0xff]
    %v198 = vld [vmem:[%s190 + $0x38] sm:$0xff]
    %v199 = vmul.f32 %v191, 0.99
    %v200 = vmul.f32 %v192, 0.99
    %v201 = vmul.f32 %v193, 0.99
    %v202 = vmul.f32 %v194, 0.99
    %v203 = vmul.f32 %v195, 0.99
    %v204 = vmul.f32 %v196, 0.99
    %v205 = vmul.f32 %v197, 0.99
    %v206 = vmul.f32 %v198, 0.99
    %v207 = vmul.f32 %v68, 0.01
    %v208 = vmul.f32 %v69, 0.01
    %v209 = vmul.f32 %v70, 0.01
    %v210 = vmul.f32 %v71, 0.01
    %v211 = vmul.f32 %v72, 0.01
    %v212 = vmul.f32 %v73, 0.01
    %v213 = vmul.f32 %v74, 0.01
    %v214 = vmul.f32 %v75, 0.01
    %v215 = vadd.f32 %v199, %v207
    %v216 = vadd.f32 %v200, %v208
    %v217 = vadd.f32 %v201, %v209
    %v218 = vadd.f32 %v202, %v210
    %v219 = vadd.f32 %v203, %v211
    %v220 = vadd.f32 %v204, %v212
    %v221 = vadd.f32 %v205, %v213
    %v222 = vadd.f32 %v206, %v214
    %v223 = vmul.f32 %v39, 0.99
    %v224 = vmul.f32 %v39, 0.01
    %v226 = vrot.slane %v224, 4
    %v228 = vadd.f32 %v223, %v226
    %v229 = vlaneseq
    %v230 = vshrl.u32 %v229, 7
    %v231 = vadd.s32 %v230, 8
    %vm232 = vcmp.lt.s32.totalorder %v230, 8
    %vm233 = vcmp.lt.s32.totalorder %v231, 8
    %v234 = vsel %vm232, 1, 0
    %v235 = vsel %vm233, 1, 0
    %v236 = vcvt.s32.f32 %v234
    %v237 = vcvt.s32.f32 %v235
    %v238 = vsub.f32 1.0, %v236
    %v239 = vsub.f32 1.0, %v237
    %vm240 = vcmask 523264
    %v242 = vsel %vm240, %v36, 0
    %v245 = vsel %vm240, %v38, 0
    %247 = vmatprep.subr.mxu0 0.0
    %248 = vmatpush1.msra.mxu0 %v40
    %249 = vmatprep.subr.mxu0 0.0
    %250 = vmatpush1.msra.mxu0 %v41
    %251 = vmatprep.subr.mxu0 0.0
    %252 = vmatpush1.msra.mxu0 %v42
    %253 = vmatprep.subr.mxu0 0.0
    %254 = vmatpush1.msra.mxu0 %v43
    %255 = vmatprep.subr.mxu0 0.0
    %256 = vmatpush1.msra.mxu0 %v44
    %257 = vmatprep.subr.mxu0 0.0
    %258 = vmatpush1.msra.mxu0 %v45
    %259 = vmatprep.subr.mxu0 0.0
    %260 = vmatpush1.msra.mxu0 %v46
    %261 = vmatprep.subr.mxu0 0.0
    %262 = vmatpush1.msra.mxu0 %v47
    %263 = vmatprep.subr.mxu0 0.0
    %264 = vmatpush1.msra.mxu0 %v48
    %265 = vmatprep.subr.mxu0 0.0
    %266 = vmatpush1.msra.mxu0 %v49
    %267 = vmatprep.subr.mxu0 0.0
    %268 = vmatpush1.msra.mxu0 %v50
    %269 = vmatprep.subr.mxu0 0.0
    %270 = vmatpush1.msra.mxu0 %v51
    %271 = vmatprep.subr.mxu0 0.0
    %272 = vmatpush1.msra.mxu0 %v52
    %273 = vmatprep.subr.mxu0 0.0
    %274 = vmatpush1.msra.mxu0 %v53
    %275 = vmatprep.subr.mxu0 0.0
    %276 = vmatpush1.msra.mxu0 %v54
    %277 = vmatprep.subr.mxu0 0.0
    %278 = vmatpush1.msra.mxu0 %v55
    %279 = vmatprep.subr.mxu0 0.0
    %280 = vmatpush1.msra.mxu0 %v56
    %281 = vmatprep.subr.mxu0 0.0
    %282 = vmatpush1.msra.mxu0 %v57
    %283 = vmatprep.subr.mxu0 0.0
    %284 = vmatpush1.msra.mxu0 %v58
    %285 = vmatprep.subr.mxu0 0.0
    %286 = vmatpush1.msra.mxu0 %v59
    %287 = vmatprep.subr.mxu0 0.0
    %288 = vmatpush1.msra.mxu0 %v60
    %289 = vmatprep.subr.mxu0 0.0
    %290 = vmatpush1.msra.mxu0 %v61
    %291 = vmatprep.subr.mxu0 0.0
    %292 = vmatpush1.msra.mxu0 %v62
    %293 = vmatprep.subr.mxu0 0.0
    %294 = vmatpush1.msra.mxu0 %v63
    %295 = vmatprep.subr.mxu0 0.0
    %296 = vmatpush1.msra.mxu0 0.0
    %297 = vmatprep.subr.mxu0 0.0
    %298 = vmatpush1.msra.mxu0 0.0
    %299 = vmatprep.subr.mxu0 0.0
    %300 = vmatpush1.msra.mxu0 0.0
    %301 = vmatprep.subr.mxu0 0.0
    %302 = vmatpush1.msra.mxu0 0.0
    %303 = vmatprep.subr.mxu0 0.0
    %304 = vmatpush1.msra.mxu0 0.0
    %305 = vmatprep.subr.mxu0 0.0
    %306 = vmatpush1.msra.mxu0 0.0
    %307 = vmatprep.subr.mxu0 0.0
    %308 = vmatpush1.msra.mxu0 0.0
    %309 = vmatprep.subr.mxu0 0.0
    %310 = vmatpush1.msra.mxu0 0.0
    %311 = vmatprep.mubr.f32.mxu0 %v242
    %312 = vmatmul.mubr.f32.gmra.mrb[0].mxu0 %v35
    %v313 = vpop.f32.mrb[0].mxu0
    %v314 = vadd.f32 0.0, %v313
    %v315 = vpop.f32.mrb[0].mxu0
    %316 = vmatprep.mubr.f32.mxu0 %v245
    %317 = vmatmul.mubr.f32.gmra.mrb[0].mxu0 %v37
    %v318 = vpop.f32.mrb[0].mxu0
    %v319 = vadd.f32 0.0, %v318
    %v320 = vpop.f32.mrb[0].mxu0
    %321 = vdwg.mxu0
    %vm322 = vcmask 261120
    %v324 = vsel %vm322, %v314, 0
    %v327 = vsel %vm322, %v319, 0
    %329 = vmatprep.subr.mxu0 0.0
    %330 = vmatpush1.msra.mxu0 %v64
    %331 = vmatprep.subr.mxu0 0.0
    %332 = vmatpush1.msra.mxu0 %v65
    %333 = vmatprep.subr.mxu0 0.0
    %334 = vmatpush1.msra.mxu0 %v66
    %335 = vmatprep.subr.mxu0 0.0
    %336 = vmatpush1.msra.mxu0 %v67
    %337 = vmatprep.subr.mxu0 0.0
    %338 = vmatpush1.msra.mxu0 0.0
    %339 = vmatprep.subr.mxu0 0.0
    %340 = vmatpush1.msra.mxu0 0.0
    %341 = vmatprep.subr.mxu0 0.0
    %342 = vmatpush1.msra.mxu0 0.0
    %343 = vmatprep.subr.mxu0 0.0
    %344 = vmatpush1.msra.mxu0 0.0
    %345 = vmatprep.subr.mxu0 0.0
    %346 = vmatpush1.msra.mxu0 0.0
    %347 = vmatprep.subr.mxu0 0.0
    %348 = vmatpush1.msra.mxu0 0.0
    %349 = vmatprep.subr.mxu0 0.0
    %350 = vmatpush1.msra.mxu0 0.0
    %351 = vmatprep.subr.mxu0 0.0
    %352 = vmatpush1.msra.mxu0 0.0
    %353 = vmatprep.subr.mxu0 0.0
    %354 = vmatpush1.msra.mxu0 0.0
    %355 = vmatprep.subr.mxu0 0.0
    %356 = vmatpush1.msra.mxu0 0.0
    %357 = vmatprep.subr.mxu0 0.0
    %358 = vmatpush1.msra.mxu0 0.0
    %359 = vmatprep.subr.mxu0 0.0
    %360 = vmatpush1.msra.mxu0 0.0
    %361 = vmatprep.subr.mxu0 0.0
    %362 = vmatpush1.msra.mxu0 0.0
    %363 = vmatprep.subr.mxu0 0.0
    %364 = vmatpush1.msra.mxu0 0.0
    %365 = vmatprep.subr.mxu0 0.0
    %366 = vmatpush1.msra.mxu0 0.0
    %367 = vmatprep.subr.mxu0 0.0
    %368 = vmatpush1.msra.mxu0 0.0
    %369 = vmatprep.subr.mxu0 0.0
    %370 = vmatpush1.msra.mxu0 0.0
    %371 = vmatprep.subr.mxu0 0.0
    %372 = vmatpush1.msra.mxu0 0.0
    %373 = vmatprep.subr.mxu0 0.0
    %374 = vmatpush1.msra.mxu0 0.0
    %375 = vmatprep.subr.mxu0 0.0
    %376 = vmatpush1.msra.mxu0 0.0
    %377 = vmatprep.subr.mxu0 0.0
    %378 = vmatpush1.msra.mxu0 0.0
    %379 = vmatprep.subr.mxu0 0.0
    %380 = vmatpush1.msra.mxu0 0.0
    %381 = vmatprep.subr.mxu0 0.0
    %382 = vmatpush1.msra.mxu0 0.0
    %383 = vmatprep.subr.mxu0 0.0
    %384 = vmatpush1.msra.mxu0 0.0
    %385 = vmatprep.subr.mxu0 0.0
    %386 = vmatpush1.msra.mxu0 0.0
    %387 = vmatprep.subr.mxu0 0.0
    %388 = vmatpush1.msra.mxu0 0.0
    %389 = vmatprep.subr.mxu0 0.0
    %390 = vmatpush1.msra.mxu0 0.0
    %391 = vmatprep.subr.mxu0 0.0
    %392 = vmatpush1.msra.mxu0 0.0
    %393 = vmatprep.mubr.f32.mxu0 0.0
    %394 = vmatmul.mubr.f32.gmra.mrb[0].mxu0 %v324
    %v395 = vpop.f32.mrb[0].mxu0
    %v396 = vadd.f32 0.0, %v395
    %v397 = vpop.f32.mrb[0].mxu0
    %398 = vmatprep.mubr.f32.mxu0 0.0
    %399 = vmatmul.mubr.f32.gmra.mrb[0].mxu0 %v327
    %v400 = vpop.f32.mrb[0].mxu0
    %v401 = vadd.f32 0.0, %v400
    %v402 = vpop.f32.mrb[0].mxu0
    %403 = vdwg.mxu0
    %v404 = vmul.f32 %v396, %v236
    %v405 = vmul.f32 %v401, %v237
    %v406 = vsel %vm240, %v404, 0.0
    %v407 = vsel %vm240, %v405, 0.0
    %v408 = vadd.f32 %v406, %v407
    %v409 = vrot.slane %v408, 4
    %v410 = vadd.f32 %v408, %v409
    %v411 = vrot.slane %v410, 2
    %v412 = vadd.f32 %v410, %v411
    %v413 = vrot.slane %v412, 1
    %v414 = vadd.f32 %v412, %v413
    %v415 = vmul.f32 %v414, 0.125
    %v416 = vsub.f32 %v396, %v415
    %v417 = vsub.f32 %v401, %v415
    %v418 = vmul.f32 %v416, %v416
    %v419 = vmul.f32 %v417, %v417
    %v420 = vmul.f32 %v418, %v236
    %v421 = vmul.f32 %v419, %v237
    %v422 = vsel %vm240, %v420, 0.0
    %v423 = vsel %vm240, %v421, 0.0
    %v424 = vadd.f32 %v422, %v423
    %v425 = vrot.slane %v424, 4
    %v426 = vadd.f32 %v424, %v425
    %v427 = vrot.slane %v426, 2
    %v428 = vadd.f32 %v426, %v427
    %v429 = vrot.slane %v428, 1
    %v430 = vadd.f32 %v428, %v429
    %v431 = vmul.f32 %v430, 0.125
    %v432 = vmul.f32 %v396, %v238
    %v433 = vmul.f32 %v401, %v239
    %v434 = vsel %vm240, %v432, 0.0
    %v435 = vsel %vm240, %v433, 0.0
    %v436 = vadd.f32 %v434, %v435
    %v437 = vrot.slane %v436, 4
    %v438 = vadd.f32 %v436, %v437
    %v439 = vrot.slane %v438, 2
    %v440 = vadd.f32 %v438, %v439
    %v441 = vrot.slane %v440, 1
    %v442 = vadd.f32 %v440, %v441
    %v443 = vmul.f32 %v442, 0.125
    %v444 = vsub.f32 %v396, %v443
    %v445 = vsub.f32 %v401, %v443
    %v446 = vmul.f32 %v444, %v444
    %v447 = vmul.f32 %v445, %v445
    %v448 = vmul.f32 %v446, %v238
    %v449 = vmul.f32 %v447, %v239
    %v450 = vsel %vm240, %v448, 0.0
    %v451 = vsel %vm240, %v449, 0.0
    %v452 = vadd.f32 %v450, %v451
    %v453 = vrot.slane %v452, 4
    %v454 = vadd.f32 %v452, %v453
    %v455 = vrot.slane %v454, 2
    %v456 = vadd.f32 %v454, %v455
    %v457 = vrot.slane %v456, 1
    %v458 = vadd.f32 %v456, %v457
    %v459 = vmul.f32 %v458, 0.125
    %v460 = vmul.f32 %v236, %v415
    %v461 = vmul.f32 %v237, %v415
    %v462 = vmul.f32 %v238, %v443
    %v463 = vmul.f32 %v239, %v443
    %v464 = vadd.f32 %v460, %v462
    %v465 = vadd.f32 %v461, %v463
    %v466 = vmul.f32 %v236, %v431
    %v467 = vmul.f32 %v237, %v431
    %v468 = vmul.f32 %v238, %v459
    %v469 = vmul.f32 %v239, %v459
    %v470 = vadd.f32 %v466, %v468
    %v471 = vadd.f32 %v467, %v469
    %v472 = vsub.f32 %v396, %v464
    %v473 = vsub.f32 %v401, %v465
    %v474 = vadd.f32 %v470, 1e-05
    %v475 = vadd.f32 %v471, 1e-05
    %v476 = vrsqrt.pop %v474
    %v477 = vrsqrt.pop %v475
    %v478 = vmul.f32 %v472, %v476
    %v479 = vmul.f32 %v473, %v477
    %v480 = vlaneseq
    %v481 = vshrl.u32 %v480, 7
    %v482 = vsub.s32 0, %v481
    %v483 = vrot.slane %v39, %v482
    %v484 = vmul.f32 %v478, %v483
    %v485 = vmul.f32 %v479, %v483
    %v486 = vlaneseq
    %v487 = vshrl.u32 %v486, 7
    %v488 = vsub.s32 1, %v487
    %v489 = vrot.slane %v39, %v488
    %v490 = vadd.f32 %v484, %v489
    %v491 = vadd.f32 %v485, %v489
    %v492 = vmax.f32 %v490, 0.0
    %v493 = vmax.f32 %v491, 0.0
    %v495 = vsel %vm240, %v492, 0
    %v498 = vsel %vm240, %v493, 0
    %500 = vmatprep.subr.mxu0 0.0
    %501 = vmatpush1.msra.mxu0 %v68
    %502 = vmatprep.subr.mxu0 0.0
    %503 = vmatpush1.msra.mxu0 %v69
    %504 = vmatprep.subr.mxu0 0.0
    %505 = vmatpush1.msra.mxu0 %v70
    %506 = vmatprep.subr.mxu0 0.0
    %507 = vmatpush1.msra.mxu0 %v71
    %508 = vmatprep.subr.mxu0 0.0
    %509 = vmatpush1.msra.mxu0 %v72
    %510 = vmatprep.subr.mxu0 0.0
    %511 = vmatpush1.msra.mxu0 %v73
    %512 = vmatprep.subr.mxu0 0.0
    %513 = vmatpush1.msra.mxu0 %v74
    %514 = vmatprep.subr.mxu0 0.0
    %515 = vmatpush1.msra.mxu0 %v75
    %516 = vmatprep.subr.mxu0 0.0
    %517 = vmatpush1.msra.mxu0 0.0
    %518 = vmatprep.subr.mxu0 0.0
    %519 = vmatpush1.msra.mxu0 0.0
    %520 = vmatprep.subr.mxu0 0.0
    %521 = vmatpush1.msra.mxu0 0.0
    %522 = vmatprep.subr.mxu0 0.0
    %523 = vmatpush1.msra.mxu0 0.0
    %524 = vmatprep.subr.mxu0 0.0
    %525 = vmatpush1.msra.mxu0 0.0
    %526 = vmatprep.subr.mxu0 0.0
    %527 = vmatpush1.msra.mxu0 0.0
    %528 = vmatprep.subr.mxu0 0.0
    %529 = vmatpush1.msra.mxu0 0.0
    %530 = vmatprep.subr.mxu0 0.0
    %531 = vmatpush1.msra.mxu0 0.0
    %532 = vmatprep.subr.mxu0 0.0
    %533 = vmatpush1.msra.mxu0 0.0
    %534 = vmatprep.subr.mxu0 0.0
    %535 = vmatpush1.msra.mxu0 0.0
    %536 = vmatprep.subr.mxu0 0.0
    %537 = vmatpush1.msra.mxu0 0.0
    %538 = vmatprep.subr.mxu0 0.0
    %539 = vmatpush1.msra.mxu0 0.0
    %540 = vmatprep.subr.mxu0 0.0
    %541 = vmatpush1.msra.mxu0 0.0
    %542 = vmatprep.subr.mxu0 0.0
    %543 = vmatpush1.msra.mxu0 0.0
    %544 = vmatprep.subr.mxu0 0.0
    %545 = vmatpush1.msra.mxu0 0.0
    %546 = vmatprep.subr.mxu0 0.0
    %547 = vmatpush1.msra.mxu0 0.0
    %548 = vmatprep.subr.mxu0 0.0
    %549 = vmatpush1.msra.mxu0 0.0
    %550 = vmatprep.subr.mxu0 0.0
    %551 = vmatpush1.msra.mxu0 0.0
    %552 = vmatprep.subr.mxu0 0.0
    %553 = vmatpush1.msra.mxu0 0.0
    %554 = vmatprep.subr.mxu0 0.0
    %555 = vmatpush1.msra.mxu0 0.0
    %556 = vmatprep.subr.mxu0 0.0
    %557 = vmatpush1.msra.mxu0 0.0
    %558 = vmatprep.subr.mxu0 0.0
    %559 = vmatpush1.msra.mxu0 0.0
    %560 = vmatprep.subr.mxu0 0.0
    %561 = vmatpush1.msra.mxu0 0.0
    %562 = vmatprep.subr.mxu0 0.0
    %563 = vmatpush1.msra.mxu0 0.0
    %564 = vmatprep.mubr.f32.mxu0 0.0
    %565 = vmatmul.mubr.f32.gmra.mrb[0].mxu0 %v495
    %v566 = vpop.f32.mrb[0].mxu0
    %v567 = vadd.f32 0.0, %v566
    %v568 = vpop.f32.mrb[0].mxu0
    %569 = vmatprep.mubr.f32.mxu0 0.0
    %570 = vmatmul.mubr.f32.gmra.mrb[0].mxu0 %v498
    %v571 = vpop.f32.mrb[0].mxu0
    %v572 = vadd.f32 0.0, %v571
    %v573 = vpop.f32.mrb[0].mxu0
    %574 = vdwg.mxu0
    %v575 = vmul.f32 %v567, %v236
    %v576 = vmul.f32 %v572, %v237
    %vm577 = vcmask 130048
    %v578 = vsel %vm577, %v575, 0.0
    %v579 = vsel %vm577, %v576, 0.0
    %v580 = vadd.f32 %v578, %v579
    %v581 = vrot.slane %v580, 4
    %v582 = vadd.f32 %v580, %v581
    %v583 = vrot.slane %v582, 2
    %v584 = vadd.f32 %v582, %v583
    %v585 = vrot.slane %v584, 1
    %v586 = vadd.f32 %v584, %v585
    %v587 = vmul.f32 %v586, 0.125
    %v588 = vsub.f32 %v567, %v587
    %v589 = vsub.f32 %v572, %v587
    %v590 = vmul.f32 %v588, %v588
    %v591 = vmul.f32 %v589, %v589
    %v592 = vmul.f32 %v590, %v236
    %v593 = vmul.f32 %v591, %v237
    %v594 = vsel %vm577, %v592, 0.0
    %v595 = vsel %vm577, %v593, 0.0
    %v596 = vadd.f32 %v594, %v595
    %v597 = vrot.slane %v596, 4
    %v598 = vadd.f32 %v596, %v597
    %v599 = vrot.slane %v598, 2
    %v600 = vadd.f32 %v598, %v599
    %v601 = vrot.slane %v600, 1
    %v602 = vadd.f32 %v600, %v601
    %v603 = vmul.f32 %v602, 0.125
    %v604 = vmul.f32 %v567, %v238
    %v605 = vmul.f32 %v572, %v239
    %v606 = vsel %vm577, %v604, 0.0
    %v607 = vsel %vm577, %v605, 0.0
    %v608 = vadd.f32 %v606, %v607
    %v609 = vrot.slane %v608, 4
    %v610 = vadd.f32 %v608, %v609
    %v611 = vrot.slane %v610, 2
    %v612 = vadd.f32 %v610, %v611
    %v613 = vrot.slane %v612, 1
    %v614 = vadd.f32 %v612, %v613
    %v615 = vmul.f32 %v614, 0.125
    %v616 = vsub.f32 %v567, %v615
    %v617 = vsub.f32 %v572, %v615
    %v618 = vmul.f32 %v616, %v616
    %v619 = vmul.f32 %v617, %v617
    %v620 = vmul.f32 %v618, %v238
    %v621 = vmul.f32 %v619, %v239
    %v622 = vsel %vm577, %v620, 0.0
    %v623 = vsel %vm577, %v621, 0.0
    %v624 = vadd.f32 %v622, %v623
    %v625 = vrot.slane %v624, 4
    %v626 = vadd.f32 %v624, %v625
    %v627 = vrot.slane %v626, 2
    %v628 = vadd.f32 %v626, %v627
    %v629 = vrot.slane %v628, 1
    %v630 = vadd.f32 %v628, %v629
    %v631 = vmul.f32 %v630, 0.125
    %v632 = vmul.f32 %v236, %v587
    %v633 = vmul.f32 %v237, %v587
    %v634 = vmul.f32 %v238, %v615
    %v635 = vmul.f32 %v239, %v615
    %v636 = vadd.f32 %v632, %v634
    %v637 = vadd.f32 %v633, %v635
    %v638 = vmul.f32 %v236, %v603
    %v639 = vmul.f32 %v237, %v603
    %v640 = vmul.f32 %v238, %v631
    %v641 = vmul.f32 %v239, %v631
    %v642 = vadd.f32 %v638, %v640
    %v643 = vadd.f32 %v639, %v641
    %v644 = vsub.f32 %v567, %v636
    %v645 = vsub.f32 %v572, %v637
    %v646 = vadd.f32 %v642, 1e-05
    %v647 = vadd.f32 %v643, 1e-05
    %v648 = vrsqrt.pop %v646
    %v649 = vrsqrt.pop %v647
    %v650 = vmul.f32 %v644, %v648
    %v651 = vmul.f32 %v645, %v649
    %v652 = vld [vmem:[%s6] sm:$0xff]
    %v653 = vld [vmem:[%s6 + $0x8] sm:$0xff]
    %v654 = vld [vmem:[%s7] sm:$0xff]
    %v655 = vld [vmem:[%s7 + $0x8] sm:$0xff]
    %v656 = vld [vmem:[%s7 + $0x10] sm:$0xff]
    %v657 = vld [vmem:[%s7 + $0x18] sm:$0xff]
    %v658 = vld [vmem:[%s7 + $0x20] sm:$0xff]
    %v659 = vld [vmem:[%s7 + $0x28] sm:$0xff]
    %v660 = vld [vmem:[%s7 + $0x30] sm:$0xff]
    %v661 = vld [vmem:[%s7 + $0x38] sm:$0xff]
    %v663 = vsel %vm577, %v650, 0
    %v666 = vsel %vm577, %v651, 0
    %668 = vmatprep.subr.mxu0 0.0
    %669 = vmatpush1.msra.mxu0 %v652
    %670 = vmatprep.subr.mxu0 0.0
    %671 = vmatpush1.msra.mxu0 %v653
    %672 = vmatprep.subr.mxu0 0.0
    %673 = vmatpush1.msra.mxu0 0.0
    %674 = vmatprep.subr.mxu0 0.0
    %675 = vmatpush1.msra.mxu0 0.0
    %676 = vmatprep.subr.mxu0 0.0
    %677 = vmatpush1.msra.mxu0 0.0
    %678 = vmatprep.subr.mxu0 0.0
    %679 = vmatpush1.msra.mxu0 0.0
    %680 = vmatprep.subr.mxu0 0.0
    %681 = vmatpush1.msra.mxu0 0.0
    %682 = vmatprep.subr.mxu0 0.0
    %683 = vmatpush1.msra.mxu0 0.0
    %684 = vmatprep.subr.mxu0 0.0
    %685 = vmatpush1.msra.mxu0 0.0
    %686 = vmatprep.subr.mxu0 0.0
    %687 = vmatpush1.msra.mxu0 0.0
    %688 = vmatprep.subr.mxu0 0.0
    %689 = vmatpush1.msra.mxu0 0.0
    %690 = vmatprep.subr.mxu0 0.0
    %691 = vmatpush1.msra.mxu0 0.0
    %692 = vmatprep.subr.mxu0 0.0
    %693 = vmatpush1.msra.mxu0 0.0
    %694 = vmatprep.subr.mxu0 0.0
    %695 = vmatpush1.msra.mxu0 0.0
    %696 = vmatprep.subr.mxu0 0.0
    %697 = vmatpush1.msra.mxu0 0.0
    %698 = vmatprep.subr.mxu0 0.0
    %699 = vmatpush1.msra.mxu0 0.0
    %700 = vmatprep.subr.mxu0 0.0
    %701 = vmatpush1.msra.mxu0 0.0
    %702 = vmatprep.subr.mxu0 0.0
    %703 = vmatpush1.msra.mxu0 0.0
    %704 = vmatprep.subr.mxu0 0.0
    %705 = vmatpush1.msra.mxu0 0.0
    %706 = vmatprep.subr.mxu0 0.0
    %707 = vmatpush1.msra.mxu0 0.0
    %708 = vmatprep.subr.mxu0 0.0
    %709 = vmatpush1.msra.mxu0 0.0
    %710 = vmatprep.subr.mxu0 0.0
    %711 = vmatpush1.msra.mxu0 0.0
    %712 = vmatprep.subr.mxu0 0.0
    %713 = vmatpush1.msra.mxu0 0.0
    %714 = vmatprep.subr.mxu0 0.0
    %715 = vmatpush1.msra.mxu0 0.0
    %716 = vmatprep.subr.mxu0 0.0
    %717 = vmatpush1.msra.mxu0 0.0
    %718 = vmatprep.subr.mxu0 0.0
    %719 = vmatpush1.msra.mxu0 0.0
    %720 = vmatprep.subr.mxu0 0.0
    %721 = vmatpush1.msra.mxu0 0.0
    %722 = vmatprep.subr.mxu0 0.0
    %723 = vmatpush1.msra.mxu0 0.0
    %724 = vmatprep.subr.mxu0 0.0
    %725 = vmatpush1.msra.mxu0 0.0
    %726 = vmatprep.subr.mxu0 0.0
    %727 = vmatpush1.msra.mxu0 0.0
    %728 = vmatprep.subr.mxu0 0.0
    %729 = vmatpush1.msra.mxu0 0.0
    %730 = vmatprep.subr.mxu0 0.0
    %731 = vmatpush1.msra.mxu0 0.0
    %732 = vmatprep.mubr.f32.mxu0 0.0
    %733 = vmatmul.mubr.f32.gmra.mrb[0].mxu0 %v663
    %v734 = vpop.f32.mrb[0].mxu0
    %v735 = vadd.f32 0.0, %v734
    %v736 = vpop.f32.mrb[0].mxu0
    %737 = vmatprep.mubr.f32.mxu0 0.0
    %738 = vmatmul.mubr.f32.gmra.mrb[0].mxu0 %v666
    %v739 = vpop.f32.mrb[0].mxu0
    %v740 = vadd.f32 0.0, %v739
    %v741 = vpop.f32.mrb[0].mxu0
    %742 = vdwg.mxu0
    %v743 = vmul.f32 %v735, %v236
    %v744 = vmul.f32 %v740, %v237
    %v745 = vsel %vm240, %v743, 0.0
    %v746 = vsel %vm240, %v744, 0.0
    %v747 = vadd.f32 %v745, %v746
    %v748 = vrot.slane %v747, 4
    %v749 = vadd.f32 %v747, %v748
    %v750 = vrot.slane %v749, 2
    %v751 = vadd.f32 %v749, %v750
    %v752 = vrot.slane %v751, 1
    %v753 = vadd.f32 %v751, %v752
    %v754 = vmul.f32 %v753, 0.125
    %v755 = vsub.f32 %v735, %v754
    %v756 = vsub.f32 %v740, %v754
    %v757 = vmul.f32 %v755, %v755
    %v758 = vmul.f32 %v756, %v756
    %v759 = vmul.f32 %v757, %v236
    %v760 = vmul.f32 %v758, %v237
    %v761 = vsel %vm240, %v759, 0.0
    %v762 = vsel %vm240, %v760, 0.0
    %v763 = vadd.f32 %v761, %v762
    %v764 = vrot.slane %v763, 4
    %v765 = vadd.f32 %v763, %v764
    %v766 = vrot.slane %v765, 2
    %v767 = vadd.f32 %v765, %v766
    %v768 = vrot.slane %v767, 1
    %v769 = vadd.f32 %v767, %v768
    %v770 = vmul.f32 %v769, 0.125
    %v771 = vmul.f32 %v735, %v238
    %v772 = vmul.f32 %v740, %v239
    %v773 = vsel %vm240, %v771, 0.0
    %v774 = vsel %vm240, %v772, 0.0
    %v775 = vadd.f32 %v773, %v774
    %v776 = vrot.slane %v775, 4
    %v777 = vadd.f32 %v775, %v776
    %v778 = vrot.slane %v777, 2
    %v779 = vadd.f32 %v777, %v778
    %v780 = vrot.slane %v779, 1
    %v781 = vadd.f32 %v779, %v780
    %v782 = vmul.f32 %v781, 0.125
    %v783 = vsub.f32 %v735, %v782
    %v784 = vsub.f32 %v740, %v782
    %v785 = vmul.f32 %v783, %v783
    %v786 = vmul.f32 %v784, %v784
    %v787 = vmul.f32 %v785, %v238
    %v788 = vmul.f32 %v786, %v239
    %v789 = vsel %vm240, %v787, 0.0
    %v790 = vsel %vm240, %v788, 0.0
    %v791 = vadd.f32 %v789, %v790
    %v792 = vrot.slane %v791, 4
    %v793 = vadd.f32 %v791, %v792
    %v794 = vrot.slane %v793, 2
    %v795 = vadd.f32 %v793, %v794
    %v796 = vrot.slane %v795, 1
    %v797 = vadd.f32 %v795, %v796
    %v798 = vmul.f32 %v797, 0.125
    %v799 = vmul.f32 %v236, %v754
    %v800 = vmul.f32 %v237, %v754
    %v801 = vmul.f32 %v238, %v782
    %v802 = vmul.f32 %v239, %v782
    %v803 = vadd.f32 %v799, %v801
    %v804 = vadd.f32 %v800, %v802
    %v805 = vmul.f32 %v236, %v770
    %v806 = vmul.f32 %v237, %v770
    %v807 = vmul.f32 %v238, %v798
    %v808 = vmul.f32 %v239, %v798
    %v809 = vadd.f32 %v805, %v807
    %v810 = vadd.f32 %v806, %v808
    %v811 = vsub.f32 %v735, %v803
    %v812 = vsub.f32 %v740, %v804
    %v813 = vadd.f32 %v809, 1e-05
    %v814 = vadd.f32 %v810, 1e-05
    %v815 = vrsqrt.pop %v813
    %v816 = vrsqrt.pop %v814
    %v817 = vmul.f32 %v811, %v815
    %v818 = vmul.f32 %v812, %v816
    %v819 = vlaneseq
    %v820 = vshrl.u32 %v819, 7
    %v821 = vsub.s32 2, %v820
    %v822 = vrot.slane %v39, %v821
    %v823 = vmul.f32 %v817, %v822
    %v824 = vmul.f32 %v818, %v822
    %v825 = vlaneseq
    %v826 = vshrl.u32 %v825, 7
    %v827 = vsub.s32 3, %v826
    %v828 = vrot.slane %v39, %v827
    %v829 = vadd.f32 %v823, %v828
    %v830 = vadd.f32 %v824, %v828
    %v831 = vmax.f32 %v829, 0.0
    %v832 = vmax.f32 %v830, 0.0
    %v834 = vsel %vm240, %v831, 0
    %v837 = vsel %vm240, %v832, 0
    %839 = vmatprep.subr.mxu0 0.0
    %840 = vmatpush1.msra.mxu0 %v654
    %841 = vmatprep.subr.mxu0 0.0
    %842 = vmatpush1.msra.mxu0 %v655
    %843 = vmatprep.subr.mxu0 0.0
    %844 = vmatpush1.msra.mxu0 %v656
    %845 = vmatprep.subr.mxu0 0.0
    %846 = vmatpush1.msra.mxu0 %v657
    %847 = vmatprep.subr.mxu0 0.0
    %848 = vmatpush1.msra.mxu0 %v658
    %849 = vmatprep.subr.mxu0 0.0
    %850 = vmatpush1.msra.mxu0 %v659
    %851 = vmatprep.subr.mxu0 0.0
    %852 = vmatpush1.msra.mxu0 %v660
    %853 = vmatprep.subr.mxu0 0.0
    %854 = vmatpush1.msra.mxu0 %v661
    %855 = vmatprep.subr.mxu0 0.0
    %856 = vmatpush1.msra.mxu0 0.0
    %857 = vmatprep.subr.mxu0 0.0
    %858 = vmatpush1.msra.mxu0 0.0
    %859 = vmatprep.subr.mxu0 0.0
    %860 = vmatpush1.msra.mxu0 0.0
    %861 = vmatprep.subr.mxu0 0.0
    %862 = vmatpush1.msra.mxu0 0.0
    %863 = vmatprep.subr.mxu0 0.0
    %864 = vmatpush1.msra.mxu0 0.0
    %865 = vmatprep.subr.mxu0 0.0
    %866 = vmatpush1.msra.mxu0 0.0
    %867 = vmatprep.subr.mxu0 0.0
    %868 = vmatpush1.msra.mxu0 0.0
    %869 = vmatprep.subr.mxu0 0.0
    %870 = vmatpush1.msra.mxu0 0.0
    %871 = vmatprep.subr.mxu0 0.0
    %872 = vmatpush1.msra.mxu0 0.0
    %873 = vmatprep.subr.mxu0 0.0
    %874 = vmatpush1.msra.mxu0 0.0
    %875 = vmatprep.subr.mxu0 0.0
    %876 = vmatpush1.msra.mxu0 0.0
    %877 = vmatprep.subr.mxu0 0.0
    %878 = vmatpush1.msra.mxu0 0.0
    %879 = vmatprep.subr.mxu0 0.0
    %880 = vmatpush1.msra.mxu0 0.0
    %881 = vmatprep.subr.mxu0 0.0
    %882 = vmatpush1.msra.mxu0 0.0
    %883 = vmatprep.subr.mxu0 0.0
    %884 = vmatpush1.msra.mxu0 0.0
    %885 = vmatprep.subr.mxu0 0.0
    %886 = vmatpush1.msra.mxu0 0.0
    %887 = vmatprep.subr.mxu0 0.0
    %888 = vmatpush1.msra.mxu0 0.0
    %889 = vmatprep.subr.mxu0 0.0
    %890 = vmatpush1.msra.mxu0 0.0
    %891 = vmatprep.subr.mxu0 0.0
    %892 = vmatpush1.msra.mxu0 0.0
    %893 = vmatprep.subr.mxu0 0.0
    %894 = vmatpush1.msra.mxu0 0.0
    %895 = vmatprep.subr.mxu0 0.0
    %896 = vmatpush1.msra.mxu0 0.0
    %897 = vmatprep.subr.mxu0 0.0
    %898 = vmatpush1.msra.mxu0 0.0
    %899 = vmatprep.subr.mxu0 0.0
    %900 = vmatpush1.msra.mxu0 0.0
    %901 = vmatprep.subr.mxu0 0.0
    %902 = vmatpush1.msra.mxu0 0.0
    %903 = vmatprep.mubr.f32.mxu0 0.0
    %904 = vmatmul.mubr.f32.gmra.mrb[0].mxu0 %v834
    %v905 = vpop.f32.mrb[0].mxu0
    %v906 = vadd.f32 0.0, %v905
    %v907 = vpop.f32.mrb[0].mxu0
    %908 = vmatprep.mubr.f32.mxu0 0.0
    %909 = vmatmul.mubr.f32.gmra.mrb[0].mxu0 %v837
    %v910 = vpop.f32.mrb[0].mxu0
    %v911 = vadd.f32 0.0, %v910
    %v912 = vpop.f32.mrb[0].mxu0
    %913 = vdwg.mxu0
    %v914 = vmul.f32 %v906, %v236
    %v915 = vmul.f32 %v911, %v237
    %v916 = vsel %vm577, %v914, 0.0
    %v917 = vsel %vm577, %v915, 0.0
    %v918 = vadd.f32 %v916, %v917
    %v919 = vrot.slane %v918, 4
    %v920 = vadd.f32 %v918, %v919
    %v921 = vrot.slane %v920, 2
    %v922 = vadd.f32 %v920, %v921
    %v923 = vrot.slane %v922, 1
    %v924 = vadd.f32 %v922, %v923
    %v925 = vmul.f32 %v924, 0.125
    %v926 = vsub.f32 %v906, %v925
    %v927 = vsub.f32 %v911, %v925
    %v928 = vmul.f32 %v926, %v926
    %v929 = vmul.f32 %v927, %v927
    %v930 = vmul.f32 %v928, %v236
    %v931 = vmul.f32 %v929, %v237
    %v932 = vsel %vm577, %v930, 0.0
    %v933 = vsel %vm577, %v931, 0.0
    %v934 = vadd.f32 %v932, %v933
    %v935 = vrot.slane %v934, 4
    %v936 = vadd.f32 %v934, %v935
    %v937 = vrot.slane %v936, 2
    %v938 = vadd.f32 %v936, %v937
    %v939 = vrot.slane %v938, 1
    %v940 = vadd.f32 %v938, %v939
    %v941 = vmul.f32 %v940, 0.125
    %v942 = vmul.f32 %v906, %v238
    %v943 = vmul.f32 %v911, %v239
    %v944 = vsel %vm577, %v942, 0.0
    %v945 = vsel %vm577, %v943, 0.0
    %v946 = vadd.f32 %v944, %v945
    %v947 = vrot.slane %v946, 4
    %v948 = vadd.f32 %v946, %v947
    %v949 = vrot.slane %v948, 2
    %v950 = vadd.f32 %v948, %v949
    %v951 = vrot.slane %v950, 1
    %v952 = vadd.f32 %v950, %v951
    %v953 = vmul.f32 %v952, 0.125
    %v954 = vsub.f32 %v906, %v953
    %v955 = vsub.f32 %v911, %v953
    %v956 = vmul.f32 %v954, %v954
    %v957 = vmul.f32 %v955, %v955
    %v958 = vmul.f32 %v956, %v238
    %v959 = vmul.f32 %v957, %v239
    %v960 = vsel %vm577, %v958, 0.0
    %v961 = vsel %vm577, %v959, 0.0
    %v962 = vadd.f32 %v960, %v961
    %v963 = vrot.slane %v962, 4
    %v964 = vadd.f32 %v962, %v963
    %v965 = vrot.slane %v964, 2
    %v966 = vadd.f32 %v964, %v965
    %v967 = vrot.slane %v966, 1
    %v968 = vadd.f32 %v966, %v967
    %v969 = vmul.f32 %v968, 0.125
    %v970 = vmul.f32 %v236, %v925
    %v971 = vmul.f32 %v237, %v925
    %v972 = vmul.f32 %v238, %v953
    %v973 = vmul.f32 %v239, %v953
    %v974 = vadd.f32 %v970, %v972
    %v975 = vadd.f32 %v971, %v973
    %v976 = vmul.f32 %v236, %v941
    %v977 = vmul.f32 %v237, %v941
    %v978 = vmul.f32 %v238, %v969
    %v979 = vmul.f32 %v239, %v969
    %v980 = vadd.f32 %v976, %v978
    %v981 = vadd.f32 %v977, %v979
    %v982 = vsub.f32 %v906, %v974
    %v983 = vsub.f32 %v911, %v975
    %v984 = vadd.f32 %v980, 1e-05
    %v985 = vadd.f32 %v981, 1e-05
    %v986 = vrsqrt.pop %v984
    %v987 = vrsqrt.pop %v985
    %v988 = vmul.f32 %v982, %v986
    %v989 = vmul.f32 %v983, %v987
    %990 = vmatprep.subr.mxu0 0.0
    %991 = vmatpush1.msra.mxu0 %v149
    %992 = vmatprep.subr.mxu0 0.0
    %993 = vmatpush1.msra.mxu0 %v150
    %994 = vmatprep.subr.mxu0 0.0
    %995 = vmatpush1.msra.mxu0 %v151
    %996 = vmatprep.subr.mxu0 0.0
    %997 = vmatpush1.msra.mxu0 %v152
    %998 = vmatprep.subr.mxu0 0.0
    %999 = vmatpush1.msra.mxu0 %v153
    %1000 = vmatprep.subr.mxu0 0.0
    %1001 = vmatpush1.msra.mxu0 %v154
    %1002 = vmatprep.subr.mxu0 0.0
    %1003 = vmatpush1.msra.mxu0 %v155
    %1004 = vmatprep.subr.mxu0 0.0
    %1005 = vmatpush1.msra.mxu0 %v156
    %1006 = vmatprep.subr.mxu0 0.0
    %1007 = vmatpush1.msra.mxu0 %v157
    %1008 = vmatprep.subr.mxu0 0.0
    %1009 = vmatpush1.msra.mxu0 %v158
    %1010 = vmatprep.subr.mxu0 0.0
    %1011 = vmatpush1.msra.mxu0 %v159
    %1012 = vmatprep.subr.mxu0 0.0
    %1013 = vmatpush1.msra.mxu0 %v160
    %1014 = vmatprep.subr.mxu0 0.0
    %1015 = vmatpush1.msra.mxu0 %v161
    %1016 = vmatprep.subr.mxu0 0.0
    %1017 = vmatpush1.msra.mxu0 %v162
    %1018 = vmatprep.subr.mxu0 0.0
    %1019 = vmatpush1.msra.mxu0 %v163
    %1020 = vmatprep.subr.mxu0 0.0
    %1021 = vmatpush1.msra.mxu0 %v164
    %1022 = vmatprep.subr.mxu0 0.0
    %1023 = vmatpush1.msra.mxu0 %v165
    %1024 = vmatprep.subr.mxu0 0.0
    %1025 = vmatpush1.msra.mxu0 %v166
    %1026 = vmatprep.subr.mxu0 0.0
    %1027 = vmatpush1.msra.mxu0 %v167
    %1028 = vmatprep.subr.mxu0 0.0
    %1029 = vmatpush1.msra.mxu0 %v168
    %1030 = vmatprep.subr.mxu0 0.0
    %1031 = vmatpush1.msra.mxu0 %v169
    %1032 = vmatprep.subr.mxu0 0.0
    %1033 = vmatpush1.msra.mxu0 %v170
    %1034 = vmatprep.subr.mxu0 0.0
    %1035 = vmatpush1.msra.mxu0 %v171
    %1036 = vmatprep.subr.mxu0 0.0
    %1037 = vmatpush1.msra.mxu0 %v172
    %1038 = vmatprep.subr.mxu0 0.0
    %1039 = vmatpush1.msra.mxu0 0.0
    %1040 = vmatprep.subr.mxu0 0.0
    %1041 = vmatpush1.msra.mxu0 0.0
    %1042 = vmatprep.subr.mxu0 0.0
    %1043 = vmatpush1.msra.mxu0 0.0
    %1044 = vmatprep.subr.mxu0 0.0
    %1045 = vmatpush1.msra.mxu0 0.0
    %1046 = vmatprep.subr.mxu0 0.0
    %1047 = vmatpush1.msra.mxu0 0.0
    %1048 = vmatprep.subr.mxu0 0.0
    %1049 = vmatpush1.msra.mxu0 0.0
    %1050 = vmatprep.subr.mxu0 0.0
    %1051 = vmatpush1.msra.mxu0 0.0
    %1052 = vmatprep.subr.mxu0 0.0
    %1053 = vmatpush1.msra.mxu0 0.0
    %1054 = vmatprep.mubr.f32.mxu0 %v242
    %1055 = vmatmul.mubr.f32.gmra.mrb[0].mxu0 %v35
    %v1056 = vpop.f32.mrb[0].mxu0
    %v1057 = vadd.f32 0.0, %v1056
    %v1058 = vpop.f32.mrb[0].mxu0
    %1059 = vmatprep.mubr.f32.mxu0 %v245
    %1060 = vmatmul.mubr.f32.gmra.mrb[0].mxu0 %v37
    %v1061 = vpop.f32.mrb[0].mxu0
    %v1062 = vadd.f32 0.0, %v1061
    %v1063 = vpop.f32.mrb[0].mxu0
    %1064 = vdwg.mxu0
    %v1066 = vsel %vm322, %v1057, 0
    %v1069 = vsel %vm322, %v1062, 0
    %1071 = vmatprep.subr.mxu0 0.0
    %1072 = vmatpush1.msra.mxu0 %v186
    %1073 = vmatprep.subr.mxu0 0.0
    %1074 = vmatpush1.msra.mxu0 %v187
    %1075 = vmatprep.subr.mxu0 0.0
    %1076 = vmatpush1.msra.mxu0 %v188
    %1077 = vmatprep.subr.mxu0 0.0
    %1078 = vmatpush1.msra.mxu0 %v189
    %1079 = vmatprep.subr.mxu0 0.0
    %1080 = vmatpush1.msra.mxu0 0.0
    %1081 = vmatprep.subr.mxu0 0.0
    %1082 = vmatpush1.msra.mxu0 0.0
    %1083 = vmatprep.subr.mxu0 0.0
    %1084 = vmatpush1.msra.mxu0 0.0
    %1085 = vmatprep.subr.mxu0 0.0
    %1086 = vmatpush1.msra.mxu0 0.0
    %1087 = vmatprep.subr.mxu0 0.0
    %1088 = vmatpush1.msra.mxu0 0.0
    %1089 = vmatprep.subr.mxu0 0.0
    %1090 = vmatpush1.msra.mxu0 0.0
    %1091 = vmatprep.subr.mxu0 0.0
    %1092 = vmatpush1.msra.mxu0 0.0
    %1093 = vmatprep.subr.mxu0 0.0
    %1094 = vmatpush1.msra.mxu0 0.0
    %1095 = vmatprep.subr.mxu0 0.0
    %1096 = vmatpush1.msra.mxu0 0.0
    %1097 = vmatprep.subr.mxu0 0.0
    %1098 = vmatpush1.msra.mxu0 0.0
    %1099 = vmatprep.subr.mxu0 0.0
    %1100 = vmatpush1.msra.mxu0 0.0
    %1101 = vmatprep.subr.mxu0 0.0
    %1102 = vmatpush1.msra.mxu0 0.0
    %1103 = vmatprep.subr.mxu0 0.0
    %1104 = vmatpush1.msra.mxu0 0.0
    %1105 = vmatprep.subr.mxu0 0.0
    %1106 = vmatpush1.msra.mxu0 0.0
    %1107 = vmatprep.subr.mxu0 0.0
    %1108 = vmatpush1.msra.mxu0 0.0
    %1109 = vmatprep.subr.mxu0 0.0
    %1110 = vmatpush1.msra.mxu0 0.0
    %1111 = vmatprep.subr.mxu0 0.0
    %1112 = vmatpush1.msra.mxu0 0.0
    %1113 = vmatprep.subr.mxu0 0.0
    %1114 = vmatpush1.msra.mxu0 0.0
    %1115 = vmatprep.subr.mxu0 0.0
    %1116 = vmatpush1.msra.mxu0 0.0
    %1117 = vmatprep.subr.mxu0 0.0
    %1118 = vmatpush1.msra.mxu0 0.0
    %1119 = vmatprep.subr.mxu0 0.0
    %1120 = vmatpush1.msra.mxu0 0.0
    %1121 = vmatprep.subr.mxu0 0.0
    %1122 = vmatpush1.msra.mxu0 0.0
    %1123 = vmatprep.subr.mxu0 0.0
    %1124 = vmatpush1.msra.mxu0 0.0
    %1125 = vmatprep.subr.mxu0 0.0
    %1126 = vmatpush1.msra.mxu0 0.0
    %1127 = vmatprep.subr.mxu0 0.0
    %1128 = vmatpush1.msra.mxu0 0.0
    %1129 = vmatprep.subr.mxu0 0.0
    %1130 = vmatpush1.msra.mxu0 0.0
    %1131 = vmatprep.subr.mxu0 0.0
    %1132 = vmatpush1.msra.mxu0 0.0
    %1133 = vmatprep.subr.mxu0 0.0
    %1134 = vmatpush1.msra.mxu0 0.0
    %1135 = vmatprep.mubr.f32.mxu0 0.0
    %1136 = vmatmul.mubr.f32.gmra.mrb[0].mxu0 %v1066
    %v1137 = vpop.f32.mrb[0].mxu0
    %v1138 = vadd.f32 0.0, %v1137
    %v1139 = vpop.f32.mrb[0].mxu0
    %1140 = vmatprep.mubr.f32.mxu0 0.0
    %1141 = vmatmul.mubr.f32.gmra.mrb[0].mxu0 %v1069
    %v1142 = vpop.f32.mrb[0].mxu0
    %v1143 = vadd.f32 0.0, %v1142
    %v1144 = vpop.f32.mrb[0].mxu0
    %1145 = vdwg.mxu0
    %v1146 = vmul.f32 %v1138, %v236
    %v1147 = vmul.f32 %v1143, %v237
    %v1148 = vsel %vm240, %v1146, 0.0
    %v1149 = vsel %vm240, %v1147, 0.0
    %v1150 = vadd.f32 %v1148, %v1149
    %v1151 = vrot.slane %v1150, 4
    %v1152 = vadd.f32 %v1150, %v1151
    %v1153 = vrot.slane %v1152, 2
    %v1154 = vadd.f32 %v1152, %v1153
    %v1155 = vrot.slane %v1154, 1
    %v1156 = vadd.f32 %v1154, %v1155
    %v1157 = vmul.f32 %v1156, 0.125
    %v1158 = vsub.f32 %v1138, %v1157
    %v1159 = vsub.f32 %v1143, %v1157
    %v1160 = vmul.f32 %v1158, %v1158
    %v1161 = vmul.f32 %v1159, %v1159
    %v1162 = vmul.f32 %v1160, %v236
    %v1163 = vmul.f32 %v1161, %v237
    %v1164 = vsel %vm240, %v1162, 0.0
    %v1165 = vsel %vm240, %v1163, 0.0
    %v1166 = vadd.f32 %v1164, %v1165
    %v1167 = vrot.slane %v1166, 4
    %v1168 = vadd.f32 %v1166, %v1167
    %v1169 = vrot.slane %v1168, 2
    %v1170 = vadd.f32 %v1168, %v1169
    %v1171 = vrot.slane %v1170, 1
    %v1172 = vadd.f32 %v1170, %v1171
    %v1173 = vmul.f32 %v1172, 0.125
    %v1174 = vmul.f32 %v1138, %v238
    %v1175 = vmul.f32 %v1143, %v239
    %v1176 = vsel %vm240, %v1174, 0.0
    %v1177 = vsel %vm240, %v1175, 0.0
    %v1178 = vadd.f32 %v1176, %v1177
    %v1179 = vrot.slane %v1178, 4
    %v1180 = vadd.f32 %v1178, %v1179
    %v1181 = vrot.slane %v1180, 2
    %v1182 = vadd.f32 %v1180, %v1181
    %v1183 = vrot.slane %v1182, 1
    %v1184 = vadd.f32 %v1182, %v1183
    %v1185 = vmul.f32 %v1184, 0.125
    %v1186 = vsub.f32 %v1138, %v1185
    %v1187 = vsub.f32 %v1143, %v1185
    %v1188 = vmul.f32 %v1186, %v1186
    %v1189 = vmul.f32 %v1187, %v1187
    %v1190 = vmul.f32 %v1188, %v238
    %v1191 = vmul.f32 %v1189, %v239
    %v1192 = vsel %vm240, %v1190, 0.0
    %v1193 = vsel %vm240, %v1191, 0.0
    %v1194 = vadd.f32 %v1192, %v1193
    %v1195 = vrot.slane %v1194, 4
    %v1196 = vadd.f32 %v1194, %v1195
    %v1197 = vrot.slane %v1196, 2
    %v1198 = vadd.f32 %v1196, %v1197
    %v1199 = vrot.slane %v1198, 1
    %v1200 = vadd.f32 %v1198, %v1199
    %v1201 = vmul.f32 %v1200, 0.125
    %v1202 = vmul.f32 %v236, %v1157
    %v1203 = vmul.f32 %v237, %v1157
    %v1204 = vmul.f32 %v238, %v1185
    %v1205 = vmul.f32 %v239, %v1185
    %v1206 = vadd.f32 %v1202, %v1204
    %v1207 = vadd.f32 %v1203, %v1205
    %v1208 = vmul.f32 %v236, %v1173
    %v1209 = vmul.f32 %v237, %v1173
    %v1210 = vmul.f32 %v238, %v1201
    %v1211 = vmul.f32 %v239, %v1201
    %v1212 = vadd.f32 %v1208, %v1210
    %v1213 = vadd.f32 %v1209, %v1211
    %v1214 = vsub.f32 %v1138, %v1206
    %v1215 = vsub.f32 %v1143, %v1207
    %v1216 = vadd.f32 %v1212, 1e-05
    %v1217 = vadd.f32 %v1213, 1e-05
    %v1218 = vrsqrt.pop %v1216
    %v1219 = vrsqrt.pop %v1217
    %v1220 = vmul.f32 %v1214, %v1218
    %v1221 = vmul.f32 %v1215, %v1219
    %v1222 = vlaneseq
    %v1223 = vshrl.u32 %v1222, 7
    %v1224 = vsub.s32 4, %v1223
    %v1225 = vrot.slane %v228, %v1224
    %v1226 = vmul.f32 %v1220, %v1225
    %v1227 = vmul.f32 %v1221, %v1225
    %v1228 = vlaneseq
    %v1229 = vshrl.u32 %v1228, 7
    %v1230 = vsub.s32 5, %v1229
    %v1231 = vrot.slane %v228, %v1230
    %v1232 = vadd.f32 %v1226, %v1231
    %v1233 = vadd.f32 %v1227, %v1231
    %v1234 = vmax.f32 %v1232, 0.0
    %v1235 = vmax.f32 %v1233, 0.0
    %v1237 = vsel %vm240, %v1234, 0
    %v1240 = vsel %vm240, %v1235, 0
    %1242 = vmatprep.subr.mxu0 0.0
    %1243 = vmatpush1.msra.mxu0 %v215
    %1244 = vmatprep.subr.mxu0 0.0
    %1245 = vmatpush1.msra.mxu0 %v216
    %1246 = vmatprep.subr.mxu0 0.0
    %1247 = vmatpush1.msra.mxu0 %v217
    %1248 = vmatprep.subr.mxu0 0.0
    %1249 = vmatpush1.msra.mxu0 %v218
    %1250 = vmatprep.subr.mxu0 0.0
    %1251 = vmatpush1.msra.mxu0 %v219
    %1252 = vmatprep.subr.mxu0 0.0
    %1253 = vmatpush1.msra.mxu0 %v220
    %1254 = vmatprep.subr.mxu0 0.0
    %1255 = vmatpush1.msra.mxu0 %v221
    %1256 = vmatprep.subr.mxu0 0.0
    %1257 = vmatpush1.msra.mxu0 %v222
    %1258 = vmatprep.subr.mxu0 0.0
    %1259 = vmatpush1.msra.mxu0 0.0
    %1260 = vmatprep.subr.mxu0 0.0
    %1261 = vmatpush1.msra.mxu0 0.0
    %1262 = vmatprep.subr.mxu0 0.0
    %1263 = vmatpush1.msra.mxu0 0.0
    %1264 = vmatprep.subr.mxu0 0.0
    %1265 = vmatpush1.msra.mxu0 0.0
    %1266 = vmatprep.subr.mxu0 0.0
    %1267 = vmatpush1.msra.mxu0 0.0
    %1268 = vmatprep.subr.mxu0 0.0
    %1269 = vmatpush1.msra.mxu0 0.0
    %1270 = vmatprep.subr.mxu0 0.0
    %1271 = vmatpush1.msra.mxu0 0.0
    %1272 = vmatprep.subr.mxu0 0.0
    %1273 = vmatpush1.msra.mxu0 0.0
    %1274 = vmatprep.subr.mxu0 0.0
    %1275 = vmatpush1.msra.mxu0 0.0
    %1276 = vmatprep.subr.mxu0 0.0
    %1277 = vmatpush1.msra.mxu0 0.0
    %1278 = vmatprep.subr.mxu0 0.0
    %1279 = vmatpush1.msra.mxu0 0.0
    %1280 = vmatprep.subr.mxu0 0.0
    %1281 = vmatpush1.msra.mxu0 0.0
    %1282 = vmatprep.subr.mxu0 0.0
    %1283 = vmatpush1.msra.mxu0 0.0
    %1284 = vmatprep.subr.mxu0 0.0
    %1285 = vmatpush1.msra.mxu0 0.0
    %1286 = vmatprep.subr.mxu0 0.0
    %1287 = vmatpush1.msra.mxu0 0.0
    %1288 = vmatprep.subr.mxu0 0.0
    %1289 = vmatpush1.msra.mxu0 0.0
    %1290 = vmatprep.subr.mxu0 0.0
    %1291 = vmatpush1.msra.mxu0 0.0
    %1292 = vmatprep.subr.mxu0 0.0
    %1293 = vmatpush1.msra.mxu0 0.0
    %1294 = vmatprep.subr.mxu0 0.0
    %1295 = vmatpush1.msra.mxu0 0.0
    %1296 = vmatprep.subr.mxu0 0.0
    %1297 = vmatpush1.msra.mxu0 0.0
    %1298 = vmatprep.subr.mxu0 0.0
    %1299 = vmatpush1.msra.mxu0 0.0
    %1300 = vmatprep.subr.mxu0 0.0
    %1301 = vmatpush1.msra.mxu0 0.0
    %1302 = vmatprep.subr.mxu0 0.0
    %1303 = vmatpush1.msra.mxu0 0.0
    %1304 = vmatprep.subr.mxu0 0.0
    %1305 = vmatpush1.msra.mxu0 0.0
    %1306 = vmatprep.mubr.f32.mxu0 0.0
    %1307 = vmatmul.mubr.f32.gmra.mrb[0].mxu0 %v1237
    %v1308 = vpop.f32.mrb[0].mxu0
    %v1309 = vadd.f32 0.0, %v1308
    %v1310 = vpop.f32.mrb[0].mxu0
    %1311 = vmatprep.mubr.f32.mxu0 0.0
    %1312 = vmatmul.mubr.f32.gmra.mrb[0].mxu0 %v1240
    %v1313 = vpop.f32.mrb[0].mxu0
    %v1314 = vadd.f32 0.0, %v1313
    %v1315 = vpop.f32.mrb[0].mxu0
    %1316 = vdwg.mxu0
    %v1317 = vmul.f32 %v1309, %v236
    %v1318 = vmul.f32 %v1314, %v237
    %v1319 = vsel %vm577, %v1317, 0.0
    %v1320 = vsel %vm577, %v1318, 0.0
    %v1321 = vadd.f32 %v1319, %v1320
    %v1322 = vrot.slane %v1321, 4
    %v1323 = vadd.f32 %v1321, %v1322
    %v1324 = vrot.slane %v1323, 2
    %v1325 = vadd.f32 %v1323, %v1324
    %v1326 = vrot.slane %v1325, 1
    %v1327 = vadd.f32 %v1325, %v1326
    %v1328 = vmul.f32 %v1327, 0.125
    %v1329 = vsub.f32 %v1309, %v1328
    %v1330 = vsub.f32 %v1314, %v1328
    %v1331 = vmul.f32 %v1329, %v1329
    %v1332 = vmul.f32 %v1330, %v1330
    %v1333 = vmul.f32 %v1331, %v236
    %v1334 = vmul.f32 %v1332, %v237
    %v1335 = vsel %vm577, %v1333, 0.0
    %v1336 = vsel %vm577, %v1334, 0.0
    %v1337 = vadd.f32 %v1335, %v1336
    %v1338 = vrot.slane %v1337, 4
    %v1339 = vadd.f32 %v1337, %v1338
    %v1340 = vrot.slane %v1339, 2
    %v1341 = vadd.f32 %v1339, %v1340
    %v1342 = vrot.slane %v1341, 1
    %v1343 = vadd.f32 %v1341, %v1342
    %v1344 = vmul.f32 %v1343, 0.125
    %v1345 = vmul.f32 %v1309, %v238
    %v1346 = vmul.f32 %v1314, %v239
    %v1347 = vsel %vm577, %v1345, 0.0
    %v1348 = vsel %vm577, %v1346, 0.0
    %v1349 = vadd.f32 %v1347, %v1348
    %v1350 = vrot.slane %v1349, 4
    %v1351 = vadd.f32 %v1349, %v1350
    %v1352 = vrot.slane %v1351, 2
    %v1353 = vadd.f32 %v1351, %v1352
    %v1354 = vrot.slane %v1353, 1
    %v1355 = vadd.f32 %v1353, %v1354
    %v1356 = vmul.f32 %v1355, 0.125
    %v1357 = vsub.f32 %v1309, %v1356
    %v1358 = vsub.f32 %v1314, %v1356
    %v1359 = vmul.f32 %v1357, %v1357
    %v1360 = vmul.f32 %v1358, %v1358
    %v1361 = vmul.f32 %v1359, %v238
    %v1362 = vmul.f32 %v1360, %v239
    %v1363 = vsel %vm577, %v1361, 0.0
    %v1364 = vsel %vm577, %v1362, 0.0
    %v1365 = vadd.f32 %v1363, %v1364
    %v1366 = vrot.slane %v1365, 4
    %v1367 = vadd.f32 %v1365, %v1366
    %v1368 = vrot.slane %v1367, 2
    %v1369 = vadd.f32 %v1367, %v1368
    %v1370 = vrot.slane %v1369, 1
    %v1371 = vadd.f32 %v1369, %v1370
    %v1372 = vmul.f32 %v1371, 0.125
    %v1373 = vmul.f32 %v236, %v1328
    %v1374 = vmul.f32 %v237, %v1328
    %v1375 = vmul.f32 %v238, %v1356
    %v1376 = vmul.f32 %v239, %v1356
    %v1377 = vadd.f32 %v1373, %v1375
    %v1378 = vadd.f32 %v1374, %v1376
    %v1379 = vmul.f32 %v236, %v1344
    %v1380 = vmul.f32 %v237, %v1344
    %v1381 = vmul.f32 %v238, %v1372
    %v1382 = vmul.f32 %v239, %v1372
    %v1383 = vadd.f32 %v1379, %v1381
    %v1384 = vadd.f32 %v1380, %v1382
    %v1385 = vsub.f32 %v1309, %v1377
    %v1386 = vsub.f32 %v1314, %v1378
    %v1387 = vadd.f32 %v1383, 1e-05
    %v1388 = vadd.f32 %v1384, 1e-05
    %v1389 = vrsqrt.pop %v1387
    %v1390 = vrsqrt.pop %v1388
    %v1391 = vmul.f32 %v1385, %v1389
    %v1392 = vmul.f32 %v1386, %v1390
    %v1393 = vld [vmem:[%s2] sm:$0xff]
    %v1394 = vld [vmem:[%s2 + $0x8] sm:$0xff]
    %v1395 = vld [vmem:[%s2 + $0x10] sm:$0xff]
    %v1396 = vld [vmem:[%s2 + $0x18] sm:$0xff]
    %v1397 = vmul.f32 %v1391, %v1391
    %v1398 = vmul.f32 %v1392, %v1392
    %v1399 = vsel %vm577, %v1397, 0.0
    %1400 = vadd.xlane.f32.xlu0 %v1399
    %v1401 = vpop.xlane.xlu0 %1400
    %v1402 = vsel %vm577, %v1398, 0.0
    %1403 = vadd.xlane.f32.xlu0 %v1402
    %v1404 = vpop.xlane.xlu0 %1403
    %v1405 = vmax.f32 %v1401, 1e-24
    %v1406 = vmax.f32 %v1404, 1e-24
    %v1407 = vrsqrt.pop %v1405
    %v1408 = vrsqrt.pop %v1406
    %v1409 = vmul.f32 %v1391, %v1407
    %v1410 = vmul.f32 %v1392, %v1408
    %v1411 = vmul.f32 %v1393, %v1393
    %v1412 = vmul.f32 %v1394, %v1394
    %v1413 = vmul.f32 %v1395, %v1395
    %v1414 = vmul.f32 %v1396, %v1396
    %v1415 = vsel %vm577, %v1411, 0.0
    %1416 = vadd.xlane.f32.xlu0 %v1415
    %v1417 = vpop.xlane.xlu0 %1416
    %v1418 = vsel %vm577, %v1412, 0.0
    %1419 = vadd.xlane.f32.xlu0 %v1418
    %v1420 = vpop.xlane.xlu0 %1419
    %v1421 = vsel %vm577, %v1413, 0.0
    %1422 = vadd.xlane.f32.xlu0 %v1421
    %v1423 = vpop.xlane.xlu0 %1422
    %v1424 = vsel %vm577, %v1414, 0.0
    %1425 = vadd.xlane.f32.xlu0 %v1424
    %v1426 = vpop.xlane.xlu0 %1425
    %v1427 = vmax.f32 %v1417, 1e-24
    %v1428 = vmax.f32 %v1420, 1e-24
    %v1429 = vmax.f32 %v1423, 1e-24
    %v1430 = vmax.f32 %v1426, 1e-24
    %v1431 = vrsqrt.pop %v1427
    %v1432 = vrsqrt.pop %v1428
    %v1433 = vrsqrt.pop %v1429
    %v1434 = vrsqrt.pop %v1430
    %v1435 = vmul.f32 %v1393, %v1431
    %v1436 = vmul.f32 %v1394, %v1432
    %v1437 = vmul.f32 %v1395, %v1433
    %v1438 = vmul.f32 %v1396, %v1434
    %v1440 = vsel %vm577, %v1409, 0
    %v1443 = vsel %vm577, %v1410, 0
    %v1446 = vsel %vm577, %v1435, 0
    %v1449 = vsel %vm577, %v1436, 0
    %v1452 = vsel %vm577, %v1437, 0
    %v1455 = vsel %vm577, %v1438, 0
    %1457 = vmatprep.subr.mxu0 0.0
    %1458 = vmatpush1.xpose.msra.mxu0 %v1446
    %1459 = vmatprep.subr.mxu0 0.0
    %1460 = vmatpush1.xpose.msra.mxu0 %v1449
    %1461 = vmatprep.subr.mxu0 0.0
    %1462 = vmatpush1.xpose.msra.mxu0 %v1452
    %1463 = vmatprep.subr.mxu0 0.0
    %1464 = vmatpush1.xpose.msra.mxu0 %v1455
    %1465 = vmatprep.subr.mxu0 0.0
    %1466 = vmatpush1.xpose.msra.mxu0 0.0
    %1467 = vmatprep.subr.mxu0 0.0
    %1468 = vmatpush1.xpose.msra.mxu0 0.0
    %1469 = vmatprep.subr.mxu0 0.0
    %1470 = vmatpush1.xpose.msra.mxu0 0.0
    %1471 = vmatprep.subr.mxu0 0.0
    %1472 = vmatpush1.xpose.msra.mxu0 0.0
    %1473 = vmatprep.subr.mxu0 0.0
    %1474 = vmatpush1.xpose.msra.mxu0 0.0
    %1475 = vmatprep.subr.mxu0 0.0
    %1476 = vmatpush1.xpose.msra.mxu0 0.0
    %1477 = vmatprep.subr.mxu0 0.0
    %1478 = vmatpush1.xpose.msra.mxu0 0.0
    %1479 = vmatprep.subr.mxu0 0.0
    %1480 = vmatpush1.xpose.msra.mxu0 0.0
    %1481 = vmatprep.subr.mxu0 0.0
    %1482 = vmatpush1.xpose.msra.mxu0 0.0
    %1483 = vmatprep.subr.mxu0 0.0
    %1484 = vmatpush1.xpose.msra.mxu0 0.0
    %1485 = vmatprep.subr.mxu0 0.0
    %1486 = vmatpush1.xpose.msra.mxu0 0.0
    %1487 = vmatprep.subr.mxu0 0.0
    %1488 = vmatpush1.xpose.msra.mxu0 0.0
    %1489 = vmatprep.subr.mxu0 0.0
    %1490 = vmatpush1.xpose.msra.mxu0 0.0
    %1491 = vmatprep.subr.mxu0 0.0
    %1492 = vmatpush1.xpose.msra.mxu0 0.0
    %1493 = vmatprep.subr.mxu0 0.0
    %1494 = vmatpush1.xpose.msra.mxu0 0.0
    %1495 = vmatprep.subr.mxu0 0.0
    %1496 = vmatpush1.xpose.msra.mxu0 0.0
    %1497 = vmatprep.subr.mxu0 0.0
    %1498 = vmatpush1.xpose.msra.mxu0 0.0
    %1499 = vmatprep.subr.mxu0 0.0
    %1500 = vmatpush1.xpose.msra.mxu0 0.0
    %1501 = vmatprep.subr.mxu0 0.0
    %1502 = vmatpush1.xpose.msra.mxu0 0.0
    %1503 = vmatprep.subr.mxu0 0.0
    %1504 = vmatpush1.xpose.msra.mxu0 0.0
    %1505 = vmatprep.subr.mxu0 0.0
    %1506 = vmatpush1.xpose.msra.mxu0 0.0
    %1507 = vmatprep.subr.mxu0 0.0
    %1508 = vmatpush1.xpose.msra.mxu0 0.0
    %1509 = vmatprep.subr.mxu0 0.0
    %1510 = vmatpush1.xpose.msra.mxu0 0.0
    %1511 = vmatprep.subr.mxu0 0.0
    %1512 = vmatpush1.xpose.msra.mxu0 0.0
    %1513 = vmatprep.subr.mxu0 0.0
    %1514 = vmatpush1.xpose.msra.mxu0 0.0
    %1515 = vmatprep.subr.mxu0 0.0
    %1516 = vmatpush1.xpose.msra.mxu0 0.0
    %1517 = vmatprep.subr.mxu0 0.0
    %1518 = vmatpush1.xpose.msra.mxu0 0.0
    %1519 = vmatprep.subr.mxu0 0.0
    %1520 = vmatpush1.xpose.msra.mxu0 0.0
    %1521 = vmatprep.mubr.f32.mxu0 0.0
    %1522 = vmatmul.mubr.f32.gmra.mrb[0].mxu0 %v1440
    %v1523 = vpop.f32.mrb[0].mxu0
    %v1524 = vadd.f32 0.0, %v1523
    %v1525 = vpop.f32.mrb[0].mxu0
    %1526 = vmatprep.mubr.f32.mxu0 0.0
    %1527 = vmatmul.mubr.f32.gmra.mrb[0].mxu0 %v1443
    %v1528 = vpop.f32.mrb[0].mxu0
    %v1529 = vadd.f32 0.0, %v1528
    %v1530 = vpop.f32.mrb[0].mxu0
    %1531 = vdwg.mxu0
    %v1532 = vlaneseq
    %v1533 = vand.u32 %v1532, 127
    %v1534 = vsel %vm322, %v1524, -inf
    %1535 = vmax.xlane.f32.xlu0 %v1534
    %v1536 = vpop.xlane.xlu0 %1535
    %v1537 = vsel %vm322, %v1529, -inf
    %1538 = vmax.xlane.f32.xlu0 %v1537
    %v1539 = vpop.xlane.xlu0 %1538
    %vm1540 = vcmp.ge.f32.partialorder %v1524, %v1536
    %vm1541 = vcmp.ge.f32.partialorder %v1529, %v1539
    %v1542 = vsel %vm1540, %v1533, 32
    %v1543 = vsel %vm1541, %v1533, 32
    %v1544 = vsel %vm322, %v1542, 2147483647
    %v1545 = vand.u32 %v1544, 65535
    %v1546 = vshra.s32 %v1544, 16
    %v1547 = vcvt.s32.f32 %v1545
    %v1548 = vcvt.s32.f32 %v1546
    %1549 = vmin.xlane.f32.xlu0 %v1548
    %v1550 = vpop.xlane.xlu0 %1549
    %vm1551 = vcmp.eq.f32.partialorder %v1548, %v1550
    %v1552 = vsel %vm1551, %v1547, inf
    %1553 = vmin.xlane.f32.xlu0 %v1552
    %v1554 = vpop.xlane.xlu0 %1553
    %v1555 = vcvt.f32.s32 %v1554
    %v1556 = vcvt.f32.s32 %v1550
    %v1557 = vshll.u32 %v1556, 16
    %v1558 = vadd.s32 %v1557, %v1555
    %v1559 = vsel %vm322, %v1543, 2147483647
    %v1560 = vand.u32 %v1559, 65535
    %v1561 = vshra.s32 %v1559, 16
    %v1562 = vcvt.s32.f32 %v1560
    %v1563 = vcvt.s32.f32 %v1561
    %1564 = vmin.xlane.f32.xlu0 %v1563
    %v1565 = vpop.xlane.xlu0 %1564
    %vm1566 = vcmp.eq.f32.partialorder %v1563, %v1565
    %v1567 = vsel %vm1566, %v1562, inf
    %1568 = vmin.xlane.f32.xlu0 %v1567
    %v1569 = vpop.xlane.xlu0 %1568
    %v1570 = vcvt.f32.s32 %v1569
    %v1571 = vcvt.f32.s32 %v1565
    %v1572 = vshll.u32 %v1571, 16
    %v1573 = vadd.s32 %v1572, %v1570
    %vm1574 = vcmp.eq.s32.totalorder %v1533, %v1558
    %vm1575 = vcmp.eq.s32.totalorder %v1533, %v1573
    %v1576 = vsel %vm1574, 1, 0
    %v1577 = vsel %vm1575, 1, 0
    %v1578 = vcvt.s32.f32 %v1576
    %v1579 = vcvt.s32.f32 %v1577
    %vm1580 = vcmp.gt.f32.partialorder %v1578, 0.0
    %vm1581 = vcmp.gt.f32.partialorder %v1579, 0.0
    %v1582 = vsel %vm1580, -1e+30, %v1524
    %v1583 = vsel %vm1581, -1e+30, %v1529
    %v1584 = vsel %vm322, %v1582, -inf
    %1585 = vmax.xlane.f32.xlu0 %v1584
    %v1586 = vpop.xlane.xlu0 %1585
    %v1587 = vsel %vm322, %v1583, -inf
    %1588 = vmax.xlane.f32.xlu0 %v1587
    %v1589 = vpop.xlane.xlu0 %1588
    %vm1590 = vcmp.ge.f32.partialorder %v1582, %v1586
    %vm1591 = vcmp.ge.f32.partialorder %v1583, %v1589
    %v1592 = vsel %vm1590, %v1533, 32
    %v1593 = vsel %vm1591, %v1533, 32
    %v1594 = vsel %vm322, %v1592, 2147483647
    %v1595 = vand.u32 %v1594, 65535
    %v1596 = vshra.s32 %v1594, 16
    %v1597 = vcvt.s32.f32 %v1595
    %v1598 = vcvt.s32.f32 %v1596
    %1599 = vmin.xlane.f32.xlu0 %v1598
    %v1600 = vpop.xlane.xlu0 %1599
    %vm1601 = vcmp.eq.f32.partialorder %v1598, %v1600
    %v1602 = vsel %vm1601, %v1597, inf
    %1603 = vmin.xlane.f32.xlu0 %v1602
    %v1604 = vpop.xlane.xlu0 %1603
    %v1605 = vcvt.f32.s32 %v1604
    %v1606 = vcvt.f32.s32 %v1600
    %v1607 = vshll.u32 %v1606, 16
    %v1608 = vadd.s32 %v1607, %v1605
    %v1609 = vsel %vm322, %v1593, 2147483647
    %v1610 = vand.u32 %v1609, 65535
    %v1611 = vshra.s32 %v1609, 16
    %v1612 = vcvt.s32.f32 %v1610
    %v1613 = vcvt.s32.f32 %v1611
    %1614 = vmin.xlane.f32.xlu0 %v1613
    %v1615 = vpop.xlane.xlu0 %1614
    %vm1616 = vcmp.eq.f32.partialorder %v1613, %v1615
    %v1617 = vsel %vm1616, %v1612, inf
    %1618 = vmin.xlane.f32.xlu0 %v1617
    %v1619 = vpop.xlane.xlu0 %1618
    %v1620 = vcvt.f32.s32 %v1619
    %v1621 = vcvt.f32.s32 %v1615
    %v1622 = vshll.u32 %v1621, 16
    %v1623 = vadd.s32 %v1622, %v1620
    %vm1624 = vcmp.eq.s32.totalorder %v1533, %v1608
    %vm1625 = vcmp.eq.s32.totalorder %v1533, %v1623
    %v1626 = vsel %vm1624, 1, 0
    %v1627 = vsel %vm1625, 1, 0
    %v1628 = vcvt.s32.f32 %v1626
    %v1629 = vcvt.s32.f32 %v1627
    %v1631 = vsel %vm322, %v1578, 0
    %v1634 = vsel %vm322, %v1579, 0
    %1636 = vmatprep.subr.mxu0 0.0
    %1637 = vmatpush1.msra.mxu0 %v1393
    %1638 = vmatprep.subr.mxu0 0.0
    %1639 = vmatpush1.msra.mxu0 %v1394
    %1640 = vmatprep.subr.mxu0 0.0
    %1641 = vmatpush1.msra.mxu0 %v1395
    %1642 = vmatprep.subr.mxu0 0.0
    %1643 = vmatpush1.msra.mxu0 %v1396
    %1644 = vmatprep.subr.mxu0 0.0
    %1645 = vmatpush1.msra.mxu0 0.0
    %1646 = vmatprep.subr.mxu0 0.0
    %1647 = vmatpush1.msra.mxu0 0.0
    %1648 = vmatprep.subr.mxu0 0.0
    %1649 = vmatpush1.msra.mxu0 0.0
    %1650 = vmatprep.subr.mxu0 0.0
    %1651 = vmatpush1.msra.mxu0 0.0
    %1652 = vmatprep.subr.mxu0 0.0
    %1653 = vmatpush1.msra.mxu0 0.0
    %1654 = vmatprep.subr.mxu0 0.0
    %1655 = vmatpush1.msra.mxu0 0.0
    %1656 = vmatprep.subr.mxu0 0.0
    %1657 = vmatpush1.msra.mxu0 0.0
    %1658 = vmatprep.subr.mxu0 0.0
    %1659 = vmatpush1.msra.mxu0 0.0
    %1660 = vmatprep.subr.mxu0 0.0
    %1661 = vmatpush1.msra.mxu0 0.0
    %1662 = vmatprep.subr.mxu0 0.0
    %1663 = vmatpush1.msra.mxu0 0.0
    %1664 = vmatprep.subr.mxu0 0.0
    %1665 = vmatpush1.msra.mxu0 0.0
    %1666 = vmatprep.subr.mxu0 0.0
    %1667 = vmatpush1.msra.mxu0 0.0
    %1668 = vmatprep.subr.mxu0 0.0
    %1669 = vmatpush1.msra.mxu0 0.0
    %1670 = vmatprep.subr.mxu0 0.0
    %1671 = vmatpush1.msra.mxu0 0.0
    %1672 = vmatprep.subr.mxu0 0.0
    %1673 = vmatpush1.msra.mxu0 0.0
    %1674 = vmatprep.subr.mxu0 0.0
    %1675 = vmatpush1.msra.mxu0 0.0
    %1676 = vmatprep.subr.mxu0 0.0
    %1677 = vmatpush1.msra.mxu0 0.0
    %1678 = vmatprep.subr.mxu0 0.0
    %1679 = vmatpush1.msra.mxu0 0.0
    %1680 = vmatprep.subr.mxu0 0.0
    %1681 = vmatpush1.msra.mxu0 0.0
    %1682 = vmatprep.subr.mxu0 0.0
    %1683 = vmatpush1.msra.mxu0 0.0
    %1684 = vmatprep.subr.mxu0 0.0
    %1685 = vmatpush1.msra.mxu0 0.0
    %1686 = vmatprep.subr.mxu0 0.0
    %1687 = vmatpush1.msra.mxu0 0.0
    %1688 = vmatprep.subr.mxu0 0.0
    %1689 = vmatpush1.msra.mxu0 0.0
    %1690 = vmatprep.subr.mxu0 0.0
    %1691 = vmatpush1.msra.mxu0 0.0
    %1692 = vmatprep.subr.mxu0 0.0
    %1693 = vmatpush1.msra.mxu0 0.0
    %1694 = vmatprep.subr.mxu0 0.0
    %1695 = vmatpush1.msra.mxu0 0.0
    %1696 = vmatprep.subr.mxu0 0.0
    %1697 = vmatpush1.msra.mxu0 0.0
    %1698 = vmatprep.subr.mxu0 0.0
    %1699 = vmatpush1.msra.mxu0 0.0
    %1700 = vmatprep.mubr.f32.mxu0 0.0
    %1701 = vmatmul.mubr.f32.gmra.mrb[0].mxu0 %v1631
    %v1702 = vpop.f32.mrb[0].mxu0
    %v1703 = vadd.f32 0.0, %v1702
    %v1704 = vpop.f32.mrb[0].mxu0
    %1705 = vmatprep.mubr.f32.mxu0 0.0
    %1706 = vmatmul.mubr.f32.gmra.mrb[0].mxu0 %v1634
    %v1707 = vpop.f32.mrb[0].mxu0
    %v1708 = vadd.f32 0.0, %v1707
    %v1709 = vpop.f32.mrb[0].mxu0
    %1710 = vdwg.mxu0
    %v1712 = vsel %vm322, %v1628, 0
    %v1715 = vsel %vm322, %v1629, 0
    %1717 = vmatprep.subr.mxu0 0.0
    %1718 = vmatpush1.msra.mxu0 %v1393
    %1719 = vmatprep.subr.mxu0 0.0
    %1720 = vmatpush1.msra.mxu0 %v1394
    %1721 = vmatprep.subr.mxu0 0.0
    %1722 = vmatpush1.msra.mxu0 %v1395
    %1723 = vmatprep.subr.mxu0 0.0
    %1724 = vmatpush1.msra.mxu0 %v1396
    %1725 = vmatprep.subr.mxu0 0.0
    %1726 = vmatpush1.msra.mxu0 0.0
    %1727 = vmatprep.subr.mxu0 0.0
    %1728 = vmatpush1.msra.mxu0 0.0
    %1729 = vmatprep.subr.mxu0 0.0
    %1730 = vmatpush1.msra.mxu0 0.0
    %1731 = vmatprep.subr.mxu0 0.0
    %1732 = vmatpush1.msra.mxu0 0.0
    %1733 = vmatprep.subr.mxu0 0.0
    %1734 = vmatpush1.msra.mxu0 0.0
    %1735 = vmatprep.subr.mxu0 0.0
    %1736 = vmatpush1.msra.mxu0 0.0
    %1737 = vmatprep.subr.mxu0 0.0
    %1738 = vmatpush1.msra.mxu0 0.0
    %1739 = vmatprep.subr.mxu0 0.0
    %1740 = vmatpush1.msra.mxu0 0.0
    %1741 = vmatprep.subr.mxu0 0.0
    %1742 = vmatpush1.msra.mxu0 0.0
    %1743 = vmatprep.subr.mxu0 0.0
    %1744 = vmatpush1.msra.mxu0 0.0
    %1745 = vmatprep.subr.mxu0 0.0
    %1746 = vmatpush1.msra.mxu0 0.0
    %1747 = vmatprep.subr.mxu0 0.0
    %1748 = vmatpush1.msra.mxu0 0.0
    %1749 = vmatprep.subr.mxu0 0.0
    %1750 = vmatpush1.msra.mxu0 0.0
    %1751 = vmatprep.subr.mxu0 0.0
    %1752 = vmatpush1.msra.mxu0 0.0
    %1753 = vmatprep.subr.mxu0 0.0
    %1754 = vmatpush1.msra.mxu0 0.0
    %1755 = vmatprep.subr.mxu0 0.0
    %1756 = vmatpush1.msra.mxu0 0.0
    %1757 = vmatprep.subr.mxu0 0.0
    %1758 = vmatpush1.msra.mxu0 0.0
    %1759 = vmatprep.subr.mxu0 0.0
    %1760 = vmatpush1.msra.mxu0 0.0
    %1761 = vmatprep.subr.mxu0 0.0
    %1762 = vmatpush1.msra.mxu0 0.0
    %1763 = vmatprep.subr.mxu0 0.0
    %1764 = vmatpush1.msra.mxu0 0.0
    %1765 = vmatprep.subr.mxu0 0.0
    %1766 = vmatpush1.msra.mxu0 0.0
    %1767 = vmatprep.subr.mxu0 0.0
    %1768 = vmatpush1.msra.mxu0 0.0
    %1769 = vmatprep.subr.mxu0 0.0
    %1770 = vmatpush1.msra.mxu0 0.0
    %1771 = vmatprep.subr.mxu0 0.0
    %1772 = vmatpush1.msra.mxu0 0.0
    %1773 = vmatprep.subr.mxu0 0.0
    %1774 = vmatpush1.msra.mxu0 0.0
    %1775 = vmatprep.subr.mxu0 0.0
    %1776 = vmatpush1.msra.mxu0 0.0
    %1777 = vmatprep.subr.mxu0 0.0
    %1778 = vmatpush1.msra.mxu0 0.0
    %1779 = vmatprep.subr.mxu0 0.0
    %1780 = vmatpush1.msra.mxu0 0.0
    %1781 = vmatprep.mubr.f32.mxu0 0.0
    %1782 = vmatmul.mubr.f32.gmra.mrb[0].mxu0 %v1712
    %v1783 = vpop.f32.mrb[0].mxu0
    %v1784 = vadd.f32 0.0, %v1783
    %v1785 = vpop.f32.mrb[0].mxu0
    %1786 = vmatprep.mubr.f32.mxu0 0.0
    %1787 = vmatmul.mubr.f32.gmra.mrb[0].mxu0 %v1715
    %v1788 = vpop.f32.mrb[0].mxu0
    %v1789 = vadd.f32 0.0, %v1788
    %v1790 = vpop.f32.mrb[0].mxu0
    %1791 = vdwg.mxu0
    %vm1792 = vcmp.eq.s32.totalorder %v230, %v1533
    %v1793 = vsel %vm1792, 1, 0
    %v1794 = vcvt.s32.f32 %v1793
    %v1795 = vsub.f32 1.0, %v1794
    %v1796 = vsub.f32 %v1794, 1.0
    %v1797 = vmul.f32 %v1796, 999.0
    %v1798 = vmul.f32 %v988, %v988
    %v1799 = vsel %vm577, %v1798, 0.0
    %1800 = vadd.xlane.f32.xlu0 %v1799
    %v1801 = vpop.xlane.xlu0 %1800
    %v1802 = vmax.f32 %v1801, 1e-24
    %v1803 = vrsqrt.pop %v1802
    %v1804 = vmul.f32 %v988, %v1803
    %v1805 = vmul.f32 %v988, %v1392
    %v1806 = vsel %vm577, %v1805, 0.0
    %1807 = vadd.xlane.f32.xlu0 %v1806
    %v1808 = vpop.xlane.xlu0 %1807
    %v1809 = vmul.f32 %v1804, %v1410
    %v1810 = vsel %vm577, %v1809, 0.0
    %1811 = vadd.xlane.f32.xlu0 %v1810
    %v1812 = vpop.xlane.xlu0 %1811
    %v1814 = vsel %vm577, %v988, 0
    %1816 = vmatprep.subr.mxu0 0.0
    %1817 = vmatpush1.xpose.msra.mxu0 %v1814
    %1818 = vmatprep.subr.mxu0 0.0
    %1819 = vmatpush1.xpose.msra.mxu0 0.0
    %1820 = vmatprep.subr.mxu0 0.0
    %1821 = vmatpush1.xpose.msra.mxu0 0.0
    %1822 = vmatprep.subr.mxu0 0.0
    %1823 = vmatpush1.xpose.msra.mxu0 0.0
    %1824 = vmatprep.subr.mxu0 0.0
    %1825 = vmatpush1.xpose.msra.mxu0 0.0
    %1826 = vmatprep.subr.mxu0 0.0
    %1827 = vmatpush1.xpose.msra.mxu0 0.0
    %1828 = vmatprep.subr.mxu0 0.0
    %1829 = vmatpush1.xpose.msra.mxu0 0.0
    %1830 = vmatprep.subr.mxu0 0.0
    %1831 = vmatpush1.xpose.msra.mxu0 0.0
    %1832 = vmatprep.subr.mxu0 0.0
    %1833 = vmatpush1.xpose.msra.mxu0 0.0
    %1834 = vmatprep.subr.mxu0 0.0
    %1835 = vmatpush1.xpose.msra.mxu0 0.0
    %1836 = vmatprep.subr.mxu0 0.0
    %1837 = vmatpush1.xpose.msra.mxu0 0.0
    %1838 = vmatprep.subr.mxu0 0.0
    %1839 = vmatpush1.xpose.msra.mxu0 0.0
    %1840 = vmatprep.subr.mxu0 0.0
    %1841 = vmatpush1.xpose.msra.mxu0 0.0
    %1842 = vmatprep.subr.mxu0 0.0
    %1843 = vmatpush1.xpose.msra.mxu0 0.0
    %1844 = vmatprep.subr.mxu0 0.0
    %1845 = vmatpush1.xpose.msra.mxu0 0.0
    %1846 = vmatprep.subr.mxu0 0.0
    %1847 = vmatpush1.xpose.msra.mxu0 0.0
    %1848 = vmatprep.subr.mxu0 0.0
    %1849 = vmatpush1.xpose.msra.mxu0 0.0
    %1850 = vmatprep.subr.mxu0 0.0
    %1851 = vmatpush1.xpose.msra.mxu0 0.0
    %1852 = vmatprep.subr.mxu0 0.0
    %1853 = vmatpush1.xpose.msra.mxu0 0.0
    %1854 = vmatprep.subr.mxu0 0.0
    %1855 = vmatpush1.xpose.msra.mxu0 0.0
    %1856 = vmatprep.subr.mxu0 0.0
    %1857 = vmatpush1.xpose.msra.mxu0 0.0
    %1858 = vmatprep.subr.mxu0 0.0
    %1859 = vmatpush1.xpose.msra.mxu0 0.0
    %1860 = vmatprep.subr.mxu0 0.0
    %1861 = vmatpush1.xpose.msra.mxu0 0.0
    %1862 = vmatprep.subr.mxu0 0.0
    %1863 = vmatpush1.xpose.msra.mxu0 0.0
    %1864 = vmatprep.subr.mxu0 0.0
    %1865 = vmatpush1.xpose.msra.mxu0 0.0
    %1866 = vmatprep.subr.mxu0 0.0
    %1867 = vmatpush1.xpose.msra.mxu0 0.0
    %1868 = vmatprep.subr.mxu0 0.0
    %1869 = vmatpush1.xpose.msra.mxu0 0.0
    %1870 = vmatprep.subr.mxu0 0.0
    %1871 = vmatpush1.xpose.msra.mxu0 0.0
    %1872 = vmatprep.subr.mxu0 0.0
    %1873 = vmatpush1.xpose.msra.mxu0 0.0
    %1874 = vmatprep.subr.mxu0 0.0
    %1875 = vmatpush1.xpose.msra.mxu0 0.0
    %1876 = vmatprep.subr.mxu0 0.0
    %1877 = vmatpush1.xpose.msra.mxu0 0.0
    %1878 = vmatprep.subr.mxu0 0.0
    %1879 = vmatpush1.xpose.msra.mxu0 0.0
    %1880 = vmatprep.mubr.f32.mxu0 0.0
    %1881 = vmatmul.mubr.f32.gmra.mrb[0].mxu0 %v1814
    %v1882 = vpop.f32.mrb[0].mxu0
    %v1883 = vadd.f32 0.0, %v1882
    %v1884 = vpop.f32.mrb[0].mxu0
    %1885 = vdwg.mxu0
    %v1887 = vsel %vm577, %v1804, 0
    %1889 = vmatprep.subr.mxu0 0.0
    %1890 = vmatpush1.xpose.msra.mxu0 %v1887
    %1891 = vmatprep.subr.mxu0 0.0
    %1892 = vmatpush1.xpose.msra.mxu0 0.0
    %1893 = vmatprep.subr.mxu0 0.0
    %1894 = vmatpush1.xpose.msra.mxu0 0.0
    %1895 = vmatprep.subr.mxu0 0.0
    %1896 = vmatpush1.xpose.msra.mxu0 0.0
    %1897 = vmatprep.subr.mxu0 0.0
    %1898 = vmatpush1.xpose.msra.mxu0 0.0
    %1899 = vmatprep.subr.mxu0 0.0
    %1900 = vmatpush1.xpose.msra.mxu0 0.0
    %1901 = vmatprep.subr.mxu0 0.0
    %1902 = vmatpush1.xpose.msra.mxu0 0.0
    %1903 = vmatprep.subr.mxu0 0.0
    %1904 = vmatpush1.xpose.msra.mxu0 0.0
    %1905 = vmatprep.subr.mxu0 0.0
    %1906 = vmatpush1.xpose.msra.mxu0 0.0
    %1907 = vmatprep.subr.mxu0 0.0
    %1908 = vmatpush1.xpose.msra.mxu0 0.0
    %1909 = vmatprep.subr.mxu0 0.0
    %1910 = vmatpush1.xpose.msra.mxu0 0.0
    %1911 = vmatprep.subr.mxu0 0.0
    %1912 = vmatpush1.xpose.msra.mxu0 0.0
    %1913 = vmatprep.subr.mxu0 0.0
    %1914 = vmatpush1.xpose.msra.mxu0 0.0
    %1915 = vmatprep.subr.mxu0 0.0
    %1916 = vmatpush1.xpose.msra.mxu0 0.0
    %1917 = vmatprep.subr.mxu0 0.0
    %1918 = vmatpush1.xpose.msra.mxu0 0.0
    %1919 = vmatprep.subr.mxu0 0.0
    %1920 = vmatpush1.xpose.msra.mxu0 0.0
    %1921 = vmatprep.subr.mxu0 0.0
    %1922 = vmatpush1.xpose.msra.mxu0 0.0
    %1923 = vmatprep.subr.mxu0 0.0
    %1924 = vmatpush1.xpose.msra.mxu0 0.0
    %1925 = vmatprep.subr.mxu0 0.0
    %1926 = vmatpush1.xpose.msra.mxu0 0.0
    %1927 = vmatprep.subr.mxu0 0.0
    %1928 = vmatpush1.xpose.msra.mxu0 0.0
    %1929 = vmatprep.subr.mxu0 0.0
    %1930 = vmatpush1.xpose.msra.mxu0 0.0
    %1931 = vmatprep.subr.mxu0 0.0
    %1932 = vmatpush1.xpose.msra.mxu0 0.0
    %1933 = vmatprep.subr.mxu0 0.0
    %1934 = vmatpush1.xpose.msra.mxu0 0.0
    %1935 = vmatprep.subr.mxu0 0.0
    %1936 = vmatpush1.xpose.msra.mxu0 0.0
    %1937 = vmatprep.subr.mxu0 0.0
    %1938 = vmatpush1.xpose.msra.mxu0 0.0
    %1939 = vmatprep.subr.mxu0 0.0
    %1940 = vmatpush1.xpose.msra.mxu0 0.0
    %1941 = vmatprep.subr.mxu0 0.0
    %1942 = vmatpush1.xpose.msra.mxu0 0.0
    %1943 = vmatprep.subr.mxu0 0.0
    %1944 = vmatpush1.xpose.msra.mxu0 0.0
    %1945 = vmatprep.subr.mxu0 0.0
    %1946 = vmatpush1.xpose.msra.mxu0 0.0
    %1947 = vmatprep.subr.mxu0 0.0
    %1948 = vmatpush1.xpose.msra.mxu0 0.0
    %1949 = vmatprep.subr.mxu0 0.0
    %1950 = vmatpush1.xpose.msra.mxu0 0.0
    %1951 = vmatprep.subr.mxu0 0.0
    %1952 = vmatpush1.xpose.msra.mxu0 0.0
    %1953 = vmatprep.mubr.f32.mxu0 0.0
    %1954 = vmatmul.mubr.f32.gmra.mrb[0].mxu0 %v1887
    %v1955 = vpop.f32.mrb[0].mxu0
    %v1956 = vadd.f32 0.0, %v1955
    %v1957 = vpop.f32.mrb[0].mxu0
    %1958 = vdwg.mxu0
    %v1959 = vsub.f32 %v1883, %v1808
    %v1960 = vsub.f32 %v1959, 0.1
    %v1961 = vmul.f32 %v1960, -1.0
    %v1962 = vmul.f32 %v1961, %v1960
    %v1963 = vmul.f32 %v1962, 1.442695
    %v1964 = vpow.pop %v1963
    %v1965 = vmax.f32 %v1964, 0.0
    %v1966 = vmin.f32 %v1965, 0.999
    %v1967 = vmul.u32 %v230, 8
    %v1968 = vadd.s32 %v1967, %v1533
    %s1969 = smul.u32 %s34, 2654435761
    %v1970 = vstv %s1969
    %v1971 = vadd.s32 %v1968, %v1970
    %v1972 = vshrl.u32 %v1971, 16
    %v1973 = vxor.u32 %v1971, %v1972
    %v1974 = vmul.u32 %v1973, 2146121005
    %v1975 = vshrl.u32 %v1974, 15
    %v1976 = vxor.u32 %v1974, %v1975
    %v1977 = vmul.u32 %v1976, 2221713035
    %v1978 = vshrl.u32 %v1977, 16
    %v1979 = vxor.u32 %v1977, %v1978
    %v1980 = vshrl.u32 %v1979, 8
    %v1981 = vcvt.s32.f32 %v1980
    %v1982 = vmul.f32 %v1981, 5.9604645e-08
    %vm1983 = vcmp.lt.f32.partialorder %v1982, %v1966
    %v1984 = vsel %vm1983, 1, 0
    %v1985 = vcvt.s32.f32 %v1984
    %v1986 = vmul.f32 %v1956, %v1985
    %v1987 = vrcp.pop 0.5
    %v1988 = vmul.f32 %v1986, %v1987
    %v1989 = vmul.f32 %v1988, 1.442695
    %v1990 = vpow.pop %v1989
    %v1991 = vmul.f32 %v1990, %v1985
    %v1992 = vmul.f32 %v1991, %v1795
    %vm1993 = vcmask 64512
    %v1994 = vsel %vm1993, %v1992, 0.0
    %1995 = vadd.xlane.f32.xlu0 %v1994
    %v1996 = vpop.xlane.xlu0 %1995
    %v1998 = vsel %vm577, %v1392, 0
    %2000 = vmatprep.subr.mxu0 0.0
    %2001 = vmatpush1.xpose.msra.mxu0 %v1998
    %2002 = vmatprep.subr.mxu0 0.0
    %2003 = vmatpush1.xpose.msra.mxu0 0.0
    %2004 = vmatprep.subr.mxu0 0.0
    %2005 = vmatpush1.xpose.msra.mxu0 0.0
    %2006 = vmatprep.subr.mxu0 0.0
    %2007 = vmatpush1.xpose.msra.mxu0 0.0
    %2008 = vmatprep.subr.mxu0 0.0
    %2009 = vmatpush1.xpose.msra.mxu0 0.0
    %2010 = vmatprep.subr.mxu0 0.0
    %2011 = vmatpush1.xpose.msra.mxu0 0.0
    %2012 = vmatprep.subr.mxu0 0.0
    %2013 = vmatpush1.xpose.msra.mxu0 0.0
    %2014 = vmatprep.subr.mxu0 0.0
    %2015 = vmatpush1.xpose.msra.mxu0 0.0
    %2016 = vmatprep.subr.mxu0 0.0
    %2017 = vmatpush1.xpose.msra.mxu0 0.0
    %2018 = vmatprep.subr.mxu0 0.0
    %2019 = vmatpush1.xpose.msra.mxu0 0.0
    %2020 = vmatprep.subr.mxu0 0.0
    %2021 = vmatpush1.xpose.msra.mxu0 0.0
    %2022 = vmatprep.subr.mxu0 0.0
    %2023 = vmatpush1.xpose.msra.mxu0 0.0
    %2024 = vmatprep.subr.mxu0 0.0
    %2025 = vmatpush1.xpose.msra.mxu0 0.0
    %2026 = vmatprep.subr.mxu0 0.0
    %2027 = vmatpush1.xpose.msra.mxu0 0.0
    %2028 = vmatprep.subr.mxu0 0.0
    %2029 = vmatpush1.xpose.msra.mxu0 0.0
    %2030 = vmatprep.subr.mxu0 0.0
    %2031 = vmatpush1.xpose.msra.mxu0 0.0
    %2032 = vmatprep.subr.mxu0 0.0
    %2033 = vmatpush1.xpose.msra.mxu0 0.0
    %2034 = vmatprep.subr.mxu0 0.0
    %2035 = vmatpush1.xpose.msra.mxu0 0.0
    %2036 = vmatprep.subr.mxu0 0.0
    %2037 = vmatpush1.xpose.msra.mxu0 0.0
    %2038 = vmatprep.subr.mxu0 0.0
    %2039 = vmatpush1.xpose.msra.mxu0 0.0
    %2040 = vmatprep.subr.mxu0 0.0
    %2041 = vmatpush1.xpose.msra.mxu0 0.0
    %2042 = vmatprep.subr.mxu0 0.0
    %2043 = vmatpush1.xpose.msra.mxu0 0.0
    %2044 = vmatprep.subr.mxu0 0.0
    %2045 = vmatpush1.xpose.msra.mxu0 0.0
    %2046 = vmatprep.subr.mxu0 0.0
    %2047 = vmatpush1.xpose.msra.mxu0 0.0
    %2048 = vmatprep.subr.mxu0 0.0
    %2049 = vmatpush1.xpose.msra.mxu0 0.0
    %2050 = vmatprep.subr.mxu0 0.0
    %2051 = vmatpush1.xpose.msra.mxu0 0.0
    %2052 = vmatprep.subr.mxu0 0.0
    %2053 = vmatpush1.xpose.msra.mxu0 0.0
    %2054 = vmatprep.subr.mxu0 0.0
    %2055 = vmatpush1.xpose.msra.mxu0 0.0
    %2056 = vmatprep.subr.mxu0 0.0
    %2057 = vmatpush1.xpose.msra.mxu0 0.0
    %2058 = vmatprep.subr.mxu0 0.0
    %2059 = vmatpush1.xpose.msra.mxu0 0.0
    %2060 = vmatprep.subr.mxu0 0.0
    %2061 = vmatpush1.xpose.msra.mxu0 0.0
    %2062 = vmatprep.subr.mxu0 0.0
    %2063 = vmatpush1.xpose.msra.mxu0 0.0
    %2064 = vmatprep.mubr.f32.mxu0 0.0
    %2065 = vmatmul.mubr.f32.gmra.mrb[0].mxu0 %v1814
    %v2066 = vpop.f32.mrb[0].mxu0
    %v2067 = vadd.f32 0.0, %v2066
    %v2068 = vpop.f32.mrb[0].mxu0
    %2069 = vdwg.mxu0
    %2070 = vmatprep.subr.mxu0 0.0
    %2071 = vmatpush1.xpose.msra.mxu0 %v1443
    %2072 = vmatprep.subr.mxu0 0.0
    %2073 = vmatpush1.xpose.msra.mxu0 0.0
    %2074 = vmatprep.subr.mxu0 0.0
    %2075 = vmatpush1.xpose.msra.mxu0 0.0
    %2076 = vmatprep.subr.mxu0 0.0
    %2077 = vmatpush1.xpose.msra.mxu0 0.0
    %2078 = vmatprep.subr.mxu0 0.0
    %2079 = vmatpush1.xpose.msra.mxu0 0.0
    %2080 = vmatprep.subr.mxu0 0.0
    %2081 = vmatpush1.xpose.msra.mxu0 0.0
    %2082 = vmatprep.subr.mxu0 0.0
    %2083 = vmatpush1.xpose.msra.mxu0 0.0
    %2084 = vmatprep.subr.mxu0 0.0
    %2085 = vmatpush1.xpose.msra.mxu0 0.0
    %2086 = vmatprep.subr.mxu0 0.0
    %2087 = vmatpush1.xpose.msra.mxu0 0.0
    %2088 = vmatprep.subr.mxu0 0.0
    %2089 = vmatpush1.xpose.msra.mxu0 0.0
    %2090 = vmatprep.subr.mxu0 0.0
    %2091 = vmatpush1.xpose.msra.mxu0 0.0
    %2092 = vmatprep.subr.mxu0 0.0
    %2093 = vmatpush1.xpose.msra.mxu0 0.0
    %2094 = vmatprep.subr.mxu0 0.0
    %2095 = vmatpush1.xpose.msra.mxu0 0.0
    %2096 = vmatprep.subr.mxu0 0.0
    %2097 = vmatpush1.xpose.msra.mxu0 0.0
    %2098 = vmatprep.subr.mxu0 0.0
    %2099 = vmatpush1.xpose.msra.mxu0 0.0
    %2100 = vmatprep.subr.mxu0 0.0
    %2101 = vmatpush1.xpose.msra.mxu0 0.0
    %2102 = vmatprep.subr.mxu0 0.0
    %2103 = vmatpush1.xpose.msra.mxu0 0.0
    %2104 = vmatprep.subr.mxu0 0.0
    %2105 = vmatpush1.xpose.msra.mxu0 0.0
    %2106 = vmatprep.subr.mxu0 0.0
    %2107 = vmatpush1.xpose.msra.mxu0 0.0
    %2108 = vmatprep.subr.mxu0 0.0
    %2109 = vmatpush1.xpose.msra.mxu0 0.0
    %2110 = vmatprep.subr.mxu0 0.0
    %2111 = vmatpush1.xpose.msra.mxu0 0.0
    %2112 = vmatprep.subr.mxu0 0.0
    %2113 = vmatpush1.xpose.msra.mxu0 0.0
    %2114 = vmatprep.subr.mxu0 0.0
    %2115 = vmatpush1.xpose.msra.mxu0 0.0
    %2116 = vmatprep.subr.mxu0 0.0
    %2117 = vmatpush1.xpose.msra.mxu0 0.0
    %2118 = vmatprep.subr.mxu0 0.0
    %2119 = vmatpush1.xpose.msra.mxu0 0.0
    %2120 = vmatprep.subr.mxu0 0.0
    %2121 = vmatpush1.xpose.msra.mxu0 0.0
    %2122 = vmatprep.subr.mxu0 0.0
    %2123 = vmatpush1.xpose.msra.mxu0 0.0
    %2124 = vmatprep.subr.mxu0 0.0
    %2125 = vmatpush1.xpose.msra.mxu0 0.0
    %2126 = vmatprep.subr.mxu0 0.0
    %2127 = vmatpush1.xpose.msra.mxu0 0.0
    %2128 = vmatprep.subr.mxu0 0.0
    %2129 = vmatpush1.xpose.msra.mxu0 0.0
    %2130 = vmatprep.subr.mxu0 0.0
    %2131 = vmatpush1.xpose.msra.mxu0 0.0
    %2132 = vmatprep.subr.mxu0 0.0
    %2133 = vmatpush1.xpose.msra.mxu0 0.0
    %2134 = vmatprep.mubr.f32.mxu0 0.0
    %2135 = vmatmul.mubr.f32.gmra.mrb[0].mxu0 %v1887
    %v2136 = vpop.f32.mrb[0].mxu0
    %v2137 = vadd.f32 0.0, %v2136
    %v2138 = vpop.f32.mrb[0].mxu0
    %2139 = vdwg.mxu0
    %v2140 = vsub.f32 %v2067, %v1808
    %v2141 = vsub.f32 %v2140, 0.1
    %v2142 = vmul.f32 %v2141, -1.0
    %v2143 = vmul.f32 %v2142, %v2141
    %v2144 = vmul.f32 %v2143, 1.442695
    %v2145 = vpow.pop %v2144
    %v2146 = vmax.f32 %v2145, 0.0
    %v2147 = vmin.f32 %v2146, 0.999
    %v2148 = vadd.s32 %v1971, 2654435761
    %v2149 = vshrl.u32 %v2148, 16
    %v2150 = vxor.u32 %v2148, %v2149
    %v2151 = vmul.u32 %v2150, 2146121005
    %v2152 = vshrl.u32 %v2151, 15
    %v2153 = vxor.u32 %v2151, %v2152
    %v2154 = vmul.u32 %v2153, 2221713035
    %v2155 = vshrl.u32 %v2154, 16
    %v2156 = vxor.u32 %v2154, %v2155
    %v2157 = vshrl.u32 %v2156, 8
    %v2158 = vcvt.s32.f32 %v2157
    %v2159 = vmul.f32 %v2158, 5.9604645e-08
    %vm2160 = vcmp.lt.f32.partialorder %v2159, %v2147
    %v2161 = vsel %vm2160, 1, 0
    %v2162 = vcvt.s32.f32 %v2161
    %v2163 = vmul.f32 %v2137, %v2162
    %v2164 = vmul.f32 %v2163, %v1987
    %v2165 = vmul.f32 %v2164, 1.442695
    %v2166 = vpow.pop %v2165
    %v2167 = vmul.f32 %v2166, %v2162
    %v2168 = vmul.f32 %v2167, %v1795
    %v2169 = vsel %vm1993, %v2168, 0.0
    %2170 = vadd.xlane.f32.xlu0 %v2169
    %v2171 = vpop.xlane.xlu0 %2170
    %v2172 = vadd.f32 %v1996, %v2171
    %2173 = vmatprep.subr.mxu0 0.0
    %2174 = vmatpush1.xpose.msra.mxu0 %v1814
    %2175 = vmatprep.subr.mxu0 0.0
    %2176 = vmatpush1.xpose.msra.mxu0 0.0
    %2177 = vmatprep.subr.mxu0 0.0
    %2178 = vmatpush1.xpose.msra.mxu0 0.0
    %2179 = vmatprep.subr.mxu0 0.0
    %2180 = vmatpush1.xpose.msra.mxu0 0.0
    %2181 = vmatprep.subr.mxu0 0.0
    %2182 = vmatpush1.xpose.msra.mxu0 0.0
    %2183 = vmatprep.subr.mxu0 0.0
    %2184 = vmatpush1.xpose.msra.mxu0 0.0
    %2185 = vmatprep.subr.mxu0 0.0
    %2186 = vmatpush1.xpose.msra.mxu0 0.0
    %2187 = vmatprep.subr.mxu0 0.0
    %2188 = vmatpush1.xpose.msra.mxu0 0.0
    %2189 = vmatprep.subr.mxu0 0.0
    %2190 = vmatpush1.xpose.msra.mxu0 0.0
    %2191 = vmatprep.subr.mxu0 0.0
    %2192 = vmatpush1.xpose.msra.mxu0 0.0
    %2193 = vmatprep.subr.mxu0 0.0
    %2194 = vmatpush1.xpose.msra.mxu0 0.0
    %2195 = vmatprep.subr.mxu0 0.0
    %2196 = vmatpush1.xpose.msra.mxu0 0.0
    %2197 = vmatprep.subr.mxu0 0.0
    %2198 = vmatpush1.xpose.msra.mxu0 0.0
    %2199 = vmatprep.subr.mxu0 0.0
    %2200 = vmatpush1.xpose.msra.mxu0 0.0
    %2201 = vmatprep.subr.mxu0 0.0
    %2202 = vmatpush1.xpose.msra.mxu0 0.0
    %2203 = vmatprep.subr.mxu0 0.0
    %2204 = vmatpush1.xpose.msra.mxu0 0.0
    %2205 = vmatprep.subr.mxu0 0.0
    %2206 = vmatpush1.xpose.msra.mxu0 0.0
    %2207 = vmatprep.subr.mxu0 0.0
    %2208 = vmatpush1.xpose.msra.mxu0 0.0
    %2209 = vmatprep.subr.mxu0 0.0
    %2210 = vmatpush1.xpose.msra.mxu0 0.0
    %2211 = vmatprep.subr.mxu0 0.0
    %2212 = vmatpush1.xpose.msra.mxu0 0.0
    %2213 = vmatprep.subr.mxu0 0.0
    %2214 = vmatpush1.xpose.msra.mxu0 0.0
    %2215 = vmatprep.subr.mxu0 0.0
    %2216 = vmatpush1.xpose.msra.mxu0 0.0
    %2217 = vmatprep.subr.mxu0 0.0
    %2218 = vmatpush1.xpose.msra.mxu0 0.0
    %2219 = vmatprep.subr.mxu0 0.0
    %2220 = vmatpush1.xpose.msra.mxu0 0.0
    %2221 = vmatprep.subr.mxu0 0.0
    %2222 = vmatpush1.xpose.msra.mxu0 0.0
    %2223 = vmatprep.subr.mxu0 0.0
    %2224 = vmatpush1.xpose.msra.mxu0 0.0
    %2225 = vmatprep.subr.mxu0 0.0
    %2226 = vmatpush1.xpose.msra.mxu0 0.0
    %2227 = vmatprep.subr.mxu0 0.0
    %2228 = vmatpush1.xpose.msra.mxu0 0.0
    %2229 = vmatprep.subr.mxu0 0.0
    %2230 = vmatpush1.xpose.msra.mxu0 0.0
    %2231 = vmatprep.subr.mxu0 0.0
    %2232 = vmatpush1.xpose.msra.mxu0 0.0
    %2233 = vmatprep.subr.mxu0 0.0
    %2234 = vmatpush1.xpose.msra.mxu0 0.0
    %2235 = vmatprep.subr.mxu0 0.0
    %2236 = vmatpush1.xpose.msra.mxu0 0.0
    %2237 = vmatprep.mubr.f32.mxu0 0.0
    %2238 = vmatmul.mubr.f32.gmra.mrb[0].mxu0 %v1998
    %v2239 = vpop.f32.mrb[0].mxu0
    %v2240 = vadd.f32 0.0, %v2239
    %v2241 = vpop.f32.mrb[0].mxu0
    %2242 = vdwg.mxu0
    %2243 = vmatprep.subr.mxu0 0.0
    %2244 = vmatpush1.xpose.msra.mxu0 %v1887
    %2245 = vmatprep.subr.mxu0 0.0
    %2246 = vmatpush1.xpose.msra.mxu0 0.0
    %2247 = vmatprep.subr.mxu0 0.0
    %2248 = vmatpush1.xpose.msra.mxu0 0.0
    %2249 = vmatprep.subr.mxu0 0.0
    %2250 = vmatpush1.xpose.msra.mxu0 0.0
    %2251 = vmatprep.subr.mxu0 0.0
    %2252 = vmatpush1.xpose.msra.mxu0 0.0
    %2253 = vmatprep.subr.mxu0 0.0
    %2254 = vmatpush1.xpose.msra.mxu0 0.0
    %2255 = vmatprep.subr.mxu0 0.0
    %2256 = vmatpush1.xpose.msra.mxu0 0.0
    %2257 = vmatprep.subr.mxu0 0.0
    %2258 = vmatpush1.xpose.msra.mxu0 0.0
    %2259 = vmatprep.subr.mxu0 0.0
    %2260 = vmatpush1.xpose.msra.mxu0 0.0
    %2261 = vmatprep.subr.mxu0 0.0
    %2262 = vmatpush1.xpose.msra.mxu0 0.0
    %2263 = vmatprep.subr.mxu0 0.0
    %2264 = vmatpush1.xpose.msra.mxu0 0.0
    %2265 = vmatprep.subr.mxu0 0.0
    %2266 = vmatpush1.xpose.msra.mxu0 0.0
    %2267 = vmatprep.subr.mxu0 0.0
    %2268 = vmatpush1.xpose.msra.mxu0 0.0
    %2269 = vmatprep.subr.mxu0 0.0
    %2270 = vmatpush1.xpose.msra.mxu0 0.0
    %2271 = vmatprep.subr.mxu0 0.0
    %2272 = vmatpush1.xpose.msra.mxu0 0.0
    %2273 = vmatprep.subr.mxu0 0.0
    %2274 = vmatpush1.xpose.msra.mxu0 0.0
    %2275 = vmatprep.subr.mxu0 0.0
    %2276 = vmatpush1.xpose.msra.mxu0 0.0
    %2277 = vmatprep.subr.mxu0 0.0
    %2278 = vmatpush1.xpose.msra.mxu0 0.0
    %2279 = vmatprep.subr.mxu0 0.0
    %2280 = vmatpush1.xpose.msra.mxu0 0.0
    %2281 = vmatprep.subr.mxu0 0.0
    %2282 = vmatpush1.xpose.msra.mxu0 0.0
    %2283 = vmatprep.subr.mxu0 0.0
    %2284 = vmatpush1.xpose.msra.mxu0 0.0
    %2285 = vmatprep.subr.mxu0 0.0
    %2286 = vmatpush1.xpose.msra.mxu0 0.0
    %2287 = vmatprep.subr.mxu0 0.0
    %2288 = vmatpush1.xpose.msra.mxu0 0.0
    %2289 = vmatprep.subr.mxu0 0.0
    %2290 = vmatpush1.xpose.msra.mxu0 0.0
    %2291 = vmatprep.subr.mxu0 0.0
    %2292 = vmatpush1.xpose.msra.mxu0 0.0
    %2293 = vmatprep.subr.mxu0 0.0
    %2294 = vmatpush1.xpose.msra.mxu0 0.0
    %2295 = vmatprep.subr.mxu0 0.0
    %2296 = vmatpush1.xpose.msra.mxu0 0.0
    %2297 = vmatprep.subr.mxu0 0.0
    %2298 = vmatpush1.xpose.msra.mxu0 0.0
    %2299 = vmatprep.subr.mxu0 0.0
    %2300 = vmatpush1.xpose.msra.mxu0 0.0
    %2301 = vmatprep.subr.mxu0 0.0
    %2302 = vmatpush1.xpose.msra.mxu0 0.0
    %2303 = vmatprep.subr.mxu0 0.0
    %2304 = vmatpush1.xpose.msra.mxu0 0.0
    %2305 = vmatprep.subr.mxu0 0.0
    %2306 = vmatpush1.xpose.msra.mxu0 0.0
    %2307 = vmatprep.mubr.f32.mxu0 0.0
    %2308 = vmatmul.mubr.f32.gmra.mrb[0].mxu0 %v1443
    %v2309 = vpop.f32.mrb[0].mxu0
    %v2310 = vadd.f32 0.0, %v2309
    %v2311 = vpop.f32.mrb[0].mxu0
    %2312 = vdwg.mxu0
    %v2313 = vsub.f32 %v2240, %v1808
    %v2314 = vsub.f32 %v2313, 0.1
    %v2315 = vmul.f32 %v2314, -1.0
    %v2316 = vmul.f32 %v2315, %v2314
    %v2317 = vmul.f32 %v2316, 1.442695
    %v2318 = vpow.pop %v2317
    %v2319 = vmax.f32 %v2318, 0.0
    %v2320 = vmin.f32 %v2319, 0.999
    %v2321 = vadd.s32 %v1971, 1013904226
    %v2322 = vshrl.u32 %v2321, 16
    %v2323 = vxor.u32 %v2321, %v2322
    %v2324 = vmul.u32 %v2323, 2146121005
    %v2325 = vshrl.u32 %v2324, 15
    %v2326 = vxor.u32 %v2324, %v2325
    %v2327 = vmul.u32 %v2326, 2221713035
    %v2328 = vshrl.u32 %v2327, 16
    %v2329 = vxor.u32 %v2327, %v2328
    %v2330 = vshrl.u32 %v2329, 8
    %v2331 = vcvt.s32.f32 %v2330
    %v2332 = vmul.f32 %v2331, 5.9604645e-08
    %vm2333 = vcmp.lt.f32.partialorder %v2332, %v2320
    %v2334 = vsel %vm2333, 1, 0
    %v2335 = vcvt.s32.f32 %v2334
    %v2336 = vmul.f32 %v2310, %v2335
    %v2337 = vmul.f32 %v2336, %v1987
    %v2338 = vmul.f32 %v2337, 1.442695
    %v2339 = vpow.pop %v2338
    %v2340 = vmul.f32 %v2339, %v2335
    %v2341 = vmul.f32 %v2340, %v1795
    %v2342 = vsel %vm1993, %v2341, 0.0
    %2343 = vadd.xlane.f32.xlu0 %v2342
    %v2344 = vpop.xlane.xlu0 %2343
    %2345 = vmatprep.subr.mxu0 0.0
    %2346 = vmatpush1.xpose.msra.mxu0 %v1998
    %2347 = vmatprep.subr.mxu0 0.0
    %2348 = vmatpush1.xpose.msra.mxu0 0.0
    %2349 = vmatprep.subr.mxu0 0.0
    %2350 = vmatpush1.xpose.msra.mxu0 0.0
    %2351 = vmatprep.subr.mxu0 0.0
    %2352 = vmatpush1.xpose.msra.mxu0 0.0
    %2353 = vmatprep.subr.mxu0 0.0
    %2354 = vmatpush1.xpose.msra.mxu0 0.0
    %2355 = vmatprep.subr.mxu0 0.0
    %2356 = vmatpush1.xpose.msra.mxu0 0.0
    %2357 = vmatprep.subr.mxu0 0.0
    %2358 = vmatpush1.xpose.msra.mxu0 0.0
    %2359 = vmatprep.subr.mxu0 0.0
    %2360 = vmatpush1.xpose.msra.mxu0 0.0
    %2361 = vmatprep.subr.mxu0 0.0
    %2362 = vmatpush1.xpose.msra.mxu0 0.0
    %2363 = vmatprep.subr.mxu0 0.0
    %2364 = vmatpush1.xpose.msra.mxu0 0.0
    %2365 = vmatprep.subr.mxu0 0.0
    %2366 = vmatpush1.xpose.msra.mxu0 0.0
    %2367 = vmatprep.subr.mxu0 0.0
    %2368 = vmatpush1.xpose.msra.mxu0 0.0
    %2369 = vmatprep.subr.mxu0 0.0
    %2370 = vmatpush1.xpose.msra.mxu0 0.0
    %2371 = vmatprep.subr.mxu0 0.0
    %2372 = vmatpush1.xpose.msra.mxu0 0.0
    %2373 = vmatprep.subr.mxu0 0.0
    %2374 = vmatpush1.xpose.msra.mxu0 0.0
    %2375 = vmatprep.subr.mxu0 0.0
    %2376 = vmatpush1.xpose.msra.mxu0 0.0
    %2377 = vmatprep.subr.mxu0 0.0
    %2378 = vmatpush1.xpose.msra.mxu0 0.0
    %2379 = vmatprep.subr.mxu0 0.0
    %2380 = vmatpush1.xpose.msra.mxu0 0.0
    %2381 = vmatprep.subr.mxu0 0.0
    %2382 = vmatpush1.xpose.msra.mxu0 0.0
    %2383 = vmatprep.subr.mxu0 0.0
    %2384 = vmatpush1.xpose.msra.mxu0 0.0
    %2385 = vmatprep.subr.mxu0 0.0
    %2386 = vmatpush1.xpose.msra.mxu0 0.0
    %2387 = vmatprep.subr.mxu0 0.0
    %2388 = vmatpush1.xpose.msra.mxu0 0.0
    %2389 = vmatprep.subr.mxu0 0.0
    %2390 = vmatpush1.xpose.msra.mxu0 0.0
    %2391 = vmatprep.subr.mxu0 0.0
    %2392 = vmatpush1.xpose.msra.mxu0 0.0
    %2393 = vmatprep.subr.mxu0 0.0
    %2394 = vmatpush1.xpose.msra.mxu0 0.0
    %2395 = vmatprep.subr.mxu0 0.0
    %2396 = vmatpush1.xpose.msra.mxu0 0.0
    %2397 = vmatprep.subr.mxu0 0.0
    %2398 = vmatpush1.xpose.msra.mxu0 0.0
    %2399 = vmatprep.subr.mxu0 0.0
    %2400 = vmatpush1.xpose.msra.mxu0 0.0
    %2401 = vmatprep.subr.mxu0 0.0
    %2402 = vmatpush1.xpose.msra.mxu0 0.0
    %2403 = vmatprep.subr.mxu0 0.0
    %2404 = vmatpush1.xpose.msra.mxu0 0.0
    %2405 = vmatprep.subr.mxu0 0.0
    %2406 = vmatpush1.xpose.msra.mxu0 0.0
    %2407 = vmatprep.subr.mxu0 0.0
    %2408 = vmatpush1.xpose.msra.mxu0 0.0
    %2409 = vmatprep.mubr.f32.mxu0 0.0
    %2410 = vmatmul.mubr.f32.gmra.mrb[0].mxu0 %v1998
    %v2411 = vpop.f32.mrb[0].mxu0
    %v2412 = vadd.f32 0.0, %v2411
    %v2413 = vpop.f32.mrb[0].mxu0
    %2414 = vdwg.mxu0
    %2415 = vmatprep.subr.mxu0 0.0
    %2416 = vmatpush1.xpose.msra.mxu0 %v1443
    %2417 = vmatprep.subr.mxu0 0.0
    %2418 = vmatpush1.xpose.msra.mxu0 0.0
    %2419 = vmatprep.subr.mxu0 0.0
    %2420 = vmatpush1.xpose.msra.mxu0 0.0
    %2421 = vmatprep.subr.mxu0 0.0
    %2422 = vmatpush1.xpose.msra.mxu0 0.0
    %2423 = vmatprep.subr.mxu0 0.0
    %2424 = vmatpush1.xpose.msra.mxu0 0.0
    %2425 = vmatprep.subr.mxu0 0.0
    %2426 = vmatpush1.xpose.msra.mxu0 0.0
    %2427 = vmatprep.subr.mxu0 0.0
    %2428 = vmatpush1.xpose.msra.mxu0 0.0
    %2429 = vmatprep.subr.mxu0 0.0
    %2430 = vmatpush1.xpose.msra.mxu0 0.0
    %2431 = vmatprep.subr.mxu0 0.0
    %2432 = vmatpush1.xpose.msra.mxu0 0.0
    %2433 = vmatprep.subr.mxu0 0.0
    %2434 = vmatpush1.xpose.msra.mxu0 0.0
    %2435 = vmatprep.subr.mxu0 0.0
    %2436 = vmatpush1.xpose.msra.mxu0 0.0
    %2437 = vmatprep.subr.mxu0 0.0
    %2438 = vmatpush1.xpose.msra.mxu0 0.0
    %2439 = vmatprep.subr.mxu0 0.0
    %2440 = vmatpush1.xpose.msra.mxu0 0.0
    %2441 = vmatprep.subr.mxu0 0.0
    %2442 = vmatpush1.xpose.msra.mxu0 0.0
    %2443 = vmatprep.subr.mxu0 0.0
    %2444 = vmatpush1.xpose.msra.mxu0 0.0
    %2445 = vmatprep.subr.mxu0 0.0
    %2446 = vmatpush1.xpose.msra.mxu0 0.0
    %2447 = vmatprep.subr.mxu0 0.0
    %2448 = vmatpush1.xpose.msra.mxu0 0.0
    %2449 = vmatprep.subr.mxu0 0.0
    %2450 = vmatpush1.xpose.msra.mxu0 0.0
    %2451 = vmatprep.subr.mxu0 0.0
    %2452 = vmatpush1.xpose.msra.mxu0 0.0
    %2453 = vmatprep.subr.mxu0 0.0
    %2454 = vmatpush1.xpose.msra.mxu0 0.0
    %2455 = vmatprep.subr.mxu0 0.0
    %2456 = vmatpush1.xpose.msra.mxu0 0.0
    %2457 = vmatprep.subr.mxu0 0.0
    %2458 = vmatpush1.xpose.msra.mxu0 0.0
    %2459 = vmatprep.subr.mxu0 0.0
    %2460 = vmatpush1.xpose.msra.mxu0 0.0
    %2461 = vmatprep.subr.mxu0 0.0
    %2462 = vmatpush1.xpose.msra.mxu0 0.0
    %2463 = vmatprep.subr.mxu0 0.0
    %2464 = vmatpush1.xpose.msra.mxu0 0.0
    %2465 = vmatprep.subr.mxu0 0.0
    %2466 = vmatpush1.xpose.msra.mxu0 0.0
    %2467 = vmatprep.subr.mxu0 0.0
    %2468 = vmatpush1.xpose.msra.mxu0 0.0
    %2469 = vmatprep.subr.mxu0 0.0
    %2470 = vmatpush1.xpose.msra.mxu0 0.0
    %2471 = vmatprep.subr.mxu0 0.0
    %2472 = vmatpush1.xpose.msra.mxu0 0.0
    %2473 = vmatprep.subr.mxu0 0.0
    %2474 = vmatpush1.xpose.msra.mxu0 0.0
    %2475 = vmatprep.subr.mxu0 0.0
    %2476 = vmatpush1.xpose.msra.mxu0 0.0
    %2477 = vmatprep.subr.mxu0 0.0
    %2478 = vmatpush1.xpose.msra.mxu0 0.0
    %2479 = vmatprep.mubr.f32.mxu0 0.0
    %2480 = vmatmul.mubr.f32.gmra.mrb[0].mxu0 %v1443
    %v2481 = vpop.f32.mrb[0].mxu0
    %v2482 = vadd.f32 0.0, %v2481
    %v2483 = vpop.f32.mrb[0].mxu0
    %2484 = vdwg.mxu0
    %v2485 = vsub.f32 %v2412, %v1808
    %v2486 = vsub.f32 %v2485, 0.1
    %v2487 = vmul.f32 %v2486, -1.0
    %v2488 = vmul.f32 %v2487, %v2486
    %v2489 = vmul.f32 %v2488, 1.442695
    %v2490 = vpow.pop %v2489
    %v2491 = vmax.f32 %v2490, 0.0
    %v2492 = vmin.f32 %v2491, 0.999
    %v2493 = vadd.s32 %v1971, 3668339987
    %v2494 = vshrl.u32 %v2493, 16
    %v2495 = vxor.u32 %v2493, %v2494
    %v2496 = vmul.u32 %v2495, 2146121005
    %v2497 = vshrl.u32 %v2496, 15
    %v2498 = vxor.u32 %v2496, %v2497
    %v2499 = vmul.u32 %v2498, 2221713035
    %v2500 = vshrl.u32 %v2499, 16
    %v2501 = vxor.u32 %v2499, %v2500
    %v2502 = vshrl.u32 %v2501, 8
    %v2503 = vcvt.s32.f32 %v2502
    %v2504 = vmul.f32 %v2503, 5.9604645e-08
    %vm2505 = vcmp.lt.f32.partialorder %v2504, %v2492
    %v2506 = vsel %vm2505, 1, 0
    %v2507 = vcvt.s32.f32 %v2506
    %v2508 = vmul.f32 %v2482, %v2507
    %v2509 = vmul.f32 %v2508, %v1987
    %v2510 = vmul.f32 %v2509, 1.442695
    %v2511 = vpow.pop %v2510
    %v2512 = vmul.f32 %v2511, %v2507
    %v2513 = vmul.f32 %v2512, %v1795
    %v2514 = vsel %vm1993, %v2513, 0.0
    %2515 = vadd.xlane.f32.xlu0 %v2514
    %v2516 = vpop.xlane.xlu0 %2515
    %v2517 = vadd.f32 %v2344, %v2516
    %v2518 = vmul.f32 %v1812, %v1987
    %v2519 = vmul.f32 %v2518, 1.442695
    %v2520 = vpow.pop %v2519
    %v2521 = vmul.f32 %v2172, %v1794
    %v2522 = vsel %vm1993, %v2521, 0.0
    %v2523 = vrot.slane %v2522, 4
    %v2524 = vadd.f32 %v2522, %v2523
    %v2525 = vrot.slane %v2524, 2
    %v2526 = vadd.f32 %v2524, %v2525
    %v2527 = vrot.slane %v2526, 1
    %v2528 = vadd.f32 %v2526, %v2527
    %v2529 = vmul.f32 %v2517, %v1794
    %v2530 = vsel %vm1993, %v2529, 0.0
    %v2531 = vrot.slane %v2530, 4
    %v2532 = vadd.f32 %v2530, %v2531
    %v2533 = vrot.slane %v2532, 2
    %v2534 = vadd.f32 %v2532, %v2533
    %v2535 = vrot.slane %v2534, 1
    %v2536 = vadd.f32 %v2534, %v2535
    %v2537 = vadd.f32 %v2520, %v2528
    %v2538 = vlog2.pop %v2537
    %v2539 = vmul.f32 %v2538, 0.6931472
    %v2540 = vsel %vm1993, %v2539, 0.0
    %2541 = vadd.xlane.f32.xlu0 %v2540
    %v2542 = vpop.xlane.xlu0 %2541
    %v2543 = vrot.slane %v2542, 4
    %v2544 = vadd.f32 %v2542, %v2543
    %v2545 = vrot.slane %v2544, 2
    %v2546 = vadd.f32 %v2544, %v2545
    %v2547 = vrot.slane %v2546, 1
    %v2548 = vadd.f32 %v2546, %v2547
    %s2549 = vtos %v2548
    %v2550 = vadd.f32 %v2520, %v2536
    %v2551 = vlog2.pop %v2550
    %v2552 = vmul.f32 %v2551, 0.6931472
    %v2553 = vsel %vm1993, %v2552, 0.0
    %2554 = vadd.xlane.f32.xlu0 %v2553
    %v2555 = vpop.xlane.xlu0 %2554
    %v2556 = vrot.slane %v2555, 4
    %v2557 = vadd.f32 %v2555, %v2556
    %v2558 = vrot.slane %v2557, 2
    %v2559 = vadd.f32 %v2557, %v2558
    %v2560 = vrot.slane %v2559, 1
    %v2561 = vadd.f32 %v2559, %v2560
    %s2562 = vtos %v2561
    %s2563 = sadd.f32 %s2549, %s2562
    %s2564 = smul.f32 %s2563, 2.0
    %vm2565 = vcmask 7168
    %v2566 = vsel %vm2565, %v2518, 0.0
    %2567 = vadd.xlane.f32.xlu0 %v2566
    %v2568 = vpop.xlane.xlu0 %2567
    %v2569 = vrot.slane %v2568, 4
    %v2570 = vadd.f32 %v2568, %v2569
    %v2571 = vrot.slane %v2570, 2
    %v2572 = vadd.f32 %v2570, %v2571
    %v2573 = vrot.slane %v2572, 1
    %v2574 = vadd.f32 %v2572, %v2573
    %s2575 = vtos %v2574
    %s2576 = smul.f32 %s2575, 32.0
    %s2577 = ssub.f32 %s2564, %s2576
    %v2578 = vrcp.pop 256.0
    %s2579 = vtos %v2578
    %s2580 = smul.f32 %s2577, %s2579
    %v2581 = vmul.f32 %v989, %v989
    %v2582 = vsel %vm577, %v2581, 0.0
    %2583 = vadd.xlane.f32.xlu0 %v2582
    %v2584 = vpop.xlane.xlu0 %2583
    %v2585 = vmax.f32 %v2584, 1e-24
    %v2586 = vrsqrt.pop %v2585
    %v2587 = vmul.f32 %v989, %v2586
    %v2588 = vmul.f32 %v989, %v1391
    %v2589 = vsel %vm577, %v2588, 0.0
    %2590 = vadd.xlane.f32.xlu0 %v2589
    %v2591 = vpop.xlane.xlu0 %2590
    %v2592 = vmul.f32 %v2587, %v1409
    %v2593 = vsel %vm577, %v2592, 0.0
    %2594 = vadd.xlane.f32.xlu0 %v2593
    %v2595 = vpop.xlane.xlu0 %2594
    %v2597 = vsel %vm577, %v989, 0
    %2599 = vmatprep.subr.mxu0 0.0
    %2600 = vmatpush1.xpose.msra.mxu0 %v2597
    %2601 = vmatprep.subr.mxu0 0.0
    %2602 = vmatpush1.xpose.msra.mxu0 0.0
    %2603 = vmatprep.subr.mxu0 0.0
    %2604 = vmatpush1.xpose.msra.mxu0 0.0
    %2605 = vmatprep.subr.mxu0 0.0
    %2606 = vmatpush1.xpose.msra.mxu0 0.0
    %2607 = vmatprep.subr.mxu0 0.0
    %2608 = vmatpush1.xpose.msra.mxu0 0.0
    %2609 = vmatprep.subr.mxu0 0.0
    %2610 = vmatpush1.xpose.msra.mxu0 0.0
    %2611 = vmatprep.subr.mxu0 0.0
    %2612 = vmatpush1.xpose.msra.mxu0 0.0
    %2613 = vmatprep.subr.mxu0 0.0
    %2614 = vmatpush1.xpose.msra.mxu0 0.0
    %2615 = vmatprep.subr.mxu0 0.0
    %2616 = vmatpush1.xpose.msra.mxu0 0.0
    %2617 = vmatprep.subr.mxu0 0.0
    %2618 = vmatpush1.xpose.msra.mxu0 0.0
    %2619 = vmatprep.subr.mxu0 0.0
    %2620 = vmatpush1.xpose.msra.mxu0 0.0
    %2621 = vmatprep.subr.mxu0 0.0
    %2622 = vmatpush1.xpose.msra.mxu0 0.0
    %2623 = vmatprep.subr.mxu0 0.0
    %2624 = vmatpush1.xpose.msra.mxu0 0.0
    %2625 = vmatprep.subr.mxu0 0.0
    %2626 = vmatpush1.xpose.msra.mxu0 0.0
    %2627 = vmatprep.subr.mxu0 0.0
    %2628 = vmatpush1.xpose.msra.mxu0 0.0
    %2629 = vmatprep.subr.mxu0 0.0
    %2630 = vmatpush1.xpose.msra.mxu0 0.0
    %2631 = vmatprep.subr.mxu0 0.0
    %2632 = vmatpush1.xpose.msra.mxu0 0.0
    %2633 = vmatprep.subr.mxu0 0.0
    %2634 = vmatpush1.xpose.msra.mxu0 0.0
    %2635 = vmatprep.subr.mxu0 0.0
    %2636 = vmatpush1.xpose.msra.mxu0 0.0
    %2637 = vmatprep.subr.mxu0 0.0
    %2638 = vmatpush1.xpose.msra.mxu0 0.0
    %2639 = vmatprep.subr.mxu0 0.0
    %2640 = vmatpush1.xpose.msra.mxu0 0.0
    %2641 = vmatprep.subr.mxu0 0.0
    %2642 = vmatpush1.xpose.msra.mxu0 0.0
    %2643 = vmatprep.subr.mxu0 0.0
    %2644 = vmatpush1.xpose.msra.mxu0 0.0
    %2645 = vmatprep.subr.mxu0 0.0
    %2646 = vmatpush1.xpose.msra.mxu0 0.0
    %2647 = vmatprep.subr.mxu0 0.0
    %2648 = vmatpush1.xpose.msra.mxu0 0.0
    %2649 = vmatprep.subr.mxu0 0.0
    %2650 = vmatpush1.xpose.msra.mxu0 0.0
    %2651 = vmatprep.subr.mxu0 0.0
    %2652 = vmatpush1.xpose.msra.mxu0 0.0
    %2653 = vmatprep.subr.mxu0 0.0
    %2654 = vmatpush1.xpose.msra.mxu0 0.0
    %2655 = vmatprep.subr.mxu0 0.0
    %2656 = vmatpush1.xpose.msra.mxu0 0.0
    %2657 = vmatprep.subr.mxu0 0.0
    %2658 = vmatpush1.xpose.msra.mxu0 0.0
    %2659 = vmatprep.subr.mxu0 0.0
    %2660 = vmatpush1.xpose.msra.mxu0 0.0
    %2661 = vmatprep.subr.mxu0 0.0
    %2662 = vmatpush1.xpose.msra.mxu0 0.0
    %2663 = vmatprep.mubr.f32.mxu0 0.0
    %2664 = vmatmul.mubr.f32.gmra.mrb[0].mxu0 %v2597
    %v2665 = vpop.f32.mrb[0].mxu0
    %v2666 = vadd.f32 0.0, %v2665
    %v2667 = vpop.f32.mrb[0].mxu0
    %2668 = vdwg.mxu0
    %v2670 = vsel %vm577, %v2587, 0
    %2672 = vmatprep.subr.mxu0 0.0
    %2673 = vmatpush1.xpose.msra.mxu0 %v2670
    %2674 = vmatprep.subr.mxu0 0.0
    %2675 = vmatpush1.xpose.msra.mxu0 0.0
    %2676 = vmatprep.subr.mxu0 0.0
    %2677 = vmatpush1.xpose.msra.mxu0 0.0
    %2678 = vmatprep.subr.mxu0 0.0
    %2679 = vmatpush1.xpose.msra.mxu0 0.0
    %2680 = vmatprep.subr.mxu0 0.0
    %2681 = vmatpush1.xpose.msra.mxu0 0.0
    %2682 = vmatprep.subr.mxu0 0.0
    %2683 = vmatpush1.xpose.msra.mxu0 0.0
    %2684 = vmatprep.subr.mxu0 0.0
    %2685 = vmatpush1.xpose.msra.mxu0 0.0
    %2686 = vmatprep.subr.mxu0 0.0
    %2687 = vmatpush1.xpose.msra.mxu0 0.0
    %2688 = vmatprep.subr.mxu0 0.0
    %2689 = vmatpush1.xpose.msra.mxu0 0.0
    %2690 = vmatprep.subr.mxu0 0.0
    %2691 = vmatpush1.xpose.msra.mxu0 0.0
    %2692 = vmatprep.subr.mxu0 0.0
    %2693 = vmatpush1.xpose.msra.mxu0 0.0
    %2694 = vmatprep.subr.mxu0 0.0
    %2695 = vmatpush1.xpose.msra.mxu0 0.0
    %2696 = vmatprep.subr.mxu0 0.0
    %2697 = vmatpush1.xpose.msra.mxu0 0.0
    %2698 = vmatprep.subr.mxu0 0.0
    %2699 = vmatpush1.xpose.msra.mxu0 0.0
    %2700 = vmatprep.subr.mxu0 0.0
    %2701 = vmatpush1.xpose.msra.mxu0 0.0
    %2702 = vmatprep.subr.mxu0 0.0
    %2703 = vmatpush1.xpose.msra.mxu0 0.0
    %2704 = vmatprep.subr.mxu0 0.0
    %2705 = vmatpush1.xpose.msra.mxu0 0.0
    %2706 = vmatprep.subr.mxu0 0.0
    %2707 = vmatpush1.xpose.msra.mxu0 0.0
    %2708 = vmatprep.subr.mxu0 0.0
    %2709 = vmatpush1.xpose.msra.mxu0 0.0
    %2710 = vmatprep.subr.mxu0 0.0
    %2711 = vmatpush1.xpose.msra.mxu0 0.0
    %2712 = vmatprep.subr.mxu0 0.0
    %2713 = vmatpush1.xpose.msra.mxu0 0.0
    %2714 = vmatprep.subr.mxu0 0.0
    %2715 = vmatpush1.xpose.msra.mxu0 0.0
    %2716 = vmatprep.subr.mxu0 0.0
    %2717 = vmatpush1.xpose.msra.mxu0 0.0
    %2718 = vmatprep.subr.mxu0 0.0
    %2719 = vmatpush1.xpose.msra.mxu0 0.0
    %2720 = vmatprep.subr.mxu0 0.0
    %2721 = vmatpush1.xpose.msra.mxu0 0.0
    %2722 = vmatprep.subr.mxu0 0.0
    %2723 = vmatpush1.xpose.msra.mxu0 0.0
    %2724 = vmatprep.subr.mxu0 0.0
    %2725 = vmatpush1.xpose.msra.mxu0 0.0
    %2726 = vmatprep.subr.mxu0 0.0
    %2727 = vmatpush1.xpose.msra.mxu0 0.0
    %2728 = vmatprep.subr.mxu0 0.0
    %2729 = vmatpush1.xpose.msra.mxu0 0.0
    %2730 = vmatprep.subr.mxu0 0.0
    %2731 = vmatpush1.xpose.msra.mxu0 0.0
    %2732 = vmatprep.subr.mxu0 0.0
    %2733 = vmatpush1.xpose.msra.mxu0 0.0
    %2734 = vmatprep.subr.mxu0 0.0
    %2735 = vmatpush1.xpose.msra.mxu0 0.0
    %2736 = vmatprep.mubr.f32.mxu0 0.0
    %2737 = vmatmul.mubr.f32.gmra.mrb[0].mxu0 %v2670
    %v2738 = vpop.f32.mrb[0].mxu0
    %v2739 = vadd.f32 0.0, %v2738
    %v2740 = vpop.f32.mrb[0].mxu0
    %2741 = vdwg.mxu0
    %v2742 = vsub.f32 %v2666, %v2591
    %v2743 = vsub.f32 %v2742, 0.1
    %v2744 = vmul.f32 %v2743, -1.0
    %v2745 = vmul.f32 %v2744, %v2743
    %v2746 = vmul.f32 %v2745, 1.442695
    %v2747 = vpow.pop %v2746
    %v2748 = vmax.f32 %v2747, 0.0
    %v2749 = vmin.f32 %v2748, 0.999
    %v2750 = vadd.s32 %v1971, 2027808452
    %v2751 = vshrl.u32 %v2750, 16
    %v2752 = vxor.u32 %v2750, %v2751
    %v2753 = vmul.u32 %v2752, 2146121005
    %v2754 = vshrl.u32 %v2753, 15
    %v2755 = vxor.u32 %v2753, %v2754
    %v2756 = vmul.u32 %v2755, 2221713035
    %v2757 = vshrl.u32 %v2756, 16
    %v2758 = vxor.u32 %v2756, %v2757
    %v2759 = vshrl.u32 %v2758, 8
    %v2760 = vcvt.s32.f32 %v2759
    %v2761 = vmul.f32 %v2760, 5.9604645e-08
    %vm2762 = vcmp.lt.f32.partialorder %v2761, %v2749
    %v2763 = vsel %vm2762, 1, 0
    %v2764 = vcvt.s32.f32 %v2763
    %v2765 = vmul.f32 %v2739, %v2764
    %v2766 = vmul.f32 %v2765, %v1987
    %v2767 = vmul.f32 %v2766, 1.442695
    %v2768 = vpow.pop %v2767
    %v2769 = vmul.f32 %v2768, %v2764
    %v2770 = vmul.f32 %v2769, %v1795
    %v2771 = vsel %vm1993, %v2770, 0.0
    %2772 = vadd.xlane.f32.xlu0 %v2771
    %v2773 = vpop.xlane.xlu0 %2772
    %v2775 = vsel %vm577, %v1391, 0
    %2777 = vmatprep.subr.mxu0 0.0
    %2778 = vmatpush1.xpose.msra.mxu0 %v2775
    %2779 = vmatprep.subr.mxu0 0.0
    %2780 = vmatpush1.xpose.msra.mxu0 0.0
    %2781 = vmatprep.subr.mxu0 0.0
    %2782 = vmatpush1.xpose.msra.mxu0 0.0
    %2783 = vmatprep.subr.mxu0 0.0
    %2784 = vmatpush1.xpose.msra.mxu0 0.0
    %2785 = vmatprep.subr.mxu0 0.0
    %2786 = vmatpush1.xpose.msra.mxu0 0.0
    %2787 = vmatprep.subr.mxu0 0.0
    %2788 = vmatpush1.xpose.msra.mxu0 0.0
    %2789 = vmatprep.subr.mxu0 0.0
    %2790 = vmatpush1.xpose.msra.mxu0 0.0
    %2791 = vmatprep.subr.mxu0 0.0
    %2792 = vmatpush1.xpose.msra.mxu0 0.0
    %2793 = vmatprep.subr.mxu0 0.0
    %2794 = vmatpush1.xpose.msra.mxu0 0.0
    %2795 = vmatprep.subr.mxu0 0.0
    %2796 = vmatpush1.xpose.msra.mxu0 0.0
    %2797 = vmatprep.subr.mxu0 0.0
    %2798 = vmatpush1.xpose.msra.mxu0 0.0
    %2799 = vmatprep.subr.mxu0 0.0
    %2800 = vmatpush1.xpose.msra.mxu0 0.0
    %2801 = vmatprep.subr.mxu0 0.0
    %2802 = vmatpush1.xpose.msra.mxu0 0.0
    %2803 = vmatprep.subr.mxu0 0.0
    %2804 = vmatpush1.xpose.msra.mxu0 0.0
    %2805 = vmatprep.subr.mxu0 0.0
    %2806 = vmatpush1.xpose.msra.mxu0 0.0
    %2807 = vmatprep.subr.mxu0 0.0
    %2808 = vmatpush1.xpose.msra.mxu0 0.0
    %2809 = vmatprep.subr.mxu0 0.0
    %2810 = vmatpush1.xpose.msra.mxu0 0.0
    %2811 = vmatprep.subr.mxu0 0.0
    %2812 = vmatpush1.xpose.msra.mxu0 0.0
    %2813 = vmatprep.subr.mxu0 0.0
    %2814 = vmatpush1.xpose.msra.mxu0 0.0
    %2815 = vmatprep.subr.mxu0 0.0
    %2816 = vmatpush1.xpose.msra.mxu0 0.0
    %2817 = vmatprep.subr.mxu0 0.0
    %2818 = vmatpush1.xpose.msra.mxu0 0.0
    %2819 = vmatprep.subr.mxu0 0.0
    %2820 = vmatpush1.xpose.msra.mxu0 0.0
    %2821 = vmatprep.subr.mxu0 0.0
    %2822 = vmatpush1.xpose.msra.mxu0 0.0
    %2823 = vmatprep.subr.mxu0 0.0
    %2824 = vmatpush1.xpose.msra.mxu0 0.0
    %2825 = vmatprep.subr.mxu0 0.0
    %2826 = vmatpush1.xpose.msra.mxu0 0.0
    %2827 = vmatprep.subr.mxu0 0.0
    %2828 = vmatpush1.xpose.msra.mxu0 0.0
    %2829 = vmatprep.subr.mxu0 0.0
    %2830 = vmatpush1.xpose.msra.mxu0 0.0
    %2831 = vmatprep.subr.mxu0 0.0
    %2832 = vmatpush1.xpose.msra.mxu0 0.0
    %2833 = vmatprep.subr.mxu0 0.0
    %2834 = vmatpush1.xpose.msra.mxu0 0.0
    %2835 = vmatprep.subr.mxu0 0.0
    %2836 = vmatpush1.xpose.msra.mxu0 0.0
    %2837 = vmatprep.subr.mxu0 0.0
    %2838 = vmatpush1.xpose.msra.mxu0 0.0
    %2839 = vmatprep.subr.mxu0 0.0
    %2840 = vmatpush1.xpose.msra.mxu0 0.0
    %2841 = vmatprep.mubr.f32.mxu0 0.0
    %2842 = vmatmul.mubr.f32.gmra.mrb[0].mxu0 %v2597
    %v2843 = vpop.f32.mrb[0].mxu0
    %v2844 = vadd.f32 0.0, %v2843
    %v2845 = vpop.f32.mrb[0].mxu0
    %2846 = vdwg.mxu0
    %2847 = vmatprep.subr.mxu0 0.0
    %2848 = vmatpush1.xpose.msra.mxu0 %v1440
    %2849 = vmatprep.subr.mxu0 0.0
    %2850 = vmatpush1.xpose.msra.mxu0 0.0
    %2851 = vmatprep.subr.mxu0 0.0
    %2852 = vmatpush1.xpose.msra.mxu0 0.0
    %2853 = vmatprep.subr.mxu0 0.0
    %2854 = vmatpush1.xpose.msra.mxu0 0.0
    %2855 = vmatprep.subr.mxu0 0.0
    %2856 = vmatpush1.xpose.msra.mxu0 0.0
    %2857 = vmatprep.subr.mxu0 0.0
    %2858 = vmatpush1.xpose.msra.mxu0 0.0
    %2859 = vmatprep.subr.mxu0 0.0
    %2860 = vmatpush1.xpose.msra.mxu0 0.0
    %2861 = vmatprep.subr.mxu0 0.0
    %2862 = vmatpush1.xpose.msra.mxu0 0.0
    %2863 = vmatprep.subr.mxu0 0.0
    %2864 = vmatpush1.xpose.msra.mxu0 0.0
    %2865 = vmatprep.subr.mxu0 0.0
    %2866 = vmatpush1.xpose.msra.mxu0 0.0
    %2867 = vmatprep.subr.mxu0 0.0
    %2868 = vmatpush1.xpose.msra.mxu0 0.0
    %2869 = vmatprep.subr.mxu0 0.0
    %2870 = vmatpush1.xpose.msra.mxu0 0.0
    %2871 = vmatprep.subr.mxu0 0.0
    %2872 = vmatpush1.xpose.msra.mxu0 0.0
    %2873 = vmatprep.subr.mxu0 0.0
    %2874 = vmatpush1.xpose.msra.mxu0 0.0
    %2875 = vmatprep.subr.mxu0 0.0
    %2876 = vmatpush1.xpose.msra.mxu0 0.0
    %2877 = vmatprep.subr.mxu0 0.0
    %2878 = vmatpush1.xpose.msra.mxu0 0.0
    %2879 = vmatprep.subr.mxu0 0.0
    %2880 = vmatpush1.xpose.msra.mxu0 0.0
    %2881 = vmatprep.subr.mxu0 0.0
    %2882 = vmatpush1.xpose.msra.mxu0 0.0
    %2883 = vmatprep.subr.mxu0 0.0
    %2884 = vmatpush1.xpose.msra.mxu0 0.0
    %2885 = vmatprep.subr.mxu0 0.0
    %2886 = vmatpush1.xpose.msra.mxu0 0.0
    %2887 = vmatprep.subr.mxu0 0.0
    %2888 = vmatpush1.xpose.msra.mxu0 0.0
    %2889 = vmatprep.subr.mxu0 0.0
    %2890 = vmatpush1.xpose.msra.mxu0 0.0
    %2891 = vmatprep.subr.mxu0 0.0
    %2892 = vmatpush1.xpose.msra.mxu0 0.0
    %2893 = vmatprep.subr.mxu0 0.0
    %2894 = vmatpush1.xpose.msra.mxu0 0.0
    %2895 = vmatprep.subr.mxu0 0.0
    %2896 = vmatpush1.xpose.msra.mxu0 0.0
    %2897 = vmatprep.subr.mxu0 0.0
    %2898 = vmatpush1.xpose.msra.mxu0 0.0
    %2899 = vmatprep.subr.mxu0 0.0
    %2900 = vmatpush1.xpose.msra.mxu0 0.0
    %2901 = vmatprep.subr.mxu0 0.0
    %2902 = vmatpush1.xpose.msra.mxu0 0.0
    %2903 = vmatprep.subr.mxu0 0.0
    %2904 = vmatpush1.xpose.msra.mxu0 0.0
    %2905 = vmatprep.subr.mxu0 0.0
    %2906 = vmatpush1.xpose.msra.mxu0 0.0
    %2907 = vmatprep.subr.mxu0 0.0
    %2908 = vmatpush1.xpose.msra.mxu0 0.0
    %2909 = vmatprep.subr.mxu0 0.0
    %2910 = vmatpush1.xpose.msra.mxu0 0.0
    %2911 = vmatprep.mubr.f32.mxu0 0.0
    %2912 = vmatmul.mubr.f32.gmra.mrb[0].mxu0 %v2670
    %v2913 = vpop.f32.mrb[0].mxu0
    %v2914 = vadd.f32 0.0, %v2913
    %v2915 = vpop.f32.mrb[0].mxu0
    %2916 = vdwg.mxu0
    %v2917 = vsub.f32 %v2844, %v2591
    %v2918 = vsub.f32 %v2917, 0.1
    %v2919 = vmul.f32 %v2918, -1.0
    %v2920 = vmul.f32 %v2919, %v2918
    %v2921 = vmul.f32 %v2920, 1.442695
    %v2922 = vpow.pop %v2921
    %v2923 = vmax.f32 %v2922, 0.0
    %v2924 = vmin.f32 %v2923, 0.999
    %v2925 = vadd.s32 %v1971, 387276917
    %v2926 = vshrl.u32 %v2925, 16
    %v2927 = vxor.u32 %v2925, %v2926
    %v2928 = vmul.u32 %v2927, 2146121005
    %v2929 = vshrl.u32 %v2928, 15
    %v2930 = vxor.u32 %v2928, %v2929
    %v2931 = vmul.u32 %v2930, 2221713035
    %v2932 = vshrl.u32 %v2931, 16
    %v2933 = vxor.u32 %v2931, %v2932
    %v2934 = vshrl.u32 %v2933, 8
    %v2935 = vcvt.s32.f32 %v2934
    %v2936 = vmul.f32 %v2935, 5.9604645e-08
    %vm2937 = vcmp.lt.f32.partialorder %v2936, %v2924
    %v2938 = vsel %vm2937, 1, 0
    %v2939 = vcvt.s32.f32 %v2938
    %v2940 = vmul.f32 %v2914, %v2939
    %v2941 = vmul.f32 %v2940, %v1987
    %v2942 = vmul.f32 %v2941, 1.442695
    %v2943 = vpow.pop %v2942
    %v2944 = vmul.f32 %v2943, %v2939
    %v2945 = vmul.f32 %v2944, %v1795
    %v2946 = vsel %vm1993, %v2945, 0.0
    %2947 = vadd.xlane.f32.xlu0 %v2946
    %v2948 = vpop.xlane.xlu0 %2947
    %v2949 = vadd.f32 %v2773, %v2948
    %2950 = vmatprep.subr.mxu0 0.0
    %2951 = vmatpush1.xpose.msra.mxu0 %v2597
    %2952 = vmatprep.subr.mxu0 0.0
    %2953 = vmatpush1.xpose.msra.mxu0 0.0
    %2954 = vmatprep.subr.mxu0 0.0
    %2955 = vmatpush1.xpose.msra.mxu0 0.0
    %2956 = vmatprep.subr.mxu0 0.0
    %2957 = vmatpush1.xpose.msra.mxu0 0.0
    %2958 = vmatprep.subr.mxu0 0.0
    %2959 = vmatpush1.xpose.msra.mxu0 0.0
    %2960 = vmatprep.subr.mxu0 0.0
    %2961 = vmatpush1.xpose.msra.mxu0 0.0
    %2962 = vmatprep.subr.mxu0 0.0
    %2963 = vmatpush1.xpose.msra.mxu0 0.0
    %2964 = vmatprep.subr.mxu0 0.0
    %2965 = vmatpush1.xpose.msra.mxu0 0.0
    %2966 = vmatprep.subr.mxu0 0.0
    %2967 = vmatpush1.xpose.msra.mxu0 0.0
    %2968 = vmatprep.subr.mxu0 0.0
    %2969 = vmatpush1.xpose.msra.mxu0 0.0
    %2970 = vmatprep.subr.mxu0 0.0
    %2971 = vmatpush1.xpose.msra.mxu0 0.0
    %2972 = vmatprep.subr.mxu0 0.0
    %2973 = vmatpush1.xpose.msra.mxu0 0.0
    %2974 = vmatprep.subr.mxu0 0.0
    %2975 = vmatpush1.xpose.msra.mxu0 0.0
    %2976 = vmatprep.subr.mxu0 0.0
    %2977 = vmatpush1.xpose.msra.mxu0 0.0
    %2978 = vmatprep.subr.mxu0 0.0
    %2979 = vmatpush1.xpose.msra.mxu0 0.0
    %2980 = vmatprep.subr.mxu0 0.0
    %2981 = vmatpush1.xpose.msra.mxu0 0.0
    %2982 = vmatprep.subr.mxu0 0.0
    %2983 = vmatpush1.xpose.msra.mxu0 0.0
    %2984 = vmatprep.subr.mxu0 0.0
    %2985 = vmatpush1.xpose.msra.mxu0 0.0
    %2986 = vmatprep.subr.mxu0 0.0
    %2987 = vmatpush1.xpose.msra.mxu0 0.0
    %2988 = vmatprep.subr.mxu0 0.0
    %2989 = vmatpush1.xpose.msra.mxu0 0.0
    %2990 = vmatprep.subr.mxu0 0.0
    %2991 = vmatpush1.xpose.msra.mxu0 0.0
    %2992 = vmatprep.subr.mxu0 0.0
    %2993 = vmatpush1.xpose.msra.mxu0 0.0
    %2994 = vmatprep.subr.mxu0 0.0
    %2995 = vmatpush1.xpose.msra.mxu0 0.0
    %2996 = vmatprep.subr.mxu0 0.0
    %2997 = vmatpush1.xpose.msra.mxu0 0.0
    %2998 = vmatprep.subr.mxu0 0.0
    %2999 = vmatpush1.xpose.msra.mxu0 0.0
    %3000 = vmatprep.subr.mxu0 0.0
    %3001 = vmatpush1.xpose.msra.mxu0 0.0
    %3002 = vmatprep.subr.mxu0 0.0
    %3003 = vmatpush1.xpose.msra.mxu0 0.0
    %3004 = vmatprep.subr.mxu0 0.0
    %3005 = vmatpush1.xpose.msra.mxu0 0.0
    %3006 = vmatprep.subr.mxu0 0.0
    %3007 = vmatpush1.xpose.msra.mxu0 0.0
    %3008 = vmatprep.subr.mxu0 0.0
    %3009 = vmatpush1.xpose.msra.mxu0 0.0
    %3010 = vmatprep.subr.mxu0 0.0
    %3011 = vmatpush1.xpose.msra.mxu0 0.0
    %3012 = vmatprep.subr.mxu0 0.0
    %3013 = vmatpush1.xpose.msra.mxu0 0.0
    %3014 = vmatprep.mubr.f32.mxu0 0.0
    %3015 = vmatmul.mubr.f32.gmra.mrb[0].mxu0 %v2775
    %v3016 = vpop.f32.mrb[0].mxu0
    %v3017 = vadd.f32 0.0, %v3016
    %v3018 = vpop.f32.mrb[0].mxu0
    %3019 = vdwg.mxu0
    %3020 = vmatprep.subr.mxu0 0.0
    %3021 = vmatpush1.xpose.msra.mxu0 %v2670
    %3022 = vmatprep.subr.mxu0 0.0
    %3023 = vmatpush1.xpose.msra.mxu0 0.0
    %3024 = vmatprep.subr.mxu0 0.0
    %3025 = vmatpush1.xpose.msra.mxu0 0.0
    %3026 = vmatprep.subr.mxu0 0.0
    %3027 = vmatpush1.xpose.msra.mxu0 0.0
    %3028 = vmatprep.subr.mxu0 0.0
    %3029 = vmatpush1.xpose.msra.mxu0 0.0
    %3030 = vmatprep.subr.mxu0 0.0
    %3031 = vmatpush1.xpose.msra.mxu0 0.0
    %3032 = vmatprep.subr.mxu0 0.0
    %3033 = vmatpush1.xpose.msra.mxu0 0.0
    %3034 = vmatprep.subr.mxu0 0.0
    %3035 = vmatpush1.xpose.msra.mxu0 0.0
    %3036 = vmatprep.subr.mxu0 0.0
    %3037 = vmatpush1.xpose.msra.mxu0 0.0
    %3038 = vmatprep.subr.mxu0 0.0
    %3039 = vmatpush1.xpose.msra.mxu0 0.0
    %3040 = vmatprep.subr.mxu0 0.0
    %3041 = vmatpush1.xpose.msra.mxu0 0.0
    %3042 = vmatprep.subr.mxu0 0.0
    %3043 = vmatpush1.xpose.msra.mxu0 0.0
    %3044 = vmatprep.subr.mxu0 0.0
    %3045 = vmatpush1.xpose.msra.mxu0 0.0
    %3046 = vmatprep.subr.mxu0 0.0
    %3047 = vmatpush1.xpose.msra.mxu0 0.0
    %3048 = vmatprep.subr.mxu0 0.0
    %3049 = vmatpush1.xpose.msra.mxu0 0.0
    %3050 = vmatprep.subr.mxu0 0.0
    %3051 = vmatpush1.xpose.msra.mxu0 0.0
    %3052 = vmatprep.subr.mxu0 0.0
    %3053 = vmatpush1.xpose.msra.mxu0 0.0
    %3054 = vmatprep.subr.mxu0 0.0
    %3055 = vmatpush1.xpose.msra.mxu0 0.0
    %3056 = vmatprep.subr.mxu0 0.0
    %3057 = vmatpush1.xpose.msra.mxu0 0.0
    %3058 = vmatprep.subr.mxu0 0.0
    %3059 = vmatpush1.xpose.msra.mxu0 0.0
    %3060 = vmatprep.subr.mxu0 0.0
    %3061 = vmatpush1.xpose.msra.mxu0 0.0
    %3062 = vmatprep.subr.mxu0 0.0
    %3063 = vmatpush1.xpose.msra.mxu0 0.0
    %3064 = vmatprep.subr.mxu0 0.0
    %3065 = vmatpush1.xpose.msra.mxu0 0.0
    %3066 = vmatprep.subr.mxu0 0.0
    %3067 = vmatpush1.xpose.msra.mxu0 0.0
    %3068 = vmatprep.subr.mxu0 0.0
    %3069 = vmatpush1.xpose.msra.mxu0 0.0
    %3070 = vmatprep.subr.mxu0 0.0
    %3071 = vmatpush1.xpose.msra.mxu0 0.0
    %3072 = vmatprep.subr.mxu0 0.0
    %3073 = vmatpush1.xpose.msra.mxu0 0.0
    %3074 = vmatprep.subr.mxu0 0.0
    %3075 = vmatpush1.xpose.msra.mxu0 0.0
    %3076 = vmatprep.subr.mxu0 0.0
    %3077 = vmatpush1.xpose.msra.mxu0 0.0
    %3078 = vmatprep.subr.mxu0 0.0
    %3079 = vmatpush1.xpose.msra.mxu0 0.0
    %3080 = vmatprep.subr.mxu0 0.0
    %3081 = vmatpush1.xpose.msra.mxu0 0.0
    %3082 = vmatprep.subr.mxu0 0.0
    %3083 = vmatpush1.xpose.msra.mxu0 0.0
    %3084 = vmatprep.mubr.f32.mxu0 0.0
    %3085 = vmatmul.mubr.f32.gmra.mrb[0].mxu0 %v1440
    %v3086 = vpop.f32.mrb[0].mxu0
    %v3087 = vadd.f32 0.0, %v3086
    %v3088 = vpop.f32.mrb[0].mxu0
    %3089 = vdwg.mxu0
    %v3090 = vsub.f32 %v3017, %v2591
    %v3091 = vsub.f32 %v3090, 0.1
    %v3092 = vmul.f32 %v3091, -1.0
    %v3093 = vmul.f32 %v3092, %v3091
    %v3094 = vmul.f32 %v3093, 1.442695
    %v3095 = vpow.pop %v3094
    %v3096 = vmax.f32 %v3095, 0.0
    %v3097 = vmin.f32 %v3096, 0.999
    %v3098 = vadd.s32 %v1971, 3041712678
    %v3099 = vshrl.u32 %v3098, 16
    %v3100 = vxor.u32 %v3098, %v3099
    %v3101 = vmul.u32 %v3100, 2146121005
    %v3102 = vshrl.u32 %v3101, 15
    %v3103 = vxor.u32 %v3101, %v3102
    %v3104 = vmul.u32 %v3103, 2221713035
    %v3105 = vshrl.u32 %v3104, 16
    %v3106 = vxor.u32 %v3104, %v3105
    %v3107 = vshrl.u32 %v3106, 8
    %v3108 = vcvt.s32.f32 %v3107
    %v3109 = vmul.f32 %v3108, 5.9604645e-08
    %vm3110 = vcmp.lt.f32.partialorder %v3109, %v3097
    %v3111 = vsel %vm3110, 1, 0
    %v3112 = vcvt.s32.f32 %v3111
    %v3113 = vmul.f32 %v3087, %v3112
    %v3114 = vmul.f32 %v3113, %v1987
    %v3115 = vmul.f32 %v3114, 1.442695
    %v3116 = vpow.pop %v3115
    %v3117 = vmul.f32 %v3116, %v3112
    %v3118 = vmul.f32 %v3117, %v1795
    %v3119 = vsel %vm1993, %v3118, 0.0
    %3120 = vadd.xlane.f32.xlu0 %v3119
    %v3121 = vpop.xlane.xlu0 %3120
    %3122 = vmatprep.subr.mxu0 0.0
    %3123 = vmatpush1.xpose.msra.mxu0 %v2775
    %3124 = vmatprep.subr.mxu0 0.0
    %3125 = vmatpush1.xpose.msra.mxu0 0.0
    %3126 = vmatprep.subr.mxu0 0.0
    %3127 = vmatpush1.xpose.msra.mxu0 0.0
    %3128 = vmatprep.subr.mxu0 0.0
    %3129 = vmatpush1.xpose.msra.mxu0 0.0
    %3130 = vmatprep.subr.mxu0 0.0
    %3131 = vmatpush1.xpose.msra.mxu0 0.0
    %3132 = vmatprep.subr.mxu0 0.0
    %3133 = vmatpush1.xpose.msra.mxu0 0.0
    %3134 = vmatprep.subr.mxu0 0.0
    %3135 = vmatpush1.xpose.msra.mxu0 0.0
    %3136 = vmatprep.subr.mxu0 0.0
    %3137 = vmatpush1.xpose.msra.mxu0 0.0
    %3138 = vmatprep.subr.mxu0 0.0
    %3139 = vmatpush1.xpose.msra.mxu0 0.0
    %3140 = vmatprep.subr.mxu0 0.0
    %3141 = vmatpush1.xpose.msra.mxu0 0.0
    %3142 = vmatprep.subr.mxu0 0.0
    %3143 = vmatpush1.xpose.msra.mxu0 0.0
    %3144 = vmatprep.subr.mxu0 0.0
    %3145 = vmatpush1.xpose.msra.mxu0 0.0
    %3146 = vmatprep.subr.mxu0 0.0
    %3147 = vmatpush1.xpose.msra.mxu0 0.0
    %3148 = vmatprep.subr.mxu0 0.0
    %3149 = vmatpush1.xpose.msra.mxu0 0.0
    %3150 = vmatprep.subr.mxu0 0.0
    %3151 = vmatpush1.xpose.msra.mxu0 0.0
    %3152 = vmatprep.subr.mxu0 0.0
    %3153 = vmatpush1.xpose.msra.mxu0 0.0
    %3154 = vmatprep.subr.mxu0 0.0
    %3155 = vmatpush1.xpose.msra.mxu0 0.0
    %3156 = vmatprep.subr.mxu0 0.0
    %3157 = vmatpush1.xpose.msra.mxu0 0.0
    %3158 = vmatprep.subr.mxu0 0.0
    %3159 = vmatpush1.xpose.msra.mxu0 0.0
    %3160 = vmatprep.subr.mxu0 0.0
    %3161 = vmatpush1.xpose.msra.mxu0 0.0
    %3162 = vmatprep.subr.mxu0 0.0
    %3163 = vmatpush1.xpose.msra.mxu0 0.0
    %3164 = vmatprep.subr.mxu0 0.0
    %3165 = vmatpush1.xpose.msra.mxu0 0.0
    %3166 = vmatprep.subr.mxu0 0.0
    %3167 = vmatpush1.xpose.msra.mxu0 0.0
    %3168 = vmatprep.subr.mxu0 0.0
    %3169 = vmatpush1.xpose.msra.mxu0 0.0
    %3170 = vmatprep.subr.mxu0 0.0
    %3171 = vmatpush1.xpose.msra.mxu0 0.0
    %3172 = vmatprep.subr.mxu0 0.0
    %3173 = vmatpush1.xpose.msra.mxu0 0.0
    %3174 = vmatprep.subr.mxu0 0.0
    %3175 = vmatpush1.xpose.msra.mxu0 0.0
    %3176 = vmatprep.subr.mxu0 0.0
    %3177 = vmatpush1.xpose.msra.mxu0 0.0
    %3178 = vmatprep.subr.mxu0 0.0
    %3179 = vmatpush1.xpose.msra.mxu0 0.0
    %3180 = vmatprep.subr.mxu0 0.0
    %3181 = vmatpush1.xpose.msra.mxu0 0.0
    %3182 = vmatprep.subr.mxu0 0.0
    %3183 = vmatpush1.xpose.msra.mxu0 0.0
    %3184 = vmatprep.subr.mxu0 0.0
    %3185 = vmatpush1.xpose.msra.mxu0 0.0
    %3186 = vmatprep.mubr.f32.mxu0 0.0
    %3187 = vmatmul.mubr.f32.gmra.mrb[0].mxu0 %v2775
    %v3188 = vpop.f32.mrb[0].mxu0
    %v3189 = vadd.f32 0.0, %v3188
    %v3190 = vpop.f32.mrb[0].mxu0
    %3191 = vdwg.mxu0
    %3192 = vmatprep.subr.mxu0 0.0
    %3193 = vmatpush1.xpose.msra.mxu0 %v1440
    %3194 = vmatprep.subr.mxu0 0.0
    %3195 = vmatpush1.xpose.msra.mxu0 0.0
    %3196 = vmatprep.subr.mxu0 0.0
    %3197 = vmatpush1.xpose.msra.mxu0 0.0
    %3198 = vmatprep.subr.mxu0 0.0
    %3199 = vmatpush1.xpose.msra.mxu0 0.0
    %3200 = vmatprep.subr.mxu0 0.0
    %3201 = vmatpush1.xpose.msra.mxu0 0.0
    %3202 = vmatprep.subr.mxu0 0.0
    %3203 = vmatpush1.xpose.msra.mxu0 0.0
    %3204 = vmatprep.subr.mxu0 0.0
    %3205 = vmatpush1.xpose.msra.mxu0 0.0
    %3206 = vmatprep.subr.mxu0 0.0
    %3207 = vmatpush1.xpose.msra.mxu0 0.0
    %3208 = vmatprep.subr.mxu0 0.0
    %3209 = vmatpush1.xpose.msra.mxu0 0.0
    %3210 = vmatprep.subr.mxu0 0.0
    %3211 = vmatpush1.xpose.msra.mxu0 0.0
    %3212 = vmatprep.subr.mxu0 0.0
    %3213 = vmatpush1.xpose.msra.mxu0 0.0
    %3214 = vmatprep.subr.mxu0 0.0
    %3215 = vmatpush1.xpose.msra.mxu0 0.0
    %3216 = vmatprep.subr.mxu0 0.0
    %3217 = vmatpush1.xpose.msra.mxu0 0.0
    %3218 = vmatprep.subr.mxu0 0.0
    %3219 = vmatpush1.xpose.msra.mxu0 0.0
    %3220 = vmatprep.subr.mxu0 0.0
    %3221 = vmatpush1.xpose.msra.mxu0 0.0
    %3222 = vmatprep.subr.mxu0 0.0
    %3223 = vmatpush1.xpose.msra.mxu0 0.0
    %3224 = vmatprep.subr.mxu0 0.0
    %3225 = vmatpush1.xpose.msra.mxu0 0.0
    %3226 = vmatprep.subr.mxu0 0.0
    %3227 = vmatpush1.xpose.msra.mxu0 0.0
    %3228 = vmatprep.subr.mxu0 0.0
    %3229 = vmatpush1.xpose.msra.mxu0 0.0
    %3230 = vmatprep.subr.mxu0 0.0
    %3231 = vmatpush1.xpose.msra.mxu0 0.0
    %3232 = vmatprep.subr.mxu0 0.0
    %3233 = vmatpush1.xpose.msra.mxu0 0.0
    %3234 = vmatprep.subr.mxu0 0.0
    %3235 = vmatpush1.xpose.msra.mxu0 0.0
    %3236 = vmatprep.subr.mxu0 0.0
    %3237 = vmatpush1.xpose.msra.mxu0 0.0
    %3238 = vmatprep.subr.mxu0 0.0
    %3239 = vmatpush1.xpose.msra.mxu0 0.0
    %3240 = vmatprep.subr.mxu0 0.0
    %3241 = vmatpush1.xpose.msra.mxu0 0.0
    %3242 = vmatprep.subr.mxu0 0.0
    %3243 = vmatpush1.xpose.msra.mxu0 0.0
    %3244 = vmatprep.subr.mxu0 0.0
    %3245 = vmatpush1.xpose.msra.mxu0 0.0
    %3246 = vmatprep.subr.mxu0 0.0
    %3247 = vmatpush1.xpose.msra.mxu0 0.0
    %3248 = vmatprep.subr.mxu0 0.0
    %3249 = vmatpush1.xpose.msra.mxu0 0.0
    %3250 = vmatprep.subr.mxu0 0.0
    %3251 = vmatpush1.xpose.msra.mxu0 0.0
    %3252 = vmatprep.subr.mxu0 0.0
    %3253 = vmatpush1.xpose.msra.mxu0 0.0
    %3254 = vmatprep.subr.mxu0 0.0
    %3255 = vmatpush1.xpose.msra.mxu0 0.0
    %3256 = vmatprep.mubr.f32.mxu0 0.0
    %3257 = vmatmul.mubr.f32.gmra.mrb[0].mxu0 %v1440
    %v3258 = vpop.f32.mrb[0].mxu0
    %v3259 = vadd.f32 0.0, %v3258
    %v3260 = vpop.f32.mrb[0].mxu0
    %3261 = vdwg.mxu0
    %v3262 = vsub.f32 %v3189, %v2591
    %v3263 = vsub.f32 %v3262, 0.1
    %v3264 = vmul.f32 %v3263, -1.0
    %v3265 = vmul.f32 %v3264, %v3263
    %v3266 = vmul.f32 %v3265, 1.442695
    %v3267 = vpow.pop %v3266
    %v3268 = vmax.f32 %v3267, 0.0
    %v3269 = vmin.f32 %v3268, 0.999
    %v3270 = vadd.s32 %v1971, 1401181143
    %v3271 = vshrl.u32 %v3270, 16
    %v3272 = vxor.u32 %v3270, %v3271
    %v3273 = vmul.u32 %v3272, 2146121005
    %v3274 = vshrl.u32 %v3273, 15
    %v3275 = vxor.u32 %v3273, %v3274
    %v3276 = vmul.u32 %v3275, 2221713035
    %v3277 = vshrl.u32 %v3276, 16
    %v3278 = vxor.u32 %v3276, %v3277
    %v3279 = vshrl.u32 %v3278, 8
    %v3280 = vcvt.s32.f32 %v3279
    %v3281 = vmul.f32 %v3280, 5.9604645e-08
    %vm3282 = vcmp.lt.f32.partialorder %v3281, %v3269
    %v3283 = vsel %vm3282, 1, 0
    %v3284 = vcvt.s32.f32 %v3283
    %v3285 = vmul.f32 %v3259, %v3284
    %v3286 = vmul.f32 %v3285, %v1987
    %v3287 = vmul.f32 %v3286, 1.442695
    %v3288 = vpow.pop %v3287
    %v3289 = vmul.f32 %v3288, %v3284
    %v3290 = vmul.f32 %v3289, %v1795
    %v3291 = vsel %vm1993, %v3290, 0.0
    %3292 = vadd.xlane.f32.xlu0 %v3291
    %v3293 = vpop.xlane.xlu0 %3292
    %v3294 = vadd.f32 %v3121, %v3293
    %v3295 = vmul.f32 %v2595, %v1987
    %v3296 = vmul.f32 %v3295, 1.442695
    %v3297 = vpow.pop %v3296
    %v3298 = vmul.f32 %v2949, %v1794
    %v3299 = vsel %vm1993, %v3298, 0.0
    %v3300 = vrot.slane %v3299, 4
    %v3301 = vadd.f32 %v3299, %v3300
    %v3302 = vrot.slane %v3301, 2
    %v3303 = vadd.f32 %v3301, %v3302
    %v3304 = vrot.slane %v3303, 1
    %v3305 = vadd.f32 %v3303, %v3304
    %v3306 = vmul.f32 %v3294, %v1794
    %v3307 = vsel %vm1993, %v3306, 0.0
    %v3308 = vrot.slane %v3307, 4
    %v3309 = vadd.f32 %v3307, %v3308
    %v3310 = vrot.slane %v3309, 2
    %v3311 = vadd.f32 %v3309, %v3310
    %v3312 = vrot.slane %v3311, 1
    %v3313 = vadd.f32 %v3311, %v3312
    %v3314 = vadd.f32 %v3297, %v3305
    %v3315 = vlog2.pop %v3314
    %v3316 = vmul.f32 %v3315, 0.6931472
    %v3317 = vsel %vm1993, %v3316, 0.0
    %3318 = vadd.xlane.f32.xlu0 %v3317
    %v3319 = vpop.xlane.xlu0 %3318
    %v3320 = vrot.slane %v3319, 4
    %v3321 = vadd.f32 %v3319, %v3320
    %v3322 = vrot.slane %v3321, 2
    %v3323 = vadd.f32 %v3321, %v3322
    %v3324 = vrot.slane %v3323, 1
    %v3325 = vadd.f32 %v3323, %v3324
    %s3326 = vtos %v3325
    %v3327 = vadd.f32 %v3297, %v3313
    %v3328 = vlog2.pop %v3327
    %v3329 = vmul.f32 %v3328, 0.6931472
    %v3330 = vsel %vm1993, %v3329, 0.0
    %3331 = vadd.xlane.f32.xlu0 %v3330
    %v3332 = vpop.xlane.xlu0 %3331
    %v3333 = vrot.slane %v3332, 4
    %v3334 = vadd.f32 %v3332, %v3333
    %v3335 = vrot.slane %v3334, 2
    %v3336 = vadd.f32 %v3334, %v3335
    %v3337 = vrot.slane %v3336, 1
    %v3338 = vadd.f32 %v3336, %v3337
    %s3339 = vtos %v3338
    %s3340 = sadd.f32 %s3326, %s3339
    %s3341 = smul.f32 %s3340, 2.0
    %v3342 = vsel %vm2565, %v3295, 0.0
    %3343 = vadd.xlane.f32.xlu0 %v3342
    %v3344 = vpop.xlane.xlu0 %3343
    %v3345 = vrot.slane %v3344, 4
    %v3346 = vadd.f32 %v3344, %v3345
    %v3347 = vrot.slane %v3346, 2
    %v3348 = vadd.f32 %v3346, %v3347
    %v3349 = vrot.slane %v3348, 1
    %v3350 = vadd.f32 %v3348, %v3349
    %s3351 = vtos %v3350
    %s3352 = smul.f32 %s3351, 32.0
    %s3353 = ssub.f32 %s3341, %s3352
    %v3354 = vrcp.pop 256.0
    %s3355 = vtos %v3354
    %s3356 = smul.f32 %s3353, %s3355
    %s3357 = sadd.f32 %s2580, %s3356
    %v3358 = vmul.f32 %v650, %v650
    %v3359 = vsel %vm577, %v3358, 0.0
    %3360 = vadd.xlane.f32.xlu0 %v3359
    %v3361 = vpop.xlane.xlu0 %3360
    %v3362 = vmax.f32 %v3361, 1e-24
    %v3363 = vrsqrt.pop %v3362
    %v3364 = vmul.f32 %v650, %v3363
    %v3365 = vmul.f32 %v1708, %v1708
    %v3366 = vsel %vm577, %v3365, 0.0
    %3367 = vadd.xlane.f32.xlu0 %v3366
    %v3368 = vpop.xlane.xlu0 %3367
    %v3369 = vmax.f32 %v3368, 1e-24
    %v3370 = vrsqrt.pop %v3369
    %v3371 = vmul.f32 %v1708, %v3370
    %v3372 = vmul.f32 %v1789, %v1789
    %v3373 = vsel %vm577, %v3372, 0.0
    %3374 = vadd.xlane.f32.xlu0 %v3373
    %v3375 = vpop.xlane.xlu0 %3374
    %v3376 = vmax.f32 %v3375, 1e-24
    %v3377 = vrsqrt.pop %v3376
    %v3378 = vmul.f32 %v1789, %v3377
    %v3379 = vmul.f32 %v1804, %v3371
    %v3380 = vsel %vm577, %v3379, 0.0
    %3381 = vadd.xlane.f32.xlu0 %v3380
    %v3382 = vpop.xlane.xlu0 %3381
    %v3383 = vmul.f32 %v1804, %v3378
    %v3384 = vsel %vm577, %v3383, 0.0
    %3385 = vadd.xlane.f32.xlu0 %v3384
    %v3386 = vpop.xlane.xlu0 %3385
    %v3387 = vsub.f32 %v2137, %v1812
    %v3388 = vsub.f32 %v3387, 0.1
    %v3389 = vmul.f32 %v3388, -1.0
    %v3390 = vmul.f32 %v3389, %v3388
    %v3391 = vmul.f32 %v3390, 1.442695
    %v3392 = vpow.pop %v3391
    %v3393 = vmax.f32 %v3392, 0.0
    %v3394 = vmin.f32 %v3393, 0.999
    %v3395 = vadd.s32 %v1971, 4055616904
    %v3396 = vshrl.u32 %v3395, 16
    %v3397 = vxor.u32 %v3395, %v3396
    %v3398 = vmul.u32 %v3397, 2146121005
    %v3399 = vshrl.u32 %v3398, 15
    %v3400 = vxor.u32 %v3398, %v3399
    %v3401 = vmul.u32 %v3400, 2221713035
    %v3402 = vshrl.u32 %v3401, 16
    %v3403 = vxor.u32 %v3401, %v3402
    %v3404 = vshrl.u32 %v3403, 8
    %v3405 = vcvt.s32.f32 %v3404
    %v3406 = vmul.f32 %v3405, 5.9604645e-08
    %vm3407 = vcmp.lt.f32.partialorder %v3406, %v3394
    %v3408 = vsel %vm3407, 1, 0
    %v3409 = vcvt.s32.f32 %v3408
    %v3410 = vmul.f32 %v2137, %v3409
    %v3411 = vmul.f32 %v3410, 1.442695
    %v3412 = vpow.pop %v3411
    %v3413 = vmul.f32 %v3412, %v3409
    %v3414 = vmul.f32 %v3413, %v1795
    %v3415 = vsel %vm1993, %v3414, 0.0
    %3416 = vadd.xlane.f32.xlu0 %v3415
    %v3417 = vpop.xlane.xlu0 %3416
    %v3418 = vadd.f32 %v3417, 0.0
    %v3420 = vsel %vm577, %v3371, 0
    %3422 = vmatprep.subr.mxu0 0.0
    %3423 = vmatpush1.xpose.msra.mxu0 %v3420
    %3424 = vmatprep.subr.mxu0 0.0
    %3425 = vmatpush1.xpose.msra.mxu0 0.0
    %3426 = vmatprep.subr.mxu0 0.0
    %3427 = vmatpush1.xpose.msra.mxu0 0.0
    %3428 = vmatprep.subr.mxu0 0.0
    %3429 = vmatpush1.xpose.msra.mxu0 0.0
    %3430 = vmatprep.subr.mxu0 0.0
    %3431 = vmatpush1.xpose.msra.mxu0 0.0
    %3432 = vmatprep.subr.mxu0 0.0
    %3433 = vmatpush1.xpose.msra.mxu0 0.0
    %3434 = vmatprep.subr.mxu0 0.0
    %3435 = vmatpush1.xpose.msra.mxu0 0.0
    %3436 = vmatprep.subr.mxu0 0.0
    %3437 = vmatpush1.xpose.msra.mxu0 0.0
    %3438 = vmatprep.subr.mxu0 0.0
    %3439 = vmatpush1.xpose.msra.mxu0 0.0
    %3440 = vmatprep.subr.mxu0 0.0
    %3441 = vmatpush1.xpose.msra.mxu0 0.0
    %3442 = vmatprep.subr.mxu0 0.0
    %3443 = vmatpush1.xpose.msra.mxu0 0.0
    %3444 = vmatprep.subr.mxu0 0.0
    %3445 = vmatpush1.xpose.msra.mxu0 0.0
    %3446 = vmatprep.subr.mxu0 0.0
    %3447 = vmatpush1.xpose.msra.mxu0 0.0
    %3448 = vmatprep.subr.mxu0 0.0
    %3449 = vmatpush1.xpose.msra.mxu0 0.0
    %3450 = vmatprep.subr.mxu0 0.0
    %3451 = vmatpush1.xpose.msra.mxu0 0.0
    %3452 = vmatprep.subr.mxu0 0.0
    %3453 = vmatpush1.xpose.msra.mxu0 0.0
    %3454 = vmatprep.subr.mxu0 0.0
    %3455 = vmatpush1.xpose.msra.mxu0 0.0
    %3456 = vmatprep.subr.mxu0 0.0
    %3457 = vmatpush1.xpose.msra.mxu0 0.0
    %3458 = vmatprep.subr.mxu0 0.0
    %3459 = vmatpush1.xpose.msra.mxu0 0.0
    %3460 = vmatprep.subr.mxu0 0.0
    %3461 = vmatpush1.xpose.msra.mxu0 0.0
    %3462 = vmatprep.subr.mxu0 0.0
    %3463 = vmatpush1.xpose.msra.mxu0 0.0
    %3464 = vmatprep.subr.mxu0 0.0
    %3465 = vmatpush1.xpose.msra.mxu0 0.0
    %3466 = vmatprep.subr.mxu0 0.0
    %3467 = vmatpush1.xpose.msra.mxu0 0.0
    %3468 = vmatprep.subr.mxu0 0.0
    %3469 = vmatpush1.xpose.msra.mxu0 0.0
    %3470 = vmatprep.subr.mxu0 0.0
    %3471 = vmatpush1.xpose.msra.mxu0 0.0
    %3472 = vmatprep.subr.mxu0 0.0
    %3473 = vmatpush1.xpose.msra.mxu0 0.0
    %3474 = vmatprep.subr.mxu0 0.0
    %3475 = vmatpush1.xpose.msra.mxu0 0.0
    %3476 = vmatprep.subr.mxu0 0.0
    %3477 = vmatpush1.xpose.msra.mxu0 0.0
    %3478 = vmatprep.subr.mxu0 0.0
    %3479 = vmatpush1.xpose.msra.mxu0 0.0
    %3480 = vmatprep.subr.mxu0 0.0
    %3481 = vmatpush1.xpose.msra.mxu0 0.0
    %3482 = vmatprep.subr.mxu0 0.0
    %3483 = vmatpush1.xpose.msra.mxu0 0.0
    %3484 = vmatprep.subr.mxu0 0.0
    %3485 = vmatpush1.xpose.msra.mxu0 0.0
    %3486 = vmatprep.mubr.f32.mxu0 0.0
    %3487 = vmatmul.mubr.f32.gmra.mrb[0].mxu0 %v1887
    %v3488 = vpop.f32.mrb[0].mxu0
    %v3489 = vadd.f32 0.0, %v3488
    %v3490 = vpop.f32.mrb[0].mxu0
    %3491 = vdwg.mxu0
    %v3492 = vsub.f32 %v3489, %v1812
    %v3493 = vsub.f32 %v3492, 0.1
    %v3494 = vmul.f32 %v3493, -1.0
    %v3495 = vmul.f32 %v3494, %v3493
    %v3496 = vmul.f32 %v3495, 1.442695
    %v3497 = vpow.pop %v3496
    %v3498 = vmax.f32 %v3497, 0.0
    %v3499 = vmin.f32 %v3498, 0.999
    %v3500 = vadd.s32 %v1971, 2415085369
    %v3501 = vshrl.u32 %v3500, 16
    %v3502 = vxor.u32 %v3500, %v3501
    %v3503 = vmul.u32 %v3502, 2146121005
    %v3504 = vshrl.u32 %v3503, 15
    %v3505 = vxor.u32 %v3503, %v3504
    %v3506 = vmul.u32 %v3505, 2221713035
    %v3507 = vshrl.u32 %v3506, 16
    %v3508 = vxor.u32 %v3506, %v3507
    %v3509 = vshrl.u32 %v3508, 8
    %v3510 = vcvt.s32.f32 %v3509
    %v3511 = vmul.f32 %v3510, 5.9604645e-08
    %vm3512 = vcmp.lt.f32.partialorder %v3511, %v3499
    %v3513 = vsel %vm3512, 1, 0
    %v3514 = vcvt.s32.f32 %v3513
    %v3515 = vmul.f32 %v3489, %v3514
    %v3516 = vmul.f32 %v3515, 1.442695
    %v3517 = vpow.pop %v3516
    %v3518 = vmul.f32 %v3517, %v3514
    %v3519 = vmul.f32 %v3518, %v1795
    %v3520 = vsel %vm1993, %v3519, 0.0
    %3521 = vadd.xlane.f32.xlu0 %v3520
    %v3522 = vpop.xlane.xlu0 %3521
    %v3523 = vadd.f32 %v3418, %v3522
    %v3525 = vsel %vm577, %v3378, 0
    %3527 = vmatprep.subr.mxu0 0.0
    %3528 = vmatpush1.xpose.msra.mxu0 %v3525
    %3529 = vmatprep.subr.mxu0 0.0
    %3530 = vmatpush1.xpose.msra.mxu0 0.0
    %3531 = vmatprep.subr.mxu0 0.0
    %3532 = vmatpush1.xpose.msra.mxu0 0.0
    %3533 = vmatprep.subr.mxu0 0.0
    %3534 = vmatpush1.xpose.msra.mxu0 0.0
    %3535 = vmatprep.subr.mxu0 0.0
    %3536 = vmatpush1.xpose.msra.mxu0 0.0
    %3537 = vmatprep.subr.mxu0 0.0
    %3538 = vmatpush1.xpose.msra.mxu0 0.0
    %3539 = vmatprep.subr.mxu0 0.0
    %3540 = vmatpush1.xpose.msra.mxu0 0.0
    %3541 = vmatprep.subr.mxu0 0.0
    %3542 = vmatpush1.xpose.msra.mxu0 0.0
    %3543 = vmatprep.subr.mxu0 0.0
    %3544 = vmatpush1.xpose.msra.mxu0 0.0
    %3545 = vmatprep.subr.mxu0 0.0
    %3546 = vmatpush1.xpose.msra.mxu0 0.0
    %3547 = vmatprep.subr.mxu0 0.0
    %3548 = vmatpush1.xpose.msra.mxu0 0.0
    %3549 = vmatprep.subr.mxu0 0.0
    %3550 = vmatpush1.xpose.msra.mxu0 0.0
    %3551 = vmatprep.subr.mxu0 0.0
    %3552 = vmatpush1.xpose.msra.mxu0 0.0
    %3553 = vmatprep.subr.mxu0 0.0
    %3554 = vmatpush1.xpose.msra.mxu0 0.0
    %3555 = vmatprep.subr.mxu0 0.0
    %3556 = vmatpush1.xpose.msra.mxu0 0.0
    %3557 = vmatprep.subr.mxu0 0.0
    %3558 = vmatpush1.xpose.msra.mxu0 0.0
    %3559 = vmatprep.subr.mxu0 0.0
    %3560 = vmatpush1.xpose.msra.mxu0 0.0
    %3561 = vmatprep.subr.mxu0 0.0
    %3562 = vmatpush1.xpose.msra.mxu0 0.0
    %3563 = vmatprep.subr.mxu0 0.0
    %3564 = vmatpush1.xpose.msra.mxu0 0.0
    %3565 = vmatprep.subr.mxu0 0.0
    %3566 = vmatpush1.xpose.msra.mxu0 0.0
    %3567 = vmatprep.subr.mxu0 0.0
    %3568 = vmatpush1.xpose.msra.mxu0 0.0
    %3569 = vmatprep.subr.mxu0 0.0
    %3570 = vmatpush1.xpose.msra.mxu0 0.0
    %3571 = vmatprep.subr.mxu0 0.0
    %3572 = vmatpush1.xpose.msra.mxu0 0.0
    %3573 = vmatprep.subr.mxu0 0.0
    %3574 = vmatpush1.xpose.msra.mxu0 0.0
    %3575 = vmatprep.subr.mxu0 0.0
    %3576 = vmatpush1.xpose.msra.mxu0 0.0
    %3577 = vmatprep.subr.mxu0 0.0
    %3578 = vmatpush1.xpose.msra.mxu0 0.0
    %3579 = vmatprep.subr.mxu0 0.0
    %3580 = vmatpush1.xpose.msra.mxu0 0.0
    %3581 = vmatprep.subr.mxu0 0.0
    %3582 = vmatpush1.xpose.msra.mxu0 0.0
    %3583 = vmatprep.subr.mxu0 0.0
    %3584 = vmatpush1.xpose.msra.mxu0 0.0
    %3585 = vmatprep.subr.mxu0 0.0
    %3586 = vmatpush1.xpose.msra.mxu0 0.0
    %3587 = vmatprep.subr.mxu0 0.0
    %3588 = vmatpush1.xpose.msra.mxu0 0.0
    %3589 = vmatprep.subr.mxu0 0.0
    %3590 = vmatpush1.xpose.msra.mxu0 0.0
    %3591 = vmatprep.mubr.f32.mxu0 0.0
    %3592 = vmatmul.mubr.f32.gmra.mrb[0].mxu0 %v1887
    %v3593 = vpop.f32.mrb[0].mxu0
    %v3594 = vadd.f32 0.0, %v3593
    %v3595 = vpop.f32.mrb[0].mxu0
    %3596 = vdwg.mxu0
    %v3597 = vsub.f32 %v3594, %v1812
    %v3598 = vsub.f32 %v3597, 0.1
    %v3599 = vmul.f32 %v3598, -1.0
    %v3600 = vmul.f32 %v3599, %v3598
    %v3601 = vmul.f32 %v3600, 1.442695
    %v3602 = vpow.pop %v3601
    %v3603 = vmax.f32 %v3602, 0.0
    %v3604 = vmin.f32 %v3603, 0.999
    %v3605 = vadd.s32 %v1971, 774553834
    %v3606 = vshrl.u32 %v3605, 16
    %v3607 = vxor.u32 %v3605, %v3606
    %v3608 = vmul.u32 %v3607, 2146121005
    %v3609 = vshrl.u32 %v3608, 15
    %v3610 = vxor.u32 %v3608, %v3609
    %v3611 = vmul.u32 %v3610, 2221713035
    %v3612 = vshrl.u32 %v3611, 16
    %v3613 = vxor.u32 %v3611, %v3612
    %v3614 = vshrl.u32 %v3613, 8
    %v3615 = vcvt.s32.f32 %v3614
    %v3616 = vmul.f32 %v3615, 5.9604645e-08
    %vm3617 = vcmp.lt.f32.partialorder %v3616, %v3604
    %v3618 = vsel %vm3617, 1, 0
    %v3619 = vcvt.s32.f32 %v3618
    %v3620 = vmul.f32 %v3594, %v3619
    %v3621 = vmul.f32 %v3620, 1.442695
    %v3622 = vpow.pop %v3621
    %v3623 = vmul.f32 %v3622, %v3619
    %v3624 = vmul.f32 %v3623, %v1795
    %v3625 = vsel %vm1993, %v3624, 0.0
    %3626 = vadd.xlane.f32.xlu0 %v3625
    %v3627 = vpop.xlane.xlu0 %3626
    %v3628 = vadd.f32 %v3523, %v3627
    %v3630 = vsel %vm577, %v3364, 0
    %3632 = vmatprep.subr.mxu0 0.0
    %3633 = vmatpush1.xpose.msra.mxu0 %v3420
    %3634 = vmatprep.subr.mxu0 0.0
    %3635 = vmatpush1.xpose.msra.mxu0 0.0
    %3636 = vmatprep.subr.mxu0 0.0
    %3637 = vmatpush1.xpose.msra.mxu0 0.0
    %3638 = vmatprep.subr.mxu0 0.0
    %3639 = vmatpush1.xpose.msra.mxu0 0.0
    %3640 = vmatprep.subr.mxu0 0.0
    %3641 = vmatpush1.xpose.msra.mxu0 0.0
    %3642 = vmatprep.subr.mxu0 0.0
    %3643 = vmatpush1.xpose.msra.mxu0 0.0
    %3644 = vmatprep.subr.mxu0 0.0
    %3645 = vmatpush1.xpose.msra.mxu0 0.0
    %3646 = vmatprep.subr.mxu0 0.0
    %3647 = vmatpush1.xpose.msra.mxu0 0.0
    %3648 = vmatprep.subr.mxu0 0.0
    %3649 = vmatpush1.xpose.msra.mxu0 0.0
    %3650 = vmatprep.subr.mxu0 0.0
    %3651 = vmatpush1.xpose.msra.mxu0 0.0
    %3652 = vmatprep.subr.mxu0 0.0
    %3653 = vmatpush1.xpose.msra.mxu0 0.0
    %3654 = vmatprep.subr.mxu0 0.0
    %3655 = vmatpush1.xpose.msra.mxu0 0.0
    %3656 = vmatprep.subr.mxu0 0.0
    %3657 = vmatpush1.xpose.msra.mxu0 0.0
    %3658 = vmatprep.subr.mxu0 0.0
    %3659 = vmatpush1.xpose.msra.mxu0 0.0
    %3660 = vmatprep.subr.mxu0 0.0
    %3661 = vmatpush1.xpose.msra.mxu0 0.0
    %3662 = vmatprep.subr.mxu0 0.0
    %3663 = vmatpush1.xpose.msra.mxu0 0.0
    %3664 = vmatprep.subr.mxu0 0.0
    %3665 = vmatpush1.xpose.msra.mxu0 0.0
    %3666 = vmatprep.subr.mxu0 0.0
    %3667 = vmatpush1.xpose.msra.mxu0 0.0
    %3668 = vmatprep.subr.mxu0 0.0
    %3669 = vmatpush1.xpose.msra.mxu0 0.0
    %3670 = vmatprep.subr.mxu0 0.0
    %3671 = vmatpush1.xpose.msra.mxu0 0.0
    %3672 = vmatprep.subr.mxu0 0.0
    %3673 = vmatpush1.xpose.msra.mxu0 0.0
    %3674 = vmatprep.subr.mxu0 0.0
    %3675 = vmatpush1.xpose.msra.mxu0 0.0
    %3676 = vmatprep.subr.mxu0 0.0
    %3677 = vmatpush1.xpose.msra.mxu0 0.0
    %3678 = vmatprep.subr.mxu0 0.0
    %3679 = vmatpush1.xpose.msra.mxu0 0.0
    %3680 = vmatprep.subr.mxu0 0.0
    %3681 = vmatpush1.xpose.msra.mxu0 0.0
    %3682 = vmatprep.subr.mxu0 0.0
    %3683 = vmatpush1.xpose.msra.mxu0 0.0
    %3684 = vmatprep.subr.mxu0 0.0
    %3685 = vmatpush1.xpose.msra.mxu0 0.0
    %3686 = vmatprep.subr.mxu0 0.0
    %3687 = vmatpush1.xpose.msra.mxu0 0.0
    %3688 = vmatprep.subr.mxu0 0.0
    %3689 = vmatpush1.xpose.msra.mxu0 0.0
    %3690 = vmatprep.subr.mxu0 0.0
    %3691 = vmatpush1.xpose.msra.mxu0 0.0
    %3692 = vmatprep.subr.mxu0 0.0
    %3693 = vmatpush1.xpose.msra.mxu0 0.0
    %3694 = vmatprep.subr.mxu0 0.0
    %3695 = vmatpush1.xpose.msra.mxu0 0.0
    %3696 = vmatprep.mubr.f32.mxu0 0.0
    %3697 = vmatmul.mubr.f32.gmra.mrb[0].mxu0 %v3630
    %v3698 = vpop.f32.mrb[0].mxu0
    %v3699 = vadd.f32 %v1797, %v3698
    %v3700 = vpop.f32.mrb[0].mxu0
    %3701 = vdwg.mxu0
    %3702 = vmatprep.subr.mxu0 0.0
    %3703 = vmatpush1.xpose.msra.mxu0 %v3525
    %3704 = vmatprep.subr.mxu0 0.0
    %3705 = vmatpush1.xpose.msra.mxu0 0.0
    %3706 = vmatprep.subr.mxu0 0.0
    %3707 = vmatpush1.xpose.msra.mxu0 0.0
    %3708 = vmatprep.subr.mxu0 0.0
    %3709 = vmatpush1.xpose.msra.mxu0 0.0
    %3710 = vmatprep.subr.mxu0 0.0
    %3711 = vmatpush1.xpose.msra.mxu0 0.0
    %3712 = vmatprep.subr.mxu0 0.0
    %3713 = vmatpush1.xpose.msra.mxu0 0.0
    %3714 = vmatprep.subr.mxu0 0.0
    %3715 = vmatpush1.xpose.msra.mxu0 0.0
    %3716 = vmatprep.subr.mxu0 0.0
    %3717 = vmatpush1.xpose.msra.mxu0 0.0
    %3718 = vmatprep.subr.mxu0 0.0
    %3719 = vmatpush1.xpose.msra.mxu0 0.0
    %3720 = vmatprep.subr.mxu0 0.0
    %3721 = vmatpush1.xpose.msra.mxu0 0.0
    %3722 = vmatprep.subr.mxu0 0.0
    %3723 = vmatpush1.xpose.msra.mxu0 0.0
    %3724 = vmatprep.subr.mxu0 0.0
    %3725 = vmatpush1.xpose.msra.mxu0 0.0
    %3726 = vmatprep.subr.mxu0 0.0
    %3727 = vmatpush1.xpose.msra.mxu0 0.0
    %3728 = vmatprep.subr.mxu0 0.0
    %3729 = vmatpush1.xpose.msra.mxu0 0.0
    %3730 = vmatprep.subr.mxu0 0.0
    %3731 = vmatpush1.xpose.msra.mxu0 0.0
    %3732 = vmatprep.subr.mxu0 0.0
    %3733 = vmatpush1.xpose.msra.mxu0 0.0
    %3734 = vmatprep.subr.mxu0 0.0
    %3735 = vmatpush1.xpose.msra.mxu0 0.0
    %3736 = vmatprep.subr.mxu0 0.0
    %3737 = vmatpush1.xpose.msra.mxu0 0.0
    %3738 = vmatprep.subr.mxu0 0.0
    %3739 = vmatpush1.xpose.msra.mxu0 0.0
    %3740 = vmatprep.subr.mxu0 0.0
    %3741 = vmatpush1.xpose.msra.mxu0 0.0
    %3742 = vmatprep.subr.mxu0 0.0
    %3743 = vmatpush1.xpose.msra.mxu0 0.0
    %3744 = vmatprep.subr.mxu0 0.0
    %3745 = vmatpush1.xpose.msra.mxu0 0.0
    %3746 = vmatprep.subr.mxu0 0.0
    %3747 = vmatpush1.xpose.msra.mxu0 0.0
    %3748 = vmatprep.subr.mxu0 0.0
    %3749 = vmatpush1.xpose.msra.mxu0 0.0
    %3750 = vmatprep.subr.mxu0 0.0
    %3751 = vmatpush1.xpose.msra.mxu0 0.0
    %3752 = vmatprep.subr.mxu0 0.0
    %3753 = vmatpush1.xpose.msra.mxu0 0.0
    %3754 = vmatprep.subr.mxu0 0.0
    %3755 = vmatpush1.xpose.msra.mxu0 0.0
    %3756 = vmatprep.subr.mxu0 0.0
    %3757 = vmatpush1.xpose.msra.mxu0 0.0
    %3758 = vmatprep.subr.mxu0 0.0
    %3759 = vmatpush1.xpose.msra.mxu0 0.0
    %3760 = vmatprep.subr.mxu0 0.0
    %3761 = vmatpush1.xpose.msra.mxu0 0.0
    %3762 = vmatprep.subr.mxu0 0.0
    %3763 = vmatpush1.xpose.msra.mxu0 0.0
    %3764 = vmatprep.subr.mxu0 0.0
    %3765 = vmatpush1.xpose.msra.mxu0 0.0
    %3766 = vmatprep.mubr.f32.mxu0 0.0
    %3767 = vmatmul.mubr.f32.gmra.mrb[0].mxu0 %v3630
    %v3768 = vpop.f32.mrb[0].mxu0
    %v3769 = vadd.f32 %v1797, %v3768
    %v3770 = vpop.f32.mrb[0].mxu0
    %3771 = vdwg.mxu0
    %v3772 = vsel %vm1993, %v3699, -inf
    %3773 = vmax.xlane.f32.xlu0 %v3772
    %v3774 = vpop.xlane.xlu0 %3773
    %v3775 = vsel %vm1993, %v3769, -inf
    %3776 = vmax.xlane.f32.xlu0 %v3775
    %v3777 = vpop.xlane.xlu0 %3776
    %v3778 = vmax.f32 %v3774, %v3777
    %v3779 = vsub.f32 %v3699, %v3778
    %v3780 = vmul.f32 %v3779, 1.442695
    %v3781 = vpow.pop %v3780
    %v3782 = vsub.f32 %v3769, %v3778
    %v3783 = vmul.f32 %v3782, 1.442695
    %v3784 = vpow.pop %v3783
    %v3785 = vsel %vm1993, %v3781, 0.0
    %3786 = vadd.xlane.f32.xlu0 %v3785
    %v3787 = vpop.xlane.xlu0 %3786
    %v3788 = vsel %vm1993, %v3784, 0.0
    %3789 = vadd.xlane.f32.xlu0 %v3788
    %v3790 = vpop.xlane.xlu0 %3789
    %v3791 = vadd.f32 %v3787, %v3790
    %v3792 = vmul.f32 %v3781, %v1794
    %v3793 = vsel %vm1993, %v3792, 0.0
    %3794 = vadd.xlane.f32.xlu0 %v3793
    %v3795 = vpop.xlane.xlu0 %3794
    %v3796 = vrcp.pop %v3791
    %v3797 = vmul.f32 %v3795, %v3796
    %v3798 = vmul.f32 %v3784, %v1794
    %v3799 = vsel %vm1993, %v3798, 0.0
    %3800 = vadd.xlane.f32.xlu0 %v3799
    %v3801 = vpop.xlane.xlu0 %3800
    %v3802 = vmul.f32 %v3801, %v3796
    %vm3803 = vcmp.gt.f32.partialorder %v3797, 0.0
    %v3804 = vsel %vm3803, 1, 0
    %v3805 = vcvt.s32.f32 %v3804
    %vm3806 = vcmp.gt.f32.partialorder %v3802, 0.0
    %v3807 = vsel %vm3806, 1, 0
    %v3808 = vcvt.s32.f32 %v3807
    %v3809 = vmul.f32 %v1812, 1.442695
    %v3810 = vpow.pop %v3809
    %v3811 = vmul.f32 %v3382, 1.442695
    %v3812 = vpow.pop %v3811
    %v3813 = vmul.f32 %v3805, %v3812
    %v3814 = vadd.f32 %v3810, %v3813
    %v3815 = vmul.f32 %v3386, 1.442695
    %v3816 = vpow.pop %v3815
    %v3817 = vmul.f32 %v3808, %v3816
    %v3818 = vadd.f32 %v3814, %v3817
    %v3819 = vadd.f32 %v3818, %v3628
    %v3820 = vlog2.pop %v3819
    %v3821 = vmul.f32 %v3820, 0.6931472
    %v3822 = vadd.f32 %v3805, 1.0
    %v3823 = vadd.f32 %v3822, %v3808
    %v3824 = vmul.f32 %v3823, %v3821
    %v3825 = vmul.f32 %v3805, %v3382
    %v3826 = vadd.f32 %v1812, %v3825
    %v3827 = vmul.f32 %v3808, %v3386
    %v3828 = vadd.f32 %v3826, %v3827
    %v3829 = vsub.f32 %v3824, %v3828
    %v3830 = vsel %vm2565, %v3829, 0.0
    %3831 = vadd.xlane.f32.xlu0 %v3830
    %v3832 = vpop.xlane.xlu0 %3831
    %v3833 = vrot.slane %v3832, 4
    %v3834 = vadd.f32 %v3832, %v3833
    %v3835 = vrot.slane %v3834, 2
    %v3836 = vadd.f32 %v3834, %v3835
    %v3837 = vrot.slane %v3836, 1
    %v3838 = vadd.f32 %v3836, %v3837
    %s3839 = vtos %v3838
    %v3840 = vrcp.pop 8.0
    %s3841 = vtos %v3840
    %s3842 = smul.f32 %s3839, %s3841
    %v3843 = vmul.f32 %v651, %v651
    %v3844 = vsel %vm577, %v3843, 0.0
    %3845 = vadd.xlane.f32.xlu0 %v3844
    %v3846 = vpop.xlane.xlu0 %3845
    %v3847 = vmax.f32 %v3846, 1e-24
    %v3848 = vrsqrt.pop %v3847
    %v3849 = vmul.f32 %v651, %v3848
    %v3850 = vmul.f32 %v1703, %v1703
    %v3851 = vsel %vm577, %v3850, 0.0
    %3852 = vadd.xlane.f32.xlu0 %v3851
    %v3853 = vpop.xlane.xlu0 %3852
    %v3854 = vmax.f32 %v3853, 1e-24
    %v3855 = vrsqrt.pop %v3854
    %v3856 = vmul.f32 %v1703, %v3855
    %v3857 = vmul.f32 %v1784, %v1784
    %v3858 = vsel %vm577, %v3857, 0.0
    %3859 = vadd.xlane.f32.xlu0 %v3858
    %v3860 = vpop.xlane.xlu0 %3859
    %v3861 = vmax.f32 %v3860, 1e-24
    %v3862 = vrsqrt.pop %v3861
    %v3863 = vmul.f32 %v1784, %v3862
    %v3864 = vmul.f32 %v2587, %v3856
    %v3865 = vsel %vm577, %v3864, 0.0
    %3866 = vadd.xlane.f32.xlu0 %v3865
    %v3867 = vpop.xlane.xlu0 %3866
    %v3868 = vmul.f32 %v2587, %v3863
    %v3869 = vsel %vm577, %v3868, 0.0
    %3870 = vadd.xlane.f32.xlu0 %v3869
    %v3871 = vpop.xlane.xlu0 %3870
    %v3872 = vsub.f32 %v2914, %v2595
    %v3873 = vsub.f32 %v3872, 0.1
    %v3874 = vmul.f32 %v3873, -1.0
    %v3875 = vmul.f32 %v3874, %v3873
    %v3876 = vmul.f32 %v3875, 1.442695
    %v3877 = vpow.pop %v3876
    %v3878 = vmax.f32 %v3877, 0.0
    %v3879 = vmin.f32 %v3878, 0.999
    %v3880 = vadd.s32 %v1971, 3428989595
    %v3881 = vshrl.u32 %v3880, 16
    %v3882 = vxor.u32 %v3880, %v3881
    %v3883 = vmul.u32 %v3882, 2146121005
    %v3884 = vshrl.u32 %v3883, 15
    %v3885 = vxor.u32 %v3883, %v3884
    %v3886 = vmul.u32 %v3885, 2221713035
    %v3887 = vshrl.u32 %v3886, 16
    %v3888 = vxor.u32 %v3886, %v3887
    %v3889 = vshrl.u32 %v3888, 8
    %v3890 = vcvt.s32.f32 %v3889
    %v3891 = vmul.f32 %v3890, 5.9604645e-08
    %vm3892 = vcmp.lt.f32.partialorder %v3891, %v3879
    %v3893 = vsel %vm3892, 1, 0
    %v3894 = vcvt.s32.f32 %v3893
    %v3895 = vmul.f32 %v2914, %v3894
    %v3896 = vmul.f32 %v3895, 1.442695
    %v3897 = vpow.pop %v3896
    %v3898 = vmul.f32 %v3897, %v3894
    %v3899 = vmul.f32 %v3898, %v1795
    %v3900 = vsel %vm1993, %v3899, 0.0
    %3901 = vadd.xlane.f32.xlu0 %v3900
    %v3902 = vpop.xlane.xlu0 %3901
    %v3903 = vadd.f32 %v3902, 0.0
    %v3905 = vsel %vm577, %v3856, 0
    %3907 = vmatprep.subr.mxu0 0.0
    %3908 = vmatpush1.xpose.msra.mxu0 %v3905
    %3909 = vmatprep.subr.mxu0 0.0
    %3910 = vmatpush1.xpose.msra.mxu0 0.0
    %3911 = vmatprep.subr.mxu0 0.0
    %3912 = vmatpush1.xpose.msra.mxu0 0.0
    %3913 = vmatprep.subr.mxu0 0.0
    %3914 = vmatpush1.xpose.msra.mxu0 0.0
    %3915 = vmatprep.subr.mxu0 0.0
    %3916 = vmatpush1.xpose.msra.mxu0 0.0
    %3917 = vmatprep.subr.mxu0 0.0
    %3918 = vmatpush1.xpose.msra.mxu0 0.0
    %3919 = vmatprep.subr.mxu0 0.0
    %3920 = vmatpush1.xpose.msra.mxu0 0.0
    %3921 = vmatprep.subr.mxu0 0.0
    %3922 = vmatpush1.xpose.msra.mxu0 0.0
    %3923 = vmatprep.subr.mxu0 0.0
    %3924 = vmatpush1.xpose.msra.mxu0 0.0
    %3925 = vmatprep.subr.mxu0 0.0
    %3926 = vmatpush1.xpose.msra.mxu0 0.0
    %3927 = vmatprep.subr.mxu0 0.0
    %3928 = vmatpush1.xpose.msra.mxu0 0.0
    %3929 = vmatprep.subr.mxu0 0.0
    %3930 = vmatpush1.xpose.msra.mxu0 0.0
    %3931 = vmatprep.subr.mxu0 0.0
    %3932 = vmatpush1.xpose.msra.mxu0 0.0
    %3933 = vmatprep.subr.mxu0 0.0
    %3934 = vmatpush1.xpose.msra.mxu0 0.0
    %3935 = vmatprep.subr.mxu0 0.0
    %3936 = vmatpush1.xpose.msra.mxu0 0.0
    %3937 = vmatprep.subr.mxu0 0.0
    %3938 = vmatpush1.xpose.msra.mxu0 0.0
    %3939 = vmatprep.subr.mxu0 0.0
    %3940 = vmatpush1.xpose.msra.mxu0 0.0
    %3941 = vmatprep.subr.mxu0 0.0
    %3942 = vmatpush1.xpose.msra.mxu0 0.0
    %3943 = vmatprep.subr.mxu0 0.0
    %3944 = vmatpush1.xpose.msra.mxu0 0.0
    %3945 = vmatprep.subr.mxu0 0.0
    %3946 = vmatpush1.xpose.msra.mxu0 0.0
    %3947 = vmatprep.subr.mxu0 0.0
    %3948 = vmatpush1.xpose.msra.mxu0 0.0
    %3949 = vmatprep.subr.mxu0 0.0
    %3950 = vmatpush1.xpose.msra.mxu0 0.0
    %3951 = vmatprep.subr.mxu0 0.0
    %3952 = vmatpush1.xpose.msra.mxu0 0.0
    %3953 = vmatprep.subr.mxu0 0.0
    %3954 = vmatpush1.xpose.msra.mxu0 0.0
    %3955 = vmatprep.subr.mxu0 0.0
    %3956 = vmatpush1.xpose.msra.mxu0 0.0
    %3957 = vmatprep.subr.mxu0 0.0
    %3958 = vmatpush1.xpose.msra.mxu0 0.0
    %3959 = vmatprep.subr.mxu0 0.0
    %3960 = vmatpush1.xpose.msra.mxu0 0.0
    %3961 = vmatprep.subr.mxu0 0.0
    %3962 = vmatpush1.xpose.msra.mxu0 0.0
    %3963 = vmatprep.subr.mxu0 0.0
    %3964 = vmatpush1.xpose.msra.mxu0 0.0
    %3965 = vmatprep.subr.mxu0 0.0
    %3966 = vmatpush1.xpose.msra.mxu0 0.0
    %3967 = vmatprep.subr.mxu0 0.0
    %3968 = vmatpush1.xpose.msra.mxu0 0.0
    %3969 = vmatprep.subr.mxu0 0.0
    %3970 = vmatpush1.xpose.msra.mxu0 0.0
    %3971 = vmatprep.mubr.f32.mxu0 0.0
    %3972 = vmatmul.mubr.f32.gmra.mrb[0].mxu0 %v2670
    %v3973 = vpop.f32.mrb[0].mxu0
    %v3974 = vadd.f32 0.0, %v3973
    %v3975 = vpop.f32.mrb[0].mxu0
    %3976 = vdwg.mxu0
    %v3977 = vsub.f32 %v3974, %v2595
    %v3978 = vsub.f32 %v3977, 0.1
    %v3979 = vmul.f32 %v3978, -1.0
    %v3980 = vmul.f32 %v3979, %v3978
    %v3981 = vmul.f32 %v3980, 1.442695
    %v3982 = vpow.pop %v3981
    %v3983 = vmax.f32 %v3982, 0.0
    %v3984 = vmin.f32 %v3983, 0.999
    %v3985 = vadd.s32 %v1971, 1788458060
    %v3986 = vshrl.u32 %v3985, 16
    %v3987 = vxor.u32 %v3985, %v3986
    %v3988 = vmul.u32 %v3987, 2146121005
    %v3989 = vshrl.u32 %v3988, 15
    %v3990 = vxor.u32 %v3988, %v3989
    %v3991 = vmul.u32 %v3990, 2221713035
    %v3992 = vshrl.u32 %v3991, 16
    %v3993 = vxor.u32 %v3991, %v3992
    %v3994 = vshrl.u32 %v3993, 8
    %v3995 = vcvt.s32.f32 %v3994
    %v3996 = vmul.f32 %v3995, 5.9604645e-08
    %vm3997 = vcmp.lt.f32.partialorder %v3996, %v3984
    %v3998 = vsel %vm3997, 1, 0
    %v3999 = vcvt.s32.f32 %v3998
    %v4000 = vmul.f32 %v3974, %v3999
    %v4001 = vmul.f32 %v4000, 1.442695
    %v4002 = vpow.pop %v4001
    %v4003 = vmul.f32 %v4002, %v3999
    %v4004 = vmul.f32 %v4003, %v1795
    %v4005 = vsel %vm1993, %v4004, 0.0
    %4006 = vadd.xlane.f32.xlu0 %v4005
    %v4007 = vpop.xlane.xlu0 %4006
    %v4008 = vadd.f32 %v3903, %v4007
    %v4010 = vsel %vm577, %v3863, 0
    %4012 = vmatprep.subr.mxu0 0.0
    %4013 = vmatpush1.xpose.msra.mxu0 %v4010
    %4014 = vmatprep.subr.mxu0 0.0
    %4015 = vmatpush1.xpose.msra.mxu0 0.0
    %4016 = vmatprep.subr.mxu0 0.0
    %4017 = vmatpush1.xpose.msra.mxu0 0.0
    %4018 = vmatprep.subr.mxu0 0.0
    %4019 = vmatpush1.xpose.msra.mxu0 0.0
    %4020 = vmatprep.subr.mxu0 0.0
    %4021 = vmatpush1.xpose.msra.mxu0 0.0
    %4022 = vmatprep.subr.mxu0 0.0
    %4023 = vmatpush1.xpose.msra.mxu0 0.0
    %4024 = vmatprep.subr.mxu0 0.0
    %4025 = vmatpush1.xpose.msra.mxu0 0.0
    %4026 = vmatprep.subr.mxu0 0.0
    %4027 = vmatpush1.xpose.msra.mxu0 0.0
    %4028 = vmatprep.subr.mxu0 0.0
    %4029 = vmatpush1.xpose.msra.mxu0 0.0
    %4030 = vmatprep.subr.mxu0 0.0
    %4031 = vmatpush1.xpose.msra.mxu0 0.0
    %4032 = vmatprep.subr.mxu0 0.0
    %4033 = vmatpush1.xpose.msra.mxu0 0.0
    %4034 = vmatprep.subr.mxu0 0.0
    %4035 = vmatpush1.xpose.msra.mxu0 0.0
    %4036 = vmatprep.subr.mxu0 0.0
    %4037 = vmatpush1.xpose.msra.mxu0 0.0
    %4038 = vmatprep.subr.mxu0 0.0
    %4039 = vmatpush1.xpose.msra.mxu0 0.0
    %4040 = vmatprep.subr.mxu0 0.0
    %4041 = vmatpush1.xpose.msra.mxu0 0.0
    %4042 = vmatprep.subr.mxu0 0.0
    %4043 = vmatpush1.xpose.msra.mxu0 0.0
    %4044 = vmatprep.subr.mxu0 0.0
    %4045 = vmatpush1.xpose.msra.mxu0 0.0
    %4046 = vmatprep.subr.mxu0 0.0
    %4047 = vmatpush1.xpose.msra.mxu0 0.0
    %4048 = vmatprep.subr.mxu0 0.0
    %4049 = vmatpush1.xpose.msra.mxu0 0.0
    %4050 = vmatprep.subr.mxu0 0.0
    %4051 = vmatpush1.xpose.msra.mxu0 0.0
    %4052 = vmatprep.subr.mxu0 0.0
    %4053 = vmatpush1.xpose.msra.mxu0 0.0
    %4054 = vmatprep.subr.mxu0 0.0
    %4055 = vmatpush1.xpose.msra.mxu0 0.0
    %4056 = vmatprep.subr.mxu0 0.0
    %4057 = vmatpush1.xpose.msra.mxu0 0.0
    %4058 = vmatprep.subr.mxu0 0.0
    %4059 = vmatpush1.xpose.msra.mxu0 0.0
    %4060 = vmatprep.subr.mxu0 0.0
    %4061 = vmatpush1.xpose.msra.mxu0 0.0
    %4062 = vmatprep.subr.mxu0 0.0
    %4063 = vmatpush1.xpose.msra.mxu0 0.0
    %4064 = vmatprep.subr.mxu0 0.0
    %4065 = vmatpush1.xpose.msra.mxu0 0.0
    %4066 = vmatprep.subr.mxu0 0.0
    %4067 = vmatpush1.xpose.msra.mxu0 0.0
    %4068 = vmatprep.subr.mxu0 0.0
    %4069 = vmatpush1.xpose.msra.mxu0 0.0
    %4070 = vmatprep.subr.mxu0 0.0
    %4071 = vmatpush1.xpose.msra.mxu0 0.0
    %4072 = vmatprep.subr.mxu0 0.0
    %4073 = vmatpush1.xpose.msra.mxu0 0.0
    %4074 = vmatprep.subr.mxu0 0.0
    %4075 = vmatpush1.xpose.msra.mxu0 0.0
    %4076 = vmatprep.mubr.f32.mxu0 0.0
    %4077 = vmatmul.mubr.f32.gmra.mrb[0].mxu0 %v2670
    %v4078 = vpop.f32.mrb[0].mxu0
    %v4079 = vadd.f32 0.0, %v4078
    %v4080 = vpop.f32.mrb[0].mxu0
    %4081 = vdwg.mxu0
    %v4082 = vsub.f32 %v4079, %v2595
    %v4083 = vsub.f32 %v4082, 0.1
    %v4084 = vmul.f32 %v4083, -1.0
    %v4085 = vmul.f32 %v4084, %v4083
    %v4086 = vmul.f32 %v4085, 1.442695
    %v4087 = vpow.pop %v4086
    %v4088 = vmax.f32 %v4087, 0.0
    %v4089 = vmin.f32 %v4088, 0.999
    %v4090 = vadd.s32 %v1971, 147926525
    %v4091 = vshrl.u32 %v4090, 16
    %v4092 = vxor.u32 %v4090, %v4091
    %v4093 = vmul.u32 %v4092, 2146121005
    %v4094 = vshrl.u32 %v4093, 15
    %v4095 = vxor.u32 %v4093, %v4094
    %v4096 = vmul.u32 %v4095, 2221713035
    %v4097 = vshrl.u32 %v4096, 16
    %v4098 = vxor.u32 %v4096, %v4097
    %v4099 = vshrl.u32 %v4098, 8
    %v4100 = vcvt.s32.f32 %v4099
    %v4101 = vmul.f32 %v4100, 5.9604645e-08
    %vm4102 = vcmp.lt.f32.partialorder %v4101, %v4089
    %v4103 = vsel %vm4102, 1, 0
    %v4104 = vcvt.s32.f32 %v4103
    %v4105 = vmul.f32 %v4079, %v4104
    %v4106 = vmul.f32 %v4105, 1.442695
    %v4107 = vpow.pop %v4106
    %v4108 = vmul.f32 %v4107, %v4104
    %v4109 = vmul.f32 %v4108, %v1795
    %v4110 = vsel %vm1993, %v4109, 0.0
    %4111 = vadd.xlane.f32.xlu0 %v4110
    %v4112 = vpop.xlane.xlu0 %4111
    %v4113 = vadd.f32 %v4008, %v4112
    %v4115 = vsel %vm577, %v3849, 0
    %4117 = vmatprep.subr.mxu0 0.0
    %4118 = vmatpush1.xpose.msra.mxu0 %v3905
    %4119 = vmatprep.subr.mxu0 0.0
    %4120 = vmatpush1.xpose.msra.mxu0 0.0
    %4121 = vmatprep.subr.mxu0 0.0
    %4122 = vmatpush1.xpose.msra.mxu0 0.0
    %4123 = vmatprep.subr.mxu0 0.0
    %4124 = vmatpush1.xpose.msra.mxu0 0.0
    %4125 = vmatprep.subr.mxu0 0.0
    %4126 = vmatpush1.xpose.msra.mxu0 0.0
    %4127 = vmatprep.subr.mxu0 0.0
    %4128 = vmatpush1.xpose.msra.mxu0 0.0
    %4129 = vmatprep.subr.mxu0 0.0
    %4130 = vmatpush1.xpose.msra.mxu0 0.0
    %4131 = vmatprep.subr.mxu0 0.0
    %4132 = vmatpush1.xpose.msra.mxu0 0.0
    %4133 = vmatprep.subr.mxu0 0.0
    %4134 = vmatpush1.xpose.msra.mxu0 0.0
    %4135 = vmatprep.subr.mxu0 0.0
    %4136 = vmatpush1.xpose.msra.mxu0 0.0
    %4137 = vmatprep.subr.mxu0 0.0
    %4138 = vmatpush1.xpose.msra.mxu0 0.0
    %4139 = vmatprep.subr.mxu0 0.0
    %4140 = vmatpush1.xpose.msra.mxu0 0.0
    %4141 = vmatprep.subr.mxu0 0.0
    %4142 = vmatpush1.xpose.msra.mxu0 0.0
    %4143 = vmatprep.subr.mxu0 0.0
    %4144 = vmatpush1.xpose.msra.mxu0 0.0
    %4145 = vmatprep.subr.mxu0 0.0
    %4146 = vmatpush1.xpose.msra.mxu0 0.0
    %4147 = vmatprep.subr.mxu0 0.0
    %4148 = vmatpush1.xpose.msra.mxu0 0.0
    %4149 = vmatprep.subr.mxu0 0.0
    %4150 = vmatpush1.xpose.msra.mxu0 0.0
    %4151 = vmatprep.subr.mxu0 0.0
    %4152 = vmatpush1.xpose.msra.mxu0 0.0
    %4153 = vmatprep.subr.mxu0 0.0
    %4154 = vmatpush1.xpose.msra.mxu0 0.0
    %4155 = vmatprep.subr.mxu0 0.0
    %4156 = vmatpush1.xpose.msra.mxu0 0.0
    %4157 = vmatprep.subr.mxu0 0.0
    %4158 = vmatpush1.xpose.msra.mxu0 0.0
    %4159 = vmatprep.subr.mxu0 0.0
    %4160 = vmatpush1.xpose.msra.mxu0 0.0
    %4161 = vmatprep.subr.mxu0 0.0
    %4162 = vmatpush1.xpose.msra.mxu0 0.0
    %4163 = vmatprep.subr.mxu0 0.0
    %4164 = vmatpush1.xpose.msra.mxu0 0.0
    %4165 = vmatprep.subr.mxu0 0.0
    %4166 = vmatpush1.xpose.msra.mxu0 0.0
    %4167 = vmatprep.subr.mxu0 0.0
    %4168 = vmatpush1.xpose.msra.mxu0 0.0
    %4169 = vmatprep.subr.mxu0 0.0
    %4170 = vmatpush1.xpose.msra.mxu0 0.0
    %4171 = vmatprep.subr.mxu0 0.0
    %4172 = vmatpush1.xpose.msra.mxu0 0.0
    %4173 = vmatprep.subr.mxu0 0.0
    %4174 = vmatpush1.xpose.msra.mxu0 0.0
    %4175 = vmatprep.subr.mxu0 0.0
    %4176 = vmatpush1.xpose.msra.mxu0 0.0
    %4177 = vmatprep.subr.mxu0 0.0
    %4178 = vmatpush1.xpose.msra.mxu0 0.0
    %4179 = vmatprep.subr.mxu0 0.0
    %4180 = vmatpush1.xpose.msra.mxu0 0.0
    %4181 = vmatprep.mubr.f32.mxu0 0.0
    %4182 = vmatmul.mubr.f32.gmra.mrb[0].mxu0 %v4115
    %v4183 = vpop.f32.mrb[0].mxu0
    %v4184 = vadd.f32 %v1797, %v4183
    %v4185 = vpop.f32.mrb[0].mxu0
    %4186 = vdwg.mxu0
    %4187 = vmatprep.subr.mxu0 0.0
    %4188 = vmatpush1.xpose.msra.mxu0 %v4010
    %4189 = vmatprep.subr.mxu0 0.0
    %4190 = vmatpush1.xpose.msra.mxu0 0.0
    %4191 = vmatprep.subr.mxu0 0.0
    %4192 = vmatpush1.xpose.msra.mxu0 0.0
    %4193 = vmatprep.subr.mxu0 0.0
    %4194 = vmatpush1.xpose.msra.mxu0 0.0
    %4195 = vmatprep.subr.mxu0 0.0
    %4196 = vmatpush1.xpose.msra.mxu0 0.0
    %4197 = vmatprep.subr.mxu0 0.0
    %4198 = vmatpush1.xpose.msra.mxu0 0.0
    %4199 = vmatprep.subr.mxu0 0.0
    %4200 = vmatpush1.xpose.msra.mxu0 0.0
    %4201 = vmatprep.subr.mxu0 0.0
    %4202 = vmatpush1.xpose.msra.mxu0 0.0
    %4203 = vmatprep.subr.mxu0 0.0
    %4204 = vmatpush1.xpose.msra.mxu0 0.0
    %4205 = vmatprep.subr.mxu0 0.0
    %4206 = vmatpush1.xpose.msra.mxu0 0.0
    %4207 = vmatprep.subr.mxu0 0.0
    %4208 = vmatpush1.xpose.msra.mxu0 0.0
    %4209 = vmatprep.subr.mxu0 0.0
    %4210 = vmatpush1.xpose.msra.mxu0 0.0
    %4211 = vmatprep.subr.mxu0 0.0
    %4212 = vmatpush1.xpose.msra.mxu0 0.0
    %4213 = vmatprep.subr.mxu0 0.0
    %4214 = vmatpush1.xpose.msra.mxu0 0.0
    %4215 = vmatprep.subr.mxu0 0.0
    %4216 = vmatpush1.xpose.msra.mxu0 0.0
    %4217 = vmatprep.subr.mxu0 0.0
    %4218 = vmatpush1.xpose.msra.mxu0 0.0
    %4219 = vmatprep.subr.mxu0 0.0
    %4220 = vmatpush1.xpose.msra.mxu0 0.0
    %4221 = vmatprep.subr.mxu0 0.0
    %4222 = vmatpush1.xpose.msra.mxu0 0.0
    %4223 = vmatprep.subr.mxu0 0.0
    %4224 = vmatpush1.xpose.msra.mxu0 0.0
    %4225 = vmatprep.subr.mxu0 0.0
    %4226 = vmatpush1.xpose.msra.mxu0 0.0
    %4227 = vmatprep.subr.mxu0 0.0
    %4228 = vmatpush1.xpose.msra.mxu0 0.0
    %4229 = vmatprep.subr.mxu0 0.0
    %4230 = vmatpush1.xpose.msra.mxu0 0.0
    %4231 = vmatprep.subr.mxu0 0.0
    %4232 = vmatpush1.xpose.msra.mxu0 0.0
    %4233 = vmatprep.subr.mxu0 0.0
    %4234 = vmatpush1.xpose.msra.mxu0 0.0
    %4235 = vmatprep.subr.mxu0 0.0
    %4236 = vmatpush1.xpose.msra.mxu0 0.0
    %4237 = vmatprep.subr.mxu0 0.0
    %4238 = vmatpush1.xpose.msra.mxu0 0.0
    %4239 = vmatprep.subr.mxu0 0.0
    %4240 = vmatpush1.xpose.msra.mxu0 0.0
    %4241 = vmatprep.subr.mxu0 0.0
    %4242 = vmatpush1.xpose.msra.mxu0 0.0
    %4243 = vmatprep.subr.mxu0 0.0
    %4244 = vmatpush1.xpose.msra.mxu0 0.0
    %4245 = vmatprep.subr.mxu0 0.0
    %4246 = vmatpush1.xpose.msra.mxu0 0.0
    %4247 = vmatprep.subr.mxu0 0.0
    %4248 = vmatpush1.xpose.msra.mxu0 0.0
    %4249 = vmatprep.subr.mxu0 0.0
    %4250 = vmatpush1.xpose.msra.mxu0 0.0
    %4251 = vmatprep.mubr.f32.mxu0 0.0
    %4252 = vmatmul.mubr.f32.gmra.mrb[0].mxu0 %v4115
    %v4253 = vpop.f32.mrb[0].mxu0
    %v4254 = vadd.f32 %v1797, %v4253
    %v4255 = vpop.f32.mrb[0].mxu0
    %4256 = vdwg.mxu0
    %v4257 = vsel %vm1993, %v4184, -inf
    %4258 = vmax.xlane.f32.xlu0 %v4257
    %v4259 = vpop.xlane.xlu0 %4258
    %v4260 = vsel %vm1993, %v4254, -inf
    %4261 = vmax.xlane.f32.xlu0 %v4260
    %v4262 = vpop.xlane.xlu0 %4261
    %v4263 = vmax.f32 %v4259, %v4262
    %v4264 = vsub.f32 %v4184, %v4263
    %v4265 = vmul.f32 %v4264, 1.442695
    %v4266 = vpow.pop %v4265
    %v4267 = vsub.f32 %v4254, %v4263
    %v4268 = vmul.f32 %v4267, 1.442695
    %v4269 = vpow.pop %v4268
    %v4270 = vsel %vm1993, %v4266, 0.0
    %4271 = vadd.xlane.f32.xlu0 %v4270
    %v4272 = vpop.xlane.xlu0 %4271
    %v4273 = vsel %vm1993, %v4269, 0.0
    %4274 = vadd.xlane.f32.xlu0 %v4273
    %v4275 = vpop.xlane.xlu0 %4274
    %v4276 = vadd.f32 %v4272, %v4275
    %v4277 = vmul.f32 %v4266, %v1794
    %v4278 = vsel %vm1993, %v4277, 0.0
    %4279 = vadd.xlane.f32.xlu0 %v4278
    %v4280 = vpop.xlane.xlu0 %4279
    %v4281 = vrcp.pop %v4276
    %v4282 = vmul.f32 %v4280, %v4281
    %v4283 = vmul.f32 %v4269, %v1794
    %v4284 = vsel %vm1993, %v4283, 0.0
    %4285 = vadd.xlane.f32.xlu0 %v4284
    %v4286 = vpop.xlane.xlu0 %4285
    %v4287 = vmul.f32 %v4286, %v4281
    %vm4288 = vcmp.gt.f32.partialorder %v4282, 0.0
    %v4289 = vsel %vm4288, 1, 0
    %v4290 = vcvt.s32.f32 %v4289
    %vm4291 = vcmp.gt.f32.partialorder %v4287, 0.0
    %v4292 = vsel %vm4291, 1, 0
    %v4293 = vcvt.s32.f32 %v4292
    %v4294 = vmul.f32 %v2595, 1.442695
    %v4295 = vpow.pop %v4294
    %v4296 = vmul.f32 %v3867, 1.442695
    %v4297 = vpow.pop %v4296
    %v4298 = vmul.f32 %v4290, %v4297
    %v4299 = vadd.f32 %v4295, %v4298
    %v4300 = vmul.f32 %v3871, 1.442695
    %v4301 = vpow.pop %v4300
    %v4302 = vmul.f32 %v4293, %v4301
    %v4303 = vadd.f32 %v4299, %v4302
    %v4304 = vadd.f32 %v4303, %v4113
    %v4305 = vlog2.pop %v4304
    %v4306 = vmul.f32 %v4305, 0.6931472
    %v4307 = vadd.f32 %v4290, 1.0
    %v4308 = vadd.f32 %v4307, %v4293
    %v4309 = vmul.f32 %v4308, %v4306
    %v4310 = vmul.f32 %v4290, %v3867
    %v4311 = vadd.f32 %v2595, %v4310
    %v4312 = vmul.f32 %v4293, %v3871
    %v4313 = vadd.f32 %v4311, %v4312
    %v4314 = vsub.f32 %v4309, %v4313
    %v4315 = vsel %vm2565, %v4314, 0.0
    %4316 = vadd.xlane.f32.xlu0 %v4315
    %v4317 = vpop.xlane.xlu0 %4316
    %v4318 = vrot.slane %v4317, 4
    %v4319 = vadd.f32 %v4317, %v4318
    %v4320 = vrot.slane %v4319, 2
    %v4321 = vadd.f32 %v4319, %v4320
    %v4322 = vrot.slane %v4321, 1
    %v4323 = vadd.f32 %v4321, %v4322
    %s4324 = vtos %v4323
    %v4325 = vrcp.pop 8.0
    %s4326 = vtos %v4325
    %s4327 = smul.f32 %s4324, %s4326
    %s4328 = sadd.f32 %s3842, %s4327
    %v4329 = vrcp.pop 2.0
    %s4330 = vtos %v4329
    %s4331 = smul.f32 %s4328, %s4330
    %v4332 = vrcp.pop 2.0
    %s4333 = vtos %v4332
    %s4334 = smul.f32 %s3357, %s4333
    %s4335 = smul.f32 %s4334, 0.5
    %s4336 = sadd.f32 %s4331, %s4335
    %s4337 = scalar_lea.smem [#allocation3], 0
    %4338 = sst [smem:[%s4337]] %s4336
    // Predicated region
    $region38: #{_psm_forward_jit.1} parent=1 // pred_check
      _
    $region39: #{_psm_forward_jit.1} parent=1 // pred_check_branch
      %4340 = sbr.rel (0) target = $region41
    $region40: #{_psm_forward_jit.1} parent=1 // pred_region
      %s4342 = ssub.s32 16, 16
      %4343 = vsyncadd [#allocation4], %s4342
      %4346 = dma.smem_to_hbm [#allocation3], 16, %s9, [#allocation4]
    $region41: #{_psm_forward_jit.1} parent=1 // pred_fallthru
      _
    // Predicated region
    $region42: #{_psm_forward_jit.1} parent=1 // pred_check
      _
    $region43: #{_psm_forward_jit.1} parent=1 // pred_check_branch
      %4348 = sbr.rel (0) target = $region45
    $region44: #{_psm_forward_jit.1} parent=1 // pred_region
      %4349 = dma.done [#allocation4], 16
    $region45: #{_psm_forward_jit.1} parent=1 // pred_fallthru
      _
    %4350 = sfence
    %4351 = vsyncpa [#allocation4], 1

</llo_original>
